<compile_context>
chip_gen: v7x
topology: tpu7x:2x2x1
jax: 0.10.0
libtpu: 0.0.40
codegen_flags: <defaults>
</compile_context>

<pallas_src>
import numpy as np
import jax
import jax.numpy as jnp
from jax.experimental import pallas as pl
from jax.experimental.pallas import tpu as pltpu

LANE = 128
SUBLANE = 8


def _round_up(n, m):
    return ((n + m - 1) // m) * m


def _make_kernel(T, Bp, D, Dp, future, hids, gss, offs):
    """Single-invocation kernel; all sizes are static Python ints."""
    H1, H2, H3 = hids
    G1, G2, G3 = gss
    (o_w1i, o_w1h, o_w2i, o_w2h, o_w3i, o_w3h, o_wl,
     o_b1, o_b2, o_b3, o_bl) = offs
    f32 = jnp.float32

    def gate_math(gates, c, hid, gs):
        # PyTorch gate order (i, f, g, o); every gate sits in a 128-lane-aligned
        # slot of width gs, so all slices below are lane-aligned.
        sig_if = jax.nn.sigmoid(gates[:, :2 * gs])     # i and f in one EUP call
        i = sig_if[:, 0:hid]
        f = sig_if[:, gs:gs + hid]
        g = jnp.tanh(gates[:, 2 * gs:2 * gs + hid])
        o = jax.nn.sigmoid(gates[:, 3 * gs:3 * gs + hid])
        c_new = f * c + i * g
        h_new = o * jnp.tanh(c_new)
        return h_new, c_new

    def kernel(x_ref, w_ref, out_ref, xp1_ref, h3seq_ref):
        # Hoisted bias broadcasts (one broadcast op each, reused every step).
        b2 = jnp.broadcast_to(w_ref[pl.ds(o_b2, 1), :4 * G2], (Bp, 4 * G2))
        b3 = jnp.broadcast_to(w_ref[pl.ds(o_b3, 1), :4 * G3], (Bp, 4 * G3))

        # Layer-1 input projection for ALL T timesteps in one MXU matmul.
        xp1_ref[...] = (
            jnp.dot(x_ref[...], w_ref[pl.ds(o_w1i, D), :4 * G1],
                    preferred_element_type=f32)
            + w_ref[pl.ds(o_b1, 1), :4 * G1])

        h1 = jnp.zeros((Bp, H1), f32); c1 = jnp.zeros((Bp, H1), f32)
        h2 = jnp.zeros((Bp, H2), f32); c2 = jnp.zeros((Bp, H2), f32)
        h3 = jnp.zeros((Bp, H3), f32); c3 = jnp.zeros((Bp, H3), f32)

        # Wavefront over the observed steps: step s runs layer-1 at t=s,
        # layer-2 at t=s-1 and layer-3 at t=s-2 (independent within a step).
        for s in range(T + 2):                     # statically unrolled
            nh1, nc1, nh2, nc2, nh3, nc3 = h1, c1, h2, c2, h3, c3
            if s < T:
                g1 = xp1_ref[pl.ds(s * Bp, Bp), :]
                if s > 0:                          # h1 == 0 exactly at s == 0
                    g1 = g1 + jnp.dot(h1, w_ref[pl.ds(o_w1h, H1), :4 * G1],
                                      preferred_element_type=f32)
                nh1, nc1 = gate_math(g1, c1, H1, G1)
            if 1 <= s <= T:
                if s == 1:                         # h2 == 0: only the W_ih part
                    a2, k2 = h1, H1
                else:                              # fused [x; h] @ [W_ih; W_hh]
                    a2, k2 = jnp.concatenate([h1, h2], axis=-1), H1 + H2
                g2 = jnp.dot(a2, w_ref[pl.ds(o_w2i, k2), :4 * G2],
                             preferred_element_type=f32) + b2
                nh2, nc2 = gate_math(g2, c2, H2, G2)
            if 2 <= s <= T + 1:
                if s == 2:                         # h3 == 0: only the W_ih part
                    a3, k3 = h2, H2
                else:
                    a3, k3 = jnp.concatenate([h2, h3], axis=-1), H2 + H3
                g3 = jnp.dot(a3, w_ref[pl.ds(o_w3i, k3), :4 * G3],
                             preferred_element_type=f32) + b3
                nh3, nc3 = gate_math(g3, c3, H3, G3)
                h3seq_ref[pl.ds((s - 2) * Bp, Bp), :] = nh3
            h1, c1, h2, c2, h3, c3 = nh1, nc1, nh2, nc2, nh3, nc3

        # Final Linear over all T step outputs at once; one lane-dense store.
        y_seq = (jnp.dot(h3seq_ref[...], w_ref[pl.ds(o_wl, H3), :Dp],
                         preferred_element_type=f32)
                 + w_ref[pl.ds(o_bl, 1), :Dp])
        out_ref[pl.ds(0, T * Bp), :] = y_seq

        # `future` feedback rollout: previous prediction is the next input.
        if future > 0:
            b1 = jnp.broadcast_to(w_ref[pl.ds(o_b1, 1), :4 * G1], (Bp, 4 * G1))
            bl = jnp.broadcast_to(w_ref[pl.ds(o_bl, 1), :Dp], (Bp, Dp))
            y = y_seq[(T - 1) * Bp:T * Bp, :]
            for i in range(future):                # statically unrolled
                g1 = jnp.dot(jnp.concatenate([y[:, :D], h1], axis=-1),
                             w_ref[pl.ds(o_w1i, D + H1), :4 * G1],
                             preferred_element_type=f32) + b1
                h1, c1 = gate_math(g1, c1, H1, G1)
                g2 = jnp.dot(jnp.concatenate([h1, h2], axis=-1),
                             w_ref[pl.ds(o_w2i, H1 + H2), :4 * G2],
                             preferred_element_type=f32) + b2
                h2, c2 = gate_math(g2, c2, H2, G2)
                g3 = jnp.dot(jnp.concatenate([h2, h3], axis=-1),
                             w_ref[pl.ds(o_w3i, H2 + H3), :4 * G3],
                             preferred_element_type=f32) + b3
                h3, c3 = gate_math(g3, c3, H3, G3)
                y = jnp.dot(h3, w_ref[pl.ds(o_wl, H3), :Dp],
                            preferred_element_type=f32) + bl
                out_ref[pl.ds((T + i) * Bp, Bp), :] = y

    return kernel


def init_params(key, n_hidden=64, dim_latent=32):
    """Raw parameters in PyTorch LSTMCell / Linear layout (uniform +-1/sqrt(h))."""
    H1, H2, H3 = n_hidden // 2, n_hidden, 2 * n_hidden
    cell_dims = [(dim_latent, H1), (H1, H2), (H2, H3)]
    keys = jax.random.split(key, 4 * len(cell_dims) + 2)
    ki = 0
    cells = []
    for in_dim, hid in cell_dims:
        s = 1.0 / np.sqrt(hid)
        w_ih = jax.random.uniform(keys[ki], (4 * hid, in_dim), jnp.float32, -s, s); ki += 1
        w_hh = jax.random.uniform(keys[ki], (4 * hid, hid), jnp.float32, -s, s); ki += 1
        b_ih = jax.random.uniform(keys[ki], (4 * hid,), jnp.float32, -s, s); ki += 1
        b_hh = jax.random.uniform(keys[ki], (4 * hid,), jnp.float32, -s, s); ki += 1
        cells.append((w_ih, w_hh, b_ih, b_hh))
    s = 1.0 / np.sqrt(H3)
    w_l = jax.random.uniform(keys[ki], (dim_latent, H3), jnp.float32, -s, s); ki += 1
    b_l = jax.random.uniform(keys[ki], (dim_latent,), jnp.float32, -s, s); ki += 1
    return {"n_hidden": n_hidden, "dim_latent": dim_latent,
            "cells": cells, "linear1": (w_l, b_l)}


def _prepare_kernel_weights(params):
    """Pack ALL weights/biases into one lane-padded slab (one DMA).

    Row layout: [w1i, w1h, w2i, w2h, w3i, w3h, wl, b1, b2, b3, bl].
    Each W is stored transposed; gate slots are padded to 128-lane boundaries;
    b_ih + b_hh are fused; padded columns are exactly zero (required invariant).
    """
    cells = params["cells"]
    D = params["dim_latent"]
    hids = tuple(int(w_hh.shape[1]) for _, w_hh, _, _ in cells)
    in_dims = (D, hids[0], hids[1])
    gss = tuple(_round_up(h, LANE) for h in hids)
    Dp = _round_up(D, LANE)
    W = max(max(4 * g for g in gss), Dp)
    assert D % SUBLANE == 0 and all(h % SUBLANE == 0 for h in hids), \
        "dims must be multiples of 8 for the packed-slab layout"

    offs, r = [], 0
    for k in range(3):
        offs.append(r); r += in_dims[k]            # wki (adjacent to wkh below)
        offs.append(r); r += hids[k]               # wkh
    r = _round_up(r, SUBLANE); offs.append(r); r += hids[2]   # wl
    for _ in range(4):                             # b1, b2, b3, bl
        r = _round_up(r, SUBLANE); offs.append(r); r += 1
    R = _round_up(r, SUBLANE)

    slab = np.zeros((R, W), np.float32)
    for k, (w_ih, w_hh, b_ih, b_hh) in enumerate(cells):
        hid, gs, ind = hids[k], gss[k], in_dims[k]
        o_i, o_h, o_b = offs[2 * k], offs[2 * k + 1], offs[7 + k]
        wi = np.asarray(w_ih, np.float32)          # (4*hid, in_dim)
        wh = np.asarray(w_hh, np.float32)          # (4*hid, hid)
        bs = np.asarray(b_ih, np.float32) + np.asarray(b_hh, np.float32)
        for g in range(4):
            slab[o_i:o_i + ind, g * gs:g * gs + hid] = wi[g * hid:(g + 1) * hid, :].T
            slab[o_h:o_h + hid, g * gs:g * gs + hid] = wh[g * hid:(g + 1) * hid, :].T
            slab[o_b, g * gs:g * gs + hid] = bs[g * hid:(g + 1) * hid]
    w_l, b_l = params["linear1"]
    slab[offs[6]:offs[6] + hids[2], :D] = np.asarray(w_l, np.float32).T
    slab[offs[10], :D] = np.asarray(b_l, np.float32)
    return jnp.asarray(slab), hids, gss, tuple(offs), Dp


def lstm_latent_forward(x_btd, params, future=0):
    """Pallas forward. x_btd: (B, T, dim_latent) -> (T + future, B, dim_latent)."""
    B, T, D = x_btd.shape
    assert D == params["dim_latent"]
    slab, hids, gss, offs, Dp = _prepare_kernel_weights(params)
    Bp = _round_up(max(B, SUBLANE), SUBLANE)

    # Time-major, batch padded to a full sublane tile; padded rows are zero and
    # their (independent, row-wise) results are sliced away from the output.
    x_tm = jnp.transpose(x_btd, (1, 0, 2)).astype(jnp.float32)
    x_pad = jnp.zeros((T, Bp, D), jnp.float32).at[:, :B, :].set(x_tm)
    x_flat = x_pad.reshape(T * Bp, D)

    vmem = pl.BlockSpec(memory_space=pltpu.MemorySpace.VMEM)
    out_flat = pl.pallas_call(
        _make_kernel(T, Bp, D, Dp, future, hids, gss, offs),
        out_shape=jax.ShapeDtypeStruct(((T + future) * Bp, Dp), jnp.float32),
        in_specs=[vmem, vmem],
        out_specs=vmem,
        scratch_shapes=[
            pltpu.VMEM((T * Bp, 4 * gss[0]), jnp.float32),  # layer-1 x projection
            pltpu.VMEM((T * Bp, hids[2]), jnp.float32),     # layer-3 hidden seq
        ],
    )(x_flat, slab)

    return out_flat.reshape(T + future, Bp, Dp)[:, :B, :D]


def ref_forward(x_btd, params, future=0):
    """Pure-JAX reference with PyTorch lstm_latent_4 semantics."""
    B, T, D = x_btd.shape
    x = jnp.transpose(x_btd, (1, 0, 2)).astype(jnp.float32)
    cells = params["cells"]
    w_l, b_l = params["linear1"]

    def cell(a, h, c, w_ih, w_hh, b_ih, b_hh):
        hid = h.shape[-1]
        g = a @ w_ih.T + h @ w_hh.T + b_ih + b_hh
        i = jax.nn.sigmoid(g[:, :hid])
        f = jax.nn.sigmoid(g[:, hid:2 * hid])
        gg = jnp.tanh(g[:, 2 * hid:3 * hid])
        o = jax.nn.sigmoid(g[:, 3 * hid:])
        c_new = f * c + i * gg
        return o * jnp.tanh(c_new), c_new

    hcs = [(jnp.zeros((B, w_hh.shape[1]), jnp.float32),
            jnp.zeros((B, w_hh.shape[1]), jnp.float32)) for _, w_hh, _, _ in cells]
    outs, out = [], None
    for t in range(T + future):
        a = x[t] if t < T else out
        new_hcs = []
        for (w_ih, w_hh, b_ih, b_hh), (h, c) in zip(cells, hcs):
            h, c = cell(a, h, c, w_ih, w_hh, b_ih, b_hh)
            new_hcs.append((h, c))
            a = h
        hcs = new_hcs
        out = a @ w_l.T + b_l
        outs.append(out)
    return jnp.stack(outs)


if __name__ == "__main__":
    key = jax.random.PRNGKey(0)
    kp, kx = jax.random.split(key)

    B, T = 2, 8
    n_hidden, dim_latent = 64, 32   # small but structurally faithful to the module

    params = init_params(kp, n_hidden=n_hidden, dim_latent=dim_latent)
    x = jax.random.normal(kx, (B, T, dim_latent), dtype=jnp.float32)

    # future = 0 (observed steps only)
    out = jax.block_until_ready(lstm_latent_forward(x, params, future=0))
    assert out.shape == (T, B, dim_latent)
    ref = ref_forward(x, params, future=0)
    np.testing.assert_allclose(np.asarray(out), np.asarray(ref), rtol=1e-4, atol=1e-4)

    # future > 0 (feedback rollout)
    fut = 3
    out_f = jax.block_until_ready(lstm_latent_forward(x, params, future=fut))
    assert out_f.shape == (T + fut, B, dim_latent)
    ref_f = ref_forward(x, params, future=fut)
    np.testing.assert_allclose(np.asarray(out_f), np.asarray(ref_f), rtol=1e-4, atol=1e-4)

    print("KERNEL_OK")
</pallas_src>

<mosaic_0001>
module attributes {stable_mosaic.version = 11 : i64} {
  func.func @kernel(%arg0: memref<64x32xf32, #tpu.memory_space<vmem>>, %arg1: memref<512x512xf32, #tpu.memory_space<vmem>>, %arg2: memref<64x128xf32, #tpu.memory_space<vmem>>, %arg3: memref<64x512xf32, #tpu.memory_space<vmem>>, %arg4: memref<64x128xf32, #tpu.memory_space<vmem>>) attributes {dimension_semantics = [], scalar_prefetch = 0 : i64, scratch_operands = 2 : i64, tpu.core_type = #tpu.core_type<tc>} {
    %c488 = arith.constant 488 : index
    %c0 = arith.constant 0 : index
    %0 = vector.load %arg1[%c488, %c0] : memref<512x512xf32, #tpu.memory_space<vmem>>, vector<1x512xf32>
    %1 = vector.shape_cast %0 : vector<1x512xf32> to vector<1x512xf32>
    %2 = vector.broadcast %1 : vector<1x512xf32> to vector<8x512xf32>
    %c496 = arith.constant 496 : index
    %c0_0 = arith.constant 0 : index
    %3 = vector.load %arg1[%c496, %c0_0] : memref<512x512xf32, #tpu.memory_space<vmem>>, vector<1x512xf32>
    %4 = vector.shape_cast %3 : vector<1x512xf32> to vector<1x512xf32>
    %5 = vector.broadcast %4 : vector<1x512xf32> to vector<8x512xf32>
    %c0_1 = arith.constant 0 : index
    %c0_2 = arith.constant 0 : index
    %6 = vector.load %arg0[%c0_1, %c0_2] : memref<64x32xf32, #tpu.memory_space<vmem>>, vector<64x32xf32>
    %c0_3 = arith.constant 0 : index
    %c0_4 = arith.constant 0 : index
    %7 = vector.load %arg1[%c0_3, %c0_4] : memref<512x512xf32, #tpu.memory_space<vmem>>, vector<32x512xf32>
    %cst = arith.constant dense<0.000000e+00> : vector<64x512xf32>
    %8 = tpu.matmul %6, %7, %cst {dimension_numbers = #tpu.dot_dimension_numbers<[1], [0], [0], [1], [0, 0, 1, 1], [], []>} : vector<64x32xf32>, vector<32x512xf32>, vector<64x512xf32> -> vector<64x512xf32>
    %c480 = arith.constant 480 : index
    %c0_5 = arith.constant 0 : index
    %9 = vector.load %arg1[%c480, %c0_5] : memref<512x512xf32, #tpu.memory_space<vmem>>, vector<1x512xf32>
    %10 = vector.broadcast %9 : vector<1x512xf32> to vector<64x512xf32>
    %11 = arith.addf %8, %10 : vector<64x512xf32>
    %c0_6 = arith.constant 0 : index
    %c0_7 = arith.constant 0 : index
    %12 = vector.load %arg3[%c0_6, %c0_7] : memref<64x512xf32, #tpu.memory_space<vmem>>, vector<64x512xf32>
    tpu.vector_store %arg3[%c0_6, %c0_7], %11 {strides = array<i32>} : memref<64x512xf32, #tpu.memory_space<vmem>>, vector<64x512xf32>,
    %cst_8 = arith.constant 0.000000e+00 : f32
    %13 = vector.broadcast %cst_8 : f32 to vector<8x32xf32>
    %cst_9 = arith.constant 0.000000e+00 : f32
    %14 = vector.broadcast %cst_9 : f32 to vector<8x64xf32>
    %cst_10 = arith.constant 0.000000e+00 : f32
    %15 = vector.broadcast %cst_10 : f32 to vector<8x128xf32>
    %c0_11 = arith.constant 0 : index
    %c0_12 = arith.constant 0 : index
    %16 = vector.load %arg3[%c0_11, %c0_12] : memref<64x512xf32, #tpu.memory_space<vmem>>, vector<8x512xf32>
    %17 = vector.extract_strided_slice %16 {offsets = [0, 0], sizes = [8, 256], strides = [1, 1]} : vector<8x512xf32> to vector<8x256xf32>
    %18 = arith.negf %17 : vector<8x256xf32>
    %19 = math.exp %18 : vector<8x256xf32>
    %cst_13 = arith.constant 1.000000e+00 : f32
    %20 = vector.broadcast %cst_13 : f32 to vector<8x256xf32>
    %21 = arith.addf %20, %19 : vector<8x256xf32>
    %22 = arith.divf %20, %21 : vector<8x256xf32>
    %23 = vector.extract_strided_slice %22 {offsets = [0, 0], sizes = [8, 32], strides = [1, 1]} : vector<8x256xf32> to vector<8x32xf32>
    %24 = vector.extract_strided_slice %22 {offsets = [0, 128], sizes = [8, 32], strides = [1, 1]} : vector<8x256xf32> to vector<8x32xf32>
    %25 = vector.extract_strided_slice %16 {offsets = [0, 256], sizes = [8, 32], strides = [1, 1]} : vector<8x512xf32> to vector<8x32xf32>
    %26 = math.tanh %25 : vector<8x32xf32>
    %27 = vector.extract_strided_slice %16 {offsets = [0, 384], sizes = [8, 32], strides = [1, 1]} : vector<8x512xf32> to vector<8x32xf32>
    %28 = arith.negf %27 : vector<8x32xf32>
    %29 = math.exp %28 : vector<8x32xf32>
    %cst_14 = arith.constant 1.000000e+00 : f32
    %30 = vector.broadcast %cst_14 : f32 to vector<8x32xf32>
    %31 = arith.addf %30, %29 : vector<8x32xf32>
    %32 = arith.divf %30, %31 : vector<8x32xf32>
    %33 = arith.mulf %24, %13 : vector<8x32xf32>
    %34 = arith.mulf %23, %26 : vector<8x32xf32>
    %35 = arith.addf %33, %34 : vector<8x32xf32>
    %36 = math.tanh %35 : vector<8x32xf32>
    %37 = arith.mulf %32, %36 : vector<8x32xf32>
    %c8 = arith.constant 8 : index
    %c0_15 = arith.constant 0 : index
    %38 = vector.load %arg3[%c8, %c0_15] : memref<64x512xf32, #tpu.memory_space<vmem>>, vector<8x512xf32>
    %c32 = arith.constant 32 : index
    %c0_16 = arith.constant 0 : index
    %39 = vector.load %arg1[%c32, %c0_16] : memref<512x512xf32, #tpu.memory_space<vmem>>, vector<32x512xf32>
    %cst_17 = arith.constant dense<0.000000e+00> : vector<8x512xf32>
    %40 = tpu.matmul %37, %39, %cst_17 {dimension_numbers = #tpu.dot_dimension_numbers<[1], [0], [0], [1], [0, 0, 1, 1], [], []>} : vector<8x32xf32>, vector<32x512xf32>, vector<8x512xf32> -> vector<8x512xf32>
    %41 = arith.addf %38, %40 : vector<8x512xf32>
    %42 = vector.extract_strided_slice %41 {offsets = [0, 0], sizes = [8, 256], strides = [1, 1]} : vector<8x512xf32> to vector<8x256xf32>
    %43 = arith.negf %42 : vector<8x256xf32>
    %44 = math.exp %43 : vector<8x256xf32>
    %cst_18 = arith.constant 1.000000e+00 : f32
    %45 = vector.broadcast %cst_18 : f32 to vector<8x256xf32>
    %46 = arith.addf %45, %44 : vector<8x256xf32>
    %47 = arith.divf %45, %46 : vector<8x256xf32>
    %48 = vector.extract_strided_slice %47 {offsets = [0, 0], sizes = [8, 32], strides = [1, 1]} : vector<8x256xf32> to vector<8x32xf32>
    %49 = vector.extract_strided_slice %47 {offsets = [0, 128], sizes = [8, 32], strides = [1, 1]} : vector<8x256xf32> to vector<8x32xf32>
    %50 = vector.extract_strided_slice %41 {offsets = [0, 256], sizes = [8, 32], strides = [1, 1]} : vector<8x512xf32> to vector<8x32xf32>
    %51 = math.tanh %50 : vector<8x32xf32>
    %52 = vector.extract_strided_slice %41 {offsets = [0, 384], sizes = [8, 32], strides = [1, 1]} : vector<8x512xf32> to vector<8x32xf32>
    %53 = arith.negf %52 : vector<8x32xf32>
    %54 = math.exp %53 : vector<8x32xf32>
    %cst_19 = arith.constant 1.000000e+00 : f32
    %55 = vector.broadcast %cst_19 : f32 to vector<8x32xf32>
    %56 = arith.addf %55, %54 : vector<8x32xf32>
    %57 = arith.divf %55, %56 : vector<8x32xf32>
    %58 = arith.mulf %49, %35 : vector<8x32xf32>
    %59 = arith.mulf %48, %51 : vector<8x32xf32>
    %60 = arith.addf %58, %59 : vector<8x32xf32>
    %61 = math.tanh %60 : vector<8x32xf32>
    %62 = arith.mulf %57, %61 : vector<8x32xf32>
    %c64 = arith.constant 64 : index
    %c0_20 = arith.constant 0 : index
    %63 = vector.load %arg1[%c64, %c0_20] : memref<512x512xf32, #tpu.memory_space<vmem>>, vector<32x512xf32>
    %cst_21 = arith.constant dense<0.000000e+00> : vector<8x512xf32>
    %64 = tpu.matmul %37, %63, %cst_21 {dimension_numbers = #tpu.dot_dimension_numbers<[1], [0], [0], [1], [0, 0, 1, 1], [], []>} : vector<8x32xf32>, vector<32x512xf32>, vector<8x512xf32> -> vector<8x512xf32>
    %65 = arith.addf %64, %2 : vector<8x512xf32>
    %66 = vector.extract_strided_slice %65 {offsets = [0, 0], sizes = [8, 256], strides = [1, 1]} : vector<8x512xf32> to vector<8x256xf32>
    %67 = arith.negf %66 : vector<8x256xf32>
    %68 = math.exp %67 : vector<8x256xf32>
    %cst_22 = arith.constant 1.000000e+00 : f32
    %69 = vector.broadcast %cst_22 : f32 to vector<8x256xf32>
    %70 = arith.addf %69, %68 : vector<8x256xf32>
    %71 = arith.divf %69, %70 : vector<8x256xf32>
    %72 = vector.extract_strided_slice %71 {offsets = [0, 0], sizes = [8, 64], strides = [1, 1]} : vector<8x256xf32> to vector<8x64xf32>
    %73 = vector.extract_strided_slice %71 {offsets = [0, 128], sizes = [8, 64], strides = [1, 1]} : vector<8x256xf32> to vector<8x64xf32>
    %74 = vector.extract_strided_slice %65 {offsets = [0, 256], sizes = [8, 64], strides = [1, 1]} : vector<8x512xf32> to vector<8x64xf32>
    %75 = math.tanh %74 : vector<8x64xf32>
    %76 = vector.extract_strided_slice %65 {offsets = [0, 384], sizes = [8, 64], strides = [1, 1]} : vector<8x512xf32> to vector<8x64xf32>
    %77 = arith.negf %76 : vector<8x64xf32>
    %78 = math.exp %77 : vector<8x64xf32>
    %cst_23 = arith.constant 1.000000e+00 : f32
    %79 = vector.broadcast %cst_23 : f32 to vector<8x64xf32>
    %80 = arith.addf %79, %78 : vector<8x64xf32>
    %81 = arith.divf %79, %80 : vector<8x64xf32>
    %82 = arith.mulf %73, %14 : vector<8x64xf32>
    %83 = arith.mulf %72, %75 : vector<8x64xf32>
    %84 = arith.addf %82, %83 : vector<8x64xf32>
    %85 = math.tanh %84 : vector<8x64xf32>
    %86 = arith.mulf %81, %85 : vector<8x64xf32>
    %c16 = arith.constant 16 : index
    %c0_24 = arith.constant 0 : index
    %87 = vector.load %arg3[%c16, %c0_24] : memref<64x512xf32, #tpu.memory_space<vmem>>, vector<8x512xf32>
    %c32_25 = arith.constant 32 : index
    %c0_26 = arith.constant 0 : index
    %88 = vector.load %arg1[%c32_25, %c0_26] : memref<512x512xf32, #tpu.memory_space<vmem>>, vector<32x512xf32>
    %cst_27 = arith.constant dense<0.000000e+00> : vector<8x512xf32>
    %89 = tpu.matmul %62, %88, %cst_27 {dimension_numbers = #tpu.dot_dimension_numbers<[1], [0], [0], [1], [0, 0, 1, 1], [], []>} : vector<8x32xf32>, vector<32x512xf32>, vector<8x512xf32> -> vector<8x512xf32>
    %90 = arith.addf %87, %89 : vector<8x512xf32>
    %91 = vector.extract_strided_slice %90 {offsets = [0, 0], sizes = [8, 256], strides = [1, 1]} : vector<8x512xf32> to vector<8x256xf32>
    %92 = arith.negf %91 : vector<8x256xf32>
    %93 = math.exp %92 : vector<8x256xf32>
    %cst_28 = arith.constant 1.000000e+00 : f32
    %94 = vector.broadcast %cst_28 : f32 to vector<8x256xf32>
    %95 = arith.addf %94, %93 : vector<8x256xf32>
    %96 = arith.divf %94, %95 : vector<8x256xf32>
    %97 = vector.extract_strided_slice %96 {offsets = [0, 0], sizes = [8, 32], strides = [1, 1]} : vector<8x256xf32> to vector<8x32xf32>
    %98 = vector.extract_strided_slice %96 {offsets = [0, 128], sizes = [8, 32], strides = [1, 1]} : vector<8x256xf32> to vector<8x32xf32>
    %99 = vector.extract_strided_slice %90 {offsets = [0, 256], sizes = [8, 32], strides = [1, 1]} : vector<8x512xf32> to vector<8x32xf32>
    %100 = math.tanh %99 : vector<8x32xf32>
    %101 = vector.extract_strided_slice %90 {offsets = [0, 384], sizes = [8, 32], strides = [1, 1]} : vector<8x512xf32> to vector<8x32xf32>
    %102 = arith.negf %101 : vector<8x32xf32>
    %103 = math.exp %102 : vector<8x32xf32>
    %cst_29 = arith.constant 1.000000e+00 : f32
    %104 = vector.broadcast %cst_29 : f32 to vector<8x32xf32>
    %105 = arith.addf %104, %103 : vector<8x32xf32>
    %106 = arith.divf %104, %105 : vector<8x32xf32>
    %107 = arith.mulf %98, %60 : vector<8x32xf32>
    %108 = arith.mulf %97, %100 : vector<8x32xf32>
    %109 = arith.addf %107, %108 : vector<8x32xf32>
    %110 = math.tanh %109 : vector<8x32xf32>
    %111 = arith.mulf %106, %110 : vector<8x32xf32>
    %112 = tpu.concatenate %62, %86 in 1 : vector<8x32xf32>, vector<8x64xf32> -> vector<8x96xf32>
    %c64_30 = arith.constant 64 : index
    %c0_31 = arith.constant 0 : index
    %113 = vector.load %arg1[%c64_30, %c0_31] : memref<512x512xf32, #tpu.memory_space<vmem>>, vector<96x512xf32>
    %cst_32 = arith.constant dense<0.000000e+00> : vector<8x512xf32>
    %114 = tpu.matmul %112, %113, %cst_32 {dimension_numbers = #tpu.dot_dimension_numbers<[1], [0], [0], [1], [0, 0, 1, 1], [], []>} : vector<8x96xf32>, vector<96x512xf32>, vector<8x512xf32> -> vector<8x512xf32>
    %115 = arith.addf %114, %2 : vector<8x512xf32>
    %116 = vector.extract_strided_slice %115 {offsets = [0, 0], sizes = [8, 256], strides = [1, 1]} : vector<8x512xf32> to vector<8x256xf32>
    %117 = arith.negf %116 : vector<8x256xf32>
    %118 = math.exp %117 : vector<8x256xf32>
    %cst_33 = arith.constant 1.000000e+00 : f32
    %119 = vector.broadcast %cst_33 : f32 to vector<8x256xf32>
    %120 = arith.addf %119, %118 : vector<8x256xf32>
    %121 = arith.divf %119, %120 : vector<8x256xf32>
    %122 = vector.extract_strided_slice %121 {offsets = [0, 0], sizes = [8, 64], strides = [1, 1]} : vector<8x256xf32> to vector<8x64xf32>
    %123 = vector.extract_strided_slice %121 {offsets = [0, 128], sizes = [8, 64], strides = [1, 1]} : vector<8x256xf32> to vector<8x64xf32>
    %124 = vector.extract_strided_slice %115 {offsets = [0, 256], sizes = [8, 64], strides = [1, 1]} : vector<8x512xf32> to vector<8x64xf32>
    %125 = math.tanh %124 : vector<8x64xf32>
    %126 = vector.extract_strided_slice %115 {offsets = [0, 384], sizes = [8, 64], strides = [1, 1]} : vector<8x512xf32> to vector<8x64xf32>
    %127 = arith.negf %126 : vector<8x64xf32>
    %128 = math.exp %127 : vector<8x64xf32>
    %cst_34 = arith.constant 1.000000e+00 : f32
    %129 = vector.broadcast %cst_34 : f32 to vector<8x64xf32>
    %130 = arith.addf %129, %128 : vector<8x64xf32>
    %131 = arith.divf %129, %130 : vector<8x64xf32>
    %132 = arith.mulf %123, %84 : vector<8x64xf32>
    %133 = arith.mulf %122, %125 : vector<8x64xf32>
    %134 = arith.addf %132, %133 : vector<8x64xf32>
    %135 = math.tanh %134 : vector<8x64xf32>
    %136 = arith.mulf %131, %135 : vector<8x64xf32>
    %c160 = arith.constant 160 : index
    %c0_35 = arith.constant 0 : index
    %137 = vector.load %arg1[%c160, %c0_35] : memref<512x512xf32, #tpu.memory_space<vmem>>, vector<64x512xf32>
    %cst_36 = arith.constant dense<0.000000e+00> : vector<8x512xf32>
    %138 = tpu.matmul %86, %137, %cst_36 {dimension_numbers = #tpu.dot_dimension_numbers<[1], [0], [0], [1], [0, 0, 1, 1], [], []>} : vector<8x64xf32>, vector<64x512xf32>, vector<8x512xf32> -> vector<8x512xf32>
    %139 = arith.addf %138, %5 : vector<8x512xf32>
    %140 = vector.extract_strided_slice %139 {offsets = [0, 0], sizes = [8, 256], strides = [1, 1]} : vector<8x512xf32> to vector<8x256xf32>
    %141 = arith.negf %140 : vector<8x256xf32>
    %142 = math.exp %141 : vector<8x256xf32>
    %cst_37 = arith.constant 1.000000e+00 : f32
    %143 = vector.broadcast %cst_37 : f32 to vector<8x256xf32>
    %144 = arith.addf %143, %142 : vector<8x256xf32>
    %145 = arith.divf %143, %144 : vector<8x256xf32>
    %146 = vector.extract_strided_slice %145 {offsets = [0, 0], sizes = [8, 128], strides = [1, 1]} : vector<8x256xf32> to vector<8x128xf32>
    %147 = vector.extract_strided_slice %145 {offsets = [0, 128], sizes = [8, 128], strides = [1, 1]} : vector<8x256xf32> to vector<8x128xf32>
    %148 = vector.extract_strided_slice %139 {offsets = [0, 256], sizes = [8, 128], strides = [1, 1]} : vector<8x512xf32> to vector<8x128xf32>
    %149 = math.tanh %148 : vector<8x128xf32>
    %150 = vector.extract_strided_slice %139 {offsets = [0, 384], sizes = [8, 128], strides = [1, 1]} : vector<8x512xf32> to vector<8x128xf32>
    %151 = arith.negf %150 : vector<8x128xf32>
    %152 = math.exp %151 : vector<8x128xf32>
    %cst_38 = arith.constant 1.000000e+00 : f32
    %153 = vector.broadcast %cst_38 : f32 to vector<8x128xf32>
    %154 = arith.addf %153, %152 : vector<8x128xf32>
    %155 = arith.divf %153, %154 : vector<8x128xf32>
    %156 = arith.mulf %147, %15 : vector<8x128xf32>
    %157 = arith.mulf %146, %149 : vector<8x128xf32>
    %158 = arith.addf %156, %157 : vector<8x128xf32>
    %159 = math.tanh %158 : vector<8x128xf32>
    %160 = arith.mulf %155, %159 : vector<8x128xf32>
    %c0_39 = arith.constant 0 : index
    %c0_40 = arith.constant 0 : index
    %161 = vector.load %arg4[%c0_39, %c0_40] : memref<64x128xf32, #tpu.memory_space<vmem>>, vector<8x128xf32>
    tpu.vector_store %arg4[%c0_39, %c0_40], %160 {strides = array<i32>} : memref<64x128xf32, #tpu.memory_space<vmem>>, vector<8x128xf32>,
    %c24 = arith.constant 24 : index
    %c0_41 = arith.constant 0 : index
    %162 = vector.load %arg3[%c24, %c0_41] : memref<64x512xf32, #tpu.memory_space<vmem>>, vector<8x512xf32>
    %c32_42 = arith.constant 32 : index
    %c0_43 = arith.constant 0 : index
    %163 = vector.load %arg1[%c32_42, %c0_43] : memref<512x512xf32, #tpu.memory_space<vmem>>, vector<32x512xf32>
    %cst_44 = arith.constant dense<0.000000e+00> : vector<8x512xf32>
    %164 = tpu.matmul %111, %163, %cst_44 {dimension_numbers = #tpu.dot_dimension_numbers<[1], [0], [0], [1], [0, 0, 1, 1], [], []>} : vector<8x32xf32>, vector<32x512xf32>, vector<8x512xf32> -> vector<8x512xf32>
    %165 = arith.addf %162, %164 : vector<8x512xf32>
    %166 = vector.extract_strided_slice %165 {offsets = [0, 0], sizes = [8, 256], strides = [1, 1]} : vector<8x512xf32> to vector<8x256xf32>
    %167 = arith.negf %166 : vector<8x256xf32>
    %168 = math.exp %167 : vector<8x256xf32>
    %cst_45 = arith.constant 1.000000e+00 : f32
    %169 = vector.broadcast %cst_45 : f32 to vector<8x256xf32>
    %170 = arith.addf %169, %168 : vector<8x256xf32>
    %171 = arith.divf %169, %170 : vector<8x256xf32>
    %172 = vector.extract_strided_slice %171 {offsets = [0, 0], sizes = [8, 32], strides = [1, 1]} : vector<8x256xf32> to vector<8x32xf32>
    %173 = vector.extract_strided_slice %171 {offsets = [0, 128], sizes = [8, 32], strides = [1, 1]} : vector<8x256xf32> to vector<8x32xf32>
    %174 = vector.extract_strided_slice %165 {offsets = [0, 256], sizes = [8, 32], strides = [1, 1]} : vector<8x512xf32> to vector<8x32xf32>
    %175 = math.tanh %174 : vector<8x32xf32>
    %176 = vector.extract_strided_slice %165 {offsets = [0, 384], sizes = [8, 32], strides = [1, 1]} : vector<8x512xf32> to vector<8x32xf32>
    %177 = arith.negf %176 : vector<8x32xf32>
    %178 = math.exp %177 : vector<8x32xf32>
    %cst_46 = arith.constant 1.000000e+00 : f32
    %179 = vector.broadcast %cst_46 : f32 to vector<8x32xf32>
    %180 = arith.addf %179, %178 : vector<8x32xf32>
    %181 = arith.divf %179, %180 : vector<8x32xf32>
    %182 = arith.mulf %173, %109 : vector<8x32xf32>
    %183 = arith.mulf %172, %175 : vector<8x32xf32>
    %184 = arith.addf %182, %183 : vector<8x32xf32>
    %185 = math.tanh %184 : vector<8x32xf32>
    %186 = arith.mulf %181, %185 : vector<8x32xf32>
    %187 = tpu.concatenate %111, %136 in 1 : vector<8x32xf32>, vector<8x64xf32> -> vector<8x96xf32>
    %c64_47 = arith.constant 64 : index
    %c0_48 = arith.constant 0 : index
    %188 = vector.load %arg1[%c64_47, %c0_48] : memref<512x512xf32, #tpu.memory_space<vmem>>, vector<96x512xf32>
    %cst_49 = arith.constant dense<0.000000e+00> : vector<8x512xf32>
    %189 = tpu.matmul %187, %188, %cst_49 {dimension_numbers = #tpu.dot_dimension_numbers<[1], [0], [0], [1], [0, 0, 1, 1], [], []>} : vector<8x96xf32>, vector<96x512xf32>, vector<8x512xf32> -> vector<8x512xf32>
    %190 = arith.addf %189, %2 : vector<8x512xf32>
    %191 = vector.extract_strided_slice %190 {offsets = [0, 0], sizes = [8, 256], strides = [1, 1]} : vector<8x512xf32> to vector<8x256xf32>
    %192 = arith.negf %191 : vector<8x256xf32>
    %193 = math.exp %192 : vector<8x256xf32>
    %cst_50 = arith.constant 1.000000e+00 : f32
    %194 = vector.broadcast %cst_50 : f32 to vector<8x256xf32>
    %195 = arith.addf %194, %193 : vector<8x256xf32>
    %196 = arith.divf %194, %195 : vector<8x256xf32>
    %197 = vector.extract_strided_slice %196 {offsets = [0, 0], sizes = [8, 64], strides = [1, 1]} : vector<8x256xf32> to vector<8x64xf32>
    %198 = vector.extract_strided_slice %196 {offsets = [0, 128], sizes = [8, 64], strides = [1, 1]} : vector<8x256xf32> to vector<8x64xf32>
    %199 = vector.extract_strided_slice %190 {offsets = [0, 256], sizes = [8, 64], strides = [1, 1]} : vector<8x512xf32> to vector<8x64xf32>
    %200 = math.tanh %199 : vector<8x64xf32>
    %201 = vector.extract_strided_slice %190 {offsets = [0, 384], sizes = [8, 64], strides = [1, 1]} : vector<8x512xf32> to vector<8x64xf32>
    %202 = arith.negf %201 : vector<8x64xf32>
    %203 = math.exp %202 : vector<8x64xf32>
    %cst_51 = arith.constant 1.000000e+00 : f32
    %204 = vector.broadcast %cst_51 : f32 to vector<8x64xf32>
    %205 = arith.addf %204, %203 : vector<8x64xf32>
    %206 = arith.divf %204, %205 : vector<8x64xf32>
    %207 = arith.mulf %198, %134 : vector<8x64xf32>
    %208 = arith.mulf %197, %200 : vector<8x64xf32>
    %209 = arith.addf %207, %208 : vector<8x64xf32>
    %210 = math.tanh %209 : vector<8x64xf32>
    %211 = arith.mulf %206, %210 : vector<8x64xf32>
    %212 = tpu.concatenate %136, %160 in 1 : vector<8x64xf32>, vector<8x128xf32> -> vector<8x192xf32>
    %c160_52 = arith.constant 160 : index
    %c0_53 = arith.constant 0 : index
    %213 = vector.load %arg1[%c160_52, %c0_53] : memref<512x512xf32, #tpu.memory_space<vmem>>, vector<192x512xf32>
    %cst_54 = arith.constant dense<0.000000e+00> : vector<8x512xf32>
    %214 = tpu.matmul %212, %213, %cst_54 {dimension_numbers = #tpu.dot_dimension_numbers<[1], [0], [0], [1], [0, 0, 1, 1], [], []>} : vector<8x192xf32>, vector<192x512xf32>, vector<8x512xf32> -> vector<8x512xf32>
    %215 = arith.addf %214, %5 : vector<8x512xf32>
    %216 = vector.extract_strided_slice %215 {offsets = [0, 0], sizes = [8, 256], strides = [1, 1]} : vector<8x512xf32> to vector<8x256xf32>
    %217 = arith.negf %216 : vector<8x256xf32>
    %218 = math.exp %217 : vector<8x256xf32>
    %cst_55 = arith.constant 1.000000e+00 : f32
    %219 = vector.broadcast %cst_55 : f32 to vector<8x256xf32>
    %220 = arith.addf %219, %218 : vector<8x256xf32>
    %221 = arith.divf %219, %220 : vector<8x256xf32>
    %222 = vector.extract_strided_slice %221 {offsets = [0, 0], sizes = [8, 128], strides = [1, 1]} : vector<8x256xf32> to vector<8x128xf32>
    %223 = vector.extract_strided_slice %221 {offsets = [0, 128], sizes = [8, 128], strides = [1, 1]} : vector<8x256xf32> to vector<8x128xf32>
    %224 = vector.extract_strided_slice %215 {offsets = [0, 256], sizes = [8, 128], strides = [1, 1]} : vector<8x512xf32> to vector<8x128xf32>
    %225 = math.tanh %224 : vector<8x128xf32>
    %226 = vector.extract_strided_slice %215 {offsets = [0, 384], sizes = [8, 128], strides = [1, 1]} : vector<8x512xf32> to vector<8x128xf32>
    %227 = arith.negf %226 : vector<8x128xf32>
    %228 = math.exp %227 : vector<8x128xf32>
    %cst_56 = arith.constant 1.000000e+00 : f32
    %229 = vector.broadcast %cst_56 : f32 to vector<8x128xf32>
    %230 = arith.addf %229, %228 : vector<8x128xf32>
    %231 = arith.divf %229, %230 : vector<8x128xf32>
    %232 = arith.mulf %223, %158 : vector<8x128xf32>
    %233 = arith.mulf %222, %225 : vector<8x128xf32>
    %234 = arith.addf %232, %233 : vector<8x128xf32>
    %235 = math.tanh %234 : vector<8x128xf32>
    %236 = arith.mulf %231, %235 : vector<8x128xf32>
    %c8_57 = arith.constant 8 : index
    %c0_58 = arith.constant 0 : index
    %237 = vector.load %arg4[%c8_57, %c0_58] : memref<64x128xf32, #tpu.memory_space<vmem>>, vector<8x128xf32>
    tpu.vector_store %arg4[%c8_57, %c0_58], %236 {strides = array<i32>} : memref<64x128xf32, #tpu.memory_space<vmem>>, vector<8x128xf32>,
    %c32_59 = arith.constant 32 : index
    %c0_60 = arith.constant 0 : index
    %238 = vector.load %arg3[%c32_59, %c0_60] : memref<64x512xf32, #tpu.memory_space<vmem>>, vector<8x512xf32>
    %c32_61 = arith.constant 32 : index
    %c0_62 = arith.constant 0 : index
    %239 = vector.load %arg1[%c32_61, %c0_62] : memref<512x512xf32, #tpu.memory_space<vmem>>, vector<32x512xf32>
    %cst_63 = arith.constant dense<0.000000e+00> : vector<8x512xf32>
    %240 = tpu.matmul %186, %239, %cst_63 {dimension_numbers = #tpu.dot_dimension_numbers<[1], [0], [0], [1], [0, 0, 1, 1], [], []>} : vector<8x32xf32>, vector<32x512xf32>, vector<8x512xf32> -> vector<8x512xf32>
    %241 = arith.addf %238, %240 : vector<8x512xf32>
    %242 = vector.extract_strided_slice %241 {offsets = [0, 0], sizes = [8, 256], strides = [1, 1]} : vector<8x512xf32> to vector<8x256xf32>
    %243 = arith.negf %242 : vector<8x256xf32>
    %244 = math.exp %243 : vector<8x256xf32>
    %cst_64 = arith.constant 1.000000e+00 : f32
    %245 = vector.broadcast %cst_64 : f32 to vector<8x256xf32>
    %246 = arith.addf %245, %244 : vector<8x256xf32>
    %247 = arith.divf %245, %246 : vector<8x256xf32>
    %248 = vector.extract_strided_slice %247 {offsets = [0, 0], sizes = [8, 32], strides = [1, 1]} : vector<8x256xf32> to vector<8x32xf32>
    %249 = vector.extract_strided_slice %247 {offsets = [0, 128], sizes = [8, 32], strides = [1, 1]} : vector<8x256xf32> to vector<8x32xf32>
    %250 = vector.extract_strided_slice %241 {offsets = [0, 256], sizes = [8, 32], strides = [1, 1]} : vector<8x512xf32> to vector<8x32xf32>
    %251 = math.tanh %250 : vector<8x32xf32>
    %252 = vector.extract_strided_slice %241 {offsets = [0, 384], sizes = [8, 32], strides = [1, 1]} : vector<8x512xf32> to vector<8x32xf32>
    %253 = arith.negf %252 : vector<8x32xf32>
    %254 = math.exp %253 : vector<8x32xf32>
    %cst_65 = arith.constant 1.000000e+00 : f32
    %255 = vector.broadcast %cst_65 : f32 to vector<8x32xf32>
    %256 = arith.addf %255, %254 : vector<8x32xf32>
    %257 = arith.divf %255, %256 : vector<8x32xf32>
    %258 = arith.mulf %249, %184 : vector<8x32xf32>
    %259 = arith.mulf %248, %251 : vector<8x32xf32>
    %260 = arith.addf %258, %259 : vector<8x32xf32>
    %261 = math.tanh %260 : vector<8x32xf32>
    %262 = arith.mulf %257, %261 : vector<8x32xf32>
    %263 = tpu.concatenate %186, %211 in 1 : vector<8x32xf32>, vector<8x64xf32> -> vector<8x96xf32>
    %c64_66 = arith.constant 64 : index
    %c0_67 = arith.constant 0 : index
    %264 = vector.load %arg1[%c64_66, %c0_67] : memref<512x512xf32, #tpu.memory_space<vmem>>, vector<96x512xf32>
    %cst_68 = arith.constant dense<0.000000e+00> : vector<8x512xf32>
    %265 = tpu.matmul %263, %264, %cst_68 {dimension_numbers = #tpu.dot_dimension_numbers<[1], [0], [0], [1], [0, 0, 1, 1], [], []>} : vector<8x96xf32>, vector<96x512xf32>, vector<8x512xf32> -> vector<8x512xf32>
    %266 = arith.addf %265, %2 : vector<8x512xf32>
    %267 = vector.extract_strided_slice %266 {offsets = [0, 0], sizes = [8, 256], strides = [1, 1]} : vector<8x512xf32> to vector<8x256xf32>
    %268 = arith.negf %267 : vector<8x256xf32>
    %269 = math.exp %268 : vector<8x256xf32>
    %cst_69 = arith.constant 1.000000e+00 : f32
    %270 = vector.broadcast %cst_69 : f32 to vector<8x256xf32>
    %271 = arith.addf %270, %269 : vector<8x256xf32>
    %272 = arith.divf %270, %271 : vector<8x256xf32>
    %273 = vector.extract_strided_slice %272 {offsets = [0, 0], sizes = [8, 64], strides = [1, 1]} : vector<8x256xf32> to vector<8x64xf32>
    %274 = vector.extract_strided_slice %272 {offsets = [0, 128], sizes = [8, 64], strides = [1, 1]} : vector<8x256xf32> to vector<8x64xf32>
    %275 = vector.extract_strided_slice %266 {offsets = [0, 256], sizes = [8, 64], strides = [1, 1]} : vector<8x512xf32> to vector<8x64xf32>
    %276 = math.tanh %275 : vector<8x64xf32>
    %277 = vector.extract_strided_slice %266 {offsets = [0, 384], sizes = [8, 64], strides = [1, 1]} : vector<8x512xf32> to vector<8x64xf32>
    %278 = arith.negf %277 : vector<8x64xf32>
    %279 = math.exp %278 : vector<8x64xf32>
    %cst_70 = arith.constant 1.000000e+00 : f32
    %280 = vector.broadcast %cst_70 : f32 to vector<8x64xf32>
    %281 = arith.addf %280, %279 : vector<8x64xf32>
    %282 = arith.divf %280, %281 : vector<8x64xf32>
    %283 = arith.mulf %274, %209 : vector<8x64xf32>
    %284 = arith.mulf %273, %276 : vector<8x64xf32>
    %285 = arith.addf %283, %284 : vector<8x64xf32>
    %286 = math.tanh %285 : vector<8x64xf32>
    %287 = arith.mulf %282, %286 : vector<8x64xf32>
    %288 = tpu.concatenate %211, %236 in 1 : vector<8x64xf32>, vector<8x128xf32> -> vector<8x192xf32>
    %c160_71 = arith.constant 160 : index
    %c0_72 = arith.constant 0 : index
    %289 = vector.load %arg1[%c160_71, %c0_72] : memref<512x512xf32, #tpu.memory_space<vmem>>, vector<192x512xf32>
    %cst_73 = arith.constant dense<0.000000e+00> : vector<8x512xf32>
    %290 = tpu.matmul %288, %289, %cst_73 {dimension_numbers = #tpu.dot_dimension_numbers<[1], [0], [0], [1], [0, 0, 1, 1], [], []>} : vector<8x192xf32>, vector<192x512xf32>, vector<8x512xf32> -> vector<8x512xf32>
    %291 = arith.addf %290, %5 : vector<8x512xf32>
    %292 = vector.extract_strided_slice %291 {offsets = [0, 0], sizes = [8, 256], strides = [1, 1]} : vector<8x512xf32> to vector<8x256xf32>
    %293 = arith.negf %292 : vector<8x256xf32>
    %294 = math.exp %293 : vector<8x256xf32>
    %cst_74 = arith.constant 1.000000e+00 : f32
    %295 = vector.broadcast %cst_74 : f32 to vector<8x256xf32>
    %296 = arith.addf %295, %294 : vector<8x256xf32>
    %297 = arith.divf %295, %296 : vector<8x256xf32>
    %298 = vector.extract_strided_slice %297 {offsets = [0, 0], sizes = [8, 128], strides = [1, 1]} : vector<8x256xf32> to vector<8x128xf32>
    %299 = vector.extract_strided_slice %297 {offsets = [0, 128], sizes = [8, 128], strides = [1, 1]} : vector<8x256xf32> to vector<8x128xf32>
    %300 = vector.extract_strided_slice %291 {offsets = [0, 256], sizes = [8, 128], strides = [1, 1]} : vector<8x512xf32> to vector<8x128xf32>
    %301 = math.tanh %300 : vector<8x128xf32>
    %302 = vector.extract_strided_slice %291 {offsets = [0, 384], sizes = [8, 128], strides = [1, 1]} : vector<8x512xf32> to vector<8x128xf32>
    %303 = arith.negf %302 : vector<8x128xf32>
    %304 = math.exp %303 : vector<8x128xf32>
    %cst_75 = arith.constant 1.000000e+00 : f32
    %305 = vector.broadcast %cst_75 : f32 to vector<8x128xf32>
    %306 = arith.addf %305, %304 : vector<8x128xf32>
    %307 = arith.divf %305, %306 : vector<8x128xf32>
    %308 = arith.mulf %299, %234 : vector<8x128xf32>
    %309 = arith.mulf %298, %301 : vector<8x128xf32>
    %310 = arith.addf %308, %309 : vector<8x128xf32>
    %311 = math.tanh %310 : vector<8x128xf32>
    %312 = arith.mulf %307, %311 : vector<8x128xf32>
    %c16_76 = arith.constant 16 : index
    %c0_77 = arith.constant 0 : index
    %313 = vector.load %arg4[%c16_76, %c0_77] : memref<64x128xf32, #tpu.memory_space<vmem>>, vector<8x128xf32>
    tpu.vector_store %arg4[%c16_76, %c0_77], %312 {strides = array<i32>} : memref<64x128xf32, #tpu.memory_space<vmem>>, vector<8x128xf32>,
    %c40 = arith.constant 40 : index
    %c0_78 = arith.constant 0 : index
    %314 = vector.load %arg3[%c40, %c0_78] : memref<64x512xf32, #tpu.memory_space<vmem>>, vector<8x512xf32>
    %c32_79 = arith.constant 32 : index
    %c0_80 = arith.constant 0 : index
    %315 = vector.load %arg1[%c32_79, %c0_80] : memref<512x512xf32, #tpu.memory_space<vmem>>, vector<32x512xf32>
    %cst_81 = arith.constant dense<0.000000e+00> : vector<8x512xf32>
    %316 = tpu.matmul %262, %315, %cst_81 {dimension_numbers = #tpu.dot_dimension_numbers<[1], [0], [0], [1], [0, 0, 1, 1], [], []>} : vector<8x32xf32>, vector<32x512xf32>, vector<8x512xf32> -> vector<8x512xf32>
    %317 = arith.addf %314, %316 : vector<8x512xf32>
    %318 = vector.extract_strided_slice %317 {offsets = [0, 0], sizes = [8, 256], strides = [1, 1]} : vector<8x512xf32> to vector<8x256xf32>
    %319 = arith.negf %318 : vector<8x256xf32>
    %320 = math.exp %319 : vector<8x256xf32>
    %cst_82 = arith.constant 1.000000e+00 : f32
    %321 = vector.broadcast %cst_82 : f32 to vector<8x256xf32>
    %322 = arith.addf %321, %320 : vector<8x256xf32>
    %323 = arith.divf %321, %322 : vector<8x256xf32>
    %324 = vector.extract_strided_slice %323 {offsets = [0, 0], sizes = [8, 32], strides = [1, 1]} : vector<8x256xf32> to vector<8x32xf32>
    %325 = vector.extract_strided_slice %323 {offsets = [0, 128], sizes = [8, 32], strides = [1, 1]} : vector<8x256xf32> to vector<8x32xf32>
    %326 = vector.extract_strided_slice %317 {offsets = [0, 256], sizes = [8, 32], strides = [1, 1]} : vector<8x512xf32> to vector<8x32xf32>
    %327 = math.tanh %326 : vector<8x32xf32>
    %328 = vector.extract_strided_slice %317 {offsets = [0, 384], sizes = [8, 32], strides = [1, 1]} : vector<8x512xf32> to vector<8x32xf32>
    %329 = arith.negf %328 : vector<8x32xf32>
    %330 = math.exp %329 : vector<8x32xf32>
    %cst_83 = arith.constant 1.000000e+00 : f32
    %331 = vector.broadcast %cst_83 : f32 to vector<8x32xf32>
    %332 = arith.addf %331, %330 : vector<8x32xf32>
    %333 = arith.divf %331, %332 : vector<8x32xf32>
    %334 = arith.mulf %325, %260 : vector<8x32xf32>
    %335 = arith.mulf %324, %327 : vector<8x32xf32>
    %336 = arith.addf %334, %335 : vector<8x32xf32>
    %337 = math.tanh %336 : vector<8x32xf32>
    %338 = arith.mulf %333, %337 : vector<8x32xf32>
    %339 = tpu.concatenate %262, %287 in 1 : vector<8x32xf32>, vector<8x64xf32> -> vector<8x96xf32>
    %c64_84 = arith.constant 64 : index
    %c0_85 = arith.constant 0 : index
    %340 = vector.load %arg1[%c64_84, %c0_85] : memref<512x512xf32, #tpu.memory_space<vmem>>, vector<96x512xf32>
    %cst_86 = arith.constant dense<0.000000e+00> : vector<8x512xf32>
    %341 = tpu.matmul %339, %340, %cst_86 {dimension_numbers = #tpu.dot_dimension_numbers<[1], [0], [0], [1], [0, 0, 1, 1], [], []>} : vector<8x96xf32>, vector<96x512xf32>, vector<8x512xf32> -> vector<8x512xf32>
    %342 = arith.addf %341, %2 : vector<8x512xf32>
    %343 = vector.extract_strided_slice %342 {offsets = [0, 0], sizes = [8, 256], strides = [1, 1]} : vector<8x512xf32> to vector<8x256xf32>
    %344 = arith.negf %343 : vector<8x256xf32>
    %345 = math.exp %344 : vector<8x256xf32>
    %cst_87 = arith.constant 1.000000e+00 : f32
    %346 = vector.broadcast %cst_87 : f32 to vector<8x256xf32>
    %347 = arith.addf %346, %345 : vector<8x256xf32>
    %348 = arith.divf %346, %347 : vector<8x256xf32>
    %349 = vector.extract_strided_slice %348 {offsets = [0, 0], sizes = [8, 64], strides = [1, 1]} : vector<8x256xf32> to vector<8x64xf32>
    %350 = vector.extract_strided_slice %348 {offsets = [0, 128], sizes = [8, 64], strides = [1, 1]} : vector<8x256xf32> to vector<8x64xf32>
    %351 = vector.extract_strided_slice %342 {offsets = [0, 256], sizes = [8, 64], strides = [1, 1]} : vector<8x512xf32> to vector<8x64xf32>
    %352 = math.tanh %351 : vector<8x64xf32>
    %353 = vector.extract_strided_slice %342 {offsets = [0, 384], sizes = [8, 64], strides = [1, 1]} : vector<8x512xf32> to vector<8x64xf32>
    %354 = arith.negf %353 : vector<8x64xf32>
    %355 = math.exp %354 : vector<8x64xf32>
    %cst_88 = arith.constant 1.000000e+00 : f32
    %356 = vector.broadcast %cst_88 : f32 to vector<8x64xf32>
    %357 = arith.addf %356, %355 : vector<8x64xf32>
    %358 = arith.divf %356, %357 : vector<8x64xf32>
    %359 = arith.mulf %350, %285 : vector<8x64xf32>
    %360 = arith.mulf %349, %352 : vector<8x64xf32>
    %361 = arith.addf %359, %360 : vector<8x64xf32>
    %362 = math.tanh %361 : vector<8x64xf32>
    %363 = arith.mulf %358, %362 : vector<8x64xf32>
    %364 = tpu.concatenate %287, %312 in 1 : vector<8x64xf32>, vector<8x128xf32> -> vector<8x192xf32>
    %c160_89 = arith.constant 160 : index
    %c0_90 = arith.constant 0 : index
    %365 = vector.load %arg1[%c160_89, %c0_90] : memref<512x512xf32, #tpu.memory_space<vmem>>, vector<192x512xf32>
    %cst_91 = arith.constant dense<0.000000e+00> : vector<8x512xf32>
    %366 = tpu.matmul %364, %365, %cst_91 {dimension_numbers = #tpu.dot_dimension_numbers<[1], [0], [0], [1], [0, 0, 1, 1], [], []>} : vector<8x192xf32>, vector<192x512xf32>, vector<8x512xf32> -> vector<8x512xf32>
    %367 = arith.addf %366, %5 : vector<8x512xf32>
    %368 = vector.extract_strided_slice %367 {offsets = [0, 0], sizes = [8, 256], strides = [1, 1]} : vector<8x512xf32> to vector<8x256xf32>
    %369 = arith.negf %368 : vector<8x256xf32>
    %370 = math.exp %369 : vector<8x256xf32>
    %cst_92 = arith.constant 1.000000e+00 : f32
    %371 = vector.broadcast %cst_92 : f32 to vector<8x256xf32>
    %372 = arith.addf %371, %370 : vector<8x256xf32>
    %373 = arith.divf %371, %372 : vector<8x256xf32>
    %374 = vector.extract_strided_slice %373 {offsets = [0, 0], sizes = [8, 128], strides = [1, 1]} : vector<8x256xf32> to vector<8x128xf32>
    %375 = vector.extract_strided_slice %373 {offsets = [0, 128], sizes = [8, 128], strides = [1, 1]} : vector<8x256xf32> to vector<8x128xf32>
    %376 = vector.extract_strided_slice %367 {offsets = [0, 256], sizes = [8, 128], strides = [1, 1]} : vector<8x512xf32> to vector<8x128xf32>
    %377 = math.tanh %376 : vector<8x128xf32>
    %378 = vector.extract_strided_slice %367 {offsets = [0, 384], sizes = [8, 128], strides = [1, 1]} : vector<8x512xf32> to vector<8x128xf32>
    %379 = arith.negf %378 : vector<8x128xf32>
    %380 = math.exp %379 : vector<8x128xf32>
    %cst_93 = arith.constant 1.000000e+00 : f32
    %381 = vector.broadcast %cst_93 : f32 to vector<8x128xf32>
    %382 = arith.addf %381, %380 : vector<8x128xf32>
    %383 = arith.divf %381, %382 : vector<8x128xf32>
    %384 = arith.mulf %375, %310 : vector<8x128xf32>
    %385 = arith.mulf %374, %377 : vector<8x128xf32>
    %386 = arith.addf %384, %385 : vector<8x128xf32>
    %387 = math.tanh %386 : vector<8x128xf32>
    %388 = arith.mulf %383, %387 : vector<8x128xf32>
    %c24_94 = arith.constant 24 : index
    %c0_95 = arith.constant 0 : index
    %389 = vector.load %arg4[%c24_94, %c0_95] : memref<64x128xf32, #tpu.memory_space<vmem>>, vector<8x128xf32>
    tpu.vector_store %arg4[%c24_94, %c0_95], %388 {strides = array<i32>} : memref<64x128xf32, #tpu.memory_space<vmem>>, vector<8x128xf32>,
    %c48 = arith.constant 48 : index
    %c0_96 = arith.constant 0 : index
    %390 = vector.load %arg3[%c48, %c0_96] : memref<64x512xf32, #tpu.memory_space<vmem>>, vector<8x512xf32>
    %c32_97 = arith.constant 32 : index
    %c0_98 = arith.constant 0 : index
    %391 = vector.load %arg1[%c32_97, %c0_98] : memref<512x512xf32, #tpu.memory_space<vmem>>, vector<32x512xf32>
    %cst_99 = arith.constant dense<0.000000e+00> : vector<8x512xf32>
    %392 = tpu.matmul %338, %391, %cst_99 {dimension_numbers = #tpu.dot_dimension_numbers<[1], [0], [0], [1], [0, 0, 1, 1], [], []>} : vector<8x32xf32>, vector<32x512xf32>, vector<8x512xf32> -> vector<8x512xf32>
    %393 = arith.addf %390, %392 : vector<8x512xf32>
    %394 = vector.extract_strided_slice %393 {offsets = [0, 0], sizes = [8, 256], strides = [1, 1]} : vector<8x512xf32> to vector<8x256xf32>
    %395 = arith.negf %394 : vector<8x256xf32>
    %396 = math.exp %395 : vector<8x256xf32>
    %cst_100 = arith.constant 1.000000e+00 : f32
    %397 = vector.broadcast %cst_100 : f32 to vector<8x256xf32>
    %398 = arith.addf %397, %396 : vector<8x256xf32>
    %399 = arith.divf %397, %398 : vector<8x256xf32>
    %400 = vector.extract_strided_slice %399 {offsets = [0, 0], sizes = [8, 32], strides = [1, 1]} : vector<8x256xf32> to vector<8x32xf32>
    %401 = vector.extract_strided_slice %399 {offsets = [0, 128], sizes = [8, 32], strides = [1, 1]} : vector<8x256xf32> to vector<8x32xf32>
    %402 = vector.extract_strided_slice %393 {offsets = [0, 256], sizes = [8, 32], strides = [1, 1]} : vector<8x512xf32> to vector<8x32xf32>
    %403 = math.tanh %402 : vector<8x32xf32>
    %404 = vector.extract_strided_slice %393 {offsets = [0, 384], sizes = [8, 32], strides = [1, 1]} : vector<8x512xf32> to vector<8x32xf32>
    %405 = arith.negf %404 : vector<8x32xf32>
    %406 = math.exp %405 : vector<8x32xf32>
    %cst_101 = arith.constant 1.000000e+00 : f32
    %407 = vector.broadcast %cst_101 : f32 to vector<8x32xf32>
    %408 = arith.addf %407, %406 : vector<8x32xf32>
    %409 = arith.divf %407, %408 : vector<8x32xf32>
    %410 = arith.mulf %401, %336 : vector<8x32xf32>
    %411 = arith.mulf %400, %403 : vector<8x32xf32>
    %412 = arith.addf %410, %411 : vector<8x32xf32>
    %413 = math.tanh %412 : vector<8x32xf32>
    %414 = arith.mulf %409, %413 : vector<8x32xf32>
    %415 = tpu.concatenate %338, %363 in 1 : vector<8x32xf32>, vector<8x64xf32> -> vector<8x96xf32>
    %c64_102 = arith.constant 64 : index
    %c0_103 = arith.constant 0 : index
    %416 = vector.load %arg1[%c64_102, %c0_103] : memref<512x512xf32, #tpu.memory_space<vmem>>, vector<96x512xf32>
    %cst_104 = arith.constant dense<0.000000e+00> : vector<8x512xf32>
    %417 = tpu.matmul %415, %416, %cst_104 {dimension_numbers = #tpu.dot_dimension_numbers<[1], [0], [0], [1], [0, 0, 1, 1], [], []>} : vector<8x96xf32>, vector<96x512xf32>, vector<8x512xf32> -> vector<8x512xf32>
    %418 = arith.addf %417, %2 : vector<8x512xf32>
    %419 = vector.extract_strided_slice %418 {offsets = [0, 0], sizes = [8, 256], strides = [1, 1]} : vector<8x512xf32> to vector<8x256xf32>
    %420 = arith.negf %419 : vector<8x256xf32>
    %421 = math.exp %420 : vector<8x256xf32>
    %cst_105 = arith.constant 1.000000e+00 : f32
    %422 = vector.broadcast %cst_105 : f32 to vector<8x256xf32>
    %423 = arith.addf %422, %421 : vector<8x256xf32>
    %424 = arith.divf %422, %423 : vector<8x256xf32>
    %425 = vector.extract_strided_slice %424 {offsets = [0, 0], sizes = [8, 64], strides = [1, 1]} : vector<8x256xf32> to vector<8x64xf32>
    %426 = vector.extract_strided_slice %424 {offsets = [0, 128], sizes = [8, 64], strides = [1, 1]} : vector<8x256xf32> to vector<8x64xf32>
    %427 = vector.extract_strided_slice %418 {offsets = [0, 256], sizes = [8, 64], strides = [1, 1]} : vector<8x512xf32> to vector<8x64xf32>
    %428 = math.tanh %427 : vector<8x64xf32>
    %429 = vector.extract_strided_slice %418 {offsets = [0, 384], sizes = [8, 64], strides = [1, 1]} : vector<8x512xf32> to vector<8x64xf32>
    %430 = arith.negf %429 : vector<8x64xf32>
    %431 = math.exp %430 : vector<8x64xf32>
    %cst_106 = arith.constant 1.000000e+00 : f32
    %432 = vector.broadcast %cst_106 : f32 to vector<8x64xf32>
    %433 = arith.addf %432, %431 : vector<8x64xf32>
    %434 = arith.divf %432, %433 : vector<8x64xf32>
    %435 = arith.mulf %426, %361 : vector<8x64xf32>
    %436 = arith.mulf %425, %428 : vector<8x64xf32>
    %437 = arith.addf %435, %436 : vector<8x64xf32>
    %438 = math.tanh %437 : vector<8x64xf32>
    %439 = arith.mulf %434, %438 : vector<8x64xf32>
    %440 = tpu.concatenate %363, %388 in 1 : vector<8x64xf32>, vector<8x128xf32> -> vector<8x192xf32>
    %c160_107 = arith.constant 160 : index
    %c0_108 = arith.constant 0 : index
    %441 = vector.load %arg1[%c160_107, %c0_108] : memref<512x512xf32, #tpu.memory_space<vmem>>, vector<192x512xf32>
    %cst_109 = arith.constant dense<0.000000e+00> : vector<8x512xf32>
    %442 = tpu.matmul %440, %441, %cst_109 {dimension_numbers = #tpu.dot_dimension_numbers<[1], [0], [0], [1], [0, 0, 1, 1], [], []>} : vector<8x192xf32>, vector<192x512xf32>, vector<8x512xf32> -> vector<8x512xf32>
    %443 = arith.addf %442, %5 : vector<8x512xf32>
    %444 = vector.extract_strided_slice %443 {offsets = [0, 0], sizes = [8, 256], strides = [1, 1]} : vector<8x512xf32> to vector<8x256xf32>
    %445 = arith.negf %444 : vector<8x256xf32>
    %446 = math.exp %445 : vector<8x256xf32>
    %cst_110 = arith.constant 1.000000e+00 : f32
    %447 = vector.broadcast %cst_110 : f32 to vector<8x256xf32>
    %448 = arith.addf %447, %446 : vector<8x256xf32>
    %449 = arith.divf %447, %448 : vector<8x256xf32>
    %450 = vector.extract_strided_slice %449 {offsets = [0, 0], sizes = [8, 128], strides = [1, 1]} : vector<8x256xf32> to vector<8x128xf32>
    %451 = vector.extract_strided_slice %449 {offsets = [0, 128], sizes = [8, 128], strides = [1, 1]} : vector<8x256xf32> to vector<8x128xf32>
    %452 = vector.extract_strided_slice %443 {offsets = [0, 256], sizes = [8, 128], strides = [1, 1]} : vector<8x512xf32> to vector<8x128xf32>
    %453 = math.tanh %452 : vector<8x128xf32>
    %454 = vector.extract_strided_slice %443 {offsets = [0, 384], sizes = [8, 128], strides = [1, 1]} : vector<8x512xf32> to vector<8x128xf32>
    %455 = arith.negf %454 : vector<8x128xf32>
    %456 = math.exp %455 : vector<8x128xf32>
    %cst_111 = arith.constant 1.000000e+00 : f32
    %457 = vector.broadcast %cst_111 : f32 to vector<8x128xf32>
    %458 = arith.addf %457, %456 : vector<8x128xf32>
    %459 = arith.divf %457, %458 : vector<8x128xf32>
    %460 = arith.mulf %451, %386 : vector<8x128xf32>
    %461 = arith.mulf %450, %453 : vector<8x128xf32>
    %462 = arith.addf %460, %461 : vector<8x128xf32>
    %463 = math.tanh %462 : vector<8x128xf32>
    %464 = arith.mulf %459, %463 : vector<8x128xf32>
    %c32_112 = arith.constant 32 : index
    %c0_113 = arith.constant 0 : index
    %465 = vector.load %arg4[%c32_112, %c0_113] : memref<64x128xf32, #tpu.memory_space<vmem>>, vector<8x128xf32>
    tpu.vector_store %arg4[%c32_112, %c0_113], %464 {strides = array<i32>} : memref<64x128xf32, #tpu.memory_space<vmem>>, vector<8x128xf32>,
    %c56 = arith.constant 56 : index
    %c0_114 = arith.constant 0 : index
    %466 = vector.load %arg3[%c56, %c0_114] : memref<64x512xf32, #tpu.memory_space<vmem>>, vector<8x512xf32>
    %c32_115 = arith.constant 32 : index
    %c0_116 = arith.constant 0 : index
    %467 = vector.load %arg1[%c32_115, %c0_116] : memref<512x512xf32, #tpu.memory_space<vmem>>, vector<32x512xf32>
    %cst_117 = arith.constant dense<0.000000e+00> : vector<8x512xf32>
    %468 = tpu.matmul %414, %467, %cst_117 {dimension_numbers = #tpu.dot_dimension_numbers<[1], [0], [0], [1], [0, 0, 1, 1], [], []>} : vector<8x32xf32>, vector<32x512xf32>, vector<8x512xf32> -> vector<8x512xf32>
    %469 = arith.addf %466, %468 : vector<8x512xf32>
    %470 = vector.extract_strided_slice %469 {offsets = [0, 0], sizes = [8, 256], strides = [1, 1]} : vector<8x512xf32> to vector<8x256xf32>
    %471 = arith.negf %470 : vector<8x256xf32>
    %472 = math.exp %471 : vector<8x256xf32>
    %cst_118 = arith.constant 1.000000e+00 : f32
    %473 = vector.broadcast %cst_118 : f32 to vector<8x256xf32>
    %474 = arith.addf %473, %472 : vector<8x256xf32>
    %475 = arith.divf %473, %474 : vector<8x256xf32>
    %476 = vector.extract_strided_slice %475 {offsets = [0, 0], sizes = [8, 32], strides = [1, 1]} : vector<8x256xf32> to vector<8x32xf32>
    %477 = vector.extract_strided_slice %475 {offsets = [0, 128], sizes = [8, 32], strides = [1, 1]} : vector<8x256xf32> to vector<8x32xf32>
    %478 = vector.extract_strided_slice %469 {offsets = [0, 256], sizes = [8, 32], strides = [1, 1]} : vector<8x512xf32> to vector<8x32xf32>
    %479 = math.tanh %478 : vector<8x32xf32>
    %480 = vector.extract_strided_slice %469 {offsets = [0, 384], sizes = [8, 32], strides = [1, 1]} : vector<8x512xf32> to vector<8x32xf32>
    %481 = arith.negf %480 : vector<8x32xf32>
    %482 = math.exp %481 : vector<8x32xf32>
    %cst_119 = arith.constant 1.000000e+00 : f32
    %483 = vector.broadcast %cst_119 : f32 to vector<8x32xf32>
    %484 = arith.addf %483, %482 : vector<8x32xf32>
    %485 = arith.divf %483, %484 : vector<8x32xf32>
    %486 = arith.mulf %477, %412 : vector<8x32xf32>
    %487 = arith.mulf %476, %479 : vector<8x32xf32>
    %488 = arith.addf %486, %487 : vector<8x32xf32>
    %489 = math.tanh %488 : vector<8x32xf32>
    %490 = arith.mulf %485, %489 : vector<8x32xf32>
    %491 = tpu.concatenate %414, %439 in 1 : vector<8x32xf32>, vector<8x64xf32> -> vector<8x96xf32>
    %c64_120 = arith.constant 64 : index
    %c0_121 = arith.constant 0 : index
    %492 = vector.load %arg1[%c64_120, %c0_121] : memref<512x512xf32, #tpu.memory_space<vmem>>, vector<96x512xf32>
    %cst_122 = arith.constant dense<0.000000e+00> : vector<8x512xf32>
    %493 = tpu.matmul %491, %492, %cst_122 {dimension_numbers = #tpu.dot_dimension_numbers<[1], [0], [0], [1], [0, 0, 1, 1], [], []>} : vector<8x96xf32>, vector<96x512xf32>, vector<8x512xf32> -> vector<8x512xf32>
    %494 = arith.addf %493, %2 : vector<8x512xf32>
    %495 = vector.extract_strided_slice %494 {offsets = [0, 0], sizes = [8, 256], strides = [1, 1]} : vector<8x512xf32> to vector<8x256xf32>
    %496 = arith.negf %495 : vector<8x256xf32>
    %497 = math.exp %496 : vector<8x256xf32>
    %cst_123 = arith.constant 1.000000e+00 : f32
    %498 = vector.broadcast %cst_123 : f32 to vector<8x256xf32>
    %499 = arith.addf %498, %497 : vector<8x256xf32>
    %500 = arith.divf %498, %499 : vector<8x256xf32>
    %501 = vector.extract_strided_slice %500 {offsets = [0, 0], sizes = [8, 64], strides = [1, 1]} : vector<8x256xf32> to vector<8x64xf32>
    %502 = vector.extract_strided_slice %500 {offsets = [0, 128], sizes = [8, 64], strides = [1, 1]} : vector<8x256xf32> to vector<8x64xf32>
    %503 = vector.extract_strided_slice %494 {offsets = [0, 256], sizes = [8, 64], strides = [1, 1]} : vector<8x512xf32> to vector<8x64xf32>
    %504 = math.tanh %503 : vector<8x64xf32>
    %505 = vector.extract_strided_slice %494 {offsets = [0, 384], sizes = [8, 64], strides = [1, 1]} : vector<8x512xf32> to vector<8x64xf32>
    %506 = arith.negf %505 : vector<8x64xf32>
    %507 = math.exp %506 : vector<8x64xf32>
    %cst_124 = arith.constant 1.000000e+00 : f32
    %508 = vector.broadcast %cst_124 : f32 to vector<8x64xf32>
    %509 = arith.addf %508, %507 : vector<8x64xf32>
    %510 = arith.divf %508, %509 : vector<8x64xf32>
    %511 = arith.mulf %502, %437 : vector<8x64xf32>
    %512 = arith.mulf %501, %504 : vector<8x64xf32>
    %513 = arith.addf %511, %512 : vector<8x64xf32>
    %514 = math.tanh %513 : vector<8x64xf32>
    %515 = arith.mulf %510, %514 : vector<8x64xf32>
    %516 = tpu.concatenate %439, %464 in 1 : vector<8x64xf32>, vector<8x128xf32> -> vector<8x192xf32>
    %c160_125 = arith.constant 160 : index
    %c0_126 = arith.constant 0 : index
    %517 = vector.load %arg1[%c160_125, %c0_126] : memref<512x512xf32, #tpu.memory_space<vmem>>, vector<192x512xf32>
    %cst_127 = arith.constant dense<0.000000e+00> : vector<8x512xf32>
    %518 = tpu.matmul %516, %517, %cst_127 {dimension_numbers = #tpu.dot_dimension_numbers<[1], [0], [0], [1], [0, 0, 1, 1], [], []>} : vector<8x192xf32>, vector<192x512xf32>, vector<8x512xf32> -> vector<8x512xf32>
    %519 = arith.addf %518, %5 : vector<8x512xf32>
    %520 = vector.extract_strided_slice %519 {offsets = [0, 0], sizes = [8, 256], strides = [1, 1]} : vector<8x512xf32> to vector<8x256xf32>
    %521 = arith.negf %520 : vector<8x256xf32>
    %522 = math.exp %521 : vector<8x256xf32>
    %cst_128 = arith.constant 1.000000e+00 : f32
    %523 = vector.broadcast %cst_128 : f32 to vector<8x256xf32>
    %524 = arith.addf %523, %522 : vector<8x256xf32>
    %525 = arith.divf %523, %524 : vector<8x256xf32>
    %526 = vector.extract_strided_slice %525 {offsets = [0, 0], sizes = [8, 128], strides = [1, 1]} : vector<8x256xf32> to vector<8x128xf32>
    %527 = vector.extract_strided_slice %525 {offsets = [0, 128], sizes = [8, 128], strides = [1, 1]} : vector<8x256xf32> to vector<8x128xf32>
    %528 = vector.extract_strided_slice %519 {offsets = [0, 256], sizes = [8, 128], strides = [1, 1]} : vector<8x512xf32> to vector<8x128xf32>
    %529 = math.tanh %528 : vector<8x128xf32>
    %530 = vector.extract_strided_slice %519 {offsets = [0, 384], sizes = [8, 128], strides = [1, 1]} : vector<8x512xf32> to vector<8x128xf32>
    %531 = arith.negf %530 : vector<8x128xf32>
    %532 = math.exp %531 : vector<8x128xf32>
    %cst_129 = arith.constant 1.000000e+00 : f32
    %533 = vector.broadcast %cst_129 : f32 to vector<8x128xf32>
    %534 = arith.addf %533, %532 : vector<8x128xf32>
    %535 = arith.divf %533, %534 : vector<8x128xf32>
    %536 = arith.mulf %527, %462 : vector<8x128xf32>
    %537 = arith.mulf %526, %529 : vector<8x128xf32>
    %538 = arith.addf %536, %537 : vector<8x128xf32>
    %539 = math.tanh %538 : vector<8x128xf32>
    %540 = arith.mulf %535, %539 : vector<8x128xf32>
    %c40_130 = arith.constant 40 : index
    %c0_131 = arith.constant 0 : index
    %541 = vector.load %arg4[%c40_130, %c0_131] : memref<64x128xf32, #tpu.memory_space<vmem>>, vector<8x128xf32>
    tpu.vector_store %arg4[%c40_130, %c0_131], %540 {strides = array<i32>} : memref<64x128xf32, #tpu.memory_space<vmem>>, vector<8x128xf32>,
    %542 = tpu.concatenate %490, %515 in 1 : vector<8x32xf32>, vector<8x64xf32> -> vector<8x96xf32>
    %c64_132 = arith.constant 64 : index
    %c0_133 = arith.constant 0 : index
    %543 = vector.load %arg1[%c64_132, %c0_133] : memref<512x512xf32, #tpu.memory_space<vmem>>, vector<96x512xf32>
    %cst_134 = arith.constant dense<0.000000e+00> : vector<8x512xf32>
    %544 = tpu.matmul %542, %543, %cst_134 {dimension_numbers = #tpu.dot_dimension_numbers<[1], [0], [0], [1], [0, 0, 1, 1], [], []>} : vector<8x96xf32>, vector<96x512xf32>, vector<8x512xf32> -> vector<8x512xf32>
    %545 = arith.addf %544, %2 : vector<8x512xf32>
    %546 = vector.extract_strided_slice %545 {offsets = [0, 0], sizes = [8, 256], strides = [1, 1]} : vector<8x512xf32> to vector<8x256xf32>
    %547 = arith.negf %546 : vector<8x256xf32>
    %548 = math.exp %547 : vector<8x256xf32>
    %cst_135 = arith.constant 1.000000e+00 : f32
    %549 = vector.broadcast %cst_135 : f32 to vector<8x256xf32>
    %550 = arith.addf %549, %548 : vector<8x256xf32>
    %551 = arith.divf %549, %550 : vector<8x256xf32>
    %552 = vector.extract_strided_slice %551 {offsets = [0, 0], sizes = [8, 64], strides = [1, 1]} : vector<8x256xf32> to vector<8x64xf32>
    %553 = vector.extract_strided_slice %551 {offsets = [0, 128], sizes = [8, 64], strides = [1, 1]} : vector<8x256xf32> to vector<8x64xf32>
    %554 = vector.extract_strided_slice %545 {offsets = [0, 256], sizes = [8, 64], strides = [1, 1]} : vector<8x512xf32> to vector<8x64xf32>
    %555 = math.tanh %554 : vector<8x64xf32>
    %556 = vector.extract_strided_slice %545 {offsets = [0, 384], sizes = [8, 64], strides = [1, 1]} : vector<8x512xf32> to vector<8x64xf32>
    %557 = arith.negf %556 : vector<8x64xf32>
    %558 = math.exp %557 : vector<8x64xf32>
    %cst_136 = arith.constant 1.000000e+00 : f32
    %559 = vector.broadcast %cst_136 : f32 to vector<8x64xf32>
    %560 = arith.addf %559, %558 : vector<8x64xf32>
    %561 = arith.divf %559, %560 : vector<8x64xf32>
    %562 = arith.mulf %553, %513 : vector<8x64xf32>
    %563 = arith.mulf %552, %555 : vector<8x64xf32>
    %564 = arith.addf %562, %563 : vector<8x64xf32>
    %565 = math.tanh %564 : vector<8x64xf32>
    %566 = arith.mulf %561, %565 : vector<8x64xf32>
    %567 = tpu.concatenate %515, %540 in 1 : vector<8x64xf32>, vector<8x128xf32> -> vector<8x192xf32>
    %c160_137 = arith.constant 160 : index
    %c0_138 = arith.constant 0 : index
    %568 = vector.load %arg1[%c160_137, %c0_138] : memref<512x512xf32, #tpu.memory_space<vmem>>, vector<192x512xf32>
    %cst_139 = arith.constant dense<0.000000e+00> : vector<8x512xf32>
    %569 = tpu.matmul %567, %568, %cst_139 {dimension_numbers = #tpu.dot_dimension_numbers<[1], [0], [0], [1], [0, 0, 1, 1], [], []>} : vector<8x192xf32>, vector<192x512xf32>, vector<8x512xf32> -> vector<8x512xf32>
    %570 = arith.addf %569, %5 : vector<8x512xf32>
    %571 = vector.extract_strided_slice %570 {offsets = [0, 0], sizes = [8, 256], strides = [1, 1]} : vector<8x512xf32> to vector<8x256xf32>
    %572 = arith.negf %571 : vector<8x256xf32>
    %573 = math.exp %572 : vector<8x256xf32>
    %cst_140 = arith.constant 1.000000e+00 : f32
    %574 = vector.broadcast %cst_140 : f32 to vector<8x256xf32>
    %575 = arith.addf %574, %573 : vector<8x256xf32>
    %576 = arith.divf %574, %575 : vector<8x256xf32>
    %577 = vector.extract_strided_slice %576 {offsets = [0, 0], sizes = [8, 128], strides = [1, 1]} : vector<8x256xf32> to vector<8x128xf32>
    %578 = vector.extract_strided_slice %576 {offsets = [0, 128], sizes = [8, 128], strides = [1, 1]} : vector<8x256xf32> to vector<8x128xf32>
    %579 = vector.extract_strided_slice %570 {offsets = [0, 256], sizes = [8, 128], strides = [1, 1]} : vector<8x512xf32> to vector<8x128xf32>
    %580 = math.tanh %579 : vector<8x128xf32>
    %581 = vector.extract_strided_slice %570 {offsets = [0, 384], sizes = [8, 128], strides = [1, 1]} : vector<8x512xf32> to vector<8x128xf32>
    %582 = arith.negf %581 : vector<8x128xf32>
    %583 = math.exp %582 : vector<8x128xf32>
    %cst_141 = arith.constant 1.000000e+00 : f32
    %584 = vector.broadcast %cst_141 : f32 to vector<8x128xf32>
    %585 = arith.addf %584, %583 : vector<8x128xf32>
    %586 = arith.divf %584, %585 : vector<8x128xf32>
    %587 = arith.mulf %578, %538 : vector<8x128xf32>
    %588 = arith.mulf %577, %580 : vector<8x128xf32>
    %589 = arith.addf %587, %588 : vector<8x128xf32>
    %590 = math.tanh %589 : vector<8x128xf32>
    %591 = arith.mulf %586, %590 : vector<8x128xf32>
    %c48_142 = arith.constant 48 : index
    %c0_143 = arith.constant 0 : index
    %592 = vector.load %arg4[%c48_142, %c0_143] : memref<64x128xf32, #tpu.memory_space<vmem>>, vector<8x128xf32>
    tpu.vector_store %arg4[%c48_142, %c0_143], %591 {strides = array<i32>} : memref<64x128xf32, #tpu.memory_space<vmem>>, vector<8x128xf32>,
    %593 = tpu.concatenate %566, %591 in 1 : vector<8x64xf32>, vector<8x128xf32> -> vector<8x192xf32>
    %c160_144 = arith.constant 160 : index
    %c0_145 = arith.constant 0 : index
    %594 = vector.load %arg1[%c160_144, %c0_145] : memref<512x512xf32, #tpu.memory_space<vmem>>, vector<192x512xf32>
    %cst_146 = arith.constant dense<0.000000e+00> : vector<8x512xf32>
    %595 = tpu.matmul %593, %594, %cst_146 {dimension_numbers = #tpu.dot_dimension_numbers<[1], [0], [0], [1], [0, 0, 1, 1], [], []>} : vector<8x192xf32>, vector<192x512xf32>, vector<8x512xf32> -> vector<8x512xf32>
    %596 = arith.addf %595, %5 : vector<8x512xf32>
    %597 = vector.extract_strided_slice %596 {offsets = [0, 0], sizes = [8, 256], strides = [1, 1]} : vector<8x512xf32> to vector<8x256xf32>
    %598 = arith.negf %597 : vector<8x256xf32>
    %599 = math.exp %598 : vector<8x256xf32>
    %cst_147 = arith.constant 1.000000e+00 : f32
    %600 = vector.broadcast %cst_147 : f32 to vector<8x256xf32>
    %601 = arith.addf %600, %599 : vector<8x256xf32>
    %602 = arith.divf %600, %601 : vector<8x256xf32>
    %603 = vector.extract_strided_slice %602 {offsets = [0, 0], sizes = [8, 128], strides = [1, 1]} : vector<8x256xf32> to vector<8x128xf32>
    %604 = vector.extract_strided_slice %602 {offsets = [0, 128], sizes = [8, 128], strides = [1, 1]} : vector<8x256xf32> to vector<8x128xf32>
    %605 = vector.extract_strided_slice %596 {offsets = [0, 256], sizes = [8, 128], strides = [1, 1]} : vector<8x512xf32> to vector<8x128xf32>
    %606 = math.tanh %605 : vector<8x128xf32>
    %607 = vector.extract_strided_slice %596 {offsets = [0, 384], sizes = [8, 128], strides = [1, 1]} : vector<8x512xf32> to vector<8x128xf32>
    %608 = arith.negf %607 : vector<8x128xf32>
    %609 = math.exp %608 : vector<8x128xf32>
    %cst_148 = arith.constant 1.000000e+00 : f32
    %610 = vector.broadcast %cst_148 : f32 to vector<8x128xf32>
    %611 = arith.addf %610, %609 : vector<8x128xf32>
    %612 = arith.divf %610, %611 : vector<8x128xf32>
    %613 = arith.mulf %604, %589 : vector<8x128xf32>
    %614 = arith.mulf %603, %606 : vector<8x128xf32>
    %615 = arith.addf %613, %614 : vector<8x128xf32>
    %616 = math.tanh %615 : vector<8x128xf32>
    %617 = arith.mulf %612, %616 : vector<8x128xf32>
    %c56_149 = arith.constant 56 : index
    %c0_150 = arith.constant 0 : index
    %618 = vector.load %arg4[%c56_149, %c0_150] : memref<64x128xf32, #tpu.memory_space<vmem>>, vector<8x128xf32>
    tpu.vector_store %arg4[%c56_149, %c0_150], %617 {strides = array<i32>} : memref<64x128xf32, #tpu.memory_space<vmem>>, vector<8x128xf32>,
    %c0_151 = arith.constant 0 : index
    %c0_152 = arith.constant 0 : index
    %619 = vector.load %arg4[%c0_151, %c0_152] : memref<64x128xf32, #tpu.memory_space<vmem>>, vector<64x128xf32>
    %c352 = arith.constant 352 : index
    %c0_153 = arith.constant 0 : index
    %620 = vector.load %arg1[%c352, %c0_153] : memref<512x512xf32, #tpu.memory_space<vmem>>, vector<128x128xf32>
    %cst_154 = arith.constant dense<0.000000e+00> : vector<64x128xf32>
    %621 = tpu.matmul %619, %620, %cst_154 {dimension_numbers = #tpu.dot_dimension_numbers<[1], [0], [0], [1], [0, 0, 1, 1], [], []>} : vector<64x128xf32>, vector<128x128xf32>, vector<64x128xf32> -> vector<64x128xf32>
    %c504 = arith.constant 504 : index
    %c0_155 = arith.constant 0 : index
    %622 = vector.load %arg1[%c504, %c0_155] : memref<512x512xf32, #tpu.memory_space<vmem>>, vector<1x128xf32>
    %623 = vector.broadcast %622 : vector<1x128xf32> to vector<64x128xf32>
    %624 = arith.addf %621, %623 : vector<64x128xf32>
    %c0_156 = arith.constant 0 : index
    %c0_157 = arith.constant 0 : index
    %625 = vector.load %arg2[%c0_156, %c0_157] : memref<64x128xf32, #tpu.memory_space<vmem>>, vector<64x128xf32>
    tpu.vector_store %arg2[%c0_156, %c0_157], %624 {strides = array<i32>} : memref<64x128xf32, #tpu.memory_space<vmem>>, vector<64x128xf32>,
    return
  }
}

</mosaic_0001>

<llo_original>
// kernel: tpu_custom_call.1
$region0: #{tpu_custom_call.1}
  #allocation0 [shape = 'u32[]', space=smem, size = 0x4, offset = 0x4, fixed_abs, tag = 'smem constant byte address 0x4 - core index']
  #allocation1 [shape = 'u32[144,128]{1,0:T(1,128)}', space=vmem, size = 0x12000, scoped, tag = 'internal scratch']
  #allocation2 [shape = 'f32[64,512]{1,0:T(8,128)}', space=vmem, size = 0x20000, scoped, tag = 'scratch operand']
  #allocation3 [shape = 'f32[64,128]{1,0:T(8,128)}', space=vmem, size = 0x8000, scoped, tag = 'scratch operand']
  %s0 = inlined_call_operand.vmem [shape: f32[64,32], index: 0, kind: input, shape index: {}]
  %s1 = inlined_call_operand.hbm [shape: f32[512,512], index: 1, kind: input, shape index: {}]
  %s2 = inlined_call_operand.hbm [shape: f32[64,128], index: 2, kind: output, shape index: {}]
  %s3 = sld [smem:[#allocation0]]
  $region22: #{tpu_custom_call.1} parent=0
    _
  %s5 = ssub.s32 1, %s3
  %s6 = scalar_select 0, %s5, %s3
  $region1: #{tpu_custom_call.1} parent=0
    #allocation4 [shape = 'u8[1048576]{0}', space=vmem, size = 0x100000, scoped, tag = 'input window, operand 1, single buffered']
    #allocation5 [shape = 's32[1]{0}', space=sflag, size = 0x4, scoped, tag = 'scoped memory for tpu_custom_call.1']
    #allocation6 [shape = 's32[1]{0}', space=sflag, size = 0x4, scoped, tag = 'scoped memory for tpu_custom_call.1']
    #allocation7 [shape = 'u8[32768]{0}', space=vmem, size = 0x8000, scoped, tag = 'output window, operand 0, single buffered']
    %7 = vsyncpa [#allocation5], 0
    %8 = vsyncpa [#allocation6], 0
    // Predicated region
    $region2: #{tpu_custom_call.1} parent=1 // pred_check
      _
    $region3: #{tpu_custom_call.1} parent=1 // pred_check_branch
      %10 = sbr.rel (0) target = $region5
    $region4: #{tpu_custom_call.1} parent=1 // pred_region
      _
    $region5: #{tpu_custom_call.1} parent=1 // pred_fallthru
      _
    // Predicated region
    $region6: #{tpu_custom_call.1} parent=1 // pred_check
      _
    $region7: #{tpu_custom_call.1} parent=1 // pred_check_branch
      %12 = sbr.rel (0) target = $region9
    $region8: #{tpu_custom_call.1} parent=1 // pred_region
      %s14 = ssub.s32 32768, 32768
      %15 = vsyncadd [#allocation5], %s14
      %s16 = sshll.u32 [#allocation4], 4
      %s17 = int_to_ptr.vmem [resolvable:$true] %s16
      %22 = dma.hbm_to_vmem [thread:$0]  %s1, 32768, %s17, [#allocation5], 512, 512, 32
    $region9: #{tpu_custom_call.1} parent=1 // pred_fallthru
      _
    // Predicated region
    $region10: #{tpu_custom_call.1} parent=1 // pred_check
      _
    $region11: #{tpu_custom_call.1} parent=1 // pred_check_branch
      %24 = sbr.rel (0) target = $region13
    $region12: #{tpu_custom_call.1} parent=1 // pred_region
      %25 = dma.done [#allocation5], 32768
    $region13: #{tpu_custom_call.1} parent=1 // pred_fallthru
      _
    %s26 = scalar_lea.vmem [#allocation4], 1952
    %v27 = vld [vmem:[%s26] ss:$8 sm:$0xf]
    %v29 = vlaneseq
    %v30 = vshrl.u32 %v29, 7
    %v31 = vsub.s32 0, %v30
    %v32 = vrot.slane %v27, %v31
    %v33 = vlaneseq
    %v34 = vshrl.u32 %v33, 7
    %v35 = vsub.s32 1, %v34
    %v36 = vrot.slane %v27, %v35
    %v37 = vlaneseq
    %v38 = vshrl.u32 %v37, 7
    %v39 = vsub.s32 2, %v38
    %v40 = vrot.slane %v27, %v39
    %v41 = vlaneseq
    %v42 = vshrl.u32 %v41, 7
    %v43 = vsub.s32 3, %v42
    %v44 = vrot.slane %v27, %v43
    %s49 = scalar_lea.vmem [#allocation4], 1984
    %v50 = vld [vmem:[%s49] ss:$8 sm:$0xf]
    %v52 = vlaneseq
    %v53 = vshrl.u32 %v52, 7
    %v54 = vsub.s32 0, %v53
    %v55 = vrot.slane %v50, %v54
    %v56 = vlaneseq
    %v57 = vshrl.u32 %v56, 7
    %v58 = vsub.s32 1, %v57
    %v59 = vrot.slane %v50, %v58
    %v60 = vlaneseq
    %v61 = vshrl.u32 %v60, 7
    %v62 = vsub.s32 2, %v61
    %v63 = vrot.slane %v50, %v62
    %v64 = vlaneseq
    %v65 = vshrl.u32 %v64, 7
    %v66 = vsub.s32 3, %v65
    %v67 = vrot.slane %v50, %v66
    %v72 = vld [vmem:[%s0] sm:$0xff]
    %v73 = vld [vmem:[%s0 + $0x8] sm:$0xff]
    %v74 = vld [vmem:[%s0 + $0x10] sm:$0xff]
    %v75 = vld [vmem:[%s0 + $0x18] sm:$0xff]
    %v76 = vld [vmem:[%s0 + $0x20] sm:$0xff]
    %v77 = vld [vmem:[%s0 + $0x28] sm:$0xff]
    %v78 = vld [vmem:[%s0 + $0x30] sm:$0xff]
    %v79 = vld [vmem:[%s0 + $0x38] sm:$0xff]
    %v80 = vld [vmem:[#allocation4] sm:$0xff]
    %v81 = vld [vmem:[#allocation4 + $0x8] sm:$0xff]
    %v82 = vld [vmem:[#allocation4 + $0x10] sm:$0xff]
    %v83 = vld [vmem:[#allocation4 + $0x18] sm:$0xff]
    %v84 = vld [vmem:[#allocation4 + $0x20] sm:$0xff]
    %v85 = vld [vmem:[#allocation4 + $0x28] sm:$0xff]
    %v86 = vld [vmem:[#allocation4 + $0x30] sm:$0xff]
    %v87 = vld [vmem:[#allocation4 + $0x38] sm:$0xff]
    %v88 = vld [vmem:[#allocation4 + $0x40] sm:$0xff]
    %v89 = vld [vmem:[#allocation4 + $0x48] sm:$0xff]
    %v90 = vld [vmem:[#allocation4 + $0x50] sm:$0xff]
    %v91 = vld [vmem:[#allocation4 + $0x58] sm:$0xff]
    %v92 = vld [vmem:[#allocation4 + $0x60] sm:$0xff]
    %v93 = vld [vmem:[#allocation4 + $0x68] sm:$0xff]
    %v94 = vld [vmem:[#allocation4 + $0x70] sm:$0xff]
    %v95 = vld [vmem:[#allocation4 + $0x78] sm:$0xff]
    %s96 = scalar_lea.vmem [#allocation4], 1920
    %v97 = vld [vmem:[%s96] ss:$8 sm:$0xf]
    %v99 = vlaneseq
    %v100 = vshrl.u32 %v99, 7
    %v101 = vsub.s32 0, %v100
    %v102 = vrot.slane %v97, %v101
    %v103 = vlaneseq
    %v104 = vshrl.u32 %v103, 7
    %v105 = vsub.s32 1, %v104
    %v106 = vrot.slane %v97, %v105
    %v107 = vlaneseq
    %v108 = vshrl.u32 %v107, 7
    %v109 = vsub.s32 2, %v108
    %v110 = vrot.slane %v97, %v109
    %v111 = vlaneseq
    %v112 = vshrl.u32 %v111, 7
    %v113 = vsub.s32 3, %v112
    %v114 = vrot.slane %v97, %v113
    %vm119 = vcmask 261120
    %v121 = vsel %vm119, %v72, 0
    %v124 = vsel %vm119, %v73, 0
    %v127 = vsel %vm119, %v74, 0
    %v130 = vsel %vm119, %v75, 0
    %v133 = vsel %vm119, %v76, 0
    %v136 = vsel %vm119, %v77, 0
    %v139 = vsel %vm119, %v78, 0
    %v142 = vsel %vm119, %v79, 0
    %144 = vmatprep.subr.mxu0 %v81
    %145 = vmatpush1.msra.mxu0 %v80
    %146 = vmatprep.subr.mxu0 %v85
    %147 = vmatpush1.msra.mxu0 %v84
    %148 = vmatprep.subr.mxu0 %v89
    %149 = vmatpush1.msra.mxu0 %v88
    %150 = vmatprep.subr.mxu0 %v93
    %151 = vmatpush1.msra.mxu0 %v92
    %152 = vmatprep.subr.mxu0 0.0
    %153 = vmatpush1.msra.mxu0 0.0
    %154 = vmatprep.subr.mxu0 0.0
    %155 = vmatpush1.msra.mxu0 0.0
    %156 = vmatprep.subr.mxu0 0.0
    %157 = vmatpush1.msra.mxu0 0.0
    %158 = vmatprep.subr.mxu0 0.0
    %159 = vmatpush1.msra.mxu0 0.0
    %160 = vmatprep.subr.mxu0 0.0
    %161 = vmatpush1.msra.mxu0 0.0
    %162 = vmatprep.subr.mxu0 0.0
    %163 = vmatpush1.msra.mxu0 0.0
    %164 = vmatprep.subr.mxu0 0.0
    %165 = vmatpush1.msra.mxu0 0.0
    %166 = vmatprep.subr.mxu0 0.0
    %167 = vmatpush1.msra.mxu0 0.0
    %168 = vmatprep.subr.mxu0 0.0
    %169 = vmatpush1.msra.mxu0 0.0
    %170 = vmatprep.subr.mxu0 0.0
    %171 = vmatpush1.msra.mxu0 0.0
    %172 = vmatprep.subr.mxu0 0.0
    %173 = vmatpush1.msra.mxu0 0.0
    %174 = vmatprep.subr.mxu0 0.0
    %175 = vmatpush1.msra.mxu0 0.0
    %176 = vmatprep.subr.mxu0 0.0
    %177 = vmatpush1.msra.mxu0 0.0
    %178 = vmatprep.subr.mxu0 0.0
    %179 = vmatpush1.msra.mxu0 0.0
    %180 = vmatprep.subr.mxu0 0.0
    %181 = vmatpush1.msra.mxu0 0.0
    %182 = vmatprep.subr.mxu0 0.0
    %183 = vmatpush1.msra.mxu0 0.0
    %184 = vmatprep.subr.mxu0 0.0
    %185 = vmatpush1.msra.mxu0 0.0
    %186 = vmatprep.subr.mxu0 0.0
    %187 = vmatpush1.msra.mxu0 0.0
    %188 = vmatprep.subr.mxu0 0.0
    %189 = vmatpush1.msra.mxu0 0.0
    %190 = vmatprep.subr.mxu0 0.0
    %191 = vmatpush1.msra.mxu0 0.0
    %192 = vmatprep.subr.mxu0 0.0
    %193 = vmatpush1.msra.mxu0 0.0
    %194 = vmatprep.subr.mxu0 0.0
    %195 = vmatpush1.msra.mxu0 0.0
    %196 = vmatprep.subr.mxu0 0.0
    %197 = vmatpush1.msra.mxu0 0.0
    %198 = vmatprep.subr.mxu0 0.0
    %199 = vmatpush1.msra.mxu0 0.0
    %200 = vmatprep.subr.mxu0 0.0
    %201 = vmatpush1.msra.mxu0 0.0
    %202 = vmatprep.subr.mxu0 0.0
    %203 = vmatpush1.msra.mxu0 0.0
    %204 = vmatprep.subr.mxu0 0.0
    %205 = vmatpush1.msra.mxu0 0.0
    %206 = vmatprep.subr.mxu0 0.0
    %207 = vmatpush1.msra.mxu0 0.0
    %208 = vmatprep.mubr.f32.mxu0 0.0
    %209 = vmatmul.mubr.f32.gmra.mrb[0].mxu0 %v121
    %v210 = vpop.f32.mrb[0].mxu0
    %v211 = vadd.f32 %v102, %v210
    %v212 = vpop.f32.mrb[0].mxu0
    %v213 = vadd.f32 %v106, %v212
    %214 = vmatprep.mubr.f32.mxu0 0.0
    %215 = vmatmul.mubr.f32.gmra.mrb[0].mxu0 %v124
    %v216 = vpop.f32.mrb[0].mxu0
    %v217 = vadd.f32 %v102, %v216
    %v218 = vpop.f32.mrb[0].mxu0
    %v219 = vadd.f32 %v106, %v218
    %220 = vmatprep.mubr.f32.mxu0 0.0
    %221 = vmatmul.mubr.f32.gmra.mrb[0].mxu0 %v127
    %v222 = vpop.f32.mrb[0].mxu0
    %v223 = vadd.f32 %v102, %v222
    %v224 = vpop.f32.mrb[0].mxu0
    %v225 = vadd.f32 %v106, %v224
    %226 = vmatprep.mubr.f32.mxu0 0.0
    %227 = vmatmul.mubr.f32.gmra.mrb[0].mxu0 %v130
    %v228 = vpop.f32.mrb[0].mxu0
    %v229 = vadd.f32 %v102, %v228
    %v230 = vpop.f32.mrb[0].mxu0
    %v231 = vadd.f32 %v106, %v230
    %232 = vmatprep.mubr.f32.mxu0 0.0
    %233 = vmatmul.mubr.f32.gmra.mrb[0].mxu0 %v133
    %v234 = vpop.f32.mrb[0].mxu0
    %v235 = vadd.f32 %v102, %v234
    %v236 = vpop.f32.mrb[0].mxu0
    %v237 = vadd.f32 %v106, %v236
    %238 = vmatprep.mubr.f32.mxu0 0.0
    %239 = vmatmul.mubr.f32.gmra.mrb[0].mxu0 %v136
    %v240 = vpop.f32.mrb[0].mxu0
    %v241 = vadd.f32 %v102, %v240
    %v242 = vpop.f32.mrb[0].mxu0
    %v243 = vadd.f32 %v106, %v242
    %244 = vmatprep.mubr.f32.mxu0 0.0
    %245 = vmatmul.mubr.f32.gmra.mrb[0].mxu0 %v139
    %v246 = vpop.f32.mrb[0].mxu0
    %v247 = vadd.f32 %v102, %v246
    %v248 = vpop.f32.mrb[0].mxu0
    %v249 = vadd.f32 %v106, %v248
    %250 = vmatprep.mubr.f32.mxu0 0.0
    %251 = vmatmul.mubr.f32.gmra.mrb[0].mxu0 %v142
    %v252 = vpop.f32.mrb[0].mxu0
    %v253 = vadd.f32 %v102, %v252
    %v254 = vpop.f32.mrb[0].mxu0
    %v255 = vadd.f32 %v106, %v254
    %256 = vdwg.mxu0
    %257 = vmatprep.subr.mxu0 %v83
    %258 = vmatpush1.msra.mxu0 %v82
    %259 = vmatprep.subr.mxu0 %v87
    %260 = vmatpush1.msra.mxu0 %v86
    %261 = vmatprep.subr.mxu0 %v91
    %262 = vmatpush1.msra.mxu0 %v90
    %263 = vmatprep.subr.mxu0 %v95
    %264 = vmatpush1.msra.mxu0 %v94
    %265 = vmatprep.subr.mxu0 0.0
    %266 = vmatpush1.msra.mxu0 0.0
    %267 = vmatprep.subr.mxu0 0.0
    %268 = vmatpush1.msra.mxu0 0.0
    %269 = vmatprep.subr.mxu0 0.0
    %270 = vmatpush1.msra.mxu0 0.0
    %271 = vmatprep.subr.mxu0 0.0
    %272 = vmatpush1.msra.mxu0 0.0
    %273 = vmatprep.subr.mxu0 0.0
    %274 = vmatpush1.msra.mxu0 0.0
    %275 = vmatprep.subr.mxu0 0.0
    %276 = vmatpush1.msra.mxu0 0.0
    %277 = vmatprep.subr.mxu0 0.0
    %278 = vmatpush1.msra.mxu0 0.0
    %279 = vmatprep.subr.mxu0 0.0
    %280 = vmatpush1.msra.mxu0 0.0
    %281 = vmatprep.subr.mxu0 0.0
    %282 = vmatpush1.msra.mxu0 0.0
    %283 = vmatprep.subr.mxu0 0.0
    %284 = vmatpush1.msra.mxu0 0.0
    %285 = vmatprep.subr.mxu0 0.0
    %286 = vmatpush1.msra.mxu0 0.0
    %287 = vmatprep.subr.mxu0 0.0
    %288 = vmatpush1.msra.mxu0 0.0
    %289 = vmatprep.subr.mxu0 0.0
    %290 = vmatpush1.msra.mxu0 0.0
    %291 = vmatprep.subr.mxu0 0.0
    %292 = vmatpush1.msra.mxu0 0.0
    %293 = vmatprep.subr.mxu0 0.0
    %294 = vmatpush1.msra.mxu0 0.0
    %295 = vmatprep.subr.mxu0 0.0
    %296 = vmatpush1.msra.mxu0 0.0
    %297 = vmatprep.subr.mxu0 0.0
    %298 = vmatpush1.msra.mxu0 0.0
    %299 = vmatprep.subr.mxu0 0.0
    %300 = vmatpush1.msra.mxu0 0.0
    %301 = vmatprep.subr.mxu0 0.0
    %302 = vmatpush1.msra.mxu0 0.0
    %303 = vmatprep.subr.mxu0 0.0
    %304 = vmatpush1.msra.mxu0 0.0
    %305 = vmatprep.subr.mxu0 0.0
    %306 = vmatpush1.msra.mxu0 0.0
    %307 = vmatprep.subr.mxu0 0.0
    %308 = vmatpush1.msra.mxu0 0.0
    %309 = vmatprep.subr.mxu0 0.0
    %310 = vmatpush1.msra.mxu0 0.0
    %311 = vmatprep.subr.mxu0 0.0
    %312 = vmatpush1.msra.mxu0 0.0
    %313 = vmatprep.subr.mxu0 0.0
    %314 = vmatpush1.msra.mxu0 0.0
    %315 = vmatprep.subr.mxu0 0.0
    %316 = vmatpush1.msra.mxu0 0.0
    %317 = vmatprep.subr.mxu0 0.0
    %318 = vmatpush1.msra.mxu0 0.0
    %319 = vmatprep.subr.mxu0 0.0
    %320 = vmatpush1.msra.mxu0 0.0
    %321 = vmatprep.mubr.f32.mxu0 0.0
    %322 = vmatmul.mubr.f32.gmra.mrb[0].mxu0 %v121
    %v323 = vpop.f32.mrb[0].mxu0
    %v324 = vadd.f32 %v110, %v323
    %v325 = vpop.f32.mrb[0].mxu0
    %v326 = vadd.f32 %v114, %v325
    %327 = vmatprep.mubr.f32.mxu0 0.0
    %328 = vmatmul.mubr.f32.gmra.mrb[0].mxu0 %v124
    %v329 = vpop.f32.mrb[0].mxu0
    %v330 = vadd.f32 %v110, %v329
    %v331 = vpop.f32.mrb[0].mxu0
    %v332 = vadd.f32 %v114, %v331
    %333 = vmatprep.mubr.f32.mxu0 0.0
    %334 = vmatmul.mubr.f32.gmra.mrb[0].mxu0 %v127
    %v335 = vpop.f32.mrb[0].mxu0
    %v336 = vadd.f32 %v110, %v335
    %v337 = vpop.f32.mrb[0].mxu0
    %v338 = vadd.f32 %v114, %v337
    %339 = vmatprep.mubr.f32.mxu0 0.0
    %340 = vmatmul.mubr.f32.gmra.mrb[0].mxu0 %v130
    %v341 = vpop.f32.mrb[0].mxu0
    %v342 = vadd.f32 %v110, %v341
    %v343 = vpop.f32.mrb[0].mxu0
    %v344 = vadd.f32 %v114, %v343
    %345 = vmatprep.mubr.f32.mxu0 0.0
    %346 = vmatmul.mubr.f32.gmra.mrb[0].mxu0 %v133
    %v347 = vpop.f32.mrb[0].mxu0
    %v348 = vadd.f32 %v110, %v347
    %v349 = vpop.f32.mrb[0].mxu0
    %v350 = vadd.f32 %v114, %v349
    %351 = vmatprep.mubr.f32.mxu0 0.0
    %352 = vmatmul.mubr.f32.gmra.mrb[0].mxu0 %v136
    %v353 = vpop.f32.mrb[0].mxu0
    %v354 = vadd.f32 %v110, %v353
    %v355 = vpop.f32.mrb[0].mxu0
    %v356 = vadd.f32 %v114, %v355
    %357 = vmatprep.mubr.f32.mxu0 0.0
    %358 = vmatmul.mubr.f32.gmra.mrb[0].mxu0 %v139
    %v359 = vpop.f32.mrb[0].mxu0
    %v360 = vadd.f32 %v110, %v359
    %v361 = vpop.f32.mrb[0].mxu0
    %v362 = vadd.f32 %v114, %v361
    %363 = vmatprep.mubr.f32.mxu0 0.0
    %364 = vmatmul.mubr.f32.gmra.mrb[0].mxu0 %v142
    %v365 = vpop.f32.mrb[0].mxu0
    %v366 = vadd.f32 %v110, %v365
    %v367 = vpop.f32.mrb[0].mxu0
    %v368 = vadd.f32 %v114, %v367
    %369 = vdwg.mxu0
    %370 = vst [vmem:[#allocation2] sm:$0xff] %v211
    %371 = vst [vmem:[#allocation2 + $0x8] sm:$0xff] %v213
    %372 = vst [vmem:[#allocation2 + $0x10] sm:$0xff] %v324
    %373 = vst [vmem:[#allocation2 + $0x18] sm:$0xff] %v326
    %374 = vst [vmem:[#allocation2 + $0x20] sm:$0xff] %v217
    %375 = vst [vmem:[#allocation2 + $0x28] sm:$0xff] %v219
    %376 = vst [vmem:[#allocation2 + $0x30] sm:$0xff] %v330
    %377 = vst [vmem:[#allocation2 + $0x38] sm:$0xff] %v332
    %378 = vst [vmem:[#allocation2 + $0x40] sm:$0xff] %v223
    %379 = vst [vmem:[#allocation2 + $0x48] sm:$0xff] %v225
    %380 = vst [vmem:[#allocation2 + $0x50] sm:$0xff] %v336
    %381 = vst [vmem:[#allocation2 + $0x58] sm:$0xff] %v338
    %382 = vst [vmem:[#allocation2 + $0x60] sm:$0xff] %v229
    %383 = vst [vmem:[#allocation2 + $0x68] sm:$0xff] %v231
    %384 = vst [vmem:[#allocation2 + $0x70] sm:$0xff] %v342
    %385 = vst [vmem:[#allocation2 + $0x78] sm:$0xff] %v344
    %386 = vst [vmem:[#allocation2 + $0x80] sm:$0xff] %v235
    %387 = vst [vmem:[#allocation2 + $0x88] sm:$0xff] %v237
    %388 = vst [vmem:[#allocation2 + $0x90] sm:$0xff] %v348
    %389 = vst [vmem:[#allocation2 + $0x98] sm:$0xff] %v350
    %390 = vst [vmem:[#allocation2 + $0xa0] sm:$0xff] %v241
    %391 = vst [vmem:[#allocation2 + $0xa8] sm:$0xff] %v243
    %392 = vst [vmem:[#allocation2 + $0xb0] sm:$0xff] %v354
    %393 = vst [vmem:[#allocation2 + $0xb8] sm:$0xff] %v356
    %394 = vst [vmem:[#allocation2 + $0xc0] sm:$0xff] %v247
    %395 = vst [vmem:[#allocation2 + $0xc8] sm:$0xff] %v249
    %396 = vst [vmem:[#allocation2 + $0xd0] sm:$0xff] %v360
    %397 = vst [vmem:[#allocation2 + $0xd8] sm:$0xff] %v362
    %398 = vst [vmem:[#allocation2 + $0xe0] sm:$0xff] %v253
    %399 = vst [vmem:[#allocation2 + $0xe8] sm:$0xff] %v255
    %400 = vst [vmem:[#allocation2 + $0xf0] sm:$0xff] %v366
    %401 = vst [vmem:[#allocation2 + $0xf8] sm:$0xff] %v368
    %v402 = vld [vmem:[#allocation2] sm:$0xff]
    %v403 = vld [vmem:[#allocation2 + $0x8] sm:$0xff]
    %v404 = vld [vmem:[#allocation2 + $0x10] sm:$0xff]
    %v405 = vld [vmem:[#allocation2 + $0x18] sm:$0xff]
    %v406 = vxor.u32 %v402, 2147483648
    %v407 = vxor.u32 %v403, 2147483648
    %v408 = vmul.f32 %v406, 1.442695
    %v409 = vpow.pop %v408
    %v410 = vmul.f32 %v407, 1.442695
    %v411 = vpow.pop %v410
    %v412 = vadd.f32 %v409, 1.0
    %v413 = vadd.f32 %v411, 1.0
    %v414 = vrcp.pop %v412
    %v415 = vmul.f32 1.0, %v414
    %v416 = vrcp.pop %v413
    %v417 = vmul.f32 1.0, %v416
    %v418 = vtanh.pop %v404
    %v419 = vxor.u32 %v405, 2147483648
    %v420 = vmul.f32 %v419, 1.442695
    %v421 = vpow.pop %v420
    %v422 = vadd.f32 %v421, 1.0
    %v423 = vrcp.pop %v422
    %v424 = vmul.f32 1.0, %v423
    %v425 = vmul.f32 %v417, 0.0
    %v426 = vmul.f32 %v415, %v418
    %v427 = vadd.f32 %v425, %v426
    %v428 = vtanh.pop %v427
    %v429 = vmul.f32 %v424, %v428
    %v430 = vld [vmem:[#allocation2 + $0x20] sm:$0xff]
    %v431 = vld [vmem:[#allocation2 + $0x28] sm:$0xff]
    %v432 = vld [vmem:[#allocation2 + $0x30] sm:$0xff]
    %v433 = vld [vmem:[#allocation2 + $0x38] sm:$0xff]
    %v434 = vld [vmem:[#allocation4 + $0x80] sm:$0xff]
    %v435 = vld [vmem:[#allocation4 + $0x88] sm:$0xff]
    %v436 = vld [vmem:[#allocation4 + $0x90] sm:$0xff]
    %v437 = vld [vmem:[#allocation4 + $0x98] sm:$0xff]
    %v438 = vld [vmem:[#allocation4 + $0xa0] sm:$0xff]
    %v439 = vld [vmem:[#allocation4 + $0xa8] sm:$0xff]
    %v440 = vld [vmem:[#allocation4 + $0xb0] sm:$0xff]
    %v441 = vld [vmem:[#allocation4 + $0xb8] sm:$0xff]
    %v442 = vld [vmem:[#allocation4 + $0xc0] sm:$0xff]
    %v443 = vld [vmem:[#allocation4 + $0xc8] sm:$0xff]
    %v444 = vld [vmem:[#allocation4 + $0xd0] sm:$0xff]
    %v445 = vld [vmem:[#allocation4 + $0xd8] sm:$0xff]
    %v446 = vld [vmem:[#allocation4 + $0xe0] sm:$0xff]
    %v447 = vld [vmem:[#allocation4 + $0xe8] sm:$0xff]
    %v448 = vld [vmem:[#allocation4 + $0xf0] sm:$0xff]
    %v449 = vld [vmem:[#allocation4 + $0xf8] sm:$0xff]
    %v451 = vsel %vm119, %v429, 0
    %453 = vmatprep.subr.mxu0 %v435
    %454 = vmatpush1.msra.mxu0 %v434
    %455 = vmatprep.subr.mxu0 %v439
    %456 = vmatpush1.msra.mxu0 %v438
    %457 = vmatprep.subr.mxu0 %v443
    %458 = vmatpush1.msra.mxu0 %v442
    %459 = vmatprep.subr.mxu0 %v447
    %460 = vmatpush1.msra.mxu0 %v446
    %461 = vmatprep.subr.mxu0 0.0
    %462 = vmatpush1.msra.mxu0 0.0
    %463 = vmatprep.subr.mxu0 0.0
    %464 = vmatpush1.msra.mxu0 0.0
    %465 = vmatprep.subr.mxu0 0.0
    %466 = vmatpush1.msra.mxu0 0.0
    %467 = vmatprep.subr.mxu0 0.0
    %468 = vmatpush1.msra.mxu0 0.0
    %469 = vmatprep.subr.mxu0 0.0
    %470 = vmatpush1.msra.mxu0 0.0
    %471 = vmatprep.subr.mxu0 0.0
    %472 = vmatpush1.msra.mxu0 0.0
    %473 = vmatprep.subr.mxu0 0.0
    %474 = vmatpush1.msra.mxu0 0.0
    %475 = vmatprep.subr.mxu0 0.0
    %476 = vmatpush1.msra.mxu0 0.0
    %477 = vmatprep.subr.mxu0 0.0
    %478 = vmatpush1.msra.mxu0 0.0
    %479 = vmatprep.subr.mxu0 0.0
    %480 = vmatpush1.msra.mxu0 0.0
    %481 = vmatprep.subr.mxu0 0.0
    %482 = vmatpush1.msra.mxu0 0.0
    %483 = vmatprep.subr.mxu0 0.0
    %484 = vmatpush1.msra.mxu0 0.0
    %485 = vmatprep.subr.mxu0 0.0
    %486 = vmatpush1.msra.mxu0 0.0
    %487 = vmatprep.subr.mxu0 0.0
    %488 = vmatpush1.msra.mxu0 0.0
    %489 = vmatprep.subr.mxu0 0.0
    %490 = vmatpush1.msra.mxu0 0.0
    %491 = vmatprep.subr.mxu0 0.0
    %492 = vmatpush1.msra.mxu0 0.0
    %493 = vmatprep.subr.mxu0 0.0
    %494 = vmatpush1.msra.mxu0 0.0
    %495 = vmatprep.subr.mxu0 0.0
    %496 = vmatpush1.msra.mxu0 0.0
    %497 = vmatprep.subr.mxu0 0.0
    %498 = vmatpush1.msra.mxu0 0.0
    %499 = vmatprep.subr.mxu0 0.0
    %500 = vmatpush1.msra.mxu0 0.0
    %501 = vmatprep.subr.mxu0 0.0
    %502 = vmatpush1.msra.mxu0 0.0
    %503 = vmatprep.subr.mxu0 0.0
    %504 = vmatpush1.msra.mxu0 0.0
    %505 = vmatprep.subr.mxu0 0.0
    %506 = vmatpush1.msra.mxu0 0.0
    %507 = vmatprep.subr.mxu0 0.0
    %508 = vmatpush1.msra.mxu0 0.0
    %509 = vmatprep.subr.mxu0 0.0
    %510 = vmatpush1.msra.mxu0 0.0
    %511 = vmatprep.subr.mxu0 0.0
    %512 = vmatpush1.msra.mxu0 0.0
    %513 = vmatprep.subr.mxu0 0.0
    %514 = vmatpush1.msra.mxu0 0.0
    %515 = vmatprep.subr.mxu0 0.0
    %516 = vmatpush1.msra.mxu0 0.0
    %517 = vmatprep.mubr.f32.mxu0 0.0
    %518 = vmatmul.mubr.f32.gmra.mrb[0].mxu0 %v451
    %v519 = vpop.f32.mrb[0].mxu0
    %v520 = vadd.f32 0.0, %v519
    %v521 = vpop.f32.mrb[0].mxu0
    %v522 = vadd.f32 0.0, %v521
    %523 = vdwg.mxu0
    %524 = vmatprep.subr.mxu0 %v437
    %525 = vmatpush1.msra.mxu0 %v436
    %526 = vmatprep.subr.mxu0 %v441
    %527 = vmatpush1.msra.mxu0 %v440
    %528 = vmatprep.subr.mxu0 %v445
    %529 = vmatpush1.msra.mxu0 %v444
    %530 = vmatprep.subr.mxu0 %v449
    %531 = vmatpush1.msra.mxu0 %v448
    %532 = vmatprep.subr.mxu0 0.0
    %533 = vmatpush1.msra.mxu0 0.0
    %534 = vmatprep.subr.mxu0 0.0
    %535 = vmatpush1.msra.mxu0 0.0
    %536 = vmatprep.subr.mxu0 0.0
    %537 = vmatpush1.msra.mxu0 0.0
    %538 = vmatprep.subr.mxu0 0.0
    %539 = vmatpush1.msra.mxu0 0.0
    %540 = vmatprep.subr.mxu0 0.0
    %541 = vmatpush1.msra.mxu0 0.0
    %542 = vmatprep.subr.mxu0 0.0
    %543 = vmatpush1.msra.mxu0 0.0
    %544 = vmatprep.subr.mxu0 0.0
    %545 = vmatpush1.msra.mxu0 0.0
    %546 = vmatprep.subr.mxu0 0.0
    %547 = vmatpush1.msra.mxu0 0.0
    %548 = vmatprep.subr.mxu0 0.0
    %549 = vmatpush1.msra.mxu0 0.0
    %550 = vmatprep.subr.mxu0 0.0
    %551 = vmatpush1.msra.mxu0 0.0
    %552 = vmatprep.subr.mxu0 0.0
    %553 = vmatpush1.msra.mxu0 0.0
    %554 = vmatprep.subr.mxu0 0.0
    %555 = vmatpush1.msra.mxu0 0.0
    %556 = vmatprep.subr.mxu0 0.0
    %557 = vmatpush1.msra.mxu0 0.0
    %558 = vmatprep.subr.mxu0 0.0
    %559 = vmatpush1.msra.mxu0 0.0
    %560 = vmatprep.subr.mxu0 0.0
    %561 = vmatpush1.msra.mxu0 0.0
    %562 = vmatprep.subr.mxu0 0.0
    %563 = vmatpush1.msra.mxu0 0.0
    %564 = vmatprep.subr.mxu0 0.0
    %565 = vmatpush1.msra.mxu0 0.0
    %566 = vmatprep.subr.mxu0 0.0
    %567 = vmatpush1.msra.mxu0 0.0
    %568 = vmatprep.subr.mxu0 0.0
    %569 = vmatpush1.msra.mxu0 0.0
    %570 = vmatprep.subr.mxu0 0.0
    %571 = vmatpush1.msra.mxu0 0.0
    %572 = vmatprep.subr.mxu0 0.0
    %573 = vmatpush1.msra.mxu0 0.0
    %574 = vmatprep.subr.mxu0 0.0
    %575 = vmatpush1.msra.mxu0 0.0
    %576 = vmatprep.subr.mxu0 0.0
    %577 = vmatpush1.msra.mxu0 0.0
    %578 = vmatprep.subr.mxu0 0.0
    %579 = vmatpush1.msra.mxu0 0.0
    %580 = vmatprep.subr.mxu0 0.0
    %581 = vmatpush1.msra.mxu0 0.0
    %582 = vmatprep.subr.mxu0 0.0
    %583 = vmatpush1.msra.mxu0 0.0
    %584 = vmatprep.subr.mxu0 0.0
    %585 = vmatpush1.msra.mxu0 0.0
    %586 = vmatprep.subr.mxu0 0.0
    %587 = vmatpush1.msra.mxu0 0.0
    %588 = vmatprep.mubr.f32.mxu0 0.0
    %589 = vmatmul.mubr.f32.gmra.mrb[0].mxu0 %v451
    %v590 = vpop.f32.mrb[0].mxu0
    %v591 = vadd.f32 0.0, %v590
    %v592 = vpop.f32.mrb[0].mxu0
    %v593 = vadd.f32 0.0, %v592
    %594 = vdwg.mxu0
    %v595 = vadd.f32 %v430, %v520
    %v596 = vadd.f32 %v431, %v522
    %v597 = vadd.f32 %v432, %v591
    %v598 = vadd.f32 %v433, %v593
    %v599 = vxor.u32 %v595, 2147483648
    %v600 = vxor.u32 %v596, 2147483648
    %v601 = vmul.f32 %v599, 1.442695
    %v602 = vpow.pop %v601
    %v603 = vmul.f32 %v600, 1.442695
    %v604 = vpow.pop %v603
    %v605 = vadd.f32 %v602, 1.0
    %v606 = vadd.f32 %v604, 1.0
    %v607 = vrcp.pop %v605
    %v608 = vmul.f32 1.0, %v607
    %v609 = vrcp.pop %v606
    %v610 = vmul.f32 1.0, %v609
    %v611 = vtanh.pop %v597
    %v612 = vxor.u32 %v598, 2147483648
    %v613 = vmul.f32 %v612, 1.442695
    %v614 = vpow.pop %v613
    %v615 = vadd.f32 %v614, 1.0
    %v616 = vrcp.pop %v615
    %v617 = vmul.f32 1.0, %v616
    %v618 = vmul.f32 %v610, %v427
    %v619 = vmul.f32 %v608, %v611
    %v620 = vadd.f32 %v618, %v619
    %v621 = vtanh.pop %v620
    %v622 = vmul.f32 %v617, %v621
    %v623 = vld [vmem:[#allocation4 + $0x100] sm:$0xff]
    %v624 = vld [vmem:[#allocation4 + $0x108] sm:$0xff]
    %v625 = vld [vmem:[#allocation4 + $0x110] sm:$0xff]
    %v626 = vld [vmem:[#allocation4 + $0x118] sm:$0xff]
    %v627 = vld [vmem:[#allocation4 + $0x120] sm:$0xff]
    %v628 = vld [vmem:[#allocation4 + $0x128] sm:$0xff]
    %v629 = vld [vmem:[#allocation4 + $0x130] sm:$0xff]
    %v630 = vld [vmem:[#allocation4 + $0x138] sm:$0xff]
    %v631 = vld [vmem:[#allocation4 + $0x140] sm:$0xff]
    %v632 = vld [vmem:[#allocation4 + $0x148] sm:$0xff]
    %v633 = vld [vmem:[#allocation4 + $0x150] sm:$0xff]
    %v634 = vld [vmem:[#allocation4 + $0x158] sm:$0xff]
    %v635 = vld [vmem:[#allocation4 + $0x160] sm:$0xff]
    %v636 = vld [vmem:[#allocation4 + $0x168] sm:$0xff]
    %v637 = vld [vmem:[#allocation4 + $0x170] sm:$0xff]
    %v638 = vld [vmem:[#allocation4 + $0x178] sm:$0xff]
    %639 = vmatprep.subr.mxu0 %v624
    %640 = vmatpush1.msra.mxu0 %v623
    %641 = vmatprep.subr.mxu0 %v628
    %642 = vmatpush1.msra.mxu0 %v627
    %643 = vmatprep.subr.mxu0 %v632
    %644 = vmatpush1.msra.mxu0 %v631
    %645 = vmatprep.subr.mxu0 %v636
    %646 = vmatpush1.msra.mxu0 %v635
    %647 = vmatprep.subr.mxu0 0.0
    %648 = vmatpush1.msra.mxu0 0.0
    %649 = vmatprep.subr.mxu0 0.0
    %650 = vmatpush1.msra.mxu0 0.0
    %651 = vmatprep.subr.mxu0 0.0
    %652 = vmatpush1.msra.mxu0 0.0
    %653 = vmatprep.subr.mxu0 0.0
    %654 = vmatpush1.msra.mxu0 0.0
    %655 = vmatprep.subr.mxu0 0.0
    %656 = vmatpush1.msra.mxu0 0.0
    %657 = vmatprep.subr.mxu0 0.0
    %658 = vmatpush1.msra.mxu0 0.0
    %659 = vmatprep.subr.mxu0 0.0
    %660 = vmatpush1.msra.mxu0 0.0
    %661 = vmatprep.subr.mxu0 0.0
    %662 = vmatpush1.msra.mxu0 0.0
    %663 = vmatprep.subr.mxu0 0.0
    %664 = vmatpush1.msra.mxu0 0.0
    %665 = vmatprep.subr.mxu0 0.0
    %666 = vmatpush1.msra.mxu0 0.0
    %667 = vmatprep.subr.mxu0 0.0
    %668 = vmatpush1.msra.mxu0 0.0
    %669 = vmatprep.subr.mxu0 0.0
    %670 = vmatpush1.msra.mxu0 0.0
    %671 = vmatprep.subr.mxu0 0.0
    %672 = vmatpush1.msra.mxu0 0.0
    %673 = vmatprep.subr.mxu0 0.0
    %674 = vmatpush1.msra.mxu0 0.0
    %675 = vmatprep.subr.mxu0 0.0
    %676 = vmatpush1.msra.mxu0 0.0
    %677 = vmatprep.subr.mxu0 0.0
    %678 = vmatpush1.msra.mxu0 0.0
    %679 = vmatprep.subr.mxu0 0.0
    %680 = vmatpush1.msra.mxu0 0.0
    %681 = vmatprep.subr.mxu0 0.0
    %682 = vmatpush1.msra.mxu0 0.0
    %683 = vmatprep.subr.mxu0 0.0
    %684 = vmatpush1.msra.mxu0 0.0
    %685 = vmatprep.subr.mxu0 0.0
    %686 = vmatpush1.msra.mxu0 0.0
    %687 = vmatprep.subr.mxu0 0.0
    %688 = vmatpush1.msra.mxu0 0.0
    %689 = vmatprep.subr.mxu0 0.0
    %690 = vmatpush1.msra.mxu0 0.0
    %691 = vmatprep.subr.mxu0 0.0
    %692 = vmatpush1.msra.mxu0 0.0
    %693 = vmatprep.subr.mxu0 0.0
    %694 = vmatpush1.msra.mxu0 0.0
    %695 = vmatprep.subr.mxu0 0.0
    %696 = vmatpush1.msra.mxu0 0.0
    %697 = vmatprep.subr.mxu0 0.0
    %698 = vmatpush1.msra.mxu0 0.0
    %699 = vmatprep.subr.mxu0 0.0
    %700 = vmatpush1.msra.mxu0 0.0
    %701 = vmatprep.subr.mxu0 0.0
    %702 = vmatpush1.msra.mxu0 0.0
    %703 = vmatprep.mubr.f32.mxu0 0.0
    %704 = vmatmul.mubr.f32.gmra.mrb[0].mxu0 %v451
    %v705 = vpop.f32.mrb[0].mxu0
    %v706 = vadd.f32 %v32, %v705
    %v707 = vpop.f32.mrb[0].mxu0
    %v708 = vadd.f32 %v36, %v707
    %709 = vdwg.mxu0
    %710 = vmatprep.subr.mxu0 %v626
    %711 = vmatpush1.msra.mxu0 %v625
    %712 = vmatprep.subr.mxu0 %v630
    %713 = vmatpush1.msra.mxu0 %v629
    %714 = vmatprep.subr.mxu0 %v634
    %715 = vmatpush1.msra.mxu0 %v633
    %716 = vmatprep.subr.mxu0 %v638
    %717 = vmatpush1.msra.mxu0 %v637
    %718 = vmatprep.subr.mxu0 0.0
    %719 = vmatpush1.msra.mxu0 0.0
    %720 = vmatprep.subr.mxu0 0.0
    %721 = vmatpush1.msra.mxu0 0.0
    %722 = vmatprep.subr.mxu0 0.0
    %723 = vmatpush1.msra.mxu0 0.0
    %724 = vmatprep.subr.mxu0 0.0
    %725 = vmatpush1.msra.mxu0 0.0
    %726 = vmatprep.subr.mxu0 0.0
    %727 = vmatpush1.msra.mxu0 0.0
    %728 = vmatprep.subr.mxu0 0.0
    %729 = vmatpush1.msra.mxu0 0.0
    %730 = vmatprep.subr.mxu0 0.0
    %731 = vmatpush1.msra.mxu0 0.0
    %732 = vmatprep.subr.mxu0 0.0
    %733 = vmatpush1.msra.mxu0 0.0
    %734 = vmatprep.subr.mxu0 0.0
    %735 = vmatpush1.msra.mxu0 0.0
    %736 = vmatprep.subr.mxu0 0.0
    %737 = vmatpush1.msra.mxu0 0.0
    %738 = vmatprep.subr.mxu0 0.0
    %739 = vmatpush1.msra.mxu0 0.0
    %740 = vmatprep.subr.mxu0 0.0
    %741 = vmatpush1.msra.mxu0 0.0
    %742 = vmatprep.subr.mxu0 0.0
    %743 = vmatpush1.msra.mxu0 0.0
    %744 = vmatprep.subr.mxu0 0.0
    %745 = vmatpush1.msra.mxu0 0.0
    %746 = vmatprep.subr.mxu0 0.0
    %747 = vmatpush1.msra.mxu0 0.0
    %748 = vmatprep.subr.mxu0 0.0
    %749 = vmatpush1.msra.mxu0 0.0
    %750 = vmatprep.subr.mxu0 0.0
    %751 = vmatpush1.msra.mxu0 0.0
    %752 = vmatprep.subr.mxu0 0.0
    %753 = vmatpush1.msra.mxu0 0.0
    %754 = vmatprep.subr.mxu0 0.0
    %755 = vmatpush1.msra.mxu0 0.0
    %756 = vmatprep.subr.mxu0 0.0
    %757 = vmatpush1.msra.mxu0 0.0
    %758 = vmatprep.subr.mxu0 0.0
    %759 = vmatpush1.msra.mxu0 0.0
    %760 = vmatprep.subr.mxu0 0.0
    %761 = vmatpush1.msra.mxu0 0.0
    %762 = vmatprep.subr.mxu0 0.0
    %763 = vmatpush1.msra.mxu0 0.0
    %764 = vmatprep.subr.mxu0 0.0
    %765 = vmatpush1.msra.mxu0 0.0
    %766 = vmatprep.subr.mxu0 0.0
    %767 = vmatpush1.msra.mxu0 0.0
    %768 = vmatprep.subr.mxu0 0.0
    %769 = vmatpush1.msra.mxu0 0.0
    %770 = vmatprep.subr.mxu0 0.0
    %771 = vmatpush1.msra.mxu0 0.0
    %772 = vmatprep.subr.mxu0 0.0
    %773 = vmatpush1.msra.mxu0 0.0
    %774 = vmatprep.mubr.f32.mxu0 0.0
    %775 = vmatmul.mubr.f32.gmra.mrb[0].mxu0 %v451
    %v776 = vpop.f32.mrb[0].mxu0
    %v777 = vadd.f32 %v40, %v776
    %v778 = vpop.f32.mrb[0].mxu0
    %v779 = vadd.f32 %v44, %v778
    %780 = vdwg.mxu0
    %v781 = vxor.u32 %v706, 2147483648
    %v782 = vxor.u32 %v708, 2147483648
    %v783 = vmul.f32 %v781, 1.442695
    %v784 = vpow.pop %v783
    %v785 = vmul.f32 %v782, 1.442695
    %v786 = vpow.pop %v785
    %v787 = vadd.f32 %v784, 1.0
    %v788 = vadd.f32 %v786, 1.0
    %v789 = vrcp.pop %v787
    %v790 = vmul.f32 1.0, %v789
    %v791 = vrcp.pop %v788
    %v792 = vmul.f32 1.0, %v791
    %v793 = vtanh.pop %v777
    %v794 = vxor.u32 %v779, 2147483648
    %v795 = vmul.f32 %v794, 1.442695
    %v796 = vpow.pop %v795
    %v797 = vadd.f32 %v796, 1.0
    %v798 = vrcp.pop %v797
    %v799 = vmul.f32 1.0, %v798
    %v800 = vmul.f32 %v792, 0.0
    %v801 = vmul.f32 %v790, %v793
    %v802 = vadd.f32 %v800, %v801
    %v803 = vtanh.pop %v802
    %v804 = vmul.f32 %v799, %v803
    %v805 = vld [vmem:[#allocation2 + $0x40] sm:$0xff]
    %v806 = vld [vmem:[#allocation2 + $0x48] sm:$0xff]
    %v807 = vld [vmem:[#allocation2 + $0x50] sm:$0xff]
    %v808 = vld [vmem:[#allocation2 + $0x58] sm:$0xff]
    %v810 = vsel %vm119, %v622, 0
    %812 = vmatprep.subr.mxu0 %v435
    %813 = vmatpush1.msra.mxu0 %v434
    %814 = vmatprep.subr.mxu0 %v439
    %815 = vmatpush1.msra.mxu0 %v438
    %816 = vmatprep.subr.mxu0 %v443
    %817 = vmatpush1.msra.mxu0 %v442
    %818 = vmatprep.subr.mxu0 %v447
    %819 = vmatpush1.msra.mxu0 %v446
    %820 = vmatprep.subr.mxu0 0.0
    %821 = vmatpush1.msra.mxu0 0.0
    %822 = vmatprep.subr.mxu0 0.0
    %823 = vmatpush1.msra.mxu0 0.0
    %824 = vmatprep.subr.mxu0 0.0
    %825 = vmatpush1.msra.mxu0 0.0
    %826 = vmatprep.subr.mxu0 0.0
    %827 = vmatpush1.msra.mxu0 0.0
    %828 = vmatprep.subr.mxu0 0.0
    %829 = vmatpush1.msra.mxu0 0.0
    %830 = vmatprep.subr.mxu0 0.0
    %831 = vmatpush1.msra.mxu0 0.0
    %832 = vmatprep.subr.mxu0 0.0
    %833 = vmatpush1.msra.mxu0 0.0
    %834 = vmatprep.subr.mxu0 0.0
    %835 = vmatpush1.msra.mxu0 0.0
    %836 = vmatprep.subr.mxu0 0.0
    %837 = vmatpush1.msra.mxu0 0.0
    %838 = vmatprep.subr.mxu0 0.0
    %839 = vmatpush1.msra.mxu0 0.0
    %840 = vmatprep.subr.mxu0 0.0
    %841 = vmatpush1.msra.mxu0 0.0
    %842 = vmatprep.subr.mxu0 0.0
    %843 = vmatpush1.msra.mxu0 0.0
    %844 = vmatprep.subr.mxu0 0.0
    %845 = vmatpush1.msra.mxu0 0.0
    %846 = vmatprep.subr.mxu0 0.0
    %847 = vmatpush1.msra.mxu0 0.0
    %848 = vmatprep.subr.mxu0 0.0
    %849 = vmatpush1.msra.mxu0 0.0
    %850 = vmatprep.subr.mxu0 0.0
    %851 = vmatpush1.msra.mxu0 0.0
    %852 = vmatprep.subr.mxu0 0.0
    %853 = vmatpush1.msra.mxu0 0.0
    %854 = vmatprep.subr.mxu0 0.0
    %855 = vmatpush1.msra.mxu0 0.0
    %856 = vmatprep.subr.mxu0 0.0
    %857 = vmatpush1.msra.mxu0 0.0
    %858 = vmatprep.subr.mxu0 0.0
    %859 = vmatpush1.msra.mxu0 0.0
    %860 = vmatprep.subr.mxu0 0.0
    %861 = vmatpush1.msra.mxu0 0.0
    %862 = vmatprep.subr.mxu0 0.0
    %863 = vmatpush1.msra.mxu0 0.0
    %864 = vmatprep.subr.mxu0 0.0
    %865 = vmatpush1.msra.mxu0 0.0
    %866 = vmatprep.subr.mxu0 0.0
    %867 = vmatpush1.msra.mxu0 0.0
    %868 = vmatprep.subr.mxu0 0.0
    %869 = vmatpush1.msra.mxu0 0.0
    %870 = vmatprep.subr.mxu0 0.0
    %871 = vmatpush1.msra.mxu0 0.0
    %872 = vmatprep.subr.mxu0 0.0
    %873 = vmatpush1.msra.mxu0 0.0
    %874 = vmatprep.subr.mxu0 0.0
    %875 = vmatpush1.msra.mxu0 0.0
    %876 = vmatprep.mubr.f32.mxu0 0.0
    %877 = vmatmul.mubr.f32.gmra.mrb[0].mxu0 %v810
    %v878 = vpop.f32.mrb[0].mxu0
    %v879 = vadd.f32 0.0, %v878
    %v880 = vpop.f32.mrb[0].mxu0
    %v881 = vadd.f32 0.0, %v880
    %882 = vdwg.mxu0
    %883 = vmatprep.subr.mxu0 %v437
    %884 = vmatpush1.msra.mxu0 %v436
    %885 = vmatprep.subr.mxu0 %v441
    %886 = vmatpush1.msra.mxu0 %v440
    %887 = vmatprep.subr.mxu0 %v445
    %888 = vmatpush1.msra.mxu0 %v444
    %889 = vmatprep.subr.mxu0 %v449
    %890 = vmatpush1.msra.mxu0 %v448
    %891 = vmatprep.subr.mxu0 0.0
    %892 = vmatpush1.msra.mxu0 0.0
    %893 = vmatprep.subr.mxu0 0.0
    %894 = vmatpush1.msra.mxu0 0.0
    %895 = vmatprep.subr.mxu0 0.0
    %896 = vmatpush1.msra.mxu0 0.0
    %897 = vmatprep.subr.mxu0 0.0
    %898 = vmatpush1.msra.mxu0 0.0
    %899 = vmatprep.subr.mxu0 0.0
    %900 = vmatpush1.msra.mxu0 0.0
    %901 = vmatprep.subr.mxu0 0.0
    %902 = vmatpush1.msra.mxu0 0.0
    %903 = vmatprep.subr.mxu0 0.0
    %904 = vmatpush1.msra.mxu0 0.0
    %905 = vmatprep.subr.mxu0 0.0
    %906 = vmatpush1.msra.mxu0 0.0
    %907 = vmatprep.subr.mxu0 0.0
    %908 = vmatpush1.msra.mxu0 0.0
    %909 = vmatprep.subr.mxu0 0.0
    %910 = vmatpush1.msra.mxu0 0.0
    %911 = vmatprep.subr.mxu0 0.0
    %912 = vmatpush1.msra.mxu0 0.0
    %913 = vmatprep.subr.mxu0 0.0
    %914 = vmatpush1.msra.mxu0 0.0
    %915 = vmatprep.subr.mxu0 0.0
    %916 = vmatpush1.msra.mxu0 0.0
    %917 = vmatprep.subr.mxu0 0.0
    %918 = vmatpush1.msra.mxu0 0.0
    %919 = vmatprep.subr.mxu0 0.0
    %920 = vmatpush1.msra.mxu0 0.0
    %921 = vmatprep.subr.mxu0 0.0
    %922 = vmatpush1.msra.mxu0 0.0
    %923 = vmatprep.subr.mxu0 0.0
    %924 = vmatpush1.msra.mxu0 0.0
    %925 = vmatprep.subr.mxu0 0.0
    %926 = vmatpush1.msra.mxu0 0.0
    %927 = vmatprep.subr.mxu0 0.0
    %928 = vmatpush1.msra.mxu0 0.0
    %929 = vmatprep.subr.mxu0 0.0
    %930 = vmatpush1.msra.mxu0 0.0
    %931 = vmatprep.subr.mxu0 0.0
    %932 = vmatpush1.msra.mxu0 0.0
    %933 = vmatprep.subr.mxu0 0.0
    %934 = vmatpush1.msra.mxu0 0.0
    %935 = vmatprep.subr.mxu0 0.0
    %936 = vmatpush1.msra.mxu0 0.0
    %937 = vmatprep.subr.mxu0 0.0
    %938 = vmatpush1.msra.mxu0 0.0
    %939 = vmatprep.subr.mxu0 0.0
    %940 = vmatpush1.msra.mxu0 0.0
    %941 = vmatprep.subr.mxu0 0.0
    %942 = vmatpush1.msra.mxu0 0.0
    %943 = vmatprep.subr.mxu0 0.0
    %944 = vmatpush1.msra.mxu0 0.0
    %945 = vmatprep.subr.mxu0 0.0
    %946 = vmatpush1.msra.mxu0 0.0
    %947 = vmatprep.mubr.f32.mxu0 0.0
    %948 = vmatmul.mubr.f32.gmra.mrb[0].mxu0 %v810
    %v949 = vpop.f32.mrb[0].mxu0
    %v950 = vadd.f32 0.0, %v949
    %v951 = vpop.f32.mrb[0].mxu0
    %v952 = vadd.f32 0.0, %v951
    %953 = vdwg.mxu0
    %v954 = vadd.f32 %v805, %v879
    %v955 = vadd.f32 %v806, %v881
    %v956 = vadd.f32 %v807, %v950
    %v957 = vadd.f32 %v808, %v952
    %v958 = vxor.u32 %v954, 2147483648
    %v959 = vxor.u32 %v955, 2147483648
    %v960 = vmul.f32 %v958, 1.442695
    %v961 = vpow.pop %v960
    %v962 = vmul.f32 %v959, 1.442695
    %v963 = vpow.pop %v962
    %v964 = vadd.f32 %v961, 1.0
    %v965 = vadd.f32 %v963, 1.0
    %v966 = vrcp.pop %v964
    %v967 = vmul.f32 1.0, %v966
    %v968 = vrcp.pop %v965
    %v969 = vmul.f32 1.0, %v968
    %v970 = vtanh.pop %v956
    %v971 = vxor.u32 %v957, 2147483648
    %v972 = vmul.f32 %v971, 1.442695
    %v973 = vpow.pop %v972
    %v974 = vadd.f32 %v973, 1.0
    %v975 = vrcp.pop %v974
    %v976 = vmul.f32 1.0, %v975
    %v977 = vmul.f32 %v969, %v620
    %v978 = vmul.f32 %v967, %v970
    %v979 = vadd.f32 %v977, %v978
    %v980 = vtanh.pop %v979
    %v981 = vmul.f32 %v976, %v980
    %983 = vrot.lane.b32.xlu0 %v804, 32
    %v984 = vpop.permute.xlu0 %983
    %v986 = vsel %vm119, %v622, %v984
    %v987 = vld [vmem:[#allocation4 + $0x100] sm:$0xff]
    %v988 = vld [vmem:[#allocation4 + $0x108] sm:$0xff]
    %v989 = vld [vmem:[#allocation4 + $0x110] sm:$0xff]
    %v990 = vld [vmem:[#allocation4 + $0x118] sm:$0xff]
    %v991 = vld [vmem:[#allocation4 + $0x120] sm:$0xff]
    %v992 = vld [vmem:[#allocation4 + $0x128] sm:$0xff]
    %v993 = vld [vmem:[#allocation4 + $0x130] sm:$0xff]
    %v994 = vld [vmem:[#allocation4 + $0x138] sm:$0xff]
    %v995 = vld [vmem:[#allocation4 + $0x140] sm:$0xff]
    %v996 = vld [vmem:[#allocation4 + $0x148] sm:$0xff]
    %v997 = vld [vmem:[#allocation4 + $0x150] sm:$0xff]
    %v998 = vld [vmem:[#allocation4 + $0x158] sm:$0xff]
    %v999 = vld [vmem:[#allocation4 + $0x160] sm:$0xff]
    %v1000 = vld [vmem:[#allocation4 + $0x168] sm:$0xff]
    %v1001 = vld [vmem:[#allocation4 + $0x170] sm:$0xff]
    %v1002 = vld [vmem:[#allocation4 + $0x178] sm:$0xff]
    %v1003 = vld [vmem:[#allocation4 + $0x180] sm:$0xff]
    %v1004 = vld [vmem:[#allocation4 + $0x188] sm:$0xff]
    %v1005 = vld [vmem:[#allocation4 + $0x190] sm:$0xff]
    %v1006 = vld [vmem:[#allocation4 + $0x198] sm:$0xff]
    %v1007 = vld [vmem:[#allocation4 + $0x1a0] sm:$0xff]
    %v1008 = vld [vmem:[#allocation4 + $0x1a8] sm:$0xff]
    %v1009 = vld [vmem:[#allocation4 + $0x1b0] sm:$0xff]
    %v1010 = vld [vmem:[#allocation4 + $0x1b8] sm:$0xff]
    %v1011 = vld [vmem:[#allocation4 + $0x1c0] sm:$0xff]
    %v1012 = vld [vmem:[#allocation4 + $0x1c8] sm:$0xff]
    %v1013 = vld [vmem:[#allocation4 + $0x1d0] sm:$0xff]
    %v1014 = vld [vmem:[#allocation4 + $0x1d8] sm:$0xff]
    %v1015 = vld [vmem:[#allocation4 + $0x1e0] sm:$0xff]
    %v1016 = vld [vmem:[#allocation4 + $0x1e8] sm:$0xff]
    %v1017 = vld [vmem:[#allocation4 + $0x1f0] sm:$0xff]
    %v1018 = vld [vmem:[#allocation4 + $0x1f8] sm:$0xff]
    %v1019 = vld [vmem:[#allocation4 + $0x200] sm:$0xff]
    %v1020 = vld [vmem:[#allocation4 + $0x208] sm:$0xff]
    %v1021 = vld [vmem:[#allocation4 + $0x210] sm:$0xff]
    %v1022 = vld [vmem:[#allocation4 + $0x218] sm:$0xff]
    %v1023 = vld [vmem:[#allocation4 + $0x220] sm:$0xff]
    %v1024 = vld [vmem:[#allocation4 + $0x228] sm:$0xff]
    %v1025 = vld [vmem:[#allocation4 + $0x230] sm:$0xff]
    %v1026 = vld [vmem:[#allocation4 + $0x238] sm:$0xff]
    %v1027 = vld [vmem:[#allocation4 + $0x240] sm:$0xff]
    %v1028 = vld [vmem:[#allocation4 + $0x248] sm:$0xff]
    %v1029 = vld [vmem:[#allocation4 + $0x250] sm:$0xff]
    %v1030 = vld [vmem:[#allocation4 + $0x258] sm:$0xff]
    %v1031 = vld [vmem:[#allocation4 + $0x260] sm:$0xff]
    %v1032 = vld [vmem:[#allocation4 + $0x268] sm:$0xff]
    %v1033 = vld [vmem:[#allocation4 + $0x270] sm:$0xff]
    %v1034 = vld [vmem:[#allocation4 + $0x278] sm:$0xff]
    %vm1035 = vcmask 785408
    %v1037 = vsel %vm1035, %v986, 0
    %1039 = vmatprep.subr.mxu0 %v988
    %1040 = vmatpush1.msra.mxu0 %v987
    %1041 = vmatprep.subr.mxu0 %v992
    %1042 = vmatpush1.msra.mxu0 %v991
    %1043 = vmatprep.subr.mxu0 %v996
    %1044 = vmatpush1.msra.mxu0 %v995
    %1045 = vmatprep.subr.mxu0 %v1000
    %1046 = vmatpush1.msra.mxu0 %v999
    %1047 = vmatprep.subr.mxu0 %v1004
    %1048 = vmatpush1.msra.mxu0 %v1003
    %1049 = vmatprep.subr.mxu0 %v1008
    %1050 = vmatpush1.msra.mxu0 %v1007
    %1051 = vmatprep.subr.mxu0 %v1012
    %1052 = vmatpush1.msra.mxu0 %v1011
    %1053 = vmatprep.subr.mxu0 %v1016
    %1054 = vmatpush1.msra.mxu0 %v1015
    %1055 = vmatprep.subr.mxu0 %v1020
    %1056 = vmatpush1.msra.mxu0 %v1019
    %1057 = vmatprep.subr.mxu0 %v1024
    %1058 = vmatpush1.msra.mxu0 %v1023
    %1059 = vmatprep.subr.mxu0 %v1028
    %1060 = vmatpush1.msra.mxu0 %v1027
    %1061 = vmatprep.subr.mxu0 %v1032
    %1062 = vmatpush1.msra.mxu0 %v1031
    %1063 = vmatprep.subr.mxu0 0.0
    %1064 = vmatpush1.msra.mxu0 0.0
    %1065 = vmatprep.subr.mxu0 0.0
    %1066 = vmatpush1.msra.mxu0 0.0
    %1067 = vmatprep.subr.mxu0 0.0
    %1068 = vmatpush1.msra.mxu0 0.0
    %1069 = vmatprep.subr.mxu0 0.0
    %1070 = vmatpush1.msra.mxu0 0.0
    %1071 = vmatprep.subr.mxu0 0.0
    %1072 = vmatpush1.msra.mxu0 0.0
    %1073 = vmatprep.subr.mxu0 0.0
    %1074 = vmatpush1.msra.mxu0 0.0
    %1075 = vmatprep.subr.mxu0 0.0
    %1076 = vmatpush1.msra.mxu0 0.0
    %1077 = vmatprep.subr.mxu0 0.0
    %1078 = vmatpush1.msra.mxu0 0.0
    %1079 = vmatprep.subr.mxu0 0.0
    %1080 = vmatpush1.msra.mxu0 0.0
    %1081 = vmatprep.subr.mxu0 0.0
    %1082 = vmatpush1.msra.mxu0 0.0
    %1083 = vmatprep.subr.mxu0 0.0
    %1084 = vmatpush1.msra.mxu0 0.0
    %1085 = vmatprep.subr.mxu0 0.0
    %1086 = vmatpush1.msra.mxu0 0.0
    %1087 = vmatprep.subr.mxu0 0.0
    %1088 = vmatpush1.msra.mxu0 0.0
    %1089 = vmatprep.subr.mxu0 0.0
    %1090 = vmatpush1.msra.mxu0 0.0
    %1091 = vmatprep.subr.mxu0 0.0
    %1092 = vmatpush1.msra.mxu0 0.0
    %1093 = vmatprep.subr.mxu0 0.0
    %1094 = vmatpush1.msra.mxu0 0.0
    %1095 = vmatprep.subr.mxu0 0.0
    %1096 = vmatpush1.msra.mxu0 0.0
    %1097 = vmatprep.subr.mxu0 0.0
    %1098 = vmatpush1.msra.mxu0 0.0
    %1099 = vmatprep.subr.mxu0 0.0
    %1100 = vmatpush1.msra.mxu0 0.0
    %1101 = vmatprep.subr.mxu0 0.0
    %1102 = vmatpush1.msra.mxu0 0.0
    %1103 = vmatprep.mubr.f32.mxu0 0.0
    %1104 = vmatmul.mubr.f32.gmra.mrb[0].mxu0 %v1037
    %v1105 = vpop.f32.mrb[0].mxu0
    %v1106 = vadd.f32 %v32, %v1105
    %v1107 = vpop.f32.mrb[0].mxu0
    %v1108 = vadd.f32 %v36, %v1107
    %1109 = vdwg.mxu0
    %1110 = vmatprep.subr.mxu0 %v990
    %1111 = vmatpush1.msra.mxu0 %v989
    %1112 = vmatprep.subr.mxu0 %v994
    %1113 = vmatpush1.msra.mxu0 %v993
    %1114 = vmatprep.subr.mxu0 %v998
    %1115 = vmatpush1.msra.mxu0 %v997
    %1116 = vmatprep.subr.mxu0 %v1002
    %1117 = vmatpush1.msra.mxu0 %v1001
    %1118 = vmatprep.subr.mxu0 %v1006
    %1119 = vmatpush1.msra.mxu0 %v1005
    %1120 = vmatprep.subr.mxu0 %v1010
    %1121 = vmatpush1.msra.mxu0 %v1009
    %1122 = vmatprep.subr.mxu0 %v1014
    %1123 = vmatpush1.msra.mxu0 %v1013
    %1124 = vmatprep.subr.mxu0 %v1018
    %1125 = vmatpush1.msra.mxu0 %v1017
    %1126 = vmatprep.subr.mxu0 %v1022
    %1127 = vmatpush1.msra.mxu0 %v1021
    %1128 = vmatprep.subr.mxu0 %v1026
    %1129 = vmatpush1.msra.mxu0 %v1025
    %1130 = vmatprep.subr.mxu0 %v1030
    %1131 = vmatpush1.msra.mxu0 %v1029
    %1132 = vmatprep.subr.mxu0 %v1034
    %1133 = vmatpush1.msra.mxu0 %v1033
    %1134 = vmatprep.subr.mxu0 0.0
    %1135 = vmatpush1.msra.mxu0 0.0
    %1136 = vmatprep.subr.mxu0 0.0
    %1137 = vmatpush1.msra.mxu0 0.0
    %1138 = vmatprep.subr.mxu0 0.0
    %1139 = vmatpush1.msra.mxu0 0.0
    %1140 = vmatprep.subr.mxu0 0.0
    %1141 = vmatpush1.msra.mxu0 0.0
    %1142 = vmatprep.subr.mxu0 0.0
    %1143 = vmatpush1.msra.mxu0 0.0
    %1144 = vmatprep.subr.mxu0 0.0
    %1145 = vmatpush1.msra.mxu0 0.0
    %1146 = vmatprep.subr.mxu0 0.0
    %1147 = vmatpush1.msra.mxu0 0.0
    %1148 = vmatprep.subr.mxu0 0.0
    %1149 = vmatpush1.msra.mxu0 0.0
    %1150 = vmatprep.subr.mxu0 0.0
    %1151 = vmatpush1.msra.mxu0 0.0
    %1152 = vmatprep.subr.mxu0 0.0
    %1153 = vmatpush1.msra.mxu0 0.0
    %1154 = vmatprep.subr.mxu0 0.0
    %1155 = vmatpush1.msra.mxu0 0.0
    %1156 = vmatprep.subr.mxu0 0.0
    %1157 = vmatpush1.msra.mxu0 0.0
    %1158 = vmatprep.subr.mxu0 0.0
    %1159 = vmatpush1.msra.mxu0 0.0
    %1160 = vmatprep.subr.mxu0 0.0
    %1161 = vmatpush1.msra.mxu0 0.0
    %1162 = vmatprep.subr.mxu0 0.0
    %1163 = vmatpush1.msra.mxu0 0.0
    %1164 = vmatprep.subr.mxu0 0.0
    %1165 = vmatpush1.msra.mxu0 0.0
    %1166 = vmatprep.subr.mxu0 0.0
    %1167 = vmatpush1.msra.mxu0 0.0
    %1168 = vmatprep.subr.mxu0 0.0
    %1169 = vmatpush1.msra.mxu0 0.0
    %1170 = vmatprep.subr.mxu0 0.0
    %1171 = vmatpush1.msra.mxu0 0.0
    %1172 = vmatprep.subr.mxu0 0.0
    %1173 = vmatpush1.msra.mxu0 0.0
    %1174 = vmatprep.mubr.f32.mxu0 0.0
    %1175 = vmatmul.mubr.f32.gmra.mrb[0].mxu0 %v1037
    %v1176 = vpop.f32.mrb[0].mxu0
    %v1177 = vadd.f32 %v40, %v1176
    %v1178 = vpop.f32.mrb[0].mxu0
    %v1179 = vadd.f32 %v44, %v1178
    %1180 = vdwg.mxu0
    %v1181 = vxor.u32 %v1106, 2147483648
    %v1182 = vxor.u32 %v1108, 2147483648
    %v1183 = vmul.f32 %v1181, 1.442695
    %v1184 = vpow.pop %v1183
    %v1185 = vmul.f32 %v1182, 1.442695
    %v1186 = vpow.pop %v1185
    %v1187 = vadd.f32 %v1184, 1.0
    %v1188 = vadd.f32 %v1186, 1.0
    %v1189 = vrcp.pop %v1187
    %v1190 = vmul.f32 1.0, %v1189
    %v1191 = vrcp.pop %v1188
    %v1192 = vmul.f32 1.0, %v1191
    %v1193 = vtanh.pop %v1177
    %v1194 = vxor.u32 %v1179, 2147483648
    %v1195 = vmul.f32 %v1194, 1.442695
    %v1196 = vpow.pop %v1195
    %v1197 = vadd.f32 %v1196, 1.0
    %v1198 = vrcp.pop %v1197
    %v1199 = vmul.f32 1.0, %v1198
    %v1200 = vmul.f32 %v1192, %v802
    %v1201 = vmul.f32 %v1190, %v1193
    %v1202 = vadd.f32 %v1200, %v1201
    %v1203 = vtanh.pop %v1202
    %v1204 = vmul.f32 %v1199, %v1203
    %v1205 = vld [vmem:[#allocation4 + $0x280] sm:$0xff]
    %v1206 = vld [vmem:[#allocation4 + $0x288] sm:$0xff]
    %v1207 = vld [vmem:[#allocation4 + $0x290] sm:$0xff]
    %v1208 = vld [vmem:[#allocation4 + $0x298] sm:$0xff]
    %v1209 = vld [vmem:[#allocation4 + $0x2a0] sm:$0xff]
    %v1210 = vld [vmem:[#allocation4 + $0x2a8] sm:$0xff]
    %v1211 = vld [vmem:[#allocation4 + $0x2b0] sm:$0xff]
    %v1212 = vld [vmem:[#allocation4 + $0x2b8] sm:$0xff]
    %v1213 = vld [vmem:[#allocation4 + $0x2c0] sm:$0xff]
    %v1214 = vld [vmem:[#allocation4 + $0x2c8] sm:$0xff]
    %v1215 = vld [vmem:[#allocation4 + $0x2d0] sm:$0xff]
    %v1216 = vld [vmem:[#allocation4 + $0x2d8] sm:$0xff]
    %v1217 = vld [vmem:[#allocation4 + $0x2e0] sm:$0xff]
    %v1218 = vld [vmem:[#allocation4 + $0x2e8] sm:$0xff]
    %v1219 = vld [vmem:[#allocation4 + $0x2f0] sm:$0xff]
    %v1220 = vld [vmem:[#allocation4 + $0x2f8] sm:$0xff]
    %v1221 = vld [vmem:[#allocation4 + $0x300] sm:$0xff]
    %v1222 = vld [vmem:[#allocation4 + $0x308] sm:$0xff]
    %v1223 = vld [vmem:[#allocation4 + $0x310] sm:$0xff]
    %v1224 = vld [vmem:[#allocation4 + $0x318] sm:$0xff]
    %v1225 = vld [vmem:[#allocation4 + $0x320] sm:$0xff]
    %v1226 = vld [vmem:[#allocation4 + $0x328] sm:$0xff]
    %v1227 = vld [vmem:[#allocation4 + $0x330] sm:$0xff]
    %v1228 = vld [vmem:[#allocation4 + $0x338] sm:$0xff]
    %v1229 = vld [vmem:[#allocation4 + $0x340] sm:$0xff]
    %v1230 = vld [vmem:[#allocation4 + $0x348] sm:$0xff]
    %v1231 = vld [vmem:[#allocation4 + $0x350] sm:$0xff]
    %v1232 = vld [vmem:[#allocation4 + $0x358] sm:$0xff]
    %v1233 = vld [vmem:[#allocation4 + $0x360] sm:$0xff]
    %v1234 = vld [vmem:[#allocation4 + $0x368] sm:$0xff]
    %v1235 = vld [vmem:[#allocation4 + $0x370] sm:$0xff]
    %v1236 = vld [vmem:[#allocation4 + $0x378] sm:$0xff]
    %vm1237 = vcmask 523264
    %v1238 = vsel %vm1237, %v804, 0
    %1240 = vmatprep.subr.mxu0 %v1206
    %1241 = vmatpush1.msra.mxu0 %v1205
    %1242 = vmatprep.subr.mxu0 %v1210
    %1243 = vmatpush1.msra.mxu0 %v1209
    %1244 = vmatprep.subr.mxu0 %v1214
    %1245 = vmatpush1.msra.mxu0 %v1213
    %1246 = vmatprep.subr.mxu0 %v1218
    %1247 = vmatpush1.msra.mxu0 %v1217
    %1248 = vmatprep.subr.mxu0 %v1222
    %1249 = vmatpush1.msra.mxu0 %v1221
    %1250 = vmatprep.subr.mxu0 %v1226
    %1251 = vmatpush1.msra.mxu0 %v1225
    %1252 = vmatprep.subr.mxu0 %v1230
    %1253 = vmatpush1.msra.mxu0 %v1229
    %1254 = vmatprep.subr.mxu0 %v1234
    %1255 = vmatpush1.msra.mxu0 %v1233
    %1256 = vmatprep.subr.mxu0 0.0
    %1257 = vmatpush1.msra.mxu0 0.0
    %1258 = vmatprep.subr.mxu0 0.0
    %1259 = vmatpush1.msra.mxu0 0.0
    %1260 = vmatprep.subr.mxu0 0.0
    %1261 = vmatpush1.msra.mxu0 0.0
    %1262 = vmatprep.subr.mxu0 0.0
    %1263 = vmatpush1.msra.mxu0 0.0
    %1264 = vmatprep.subr.mxu0 0.0
    %1265 = vmatpush1.msra.mxu0 0.0
    %1266 = vmatprep.subr.mxu0 0.0
    %1267 = vmatpush1.msra.mxu0 0.0
    %1268 = vmatprep.subr.mxu0 0.0
    %1269 = vmatpush1.msra.mxu0 0.0
    %1270 = vmatprep.subr.mxu0 0.0
    %1271 = vmatpush1.msra.mxu0 0.0
    %1272 = vmatprep.subr.mxu0 0.0
    %1273 = vmatpush1.msra.mxu0 0.0
    %1274 = vmatprep.subr.mxu0 0.0
    %1275 = vmatpush1.msra.mxu0 0.0
    %1276 = vmatprep.subr.mxu0 0.0
    %1277 = vmatpush1.msra.mxu0 0.0
    %1278 = vmatprep.subr.mxu0 0.0
    %1279 = vmatpush1.msra.mxu0 0.0
    %1280 = vmatprep.subr.mxu0 0.0
    %1281 = vmatpush1.msra.mxu0 0.0
    %1282 = vmatprep.subr.mxu0 0.0
    %1283 = vmatpush1.msra.mxu0 0.0
    %1284 = vmatprep.subr.mxu0 0.0
    %1285 = vmatpush1.msra.mxu0 0.0
    %1286 = vmatprep.subr.mxu0 0.0
    %1287 = vmatpush1.msra.mxu0 0.0
    %1288 = vmatprep.subr.mxu0 0.0
    %1289 = vmatpush1.msra.mxu0 0.0
    %1290 = vmatprep.subr.mxu0 0.0
    %1291 = vmatpush1.msra.mxu0 0.0
    %1292 = vmatprep.subr.mxu0 0.0
    %1293 = vmatpush1.msra.mxu0 0.0
    %1294 = vmatprep.subr.mxu0 0.0
    %1295 = vmatpush1.msra.mxu0 0.0
    %1296 = vmatprep.subr.mxu0 0.0
    %1297 = vmatpush1.msra.mxu0 0.0
    %1298 = vmatprep.subr.mxu0 0.0
    %1299 = vmatpush1.msra.mxu0 0.0
    %1300 = vmatprep.subr.mxu0 0.0
    %1301 = vmatpush1.msra.mxu0 0.0
    %1302 = vmatprep.subr.mxu0 0.0
    %1303 = vmatpush1.msra.mxu0 0.0
    %1304 = vmatprep.mubr.f32.mxu0 0.0
    %1305 = vmatmul.mubr.f32.gmra.mrb[0].mxu0 %v1238
    %v1306 = vpop.f32.mrb[0].mxu0
    %v1307 = vadd.f32 %v55, %v1306
    %v1308 = vpop.f32.mrb[0].mxu0
    %v1309 = vadd.f32 %v59, %v1308
    %1310 = vdwg.mxu0
    %1311 = vmatprep.subr.mxu0 %v1208
    %1312 = vmatpush1.msra.mxu0 %v1207
    %1313 = vmatprep.subr.mxu0 %v1212
    %1314 = vmatpush1.msra.mxu0 %v1211
    %1315 = vmatprep.subr.mxu0 %v1216
    %1316 = vmatpush1.msra.mxu0 %v1215
    %1317 = vmatprep.subr.mxu0 %v1220
    %1318 = vmatpush1.msra.mxu0 %v1219
    %1319 = vmatprep.subr.mxu0 %v1224
    %1320 = vmatpush1.msra.mxu0 %v1223
    %1321 = vmatprep.subr.mxu0 %v1228
    %1322 = vmatpush1.msra.mxu0 %v1227
    %1323 = vmatprep.subr.mxu0 %v1232
    %1324 = vmatpush1.msra.mxu0 %v1231
    %1325 = vmatprep.subr.mxu0 %v1236
    %1326 = vmatpush1.msra.mxu0 %v1235
    %1327 = vmatprep.subr.mxu0 0.0
    %1328 = vmatpush1.msra.mxu0 0.0
    %1329 = vmatprep.subr.mxu0 0.0
    %1330 = vmatpush1.msra.mxu0 0.0
    %1331 = vmatprep.subr.mxu0 0.0
    %1332 = vmatpush1.msra.mxu0 0.0
    %1333 = vmatprep.subr.mxu0 0.0
    %1334 = vmatpush1.msra.mxu0 0.0
    %1335 = vmatprep.subr.mxu0 0.0
    %1336 = vmatpush1.msra.mxu0 0.0
    %1337 = vmatprep.subr.mxu0 0.0
    %1338 = vmatpush1.msra.mxu0 0.0
    %1339 = vmatprep.subr.mxu0 0.0
    %1340 = vmatpush1.msra.mxu0 0.0
    %1341 = vmatprep.subr.mxu0 0.0
    %1342 = vmatpush1.msra.mxu0 0.0
    %1343 = vmatprep.subr.mxu0 0.0
    %1344 = vmatpush1.msra.mxu0 0.0
    %1345 = vmatprep.subr.mxu0 0.0
    %1346 = vmatpush1.msra.mxu0 0.0
    %1347 = vmatprep.subr.mxu0 0.0
    %1348 = vmatpush1.msra.mxu0 0.0
    %1349 = vmatprep.subr.mxu0 0.0
    %1350 = vmatpush1.msra.mxu0 0.0
    %1351 = vmatprep.subr.mxu0 0.0
    %1352 = vmatpush1.msra.mxu0 0.0
    %1353 = vmatprep.subr.mxu0 0.0
    %1354 = vmatpush1.msra.mxu0 0.0
    %1355 = vmatprep.subr.mxu0 0.0
    %1356 = vmatpush1.msra.mxu0 0.0
    %1357 = vmatprep.subr.mxu0 0.0
    %1358 = vmatpush1.msra.mxu0 0.0
    %1359 = vmatprep.subr.mxu0 0.0
    %1360 = vmatpush1.msra.mxu0 0.0
    %1361 = vmatprep.subr.mxu0 0.0
    %1362 = vmatpush1.msra.mxu0 0.0
    %1363 = vmatprep.subr.mxu0 0.0
    %1364 = vmatpush1.msra.mxu0 0.0
    %1365 = vmatprep.subr.mxu0 0.0
    %1366 = vmatpush1.msra.mxu0 0.0
    %1367 = vmatprep.subr.mxu0 0.0
    %1368 = vmatpush1.msra.mxu0 0.0
    %1369 = vmatprep.subr.mxu0 0.0
    %1370 = vmatpush1.msra.mxu0 0.0
    %1371 = vmatprep.subr.mxu0 0.0
    %1372 = vmatpush1.msra.mxu0 0.0
    %1373 = vmatprep.subr.mxu0 0.0
    %1374 = vmatpush1.msra.mxu0 0.0
    %1375 = vmatprep.mubr.f32.mxu0 0.0
    %1376 = vmatmul.mubr.f32.gmra.mrb[0].mxu0 %v1238
    %v1377 = vpop.f32.mrb[0].mxu0
    %v1378 = vadd.f32 %v63, %v1377
    %v1379 = vpop.f32.mrb[0].mxu0
    %v1380 = vadd.f32 %v67, %v1379
    %1381 = vdwg.mxu0
    %v1382 = vxor.u32 %v1307, 2147483648
    %v1383 = vxor.u32 %v1309, 2147483648
    %v1384 = vmul.f32 %v1382, 1.442695
    %v1385 = vpow.pop %v1384
    %v1386 = vmul.f32 %v1383, 1.442695
    %v1387 = vpow.pop %v1386
    %v1388 = vadd.f32 %v1385, 1.0
    %v1389 = vadd.f32 %v1387, 1.0
    %v1390 = vrcp.pop %v1388
    %v1391 = vmul.f32 1.0, %v1390
    %v1392 = vrcp.pop %v1389
    %v1393 = vmul.f32 1.0, %v1392
    %v1394 = vtanh.pop %v1378
    %v1395 = vxor.u32 %v1380, 2147483648
    %v1396 = vmul.f32 %v1395, 1.442695
    %v1397 = vpow.pop %v1396
    %v1398 = vadd.f32 %v1397, 1.0
    %v1399 = vrcp.pop %v1398
    %v1400 = vmul.f32 1.0, %v1399
    %v1401 = vmul.f32 %v1393, 0.0
    %v1402 = vmul.f32 %v1391, %v1394
    %v1403 = vadd.f32 %v1401, %v1402
    %v1404 = vtanh.pop %v1403
    %v1405 = vmul.f32 %v1400, %v1404
    %1406 = vst [vmem:[#allocation3] sm:$0xff] %v1405
    %v1407 = vld [vmem:[#allocation2 + $0x60] sm:$0xff]
    %v1408 = vld [vmem:[#allocation2 + $0x68] sm:$0xff]
    %v1409 = vld [vmem:[#allocation2 + $0x70] sm:$0xff]
    %v1410 = vld [vmem:[#allocation2 + $0x78] sm:$0xff]
    %v1411 = vld [vmem:[#allocation4 + $0x80] sm:$0xff]
    %v1412 = vld [vmem:[#allocation4 + $0x88] sm:$0xff]
    %v1413 = vld [vmem:[#allocation4 + $0x90] sm:$0xff]
    %v1414 = vld [vmem:[#allocation4 + $0x98] sm:$0xff]
    %v1415 = vld [vmem:[#allocation4 + $0xa0] sm:$0xff]
    %v1416 = vld [vmem:[#allocation4 + $0xa8] sm:$0xff]
    %v1417 = vld [vmem:[#allocation4 + $0xb0] sm:$0xff]
    %v1418 = vld [vmem:[#allocation4 + $0xb8] sm:$0xff]
    %v1419 = vld [vmem:[#allocation4 + $0xc0] sm:$0xff]
    %v1420 = vld [vmem:[#allocation4 + $0xc8] sm:$0xff]
    %v1421 = vld [vmem:[#allocation4 + $0xd0] sm:$0xff]
    %v1422 = vld [vmem:[#allocation4 + $0xd8] sm:$0xff]
    %v1423 = vld [vmem:[#allocation4 + $0xe0] sm:$0xff]
    %v1424 = vld [vmem:[#allocation4 + $0xe8] sm:$0xff]
    %v1425 = vld [vmem:[#allocation4 + $0xf0] sm:$0xff]
    %v1426 = vld [vmem:[#allocation4 + $0xf8] sm:$0xff]
    %v1428 = vsel %vm119, %v981, 0
    %1430 = vmatprep.subr.mxu0 %v1412
    %1431 = vmatpush1.msra.mxu0 %v1411
    %1432 = vmatprep.subr.mxu0 %v1416
    %1433 = vmatpush1.msra.mxu0 %v1415
    %1434 = vmatprep.subr.mxu0 %v1420
    %1435 = vmatpush1.msra.mxu0 %v1419
    %1436 = vmatprep.subr.mxu0 %v1424
    %1437 = vmatpush1.msra.mxu0 %v1423
    %1438 = vmatprep.subr.mxu0 0.0
    %1439 = vmatpush1.msra.mxu0 0.0
    %1440 = vmatprep.subr.mxu0 0.0
    %1441 = vmatpush1.msra.mxu0 0.0
    %1442 = vmatprep.subr.mxu0 0.0
    %1443 = vmatpush1.msra.mxu0 0.0
    %1444 = vmatprep.subr.mxu0 0.0
    %1445 = vmatpush1.msra.mxu0 0.0
    %1446 = vmatprep.subr.mxu0 0.0
    %1447 = vmatpush1.msra.mxu0 0.0
    %1448 = vmatprep.subr.mxu0 0.0
    %1449 = vmatpush1.msra.mxu0 0.0
    %1450 = vmatprep.subr.mxu0 0.0
    %1451 = vmatpush1.msra.mxu0 0.0
    %1452 = vmatprep.subr.mxu0 0.0
    %1453 = vmatpush1.msra.mxu0 0.0
    %1454 = vmatprep.subr.mxu0 0.0
    %1455 = vmatpush1.msra.mxu0 0.0
    %1456 = vmatprep.subr.mxu0 0.0
    %1457 = vmatpush1.msra.mxu0 0.0
    %1458 = vmatprep.subr.mxu0 0.0
    %1459 = vmatpush1.msra.mxu0 0.0
    %1460 = vmatprep.subr.mxu0 0.0
    %1461 = vmatpush1.msra.mxu0 0.0
    %1462 = vmatprep.subr.mxu0 0.0
    %1463 = vmatpush1.msra.mxu0 0.0
    %1464 = vmatprep.subr.mxu0 0.0
    %1465 = vmatpush1.msra.mxu0 0.0
    %1466 = vmatprep.subr.mxu0 0.0
    %1467 = vmatpush1.msra.mxu0 0.0
    %1468 = vmatprep.subr.mxu0 0.0
    %1469 = vmatpush1.msra.mxu0 0.0
    %1470 = vmatprep.subr.mxu0 0.0
    %1471 = vmatpush1.msra.mxu0 0.0
    %1472 = vmatprep.subr.mxu0 0.0
    %1473 = vmatpush1.msra.mxu0 0.0
    %1474 = vmatprep.subr.mxu0 0.0
    %1475 = vmatpush1.msra.mxu0 0.0
    %1476 = vmatprep.subr.mxu0 0.0
    %1477 = vmatpush1.msra.mxu0 0.0
    %1478 = vmatprep.subr.mxu0 0.0
    %1479 = vmatpush1.msra.mxu0 0.0
    %1480 = vmatprep.subr.mxu0 0.0
    %1481 = vmatpush1.msra.mxu0 0.0
    %1482 = vmatprep.subr.mxu0 0.0
    %1483 = vmatpush1.msra.mxu0 0.0
    %1484 = vmatprep.subr.mxu0 0.0
    %1485 = vmatpush1.msra.mxu0 0.0
    %1486 = vmatprep.subr.mxu0 0.0
    %1487 = vmatpush1.msra.mxu0 0.0
    %1488 = vmatprep.subr.mxu0 0.0
    %1489 = vmatpush1.msra.mxu0 0.0
    %1490 = vmatprep.subr.mxu0 0.0
    %1491 = vmatpush1.msra.mxu0 0.0
    %1492 = vmatprep.subr.mxu0 0.0
    %1493 = vmatpush1.msra.mxu0 0.0
    %1494 = vmatprep.mubr.f32.mxu0 0.0
    %1495 = vmatmul.mubr.f32.gmra.mrb[0].mxu0 %v1428
    %v1496 = vpop.f32.mrb[0].mxu0
    %v1497 = vadd.f32 0.0, %v1496
    %v1498 = vpop.f32.mrb[0].mxu0
    %v1499 = vadd.f32 0.0, %v1498
    %1500 = vdwg.mxu0
    %1501 = vmatprep.subr.mxu0 %v1414
    %1502 = vmatpush1.msra.mxu0 %v1413
    %1503 = vmatprep.subr.mxu0 %v1418
    %1504 = vmatpush1.msra.mxu0 %v1417
    %1505 = vmatprep.subr.mxu0 %v1422
    %1506 = vmatpush1.msra.mxu0 %v1421
    %1507 = vmatprep.subr.mxu0 %v1426
    %1508 = vmatpush1.msra.mxu0 %v1425
    %1509 = vmatprep.subr.mxu0 0.0
    %1510 = vmatpush1.msra.mxu0 0.0
    %1511 = vmatprep.subr.mxu0 0.0
    %1512 = vmatpush1.msra.mxu0 0.0
    %1513 = vmatprep.subr.mxu0 0.0
    %1514 = vmatpush1.msra.mxu0 0.0
    %1515 = vmatprep.subr.mxu0 0.0
    %1516 = vmatpush1.msra.mxu0 0.0
    %1517 = vmatprep.subr.mxu0 0.0
    %1518 = vmatpush1.msra.mxu0 0.0
    %1519 = vmatprep.subr.mxu0 0.0
    %1520 = vmatpush1.msra.mxu0 0.0
    %1521 = vmatprep.subr.mxu0 0.0
    %1522 = vmatpush1.msra.mxu0 0.0
    %1523 = vmatprep.subr.mxu0 0.0
    %1524 = vmatpush1.msra.mxu0 0.0
    %1525 = vmatprep.subr.mxu0 0.0
    %1526 = vmatpush1.msra.mxu0 0.0
    %1527 = vmatprep.subr.mxu0 0.0
    %1528 = vmatpush1.msra.mxu0 0.0
    %1529 = vmatprep.subr.mxu0 0.0
    %1530 = vmatpush1.msra.mxu0 0.0
    %1531 = vmatprep.subr.mxu0 0.0
    %1532 = vmatpush1.msra.mxu0 0.0
    %1533 = vmatprep.subr.mxu0 0.0
    %1534 = vmatpush1.msra.mxu0 0.0
    %1535 = vmatprep.subr.mxu0 0.0
    %1536 = vmatpush1.msra.mxu0 0.0
    %1537 = vmatprep.subr.mxu0 0.0
    %1538 = vmatpush1.msra.mxu0 0.0
    %1539 = vmatprep.subr.mxu0 0.0
    %1540 = vmatpush1.msra.mxu0 0.0
    %1541 = vmatprep.subr.mxu0 0.0
    %1542 = vmatpush1.msra.mxu0 0.0
    %1543 = vmatprep.subr.mxu0 0.0
    %1544 = vmatpush1.msra.mxu0 0.0
    %1545 = vmatprep.subr.mxu0 0.0
    %1546 = vmatpush1.msra.mxu0 0.0
    %1547 = vmatprep.subr.mxu0 0.0
    %1548 = vmatpush1.msra.mxu0 0.0
    %1549 = vmatprep.subr.mxu0 0.0
    %1550 = vmatpush1.msra.mxu0 0.0
    %1551 = vmatprep.subr.mxu0 0.0
    %1552 = vmatpush1.msra.mxu0 0.0
    %1553 = vmatprep.subr.mxu0 0.0
    %1554 = vmatpush1.msra.mxu0 0.0
    %1555 = vmatprep.subr.mxu0 0.0
    %1556 = vmatpush1.msra.mxu0 0.0
    %1557 = vmatprep.subr.mxu0 0.0
    %1558 = vmatpush1.msra.mxu0 0.0
    %1559 = vmatprep.subr.mxu0 0.0
    %1560 = vmatpush1.msra.mxu0 0.0
    %1561 = vmatprep.subr.mxu0 0.0
    %1562 = vmatpush1.msra.mxu0 0.0
    %1563 = vmatprep.subr.mxu0 0.0
    %1564 = vmatpush1.msra.mxu0 0.0
    %1565 = vmatprep.mubr.f32.mxu0 0.0
    %1566 = vmatmul.mubr.f32.gmra.mrb[0].mxu0 %v1428
    %v1567 = vpop.f32.mrb[0].mxu0
    %v1568 = vadd.f32 0.0, %v1567
    %v1569 = vpop.f32.mrb[0].mxu0
    %v1570 = vadd.f32 0.0, %v1569
    %1571 = vdwg.mxu0
    %v1572 = vadd.f32 %v1407, %v1497
    %v1573 = vadd.f32 %v1408, %v1499
    %v1574 = vadd.f32 %v1409, %v1568
    %v1575 = vadd.f32 %v1410, %v1570
    %v1576 = vxor.u32 %v1572, 2147483648
    %v1577 = vxor.u32 %v1573, 2147483648
    %v1578 = vmul.f32 %v1576, 1.442695
    %v1579 = vpow.pop %v1578
    %v1580 = vmul.f32 %v1577, 1.442695
    %v1581 = vpow.pop %v1580
    %v1582 = vadd.f32 %v1579, 1.0
    %v1583 = vadd.f32 %v1581, 1.0
    %v1584 = vrcp.pop %v1582
    %v1585 = vmul.f32 1.0, %v1584
    %v1586 = vrcp.pop %v1583
    %v1587 = vmul.f32 1.0, %v1586
    %v1588 = vtanh.pop %v1574
    %v1589 = vxor.u32 %v1575, 2147483648
    %v1590 = vmul.f32 %v1589, 1.442695
    %v1591 = vpow.pop %v1590
    %v1592 = vadd.f32 %v1591, 1.0
    %v1593 = vrcp.pop %v1592
    %v1594 = vmul.f32 1.0, %v1593
    %v1595 = vmul.f32 %v1587, %v979
    %v1596 = vmul.f32 %v1585, %v1588
    %v1597 = vadd.f32 %v1595, %v1596
    %v1598 = vtanh.pop %v1597
    %v1599 = vmul.f32 %v1594, %v1598
    %1601 = vrot.lane.b32.xlu0 %v1204, 32
    %v1602 = vpop.permute.xlu0 %1601
    %v1604 = vsel %vm119, %v981, %v1602
    %v1605 = vld [vmem:[#allocation4 + $0x100] sm:$0xff]
    %v1606 = vld [vmem:[#allocation4 + $0x108] sm:$0xff]
    %v1607 = vld [vmem:[#allocation4 + $0x110] sm:$0xff]
    %v1608 = vld [vmem:[#allocation4 + $0x118] sm:$0xff]
    %v1609 = vld [vmem:[#allocation4 + $0x120] sm:$0xff]
    %v1610 = vld [vmem:[#allocation4 + $0x128] sm:$0xff]
    %v1611 = vld [vmem:[#allocation4 + $0x130] sm:$0xff]
    %v1612 = vld [vmem:[#allocation4 + $0x138] sm:$0xff]
    %v1613 = vld [vmem:[#allocation4 + $0x140] sm:$0xff]
    %v1614 = vld [vmem:[#allocation4 + $0x148] sm:$0xff]
    %v1615 = vld [vmem:[#allocation4 + $0x150] sm:$0xff]
    %v1616 = vld [vmem:[#allocation4 + $0x158] sm:$0xff]
    %v1617 = vld [vmem:[#allocation4 + $0x160] sm:$0xff]
    %v1618 = vld [vmem:[#allocation4 + $0x168] sm:$0xff]
    %v1619 = vld [vmem:[#allocation4 + $0x170] sm:$0xff]
    %v1620 = vld [vmem:[#allocation4 + $0x178] sm:$0xff]
    %v1621 = vld [vmem:[#allocation4 + $0x180] sm:$0xff]
    %v1622 = vld [vmem:[#allocation4 + $0x188] sm:$0xff]
    %v1623 = vld [vmem:[#allocation4 + $0x190] sm:$0xff]
    %v1624 = vld [vmem:[#allocation4 + $0x198] sm:$0xff]
    %v1625 = vld [vmem:[#allocation4 + $0x1a0] sm:$0xff]
    %v1626 = vld [vmem:[#allocation4 + $0x1a8] sm:$0xff]
    %v1627 = vld [vmem:[#allocation4 + $0x1b0] sm:$0xff]
    %v1628 = vld [vmem:[#allocation4 + $0x1b8] sm:$0xff]
    %v1629 = vld [vmem:[#allocation4 + $0x1c0] sm:$0xff]
    %v1630 = vld [vmem:[#allocation4 + $0x1c8] sm:$0xff]
    %v1631 = vld [vmem:[#allocation4 + $0x1d0] sm:$0xff]
    %v1632 = vld [vmem:[#allocation4 + $0x1d8] sm:$0xff]
    %v1633 = vld [vmem:[#allocation4 + $0x1e0] sm:$0xff]
    %v1634 = vld [vmem:[#allocation4 + $0x1e8] sm:$0xff]
    %v1635 = vld [vmem:[#allocation4 + $0x1f0] sm:$0xff]
    %v1636 = vld [vmem:[#allocation4 + $0x1f8] sm:$0xff]
    %v1637 = vld [vmem:[#allocation4 + $0x200] sm:$0xff]
    %v1638 = vld [vmem:[#allocation4 + $0x208] sm:$0xff]
    %v1639 = vld [vmem:[#allocation4 + $0x210] sm:$0xff]
    %v1640 = vld [vmem:[#allocation4 + $0x218] sm:$0xff]
    %v1641 = vld [vmem:[#allocation4 + $0x220] sm:$0xff]
    %v1642 = vld [vmem:[#allocation4 + $0x228] sm:$0xff]
    %v1643 = vld [vmem:[#allocation4 + $0x230] sm:$0xff]
    %v1644 = vld [vmem:[#allocation4 + $0x238] sm:$0xff]
    %v1645 = vld [vmem:[#allocation4 + $0x240] sm:$0xff]
    %v1646 = vld [vmem:[#allocation4 + $0x248] sm:$0xff]
    %v1647 = vld [vmem:[#allocation4 + $0x250] sm:$0xff]
    %v1648 = vld [vmem:[#allocation4 + $0x258] sm:$0xff]
    %v1649 = vld [vmem:[#allocation4 + $0x260] sm:$0xff]
    %v1650 = vld [vmem:[#allocation4 + $0x268] sm:$0xff]
    %v1651 = vld [vmem:[#allocation4 + $0x270] sm:$0xff]
    %v1652 = vld [vmem:[#allocation4 + $0x278] sm:$0xff]
    %v1654 = vsel %vm1035, %v1604, 0
    %1656 = vmatprep.subr.mxu0 %v1606
    %1657 = vmatpush1.msra.mxu0 %v1605
    %1658 = vmatprep.subr.mxu0 %v1610
    %1659 = vmatpush1.msra.mxu0 %v1609
    %1660 = vmatprep.subr.mxu0 %v1614
    %1661 = vmatpush1.msra.mxu0 %v1613
    %1662 = vmatprep.subr.mxu0 %v1618
    %1663 = vmatpush1.msra.mxu0 %v1617
    %1664 = vmatprep.subr.mxu0 %v1622
    %1665 = vmatpush1.msra.mxu0 %v1621
    %1666 = vmatprep.subr.mxu0 %v1626
    %1667 = vmatpush1.msra.mxu0 %v1625
    %1668 = vmatprep.subr.mxu0 %v1630
    %1669 = vmatpush1.msra.mxu0 %v1629
    %1670 = vmatprep.subr.mxu0 %v1634
    %1671 = vmatpush1.msra.mxu0 %v1633
    %1672 = vmatprep.subr.mxu0 %v1638
    %1673 = vmatpush1.msra.mxu0 %v1637
    %1674 = vmatprep.subr.mxu0 %v1642
    %1675 = vmatpush1.msra.mxu0 %v1641
    %1676 = vmatprep.subr.mxu0 %v1646
    %1677 = vmatpush1.msra.mxu0 %v1645
    %1678 = vmatprep.subr.mxu0 %v1650
    %1679 = vmatpush1.msra.mxu0 %v1649
    %1680 = vmatprep.subr.mxu0 0.0
    %1681 = vmatpush1.msra.mxu0 0.0
    %1682 = vmatprep.subr.mxu0 0.0
    %1683 = vmatpush1.msra.mxu0 0.0
    %1684 = vmatprep.subr.mxu0 0.0
    %1685 = vmatpush1.msra.mxu0 0.0
    %1686 = vmatprep.subr.mxu0 0.0
    %1687 = vmatpush1.msra.mxu0 0.0
    %1688 = vmatprep.subr.mxu0 0.0
    %1689 = vmatpush1.msra.mxu0 0.0
    %1690 = vmatprep.subr.mxu0 0.0
    %1691 = vmatpush1.msra.mxu0 0.0
    %1692 = vmatprep.subr.mxu0 0.0
    %1693 = vmatpush1.msra.mxu0 0.0
    %1694 = vmatprep.subr.mxu0 0.0
    %1695 = vmatpush1.msra.mxu0 0.0
    %1696 = vmatprep.subr.mxu0 0.0
    %1697 = vmatpush1.msra.mxu0 0.0
    %1698 = vmatprep.subr.mxu0 0.0
    %1699 = vmatpush1.msra.mxu0 0.0
    %1700 = vmatprep.subr.mxu0 0.0
    %1701 = vmatpush1.msra.mxu0 0.0
    %1702 = vmatprep.subr.mxu0 0.0
    %1703 = vmatpush1.msra.mxu0 0.0
    %1704 = vmatprep.subr.mxu0 0.0
    %1705 = vmatpush1.msra.mxu0 0.0
    %1706 = vmatprep.subr.mxu0 0.0
    %1707 = vmatpush1.msra.mxu0 0.0
    %1708 = vmatprep.subr.mxu0 0.0
    %1709 = vmatpush1.msra.mxu0 0.0
    %1710 = vmatprep.subr.mxu0 0.0
    %1711 = vmatpush1.msra.mxu0 0.0
    %1712 = vmatprep.subr.mxu0 0.0
    %1713 = vmatpush1.msra.mxu0 0.0
    %1714 = vmatprep.subr.mxu0 0.0
    %1715 = vmatpush1.msra.mxu0 0.0
    %1716 = vmatprep.subr.mxu0 0.0
    %1717 = vmatpush1.msra.mxu0 0.0
    %1718 = vmatprep.subr.mxu0 0.0
    %1719 = vmatpush1.msra.mxu0 0.0
    %1720 = vmatprep.mubr.f32.mxu0 0.0
    %1721 = vmatmul.mubr.f32.gmra.mrb[0].mxu0 %v1654
    %v1722 = vpop.f32.mrb[0].mxu0
    %v1723 = vadd.f32 %v32, %v1722
    %v1724 = vpop.f32.mrb[0].mxu0
    %v1725 = vadd.f32 %v36, %v1724
    %1726 = vdwg.mxu0
    %1727 = vmatprep.subr.mxu0 %v1608
    %1728 = vmatpush1.msra.mxu0 %v1607
    %1729 = vmatprep.subr.mxu0 %v1612
    %1730 = vmatpush1.msra.mxu0 %v1611
    %1731 = vmatprep.subr.mxu0 %v1616
    %1732 = vmatpush1.msra.mxu0 %v1615
    %1733 = vmatprep.subr.mxu0 %v1620
    %1734 = vmatpush1.msra.mxu0 %v1619
    %1735 = vmatprep.subr.mxu0 %v1624
    %1736 = vmatpush1.msra.mxu0 %v1623
    %1737 = vmatprep.subr.mxu0 %v1628
    %1738 = vmatpush1.msra.mxu0 %v1627
    %1739 = vmatprep.subr.mxu0 %v1632
    %1740 = vmatpush1.msra.mxu0 %v1631
    %1741 = vmatprep.subr.mxu0 %v1636
    %1742 = vmatpush1.msra.mxu0 %v1635
    %1743 = vmatprep.subr.mxu0 %v1640
    %1744 = vmatpush1.msra.mxu0 %v1639
    %1745 = vmatprep.subr.mxu0 %v1644
    %1746 = vmatpush1.msra.mxu0 %v1643
    %1747 = vmatprep.subr.mxu0 %v1648
    %1748 = vmatpush1.msra.mxu0 %v1647
    %1749 = vmatprep.subr.mxu0 %v1652
    %1750 = vmatpush1.msra.mxu0 %v1651
    %1751 = vmatprep.subr.mxu0 0.0
    %1752 = vmatpush1.msra.mxu0 0.0
    %1753 = vmatprep.subr.mxu0 0.0
    %1754 = vmatpush1.msra.mxu0 0.0
    %1755 = vmatprep.subr.mxu0 0.0
    %1756 = vmatpush1.msra.mxu0 0.0
    %1757 = vmatprep.subr.mxu0 0.0
    %1758 = vmatpush1.msra.mxu0 0.0
    %1759 = vmatprep.subr.mxu0 0.0
    %1760 = vmatpush1.msra.mxu0 0.0
    %1761 = vmatprep.subr.mxu0 0.0
    %1762 = vmatpush1.msra.mxu0 0.0
    %1763 = vmatprep.subr.mxu0 0.0
    %1764 = vmatpush1.msra.mxu0 0.0
    %1765 = vmatprep.subr.mxu0 0.0
    %1766 = vmatpush1.msra.mxu0 0.0
    %1767 = vmatprep.subr.mxu0 0.0
    %1768 = vmatpush1.msra.mxu0 0.0
    %1769 = vmatprep.subr.mxu0 0.0
    %1770 = vmatpush1.msra.mxu0 0.0
    %1771 = vmatprep.subr.mxu0 0.0
    %1772 = vmatpush1.msra.mxu0 0.0
    %1773 = vmatprep.subr.mxu0 0.0
    %1774 = vmatpush1.msra.mxu0 0.0
    %1775 = vmatprep.subr.mxu0 0.0
    %1776 = vmatpush1.msra.mxu0 0.0
    %1777 = vmatprep.subr.mxu0 0.0
    %1778 = vmatpush1.msra.mxu0 0.0
    %1779 = vmatprep.subr.mxu0 0.0
    %1780 = vmatpush1.msra.mxu0 0.0
    %1781 = vmatprep.subr.mxu0 0.0
    %1782 = vmatpush1.msra.mxu0 0.0
    %1783 = vmatprep.subr.mxu0 0.0
    %1784 = vmatpush1.msra.mxu0 0.0
    %1785 = vmatprep.subr.mxu0 0.0
    %1786 = vmatpush1.msra.mxu0 0.0
    %1787 = vmatprep.subr.mxu0 0.0
    %1788 = vmatpush1.msra.mxu0 0.0
    %1789 = vmatprep.subr.mxu0 0.0
    %1790 = vmatpush1.msra.mxu0 0.0
    %1791 = vmatprep.mubr.f32.mxu0 0.0
    %1792 = vmatmul.mubr.f32.gmra.mrb[0].mxu0 %v1654
    %v1793 = vpop.f32.mrb[0].mxu0
    %v1794 = vadd.f32 %v40, %v1793
    %v1795 = vpop.f32.mrb[0].mxu0
    %v1796 = vadd.f32 %v44, %v1795
    %1797 = vdwg.mxu0
    %v1798 = vxor.u32 %v1723, 2147483648
    %v1799 = vxor.u32 %v1725, 2147483648
    %v1800 = vmul.f32 %v1798, 1.442695
    %v1801 = vpow.pop %v1800
    %v1802 = vmul.f32 %v1799, 1.442695
    %v1803 = vpow.pop %v1802
    %v1804 = vadd.f32 %v1801, 1.0
    %v1805 = vadd.f32 %v1803, 1.0
    %v1806 = vrcp.pop %v1804
    %v1807 = vmul.f32 1.0, %v1806
    %v1808 = vrcp.pop %v1805
    %v1809 = vmul.f32 1.0, %v1808
    %v1810 = vtanh.pop %v1794
    %v1811 = vxor.u32 %v1796, 2147483648
    %v1812 = vmul.f32 %v1811, 1.442695
    %v1813 = vpow.pop %v1812
    %v1814 = vadd.f32 %v1813, 1.0
    %v1815 = vrcp.pop %v1814
    %v1816 = vmul.f32 1.0, %v1815
    %v1817 = vmul.f32 %v1809, %v1202
    %v1818 = vmul.f32 %v1807, %v1810
    %v1819 = vadd.f32 %v1817, %v1818
    %v1820 = vtanh.pop %v1819
    %v1821 = vmul.f32 %v1816, %v1820
    %1823 = vrot.lane.b32.xlu0 %v1405, 64
    %v1824 = vpop.permute.xlu0 %1823
    %v1826 = vsel %vm1237, %v1204, %v1824
    %v1827 = vld [vmem:[#allocation4 + $0x280] sm:$0xff]
    %v1828 = vld [vmem:[#allocation4 + $0x288] sm:$0xff]
    %v1829 = vld [vmem:[#allocation4 + $0x290] sm:$0xff]
    %v1830 = vld [vmem:[#allocation4 + $0x298] sm:$0xff]
    %v1831 = vld [vmem:[#allocation4 + $0x2a0] sm:$0xff]
    %v1832 = vld [vmem:[#allocation4 + $0x2a8] sm:$0xff]
    %v1833 = vld [vmem:[#allocation4 + $0x2b0] sm:$0xff]
    %v1834 = vld [vmem:[#allocation4 + $0x2b8] sm:$0xff]
    %v1835 = vld [vmem:[#allocation4 + $0x2c0] sm:$0xff]
    %v1836 = vld [vmem:[#allocation4 + $0x2c8] sm:$0xff]
    %v1837 = vld [vmem:[#allocation4 + $0x2d0] sm:$0xff]
    %v1838 = vld [vmem:[#allocation4 + $0x2d8] sm:$0xff]
    %v1839 = vld [vmem:[#allocation4 + $0x2e0] sm:$0xff]
    %v1840 = vld [vmem:[#allocation4 + $0x2e8] sm:$0xff]
    %v1841 = vld [vmem:[#allocation4 + $0x2f0] sm:$0xff]
    %v1842 = vld [vmem:[#allocation4 + $0x2f8] sm:$0xff]
    %v1843 = vld [vmem:[#allocation4 + $0x300] sm:$0xff]
    %v1844 = vld [vmem:[#allocation4 + $0x308] sm:$0xff]
    %v1845 = vld [vmem:[#allocation4 + $0x310] sm:$0xff]
    %v1846 = vld [vmem:[#allocation4 + $0x318] sm:$0xff]
    %v1847 = vld [vmem:[#allocation4 + $0x320] sm:$0xff]
    %v1848 = vld [vmem:[#allocation4 + $0x328] sm:$0xff]
    %v1849 = vld [vmem:[#allocation4 + $0x330] sm:$0xff]
    %v1850 = vld [vmem:[#allocation4 + $0x338] sm:$0xff]
    %v1851 = vld [vmem:[#allocation4 + $0x340] sm:$0xff]
    %v1852 = vld [vmem:[#allocation4 + $0x348] sm:$0xff]
    %v1853 = vld [vmem:[#allocation4 + $0x350] sm:$0xff]
    %v1854 = vld [vmem:[#allocation4 + $0x358] sm:$0xff]
    %v1855 = vld [vmem:[#allocation4 + $0x360] sm:$0xff]
    %v1856 = vld [vmem:[#allocation4 + $0x368] sm:$0xff]
    %v1857 = vld [vmem:[#allocation4 + $0x370] sm:$0xff]
    %v1858 = vld [vmem:[#allocation4 + $0x378] sm:$0xff]
    %v1859 = vld [vmem:[#allocation4 + $0x380] sm:$0xff]
    %v1860 = vld [vmem:[#allocation4 + $0x388] sm:$0xff]
    %v1861 = vld [vmem:[#allocation4 + $0x390] sm:$0xff]
    %v1862 = vld [vmem:[#allocation4 + $0x398] sm:$0xff]
    %v1863 = vld [vmem:[#allocation4 + $0x3a0] sm:$0xff]
    %v1864 = vld [vmem:[#allocation4 + $0x3a8] sm:$0xff]
    %v1865 = vld [vmem:[#allocation4 + $0x3b0] sm:$0xff]
    %v1866 = vld [vmem:[#allocation4 + $0x3b8] sm:$0xff]
    %v1867 = vld [vmem:[#allocation4 + $0x3c0] sm:$0xff]
    %v1868 = vld [vmem:[#allocation4 + $0x3c8] sm:$0xff]
    %v1869 = vld [vmem:[#allocation4 + $0x3d0] sm:$0xff]
    %v1870 = vld [vmem:[#allocation4 + $0x3d8] sm:$0xff]
    %v1871 = vld [vmem:[#allocation4 + $0x3e0] sm:$0xff]
    %v1872 = vld [vmem:[#allocation4 + $0x3e8] sm:$0xff]
    %v1873 = vld [vmem:[#allocation4 + $0x3f0] sm:$0xff]
    %v1874 = vld [vmem:[#allocation4 + $0x3f8] sm:$0xff]
    %v1875 = vld [vmem:[#allocation4 + $0x400] sm:$0xff]
    %v1876 = vld [vmem:[#allocation4 + $0x408] sm:$0xff]
    %v1877 = vld [vmem:[#allocation4 + $0x410] sm:$0xff]
    %v1878 = vld [vmem:[#allocation4 + $0x418] sm:$0xff]
    %v1879 = vld [vmem:[#allocation4 + $0x420] sm:$0xff]
    %v1880 = vld [vmem:[#allocation4 + $0x428] sm:$0xff]
    %v1881 = vld [vmem:[#allocation4 + $0x430] sm:$0xff]
    %v1882 = vld [vmem:[#allocation4 + $0x438] sm:$0xff]
    %v1883 = vld [vmem:[#allocation4 + $0x440] sm:$0xff]
    %v1884 = vld [vmem:[#allocation4 + $0x448] sm:$0xff]
    %v1885 = vld [vmem:[#allocation4 + $0x450] sm:$0xff]
    %v1886 = vld [vmem:[#allocation4 + $0x458] sm:$0xff]
    %v1887 = vld [vmem:[#allocation4 + $0x460] sm:$0xff]
    %v1888 = vld [vmem:[#allocation4 + $0x468] sm:$0xff]
    %v1889 = vld [vmem:[#allocation4 + $0x470] sm:$0xff]
    %v1890 = vld [vmem:[#allocation4 + $0x478] sm:$0xff]
    %v1891 = vld [vmem:[#allocation4 + $0x480] sm:$0xff]
    %v1892 = vld [vmem:[#allocation4 + $0x488] sm:$0xff]
    %v1893 = vld [vmem:[#allocation4 + $0x490] sm:$0xff]
    %v1894 = vld [vmem:[#allocation4 + $0x498] sm:$0xff]
    %v1895 = vld [vmem:[#allocation4 + $0x4a0] sm:$0xff]
    %v1896 = vld [vmem:[#allocation4 + $0x4a8] sm:$0xff]
    %v1897 = vld [vmem:[#allocation4 + $0x4b0] sm:$0xff]
    %v1898 = vld [vmem:[#allocation4 + $0x4b8] sm:$0xff]
    %v1899 = vld [vmem:[#allocation4 + $0x4c0] sm:$0xff]
    %v1900 = vld [vmem:[#allocation4 + $0x4c8] sm:$0xff]
    %v1901 = vld [vmem:[#allocation4 + $0x4d0] sm:$0xff]
    %v1902 = vld [vmem:[#allocation4 + $0x4d8] sm:$0xff]
    %v1903 = vld [vmem:[#allocation4 + $0x4e0] sm:$0xff]
    %v1904 = vld [vmem:[#allocation4 + $0x4e8] sm:$0xff]
    %v1905 = vld [vmem:[#allocation4 + $0x4f0] sm:$0xff]
    %v1906 = vld [vmem:[#allocation4 + $0x4f8] sm:$0xff]
    %v1907 = vld [vmem:[#allocation4 + $0x500] sm:$0xff]
    %v1908 = vld [vmem:[#allocation4 + $0x508] sm:$0xff]
    %v1909 = vld [vmem:[#allocation4 + $0x510] sm:$0xff]
    %v1910 = vld [vmem:[#allocation4 + $0x518] sm:$0xff]
    %v1911 = vld [vmem:[#allocation4 + $0x520] sm:$0xff]
    %v1912 = vld [vmem:[#allocation4 + $0x528] sm:$0xff]
    %v1913 = vld [vmem:[#allocation4 + $0x530] sm:$0xff]
    %v1914 = vld [vmem:[#allocation4 + $0x538] sm:$0xff]
    %v1915 = vld [vmem:[#allocation4 + $0x540] sm:$0xff]
    %v1916 = vld [vmem:[#allocation4 + $0x548] sm:$0xff]
    %v1917 = vld [vmem:[#allocation4 + $0x550] sm:$0xff]
    %v1918 = vld [vmem:[#allocation4 + $0x558] sm:$0xff]
    %v1919 = vld [vmem:[#allocation4 + $0x560] sm:$0xff]
    %v1920 = vld [vmem:[#allocation4 + $0x568] sm:$0xff]
    %v1921 = vld [vmem:[#allocation4 + $0x570] sm:$0xff]
    %v1922 = vld [vmem:[#allocation4 + $0x578] sm:$0xff]
    %v1923 = vsel %vm1237, %v1824, 0
    %1925 = vmatprep.subr.mxu0 %v1828
    %1926 = vmatpush1.msra.mxu0 %v1827
    %1927 = vmatprep.subr.mxu0 %v1832
    %1928 = vmatpush1.msra.mxu0 %v1831
    %1929 = vmatprep.subr.mxu0 %v1836
    %1930 = vmatpush1.msra.mxu0 %v1835
    %1931 = vmatprep.subr.mxu0 %v1840
    %1932 = vmatpush1.msra.mxu0 %v1839
    %1933 = vmatprep.subr.mxu0 %v1844
    %1934 = vmatpush1.msra.mxu0 %v1843
    %1935 = vmatprep.subr.mxu0 %v1848
    %1936 = vmatpush1.msra.mxu0 %v1847
    %1937 = vmatprep.subr.mxu0 %v1852
    %1938 = vmatpush1.msra.mxu0 %v1851
    %1939 = vmatprep.subr.mxu0 %v1856
    %1940 = vmatpush1.msra.mxu0 %v1855
    %1941 = vmatprep.subr.mxu0 %v1860
    %1942 = vmatpush1.msra.mxu0 %v1859
    %1943 = vmatprep.subr.mxu0 %v1864
    %1944 = vmatpush1.msra.mxu0 %v1863
    %1945 = vmatprep.subr.mxu0 %v1868
    %1946 = vmatpush1.msra.mxu0 %v1867
    %1947 = vmatprep.subr.mxu0 %v1872
    %1948 = vmatpush1.msra.mxu0 %v1871
    %1949 = vmatprep.subr.mxu0 %v1876
    %1950 = vmatpush1.msra.mxu0 %v1875
    %1951 = vmatprep.subr.mxu0 %v1880
    %1952 = vmatpush1.msra.mxu0 %v1879
    %1953 = vmatprep.subr.mxu0 %v1884
    %1954 = vmatpush1.msra.mxu0 %v1883
    %1955 = vmatprep.subr.mxu0 %v1888
    %1956 = vmatpush1.msra.mxu0 %v1887
    %1957 = vmatprep.subr.mxu0 %v1892
    %1958 = vmatpush1.msra.mxu0 %v1891
    %1959 = vmatprep.subr.mxu0 %v1896
    %1960 = vmatpush1.msra.mxu0 %v1895
    %1961 = vmatprep.subr.mxu0 %v1900
    %1962 = vmatpush1.msra.mxu0 %v1899
    %1963 = vmatprep.subr.mxu0 %v1904
    %1964 = vmatpush1.msra.mxu0 %v1903
    %1965 = vmatprep.subr.mxu0 %v1908
    %1966 = vmatpush1.msra.mxu0 %v1907
    %1967 = vmatprep.subr.mxu0 %v1912
    %1968 = vmatpush1.msra.mxu0 %v1911
    %1969 = vmatprep.subr.mxu0 %v1916
    %1970 = vmatpush1.msra.mxu0 %v1915
    %1971 = vmatprep.subr.mxu0 %v1920
    %1972 = vmatpush1.msra.mxu0 %v1919
    %1973 = vmatprep.subr.mxu0 0.0
    %1974 = vmatpush1.msra.mxu0 0.0
    %1975 = vmatprep.subr.mxu0 0.0
    %1976 = vmatpush1.msra.mxu0 0.0
    %1977 = vmatprep.subr.mxu0 0.0
    %1978 = vmatpush1.msra.mxu0 0.0
    %1979 = vmatprep.subr.mxu0 0.0
    %1980 = vmatpush1.msra.mxu0 0.0
    %1981 = vmatprep.subr.mxu0 0.0
    %1982 = vmatpush1.msra.mxu0 0.0
    %1983 = vmatprep.subr.mxu0 0.0
    %1984 = vmatpush1.msra.mxu0 0.0
    %1985 = vmatprep.subr.mxu0 0.0
    %1986 = vmatpush1.msra.mxu0 0.0
    %1987 = vmatprep.subr.mxu0 0.0
    %1988 = vmatpush1.msra.mxu0 0.0
    %1989 = vmatprep.mubr.f32.mxu0 %v1923
    %1990 = vmatmul.mubr.f32.gmra.mrb[0].mxu0 %v1826
    %v1991 = vpop.f32.mrb[0].mxu0
    %v1992 = vadd.f32 %v55, %v1991
    %v1993 = vpop.f32.mrb[0].mxu0
    %v1994 = vadd.f32 %v59, %v1993
    %1995 = vdwg.mxu0
    %1996 = vmatprep.subr.mxu0 %v1830
    %1997 = vmatpush1.msra.mxu0 %v1829
    %1998 = vmatprep.subr.mxu0 %v1834
    %1999 = vmatpush1.msra.mxu0 %v1833
    %2000 = vmatprep.subr.mxu0 %v1838
    %2001 = vmatpush1.msra.mxu0 %v1837
    %2002 = vmatprep.subr.mxu0 %v1842
    %2003 = vmatpush1.msra.mxu0 %v1841
    %2004 = vmatprep.subr.mxu0 %v1846
    %2005 = vmatpush1.msra.mxu0 %v1845
    %2006 = vmatprep.subr.mxu0 %v1850
    %2007 = vmatpush1.msra.mxu0 %v1849
    %2008 = vmatprep.subr.mxu0 %v1854
    %2009 = vmatpush1.msra.mxu0 %v1853
    %2010 = vmatprep.subr.mxu0 %v1858
    %2011 = vmatpush1.msra.mxu0 %v1857
    %2012 = vmatprep.subr.mxu0 %v1862
    %2013 = vmatpush1.msra.mxu0 %v1861
    %2014 = vmatprep.subr.mxu0 %v1866
    %2015 = vmatpush1.msra.mxu0 %v1865
    %2016 = vmatprep.subr.mxu0 %v1870
    %2017 = vmatpush1.msra.mxu0 %v1869
    %2018 = vmatprep.subr.mxu0 %v1874
    %2019 = vmatpush1.msra.mxu0 %v1873
    %2020 = vmatprep.subr.mxu0 %v1878
    %2021 = vmatpush1.msra.mxu0 %v1877
    %2022 = vmatprep.subr.mxu0 %v1882
    %2023 = vmatpush1.msra.mxu0 %v1881
    %2024 = vmatprep.subr.mxu0 %v1886
    %2025 = vmatpush1.msra.mxu0 %v1885
    %2026 = vmatprep.subr.mxu0 %v1890
    %2027 = vmatpush1.msra.mxu0 %v1889
    %2028 = vmatprep.subr.mxu0 %v1894
    %2029 = vmatpush1.msra.mxu0 %v1893
    %2030 = vmatprep.subr.mxu0 %v1898
    %2031 = vmatpush1.msra.mxu0 %v1897
    %2032 = vmatprep.subr.mxu0 %v1902
    %2033 = vmatpush1.msra.mxu0 %v1901
    %2034 = vmatprep.subr.mxu0 %v1906
    %2035 = vmatpush1.msra.mxu0 %v1905
    %2036 = vmatprep.subr.mxu0 %v1910
    %2037 = vmatpush1.msra.mxu0 %v1909
    %2038 = vmatprep.subr.mxu0 %v1914
    %2039 = vmatpush1.msra.mxu0 %v1913
    %2040 = vmatprep.subr.mxu0 %v1918
    %2041 = vmatpush1.msra.mxu0 %v1917
    %2042 = vmatprep.subr.mxu0 %v1922
    %2043 = vmatpush1.msra.mxu0 %v1921
    %2044 = vmatprep.subr.mxu0 0.0
    %2045 = vmatpush1.msra.mxu0 0.0
    %2046 = vmatprep.subr.mxu0 0.0
    %2047 = vmatpush1.msra.mxu0 0.0
    %2048 = vmatprep.subr.mxu0 0.0
    %2049 = vmatpush1.msra.mxu0 0.0
    %2050 = vmatprep.subr.mxu0 0.0
    %2051 = vmatpush1.msra.mxu0 0.0
    %2052 = vmatprep.subr.mxu0 0.0
    %2053 = vmatpush1.msra.mxu0 0.0
    %2054 = vmatprep.subr.mxu0 0.0
    %2055 = vmatpush1.msra.mxu0 0.0
    %2056 = vmatprep.subr.mxu0 0.0
    %2057 = vmatpush1.msra.mxu0 0.0
    %2058 = vmatprep.subr.mxu0 0.0
    %2059 = vmatpush1.msra.mxu0 0.0
    %2060 = vmatprep.mubr.f32.mxu0 %v1923
    %2061 = vmatmul.mubr.f32.gmra.mrb[0].mxu0 %v1826
    %v2062 = vpop.f32.mrb[0].mxu0
    %v2063 = vadd.f32 %v63, %v2062
    %v2064 = vpop.f32.mrb[0].mxu0
    %v2065 = vadd.f32 %v67, %v2064
    %2066 = vdwg.mxu0
    %v2067 = vxor.u32 %v1992, 2147483648
    %v2068 = vxor.u32 %v1994, 2147483648
    %v2069 = vmul.f32 %v2067, 1.442695
    %v2070 = vpow.pop %v2069
    %v2071 = vmul.f32 %v2068, 1.442695
    %v2072 = vpow.pop %v2071
    %v2073 = vadd.f32 %v2070, 1.0
    %v2074 = vadd.f32 %v2072, 1.0
    %v2075 = vrcp.pop %v2073
    %v2076 = vmul.f32 1.0, %v2075
    %v2077 = vrcp.pop %v2074
    %v2078 = vmul.f32 1.0, %v2077
    %v2079 = vtanh.pop %v2063
    %v2080 = vxor.u32 %v2065, 2147483648
    %v2081 = vmul.f32 %v2080, 1.442695
    %v2082 = vpow.pop %v2081
    %v2083 = vadd.f32 %v2082, 1.0
    %v2084 = vrcp.pop %v2083
    %v2085 = vmul.f32 1.0, %v2084
    %v2086 = vmul.f32 %v2078, %v1403
    %v2087 = vmul.f32 %v2076, %v2079
    %v2088 = vadd.f32 %v2086, %v2087
    %v2089 = vtanh.pop %v2088
    %v2090 = vmul.f32 %v2085, %v2089
    %2091 = vst [vmem:[#allocation3 + $0x8] sm:$0xff] %v2090
    %v2092 = vld [vmem:[#allocation2 + $0x80] sm:$0xff]
    %v2093 = vld [vmem:[#allocation2 + $0x88] sm:$0xff]
    %v2094 = vld [vmem:[#allocation2 + $0x90] sm:$0xff]
    %v2095 = vld [vmem:[#allocation2 + $0x98] sm:$0xff]
    %v2096 = vld [vmem:[#allocation4 + $0x80] sm:$0xff]
    %v2097 = vld [vmem:[#allocation4 + $0x88] sm:$0xff]
    %v2098 = vld [vmem:[#allocation4 + $0x90] sm:$0xff]
    %v2099 = vld [vmem:[#allocation4 + $0x98] sm:$0xff]
    %v2100 = vld [vmem:[#allocation4 + $0xa0] sm:$0xff]
    %v2101 = vld [vmem:[#allocation4 + $0xa8] sm:$0xff]
    %v2102 = vld [vmem:[#allocation4 + $0xb0] sm:$0xff]
    %v2103 = vld [vmem:[#allocation4 + $0xb8] sm:$0xff]
    %v2104 = vld [vmem:[#allocation4 + $0xc0] sm:$0xff]
    %v2105 = vld [vmem:[#allocation4 + $0xc8] sm:$0xff]
    %v2106 = vld [vmem:[#allocation4 + $0xd0] sm:$0xff]
    %v2107 = vld [vmem:[#allocation4 + $0xd8] sm:$0xff]
    %v2108 = vld [vmem:[#allocation4 + $0xe0] sm:$0xff]
    %v2109 = vld [vmem:[#allocation4 + $0xe8] sm:$0xff]
    %v2110 = vld [vmem:[#allocation4 + $0xf0] sm:$0xff]
    %v2111 = vld [vmem:[#allocation4 + $0xf8] sm:$0xff]
    %v2113 = vsel %vm119, %v1599, 0
    %2115 = vmatprep.subr.mxu0 %v2097
    %2116 = vmatpush1.msra.mxu0 %v2096
    %2117 = vmatprep.subr.mxu0 %v2101
    %2118 = vmatpush1.msra.mxu0 %v2100
    %2119 = vmatprep.subr.mxu0 %v2105
    %2120 = vmatpush1.msra.mxu0 %v2104
    %2121 = vmatprep.subr.mxu0 %v2109
    %2122 = vmatpush1.msra.mxu0 %v2108
    %2123 = vmatprep.subr.mxu0 0.0
    %2124 = vmatpush1.msra.mxu0 0.0
    %2125 = vmatprep.subr.mxu0 0.0
    %2126 = vmatpush1.msra.mxu0 0.0
    %2127 = vmatprep.subr.mxu0 0.0
    %2128 = vmatpush1.msra.mxu0 0.0
    %2129 = vmatprep.subr.mxu0 0.0
    %2130 = vmatpush1.msra.mxu0 0.0
    %2131 = vmatprep.subr.mxu0 0.0
    %2132 = vmatpush1.msra.mxu0 0.0
    %2133 = vmatprep.subr.mxu0 0.0
    %2134 = vmatpush1.msra.mxu0 0.0
    %2135 = vmatprep.subr.mxu0 0.0
    %2136 = vmatpush1.msra.mxu0 0.0
    %2137 = vmatprep.subr.mxu0 0.0
    %2138 = vmatpush1.msra.mxu0 0.0
    %2139 = vmatprep.subr.mxu0 0.0
    %2140 = vmatpush1.msra.mxu0 0.0
    %2141 = vmatprep.subr.mxu0 0.0
    %2142 = vmatpush1.msra.mxu0 0.0
    %2143 = vmatprep.subr.mxu0 0.0
    %2144 = vmatpush1.msra.mxu0 0.0
    %2145 = vmatprep.subr.mxu0 0.0
    %2146 = vmatpush1.msra.mxu0 0.0
    %2147 = vmatprep.subr.mxu0 0.0
    %2148 = vmatpush1.msra.mxu0 0.0
    %2149 = vmatprep.subr.mxu0 0.0
    %2150 = vmatpush1.msra.mxu0 0.0
    %2151 = vmatprep.subr.mxu0 0.0
    %2152 = vmatpush1.msra.mxu0 0.0
    %2153 = vmatprep.subr.mxu0 0.0
    %2154 = vmatpush1.msra.mxu0 0.0
    %2155 = vmatprep.subr.mxu0 0.0
    %2156 = vmatpush1.msra.mxu0 0.0
    %2157 = vmatprep.subr.mxu0 0.0
    %2158 = vmatpush1.msra.mxu0 0.0
    %2159 = vmatprep.subr.mxu0 0.0
    %2160 = vmatpush1.msra.mxu0 0.0
    %2161 = vmatprep.subr.mxu0 0.0
    %2162 = vmatpush1.msra.mxu0 0.0
    %2163 = vmatprep.subr.mxu0 0.0
    %2164 = vmatpush1.msra.mxu0 0.0
    %2165 = vmatprep.subr.mxu0 0.0
    %2166 = vmatpush1.msra.mxu0 0.0
    %2167 = vmatprep.subr.mxu0 0.0
    %2168 = vmatpush1.msra.mxu0 0.0
    %2169 = vmatprep.subr.mxu0 0.0
    %2170 = vmatpush1.msra.mxu0 0.0
    %2171 = vmatprep.subr.mxu0 0.0
    %2172 = vmatpush1.msra.mxu0 0.0
    %2173 = vmatprep.subr.mxu0 0.0
    %2174 = vmatpush1.msra.mxu0 0.0
    %2175 = vmatprep.subr.mxu0 0.0
    %2176 = vmatpush1.msra.mxu0 0.0
    %2177 = vmatprep.subr.mxu0 0.0
    %2178 = vmatpush1.msra.mxu0 0.0
    %2179 = vmatprep.mubr.f32.mxu0 0.0
    %2180 = vmatmul.mubr.f32.gmra.mrb[0].mxu0 %v2113
    %v2181 = vpop.f32.mrb[0].mxu0
    %v2182 = vadd.f32 0.0, %v2181
    %v2183 = vpop.f32.mrb[0].mxu0
    %v2184 = vadd.f32 0.0, %v2183
    %2185 = vdwg.mxu0
    %2186 = vmatprep.subr.mxu0 %v2099
    %2187 = vmatpush1.msra.mxu0 %v2098
    %2188 = vmatprep.subr.mxu0 %v2103
    %2189 = vmatpush1.msra.mxu0 %v2102
    %2190 = vmatprep.subr.mxu0 %v2107
    %2191 = vmatpush1.msra.mxu0 %v2106
    %2192 = vmatprep.subr.mxu0 %v2111
    %2193 = vmatpush1.msra.mxu0 %v2110
    %2194 = vmatprep.subr.mxu0 0.0
    %2195 = vmatpush1.msra.mxu0 0.0
    %2196 = vmatprep.subr.mxu0 0.0
    %2197 = vmatpush1.msra.mxu0 0.0
    %2198 = vmatprep.subr.mxu0 0.0
    %2199 = vmatpush1.msra.mxu0 0.0
    %2200 = vmatprep.subr.mxu0 0.0
    %2201 = vmatpush1.msra.mxu0 0.0
    %2202 = vmatprep.subr.mxu0 0.0
    %2203 = vmatpush1.msra.mxu0 0.0
    %2204 = vmatprep.subr.mxu0 0.0
    %2205 = vmatpush1.msra.mxu0 0.0
    %2206 = vmatprep.subr.mxu0 0.0
    %2207 = vmatpush1.msra.mxu0 0.0
    %2208 = vmatprep.subr.mxu0 0.0
    %2209 = vmatpush1.msra.mxu0 0.0
    %2210 = vmatprep.subr.mxu0 0.0
    %2211 = vmatpush1.msra.mxu0 0.0
    %2212 = vmatprep.subr.mxu0 0.0
    %2213 = vmatpush1.msra.mxu0 0.0
    %2214 = vmatprep.subr.mxu0 0.0
    %2215 = vmatpush1.msra.mxu0 0.0
    %2216 = vmatprep.subr.mxu0 0.0
    %2217 = vmatpush1.msra.mxu0 0.0
    %2218 = vmatprep.subr.mxu0 0.0
    %2219 = vmatpush1.msra.mxu0 0.0
    %2220 = vmatprep.subr.mxu0 0.0
    %2221 = vmatpush1.msra.mxu0 0.0
    %2222 = vmatprep.subr.mxu0 0.0
    %2223 = vmatpush1.msra.mxu0 0.0
    %2224 = vmatprep.subr.mxu0 0.0
    %2225 = vmatpush1.msra.mxu0 0.0
    %2226 = vmatprep.subr.mxu0 0.0
    %2227 = vmatpush1.msra.mxu0 0.0
    %2228 = vmatprep.subr.mxu0 0.0
    %2229 = vmatpush1.msra.mxu0 0.0
    %2230 = vmatprep.subr.mxu0 0.0
    %2231 = vmatpush1.msra.mxu0 0.0
    %2232 = vmatprep.subr.mxu0 0.0
    %2233 = vmatpush1.msra.mxu0 0.0
    %2234 = vmatprep.subr.mxu0 0.0
    %2235 = vmatpush1.msra.mxu0 0.0
    %2236 = vmatprep.subr.mxu0 0.0
    %2237 = vmatpush1.msra.mxu0 0.0
    %2238 = vmatprep.subr.mxu0 0.0
    %2239 = vmatpush1.msra.mxu0 0.0
    %2240 = vmatprep.subr.mxu0 0.0
    %2241 = vmatpush1.msra.mxu0 0.0
    %2242 = vmatprep.subr.mxu0 0.0
    %2243 = vmatpush1.msra.mxu0 0.0
    %2244 = vmatprep.subr.mxu0 0.0
    %2245 = vmatpush1.msra.mxu0 0.0
    %2246 = vmatprep.subr.mxu0 0.0
    %2247 = vmatpush1.msra.mxu0 0.0
    %2248 = vmatprep.subr.mxu0 0.0
    %2249 = vmatpush1.msra.mxu0 0.0
    %2250 = vmatprep.mubr.f32.mxu0 0.0
    %2251 = vmatmul.mubr.f32.gmra.mrb[0].mxu0 %v2113
    %v2252 = vpop.f32.mrb[0].mxu0
    %v2253 = vadd.f32 0.0, %v2252
    %v2254 = vpop.f32.mrb[0].mxu0
    %v2255 = vadd.f32 0.0, %v2254
    %2256 = vdwg.mxu0
    %v2257 = vadd.f32 %v2092, %v2182
    %v2258 = vadd.f32 %v2093, %v2184
    %v2259 = vadd.f32 %v2094, %v2253
    %v2260 = vadd.f32 %v2095, %v2255
    %v2261 = vxor.u32 %v2257, 2147483648
    %v2262 = vxor.u32 %v2258, 2147483648
    %v2263 = vmul.f32 %v2261, 1.442695
    %v2264 = vpow.pop %v2263
    %v2265 = vmul.f32 %v2262, 1.442695
    %v2266 = vpow.pop %v2265
    %v2267 = vadd.f32 %v2264, 1.0
    %v2268 = vadd.f32 %v2266, 1.0
    %v2269 = vrcp.pop %v2267
    %v2270 = vmul.f32 1.0, %v2269
    %v2271 = vrcp.pop %v2268
    %v2272 = vmul.f32 1.0, %v2271
    %v2273 = vtanh.pop %v2259
    %v2274 = vxor.u32 %v2260, 2147483648
    %v2275 = vmul.f32 %v2274, 1.442695
    %v2276 = vpow.pop %v2275
    %v2277 = vadd.f32 %v2276, 1.0
    %v2278 = vrcp.pop %v2277
    %v2279 = vmul.f32 1.0, %v2278
    %v2280 = vmul.f32 %v2272, %v1597
    %v2281 = vmul.f32 %v2270, %v2273
    %v2282 = vadd.f32 %v2280, %v2281
    %v2283 = vtanh.pop %v2282
    %v2284 = vmul.f32 %v2279, %v2283
    %2286 = vrot.lane.b32.xlu0 %v1821, 32
    %v2287 = vpop.permute.xlu0 %2286
    %v2289 = vsel %vm119, %v1599, %v2287
    %v2290 = vld [vmem:[#allocation4 + $0x100] sm:$0xff]
    %v2291 = vld [vmem:[#allocation4 + $0x108] sm:$0xff]
    %v2292 = vld [vmem:[#allocation4 + $0x110] sm:$0xff]
    %v2293 = vld [vmem:[#allocation4 + $0x118] sm:$0xff]
    %v2294 = vld [vmem:[#allocation4 + $0x120] sm:$0xff]
    %v2295 = vld [vmem:[#allocation4 + $0x128] sm:$0xff]
    %v2296 = vld [vmem:[#allocation4 + $0x130] sm:$0xff]
    %v2297 = vld [vmem:[#allocation4 + $0x138] sm:$0xff]
    %v2298 = vld [vmem:[#allocation4 + $0x140] sm:$0xff]
    %v2299 = vld [vmem:[#allocation4 + $0x148] sm:$0xff]
    %v2300 = vld [vmem:[#allocation4 + $0x150] sm:$0xff]
    %v2301 = vld [vmem:[#allocation4 + $0x158] sm:$0xff]
    %v2302 = vld [vmem:[#allocation4 + $0x160] sm:$0xff]
    %v2303 = vld [vmem:[#allocation4 + $0x168] sm:$0xff]
    %v2304 = vld [vmem:[#allocation4 + $0x170] sm:$0xff]
    %v2305 = vld [vmem:[#allocation4 + $0x178] sm:$0xff]
    %v2306 = vld [vmem:[#allocation4 + $0x180] sm:$0xff]
    %v2307 = vld [vmem:[#allocation4 + $0x188] sm:$0xff]
    %v2308 = vld [vmem:[#allocation4 + $0x190] sm:$0xff]
    %v2309 = vld [vmem:[#allocation4 + $0x198] sm:$0xff]
    %v2310 = vld [vmem:[#allocation4 + $0x1a0] sm:$0xff]
    %v2311 = vld [vmem:[#allocation4 + $0x1a8] sm:$0xff]
    %v2312 = vld [vmem:[#allocation4 + $0x1b0] sm:$0xff]
    %v2313 = vld [vmem:[#allocation4 + $0x1b8] sm:$0xff]
    %v2314 = vld [vmem:[#allocation4 + $0x1c0] sm:$0xff]
    %v2315 = vld [vmem:[#allocation4 + $0x1c8] sm:$0xff]
    %v2316 = vld [vmem:[#allocation4 + $0x1d0] sm:$0xff]
    %v2317 = vld [vmem:[#allocation4 + $0x1d8] sm:$0xff]
    %v2318 = vld [vmem:[#allocation4 + $0x1e0] sm:$0xff]
    %v2319 = vld [vmem:[#allocation4 + $0x1e8] sm:$0xff]
    %v2320 = vld [vmem:[#allocation4 + $0x1f0] sm:$0xff]
    %v2321 = vld [vmem:[#allocation4 + $0x1f8] sm:$0xff]
    %v2322 = vld [vmem:[#allocation4 + $0x200] sm:$0xff]
    %v2323 = vld [vmem:[#allocation4 + $0x208] sm:$0xff]
    %v2324 = vld [vmem:[#allocation4 + $0x210] sm:$0xff]
    %v2325 = vld [vmem:[#allocation4 + $0x218] sm:$0xff]
    %v2326 = vld [vmem:[#allocation4 + $0x220] sm:$0xff]
    %v2327 = vld [vmem:[#allocation4 + $0x228] sm:$0xff]
    %v2328 = vld [vmem:[#allocation4 + $0x230] sm:$0xff]
    %v2329 = vld [vmem:[#allocation4 + $0x238] sm:$0xff]
    %v2330 = vld [vmem:[#allocation4 + $0x240] sm:$0xff]
    %v2331 = vld [vmem:[#allocation4 + $0x248] sm:$0xff]
    %v2332 = vld [vmem:[#allocation4 + $0x250] sm:$0xff]
    %v2333 = vld [vmem:[#allocation4 + $0x258] sm:$0xff]
    %v2334 = vld [vmem:[#allocation4 + $0x260] sm:$0xff]
    %v2335 = vld [vmem:[#allocation4 + $0x268] sm:$0xff]
    %v2336 = vld [vmem:[#allocation4 + $0x270] sm:$0xff]
    %v2337 = vld [vmem:[#allocation4 + $0x278] sm:$0xff]
    %v2339 = vsel %vm1035, %v2289, 0
    %2341 = vmatprep.subr.mxu0 %v2291
    %2342 = vmatpush1.msra.mxu0 %v2290
    %2343 = vmatprep.subr.mxu0 %v2295
    %2344 = vmatpush1.msra.mxu0 %v2294
    %2345 = vmatprep.subr.mxu0 %v2299
    %2346 = vmatpush1.msra.mxu0 %v2298
    %2347 = vmatprep.subr.mxu0 %v2303
    %2348 = vmatpush1.msra.mxu0 %v2302
    %2349 = vmatprep.subr.mxu0 %v2307
    %2350 = vmatpush1.msra.mxu0 %v2306
    %2351 = vmatprep.subr.mxu0 %v2311
    %2352 = vmatpush1.msra.mxu0 %v2310
    %2353 = vmatprep.subr.mxu0 %v2315
    %2354 = vmatpush1.msra.mxu0 %v2314
    %2355 = vmatprep.subr.mxu0 %v2319
    %2356 = vmatpush1.msra.mxu0 %v2318
    %2357 = vmatprep.subr.mxu0 %v2323
    %2358 = vmatpush1.msra.mxu0 %v2322
    %2359 = vmatprep.subr.mxu0 %v2327
    %2360 = vmatpush1.msra.mxu0 %v2326
    %2361 = vmatprep.subr.mxu0 %v2331
    %2362 = vmatpush1.msra.mxu0 %v2330
    %2363 = vmatprep.subr.mxu0 %v2335
    %2364 = vmatpush1.msra.mxu0 %v2334
    %2365 = vmatprep.subr.mxu0 0.0
    %2366 = vmatpush1.msra.mxu0 0.0
    %2367 = vmatprep.subr.mxu0 0.0
    %2368 = vmatpush1.msra.mxu0 0.0
    %2369 = vmatprep.subr.mxu0 0.0
    %2370 = vmatpush1.msra.mxu0 0.0
    %2371 = vmatprep.subr.mxu0 0.0
    %2372 = vmatpush1.msra.mxu0 0.0
    %2373 = vmatprep.subr.mxu0 0.0
    %2374 = vmatpush1.msra.mxu0 0.0
    %2375 = vmatprep.subr.mxu0 0.0
    %2376 = vmatpush1.msra.mxu0 0.0
    %2377 = vmatprep.subr.mxu0 0.0
    %2378 = vmatpush1.msra.mxu0 0.0
    %2379 = vmatprep.subr.mxu0 0.0
    %2380 = vmatpush1.msra.mxu0 0.0
    %2381 = vmatprep.subr.mxu0 0.0
    %2382 = vmatpush1.msra.mxu0 0.0
    %2383 = vmatprep.subr.mxu0 0.0
    %2384 = vmatpush1.msra.mxu0 0.0
    %2385 = vmatprep.subr.mxu0 0.0
    %2386 = vmatpush1.msra.mxu0 0.0
    %2387 = vmatprep.subr.mxu0 0.0
    %2388 = vmatpush1.msra.mxu0 0.0
    %2389 = vmatprep.subr.mxu0 0.0
    %2390 = vmatpush1.msra.mxu0 0.0
    %2391 = vmatprep.subr.mxu0 0.0
    %2392 = vmatpush1.msra.mxu0 0.0
    %2393 = vmatprep.subr.mxu0 0.0
    %2394 = vmatpush1.msra.mxu0 0.0
    %2395 = vmatprep.subr.mxu0 0.0
    %2396 = vmatpush1.msra.mxu0 0.0
    %2397 = vmatprep.subr.mxu0 0.0
    %2398 = vmatpush1.msra.mxu0 0.0
    %2399 = vmatprep.subr.mxu0 0.0
    %2400 = vmatpush1.msra.mxu0 0.0
    %2401 = vmatprep.subr.mxu0 0.0
    %2402 = vmatpush1.msra.mxu0 0.0
    %2403 = vmatprep.subr.mxu0 0.0
    %2404 = vmatpush1.msra.mxu0 0.0
    %2405 = vmatprep.mubr.f32.mxu0 0.0
    %2406 = vmatmul.mubr.f32.gmra.mrb[0].mxu0 %v2339
    %v2407 = vpop.f32.mrb[0].mxu0
    %v2408 = vadd.f32 %v32, %v2407
    %v2409 = vpop.f32.mrb[0].mxu0
    %v2410 = vadd.f32 %v36, %v2409
    %2411 = vdwg.mxu0
    %2412 = vmatprep.subr.mxu0 %v2293
    %2413 = vmatpush1.msra.mxu0 %v2292
    %2414 = vmatprep.subr.mxu0 %v2297
    %2415 = vmatpush1.msra.mxu0 %v2296
    %2416 = vmatprep.subr.mxu0 %v2301
    %2417 = vmatpush1.msra.mxu0 %v2300
    %2418 = vmatprep.subr.mxu0 %v2305
    %2419 = vmatpush1.msra.mxu0 %v2304
    %2420 = vmatprep.subr.mxu0 %v2309
    %2421 = vmatpush1.msra.mxu0 %v2308
    %2422 = vmatprep.subr.mxu0 %v2313
    %2423 = vmatpush1.msra.mxu0 %v2312
    %2424 = vmatprep.subr.mxu0 %v2317
    %2425 = vmatpush1.msra.mxu0 %v2316
    %2426 = vmatprep.subr.mxu0 %v2321
    %2427 = vmatpush1.msra.mxu0 %v2320
    %2428 = vmatprep.subr.mxu0 %v2325
    %2429 = vmatpush1.msra.mxu0 %v2324
    %2430 = vmatprep.subr.mxu0 %v2329
    %2431 = vmatpush1.msra.mxu0 %v2328
    %2432 = vmatprep.subr.mxu0 %v2333
    %2433 = vmatpush1.msra.mxu0 %v2332
    %2434 = vmatprep.subr.mxu0 %v2337
    %2435 = vmatpush1.msra.mxu0 %v2336
    %2436 = vmatprep.subr.mxu0 0.0
    %2437 = vmatpush1.msra.mxu0 0.0
    %2438 = vmatprep.subr.mxu0 0.0
    %2439 = vmatpush1.msra.mxu0 0.0
    %2440 = vmatprep.subr.mxu0 0.0
    %2441 = vmatpush1.msra.mxu0 0.0
    %2442 = vmatprep.subr.mxu0 0.0
    %2443 = vmatpush1.msra.mxu0 0.0
    %2444 = vmatprep.subr.mxu0 0.0
    %2445 = vmatpush1.msra.mxu0 0.0
    %2446 = vmatprep.subr.mxu0 0.0
    %2447 = vmatpush1.msra.mxu0 0.0
    %2448 = vmatprep.subr.mxu0 0.0
    %2449 = vmatpush1.msra.mxu0 0.0
    %2450 = vmatprep.subr.mxu0 0.0
    %2451 = vmatpush1.msra.mxu0 0.0
    %2452 = vmatprep.subr.mxu0 0.0
    %2453 = vmatpush1.msra.mxu0 0.0
    %2454 = vmatprep.subr.mxu0 0.0
    %2455 = vmatpush1.msra.mxu0 0.0
    %2456 = vmatprep.subr.mxu0 0.0
    %2457 = vmatpush1.msra.mxu0 0.0
    %2458 = vmatprep.subr.mxu0 0.0
    %2459 = vmatpush1.msra.mxu0 0.0
    %2460 = vmatprep.subr.mxu0 0.0
    %2461 = vmatpush1.msra.mxu0 0.0
    %2462 = vmatprep.subr.mxu0 0.0
    %2463 = vmatpush1.msra.mxu0 0.0
    %2464 = vmatprep.subr.mxu0 0.0
    %2465 = vmatpush1.msra.mxu0 0.0
    %2466 = vmatprep.subr.mxu0 0.0
    %2467 = vmatpush1.msra.mxu0 0.0
    %2468 = vmatprep.subr.mxu0 0.0
    %2469 = vmatpush1.msra.mxu0 0.0
    %2470 = vmatprep.subr.mxu0 0.0
    %2471 = vmatpush1.msra.mxu0 0.0
    %2472 = vmatprep.subr.mxu0 0.0
    %2473 = vmatpush1.msra.mxu0 0.0
    %2474 = vmatprep.subr.mxu0 0.0
    %2475 = vmatpush1.msra.mxu0 0.0
    %2476 = vmatprep.mubr.f32.mxu0 0.0
    %2477 = vmatmul.mubr.f32.gmra.mrb[0].mxu0 %v2339
    %v2478 = vpop.f32.mrb[0].mxu0
    %v2479 = vadd.f32 %v40, %v2478
    %v2480 = vpop.f32.mrb[0].mxu0
    %v2481 = vadd.f32 %v44, %v2480
    %2482 = vdwg.mxu0
    %v2483 = vxor.u32 %v2408, 2147483648
    %v2484 = vxor.u32 %v2410, 2147483648
    %v2485 = vmul.f32 %v2483, 1.442695
    %v2486 = vpow.pop %v2485
    %v2487 = vmul.f32 %v2484, 1.442695
    %v2488 = vpow.pop %v2487
    %v2489 = vadd.f32 %v2486, 1.0
    %v2490 = vadd.f32 %v2488, 1.0
    %v2491 = vrcp.pop %v2489
    %v2492 = vmul.f32 1.0, %v2491
    %v2493 = vrcp.pop %v2490
    %v2494 = vmul.f32 1.0, %v2493
    %v2495 = vtanh.pop %v2479
    %v2496 = vxor.u32 %v2481, 2147483648
    %v2497 = vmul.f32 %v2496, 1.442695
    %v2498 = vpow.pop %v2497
    %v2499 = vadd.f32 %v2498, 1.0
    %v2500 = vrcp.pop %v2499
    %v2501 = vmul.f32 1.0, %v2500
    %v2502 = vmul.f32 %v2494, %v1819
    %v2503 = vmul.f32 %v2492, %v2495
    %v2504 = vadd.f32 %v2502, %v2503
    %v2505 = vtanh.pop %v2504
    %v2506 = vmul.f32 %v2501, %v2505
    %2508 = vrot.lane.b32.xlu0 %v2090, 64
    %v2509 = vpop.permute.xlu0 %2508
    %v2511 = vsel %vm1237, %v1821, %v2509
    %v2512 = vld [vmem:[#allocation4 + $0x280] sm:$0xff]
    %v2513 = vld [vmem:[#allocation4 + $0x288] sm:$0xff]
    %v2514 = vld [vmem:[#allocation4 + $0x290] sm:$0xff]
    %v2515 = vld [vmem:[#allocation4 + $0x298] sm:$0xff]
    %v2516 = vld [vmem:[#allocation4 + $0x2a0] sm:$0xff]
    %v2517 = vld [vmem:[#allocation4 + $0x2a8] sm:$0xff]
    %v2518 = vld [vmem:[#allocation4 + $0x2b0] sm:$0xff]
    %v2519 = vld [vmem:[#allocation4 + $0x2b8] sm:$0xff]
    %v2520 = vld [vmem:[#allocation4 + $0x2c0] sm:$0xff]
    %v2521 = vld [vmem:[#allocation4 + $0x2c8] sm:$0xff]
    %v2522 = vld [vmem:[#allocation4 + $0x2d0] sm:$0xff]
    %v2523 = vld [vmem:[#allocation4 + $0x2d8] sm:$0xff]
    %v2524 = vld [vmem:[#allocation4 + $0x2e0] sm:$0xff]
    %v2525 = vld [vmem:[#allocation4 + $0x2e8] sm:$0xff]
    %v2526 = vld [vmem:[#allocation4 + $0x2f0] sm:$0xff]
    %v2527 = vld [vmem:[#allocation4 + $0x2f8] sm:$0xff]
    %v2528 = vld [vmem:[#allocation4 + $0x300] sm:$0xff]
    %v2529 = vld [vmem:[#allocation4 + $0x308] sm:$0xff]
    %v2530 = vld [vmem:[#allocation4 + $0x310] sm:$0xff]
    %v2531 = vld [vmem:[#allocation4 + $0x318] sm:$0xff]
    %v2532 = vld [vmem:[#allocation4 + $0x320] sm:$0xff]
    %v2533 = vld [vmem:[#allocation4 + $0x328] sm:$0xff]
    %v2534 = vld [vmem:[#allocation4 + $0x330] sm:$0xff]
    %v2535 = vld [vmem:[#allocation4 + $0x338] sm:$0xff]
    %v2536 = vld [vmem:[#allocation4 + $0x340] sm:$0xff]
    %v2537 = vld [vmem:[#allocation4 + $0x348] sm:$0xff]
    %v2538 = vld [vmem:[#allocation4 + $0x350] sm:$0xff]
    %v2539 = vld [vmem:[#allocation4 + $0x358] sm:$0xff]
    %v2540 = vld [vmem:[#allocation4 + $0x360] sm:$0xff]
    %v2541 = vld [vmem:[#allocation4 + $0x368] sm:$0xff]
    %v2542 = vld [vmem:[#allocation4 + $0x370] sm:$0xff]
    %v2543 = vld [vmem:[#allocation4 + $0x378] sm:$0xff]
    %v2544 = vld [vmem:[#allocation4 + $0x380] sm:$0xff]
    %v2545 = vld [vmem:[#allocation4 + $0x388] sm:$0xff]
    %v2546 = vld [vmem:[#allocation4 + $0x390] sm:$0xff]
    %v2547 = vld [vmem:[#allocation4 + $0x398] sm:$0xff]
    %v2548 = vld [vmem:[#allocation4 + $0x3a0] sm:$0xff]
    %v2549 = vld [vmem:[#allocation4 + $0x3a8] sm:$0xff]
    %v2550 = vld [vmem:[#allocation4 + $0x3b0] sm:$0xff]
    %v2551 = vld [vmem:[#allocation4 + $0x3b8] sm:$0xff]
    %v2552 = vld [vmem:[#allocation4 + $0x3c0] sm:$0xff]
    %v2553 = vld [vmem:[#allocation4 + $0x3c8] sm:$0xff]
    %v2554 = vld [vmem:[#allocation4 + $0x3d0] sm:$0xff]
    %v2555 = vld [vmem:[#allocation4 + $0x3d8] sm:$0xff]
    %v2556 = vld [vmem:[#allocation4 + $0x3e0] sm:$0xff]
    %v2557 = vld [vmem:[#allocation4 + $0x3e8] sm:$0xff]
    %v2558 = vld [vmem:[#allocation4 + $0x3f0] sm:$0xff]
    %v2559 = vld [vmem:[#allocation4 + $0x3f8] sm:$0xff]
    %v2560 = vld [vmem:[#allocation4 + $0x400] sm:$0xff]
    %v2561 = vld [vmem:[#allocation4 + $0x408] sm:$0xff]
    %v2562 = vld [vmem:[#allocation4 + $0x410] sm:$0xff]
    %v2563 = vld [vmem:[#allocation4 + $0x418] sm:$0xff]
    %v2564 = vld [vmem:[#allocation4 + $0x420] sm:$0xff]
    %v2565 = vld [vmem:[#allocation4 + $0x428] sm:$0xff]
    %v2566 = vld [vmem:[#allocation4 + $0x430] sm:$0xff]
    %v2567 = vld [vmem:[#allocation4 + $0x438] sm:$0xff]
    %v2568 = vld [vmem:[#allocation4 + $0x440] sm:$0xff]
    %v2569 = vld [vmem:[#allocation4 + $0x448] sm:$0xff]
    %v2570 = vld [vmem:[#allocation4 + $0x450] sm:$0xff]
    %v2571 = vld [vmem:[#allocation4 + $0x458] sm:$0xff]
    %v2572 = vld [vmem:[#allocation4 + $0x460] sm:$0xff]
    %v2573 = vld [vmem:[#allocation4 + $0x468] sm:$0xff]
    %v2574 = vld [vmem:[#allocation4 + $0x470] sm:$0xff]
    %v2575 = vld [vmem:[#allocation4 + $0x478] sm:$0xff]
    %v2576 = vld [vmem:[#allocation4 + $0x480] sm:$0xff]
    %v2577 = vld [vmem:[#allocation4 + $0x488] sm:$0xff]
    %v2578 = vld [vmem:[#allocation4 + $0x490] sm:$0xff]
    %v2579 = vld [vmem:[#allocation4 + $0x498] sm:$0xff]
    %v2580 = vld [vmem:[#allocation4 + $0x4a0] sm:$0xff]
    %v2581 = vld [vmem:[#allocation4 + $0x4a8] sm:$0xff]
    %v2582 = vld [vmem:[#allocation4 + $0x4b0] sm:$0xff]
    %v2583 = vld [vmem:[#allocation4 + $0x4b8] sm:$0xff]
    %v2584 = vld [vmem:[#allocation4 + $0x4c0] sm:$0xff]
    %v2585 = vld [vmem:[#allocation4 + $0x4c8] sm:$0xff]
    %v2586 = vld [vmem:[#allocation4 + $0x4d0] sm:$0xff]
    %v2587 = vld [vmem:[#allocation4 + $0x4d8] sm:$0xff]
    %v2588 = vld [vmem:[#allocation4 + $0x4e0] sm:$0xff]
    %v2589 = vld [vmem:[#allocation4 + $0x4e8] sm:$0xff]
    %v2590 = vld [vmem:[#allocation4 + $0x4f0] sm:$0xff]
    %v2591 = vld [vmem:[#allocation4 + $0x4f8] sm:$0xff]
    %v2592 = vld [vmem:[#allocation4 + $0x500] sm:$0xff]
    %v2593 = vld [vmem:[#allocation4 + $0x508] sm:$0xff]
    %v2594 = vld [vmem:[#allocation4 + $0x510] sm:$0xff]
    %v2595 = vld [vmem:[#allocation4 + $0x518] sm:$0xff]
    %v2596 = vld [vmem:[#allocation4 + $0x520] sm:$0xff]
    %v2597 = vld [vmem:[#allocation4 + $0x528] sm:$0xff]
    %v2598 = vld [vmem:[#allocation4 + $0x530] sm:$0xff]
    %v2599 = vld [vmem:[#allocation4 + $0x538] sm:$0xff]
    %v2600 = vld [vmem:[#allocation4 + $0x540] sm:$0xff]
    %v2601 = vld [vmem:[#allocation4 + $0x548] sm:$0xff]
    %v2602 = vld [vmem:[#allocation4 + $0x550] sm:$0xff]
    %v2603 = vld [vmem:[#allocation4 + $0x558] sm:$0xff]
    %v2604 = vld [vmem:[#allocation4 + $0x560] sm:$0xff]
    %v2605 = vld [vmem:[#allocation4 + $0x568] sm:$0xff]
    %v2606 = vld [vmem:[#allocation4 + $0x570] sm:$0xff]
    %v2607 = vld [vmem:[#allocation4 + $0x578] sm:$0xff]
    %v2608 = vsel %vm1237, %v2509, 0
    %2610 = vmatprep.subr.mxu0 %v2513
    %2611 = vmatpush1.msra.mxu0 %v2512
    %2612 = vmatprep.subr.mxu0 %v2517
    %2613 = vmatpush1.msra.mxu0 %v2516
    %2614 = vmatprep.subr.mxu0 %v2521
    %2615 = vmatpush1.msra.mxu0 %v2520
    %2616 = vmatprep.subr.mxu0 %v2525
    %2617 = vmatpush1.msra.mxu0 %v2524
    %2618 = vmatprep.subr.mxu0 %v2529
    %2619 = vmatpush1.msra.mxu0 %v2528
    %2620 = vmatprep.subr.mxu0 %v2533
    %2621 = vmatpush1.msra.mxu0 %v2532
    %2622 = vmatprep.subr.mxu0 %v2537
    %2623 = vmatpush1.msra.mxu0 %v2536
    %2624 = vmatprep.subr.mxu0 %v2541
    %2625 = vmatpush1.msra.mxu0 %v2540
    %2626 = vmatprep.subr.mxu0 %v2545
    %2627 = vmatpush1.msra.mxu0 %v2544
    %2628 = vmatprep.subr.mxu0 %v2549
    %2629 = vmatpush1.msra.mxu0 %v2548
    %2630 = vmatprep.subr.mxu0 %v2553
    %2631 = vmatpush1.msra.mxu0 %v2552
    %2632 = vmatprep.subr.mxu0 %v2557
    %2633 = vmatpush1.msra.mxu0 %v2556
    %2634 = vmatprep.subr.mxu0 %v2561
    %2635 = vmatpush1.msra.mxu0 %v2560
    %2636 = vmatprep.subr.mxu0 %v2565
    %2637 = vmatpush1.msra.mxu0 %v2564
    %2638 = vmatprep.subr.mxu0 %v2569
    %2639 = vmatpush1.msra.mxu0 %v2568
    %2640 = vmatprep.subr.mxu0 %v2573
    %2641 = vmatpush1.msra.mxu0 %v2572
    %2642 = vmatprep.subr.mxu0 %v2577
    %2643 = vmatpush1.msra.mxu0 %v2576
    %2644 = vmatprep.subr.mxu0 %v2581
    %2645 = vmatpush1.msra.mxu0 %v2580
    %2646 = vmatprep.subr.mxu0 %v2585
    %2647 = vmatpush1.msra.mxu0 %v2584
    %2648 = vmatprep.subr.mxu0 %v2589
    %2649 = vmatpush1.msra.mxu0 %v2588
    %2650 = vmatprep.subr.mxu0 %v2593
    %2651 = vmatpush1.msra.mxu0 %v2592
    %2652 = vmatprep.subr.mxu0 %v2597
    %2653 = vmatpush1.msra.mxu0 %v2596
    %2654 = vmatprep.subr.mxu0 %v2601
    %2655 = vmatpush1.msra.mxu0 %v2600
    %2656 = vmatprep.subr.mxu0 %v2605
    %2657 = vmatpush1.msra.mxu0 %v2604
    %2658 = vmatprep.subr.mxu0 0.0
    %2659 = vmatpush1.msra.mxu0 0.0
    %2660 = vmatprep.subr.mxu0 0.0
    %2661 = vmatpush1.msra.mxu0 0.0
    %2662 = vmatprep.subr.mxu0 0.0
    %2663 = vmatpush1.msra.mxu0 0.0
    %2664 = vmatprep.subr.mxu0 0.0
    %2665 = vmatpush1.msra.mxu0 0.0
    %2666 = vmatprep.subr.mxu0 0.0
    %2667 = vmatpush1.msra.mxu0 0.0
    %2668 = vmatprep.subr.mxu0 0.0
    %2669 = vmatpush1.msra.mxu0 0.0
    %2670 = vmatprep.subr.mxu0 0.0
    %2671 = vmatpush1.msra.mxu0 0.0
    %2672 = vmatprep.subr.mxu0 0.0
    %2673 = vmatpush1.msra.mxu0 0.0
    %2674 = vmatprep.mubr.f32.mxu0 %v2608
    %2675 = vmatmul.mubr.f32.gmra.mrb[0].mxu0 %v2511
    %v2676 = vpop.f32.mrb[0].mxu0
    %v2677 = vadd.f32 %v55, %v2676
    %v2678 = vpop.f32.mrb[0].mxu0
    %v2679 = vadd.f32 %v59, %v2678
    %2680 = vdwg.mxu0
    %2681 = vmatprep.subr.mxu0 %v2515
    %2682 = vmatpush1.msra.mxu0 %v2514
    %2683 = vmatprep.subr.mxu0 %v2519
    %2684 = vmatpush1.msra.mxu0 %v2518
    %2685 = vmatprep.subr.mxu0 %v2523
    %2686 = vmatpush1.msra.mxu0 %v2522
    %2687 = vmatprep.subr.mxu0 %v2527
    %2688 = vmatpush1.msra.mxu0 %v2526
    %2689 = vmatprep.subr.mxu0 %v2531
    %2690 = vmatpush1.msra.mxu0 %v2530
    %2691 = vmatprep.subr.mxu0 %v2535
    %2692 = vmatpush1.msra.mxu0 %v2534
    %2693 = vmatprep.subr.mxu0 %v2539
    %2694 = vmatpush1.msra.mxu0 %v2538
    %2695 = vmatprep.subr.mxu0 %v2543
    %2696 = vmatpush1.msra.mxu0 %v2542
    %2697 = vmatprep.subr.mxu0 %v2547
    %2698 = vmatpush1.msra.mxu0 %v2546
    %2699 = vmatprep.subr.mxu0 %v2551
    %2700 = vmatpush1.msra.mxu0 %v2550
    %2701 = vmatprep.subr.mxu0 %v2555
    %2702 = vmatpush1.msra.mxu0 %v2554
    %2703 = vmatprep.subr.mxu0 %v2559
    %2704 = vmatpush1.msra.mxu0 %v2558
    %2705 = vmatprep.subr.mxu0 %v2563
    %2706 = vmatpush1.msra.mxu0 %v2562
    %2707 = vmatprep.subr.mxu0 %v2567
    %2708 = vmatpush1.msra.mxu0 %v2566
    %2709 = vmatprep.subr.mxu0 %v2571
    %2710 = vmatpush1.msra.mxu0 %v2570
    %2711 = vmatprep.subr.mxu0 %v2575
    %2712 = vmatpush1.msra.mxu0 %v2574
    %2713 = vmatprep.subr.mxu0 %v2579
    %2714 = vmatpush1.msra.mxu0 %v2578
    %2715 = vmatprep.subr.mxu0 %v2583
    %2716 = vmatpush1.msra.mxu0 %v2582
    %2717 = vmatprep.subr.mxu0 %v2587
    %2718 = vmatpush1.msra.mxu0 %v2586
    %2719 = vmatprep.subr.mxu0 %v2591
    %2720 = vmatpush1.msra.mxu0 %v2590
    %2721 = vmatprep.subr.mxu0 %v2595
    %2722 = vmatpush1.msra.mxu0 %v2594
    %2723 = vmatprep.subr.mxu0 %v2599
    %2724 = vmatpush1.msra.mxu0 %v2598
    %2725 = vmatprep.subr.mxu0 %v2603
    %2726 = vmatpush1.msra.mxu0 %v2602
    %2727 = vmatprep.subr.mxu0 %v2607
    %2728 = vmatpush1.msra.mxu0 %v2606
    %2729 = vmatprep.subr.mxu0 0.0
    %2730 = vmatpush1.msra.mxu0 0.0
    %2731 = vmatprep.subr.mxu0 0.0
    %2732 = vmatpush1.msra.mxu0 0.0
    %2733 = vmatprep.subr.mxu0 0.0
    %2734 = vmatpush1.msra.mxu0 0.0
    %2735 = vmatprep.subr.mxu0 0.0
    %2736 = vmatpush1.msra.mxu0 0.0
    %2737 = vmatprep.subr.mxu0 0.0
    %2738 = vmatpush1.msra.mxu0 0.0
    %2739 = vmatprep.subr.mxu0 0.0
    %2740 = vmatpush1.msra.mxu0 0.0
    %2741 = vmatprep.subr.mxu0 0.0
    %2742 = vmatpush1.msra.mxu0 0.0
    %2743 = vmatprep.subr.mxu0 0.0
    %2744 = vmatpush1.msra.mxu0 0.0
    %2745 = vmatprep.mubr.f32.mxu0 %v2608
    %2746 = vmatmul.mubr.f32.gmra.mrb[0].mxu0 %v2511
    %v2747 = vpop.f32.mrb[0].mxu0
    %v2748 = vadd.f32 %v63, %v2747
    %v2749 = vpop.f32.mrb[0].mxu0
    %v2750 = vadd.f32 %v67, %v2749
    %2751 = vdwg.mxu0
    %v2752 = vxor.u32 %v2677, 2147483648
    %v2753 = vxor.u32 %v2679, 2147483648
    %v2754 = vmul.f32 %v2752, 1.442695
    %v2755 = vpow.pop %v2754
    %v2756 = vmul.f32 %v2753, 1.442695
    %v2757 = vpow.pop %v2756
    %v2758 = vadd.f32 %v2755, 1.0
    %v2759 = vadd.f32 %v2757, 1.0
    %v2760 = vrcp.pop %v2758
    %v2761 = vmul.f32 1.0, %v2760
    %v2762 = vrcp.pop %v2759
    %v2763 = vmul.f32 1.0, %v2762
    %v2764 = vtanh.pop %v2748
    %v2765 = vxor.u32 %v2750, 2147483648
    %v2766 = vmul.f32 %v2765, 1.442695
    %v2767 = vpow.pop %v2766
    %v2768 = vadd.f32 %v2767, 1.0
    %v2769 = vrcp.pop %v2768
    %v2770 = vmul.f32 1.0, %v2769
    %v2771 = vmul.f32 %v2763, %v2088
    %v2772 = vmul.f32 %v2761, %v2764
    %v2773 = vadd.f32 %v2771, %v2772
    %v2774 = vtanh.pop %v2773
    %v2775 = vmul.f32 %v2770, %v2774
    %2776 = vst [vmem:[#allocation3 + $0x10] sm:$0xff] %v2775
    %v2777 = vld [vmem:[#allocation2 + $0xa0] sm:$0xff]
    %v2778 = vld [vmem:[#allocation2 + $0xa8] sm:$0xff]
    %v2779 = vld [vmem:[#allocation2 + $0xb0] sm:$0xff]
    %v2780 = vld [vmem:[#allocation2 + $0xb8] sm:$0xff]
    %v2781 = vld [vmem:[#allocation4 + $0x80] sm:$0xff]
    %v2782 = vld [vmem:[#allocation4 + $0x88] sm:$0xff]
    %v2783 = vld [vmem:[#allocation4 + $0x90] sm:$0xff]
    %v2784 = vld [vmem:[#allocation4 + $0x98] sm:$0xff]
    %v2785 = vld [vmem:[#allocation4 + $0xa0] sm:$0xff]
    %v2786 = vld [vmem:[#allocation4 + $0xa8] sm:$0xff]
    %v2787 = vld [vmem:[#allocation4 + $0xb0] sm:$0xff]
    %v2788 = vld [vmem:[#allocation4 + $0xb8] sm:$0xff]
    %v2789 = vld [vmem:[#allocation4 + $0xc0] sm:$0xff]
    %v2790 = vld [vmem:[#allocation4 + $0xc8] sm:$0xff]
    %v2791 = vld [vmem:[#allocation4 + $0xd0] sm:$0xff]
    %v2792 = vld [vmem:[#allocation4 + $0xd8] sm:$0xff]
    %v2793 = vld [vmem:[#allocation4 + $0xe0] sm:$0xff]
    %v2794 = vld [vmem:[#allocation4 + $0xe8] sm:$0xff]
    %v2795 = vld [vmem:[#allocation4 + $0xf0] sm:$0xff]
    %v2796 = vld [vmem:[#allocation4 + $0xf8] sm:$0xff]
    %v2798 = vsel %vm119, %v2284, 0
    %2800 = vmatprep.subr.mxu0 %v2782
    %2801 = vmatpush1.msra.mxu0 %v2781
    %2802 = vmatprep.subr.mxu0 %v2786
    %2803 = vmatpush1.msra.mxu0 %v2785
    %2804 = vmatprep.subr.mxu0 %v2790
    %2805 = vmatpush1.msra.mxu0 %v2789
    %2806 = vmatprep.subr.mxu0 %v2794
    %2807 = vmatpush1.msra.mxu0 %v2793
    %2808 = vmatprep.subr.mxu0 0.0
    %2809 = vmatpush1.msra.mxu0 0.0
    %2810 = vmatprep.subr.mxu0 0.0
    %2811 = vmatpush1.msra.mxu0 0.0
    %2812 = vmatprep.subr.mxu0 0.0
    %2813 = vmatpush1.msra.mxu0 0.0
    %2814 = vmatprep.subr.mxu0 0.0
    %2815 = vmatpush1.msra.mxu0 0.0
    %2816 = vmatprep.subr.mxu0 0.0
    %2817 = vmatpush1.msra.mxu0 0.0
    %2818 = vmatprep.subr.mxu0 0.0
    %2819 = vmatpush1.msra.mxu0 0.0
    %2820 = vmatprep.subr.mxu0 0.0
    %2821 = vmatpush1.msra.mxu0 0.0
    %2822 = vmatprep.subr.mxu0 0.0
    %2823 = vmatpush1.msra.mxu0 0.0
    %2824 = vmatprep.subr.mxu0 0.0
    %2825 = vmatpush1.msra.mxu0 0.0
    %2826 = vmatprep.subr.mxu0 0.0
    %2827 = vmatpush1.msra.mxu0 0.0
    %2828 = vmatprep.subr.mxu0 0.0
    %2829 = vmatpush1.msra.mxu0 0.0
    %2830 = vmatprep.subr.mxu0 0.0
    %2831 = vmatpush1.msra.mxu0 0.0
    %2832 = vmatprep.subr.mxu0 0.0
    %2833 = vmatpush1.msra.mxu0 0.0
    %2834 = vmatprep.subr.mxu0 0.0
    %2835 = vmatpush1.msra.mxu0 0.0
    %2836 = vmatprep.subr.mxu0 0.0
    %2837 = vmatpush1.msra.mxu0 0.0
    %2838 = vmatprep.subr.mxu0 0.0
    %2839 = vmatpush1.msra.mxu0 0.0
    %2840 = vmatprep.subr.mxu0 0.0
    %2841 = vmatpush1.msra.mxu0 0.0
    %2842 = vmatprep.subr.mxu0 0.0
    %2843 = vmatpush1.msra.mxu0 0.0
    %2844 = vmatprep.subr.mxu0 0.0
    %2845 = vmatpush1.msra.mxu0 0.0
    %2846 = vmatprep.subr.mxu0 0.0
    %2847 = vmatpush1.msra.mxu0 0.0
    %2848 = vmatprep.subr.mxu0 0.0
    %2849 = vmatpush1.msra.mxu0 0.0
    %2850 = vmatprep.subr.mxu0 0.0
    %2851 = vmatpush1.msra.mxu0 0.0
    %2852 = vmatprep.subr.mxu0 0.0
    %2853 = vmatpush1.msra.mxu0 0.0
    %2854 = vmatprep.subr.mxu0 0.0
    %2855 = vmatpush1.msra.mxu0 0.0
    %2856 = vmatprep.subr.mxu0 0.0
    %2857 = vmatpush1.msra.mxu0 0.0
    %2858 = vmatprep.subr.mxu0 0.0
    %2859 = vmatpush1.msra.mxu0 0.0
    %2860 = vmatprep.subr.mxu0 0.0
    %2861 = vmatpush1.msra.mxu0 0.0
    %2862 = vmatprep.subr.mxu0 0.0
    %2863 = vmatpush1.msra.mxu0 0.0
    %2864 = vmatprep.mubr.f32.mxu0 0.0
    %2865 = vmatmul.mubr.f32.gmra.mrb[0].mxu0 %v2798
    %v2866 = vpop.f32.mrb[0].mxu0
    %v2867 = vadd.f32 0.0, %v2866
    %v2868 = vpop.f32.mrb[0].mxu0
    %v2869 = vadd.f32 0.0, %v2868
    %2870 = vdwg.mxu0
    %2871 = vmatprep.subr.mxu0 %v2784
    %2872 = vmatpush1.msra.mxu0 %v2783
    %2873 = vmatprep.subr.mxu0 %v2788
    %2874 = vmatpush1.msra.mxu0 %v2787
    %2875 = vmatprep.subr.mxu0 %v2792
    %2876 = vmatpush1.msra.mxu0 %v2791
    %2877 = vmatprep.subr.mxu0 %v2796
    %2878 = vmatpush1.msra.mxu0 %v2795
    %2879 = vmatprep.subr.mxu0 0.0
    %2880 = vmatpush1.msra.mxu0 0.0
    %2881 = vmatprep.subr.mxu0 0.0
    %2882 = vmatpush1.msra.mxu0 0.0
    %2883 = vmatprep.subr.mxu0 0.0
    %2884 = vmatpush1.msra.mxu0 0.0
    %2885 = vmatprep.subr.mxu0 0.0
    %2886 = vmatpush1.msra.mxu0 0.0
    %2887 = vmatprep.subr.mxu0 0.0
    %2888 = vmatpush1.msra.mxu0 0.0
    %2889 = vmatprep.subr.mxu0 0.0
    %2890 = vmatpush1.msra.mxu0 0.0
    %2891 = vmatprep.subr.mxu0 0.0
    %2892 = vmatpush1.msra.mxu0 0.0
    %2893 = vmatprep.subr.mxu0 0.0
    %2894 = vmatpush1.msra.mxu0 0.0
    %2895 = vmatprep.subr.mxu0 0.0
    %2896 = vmatpush1.msra.mxu0 0.0
    %2897 = vmatprep.subr.mxu0 0.0
    %2898 = vmatpush1.msra.mxu0 0.0
    %2899 = vmatprep.subr.mxu0 0.0
    %2900 = vmatpush1.msra.mxu0 0.0
    %2901 = vmatprep.subr.mxu0 0.0
    %2902 = vmatpush1.msra.mxu0 0.0
    %2903 = vmatprep.subr.mxu0 0.0
    %2904 = vmatpush1.msra.mxu0 0.0
    %2905 = vmatprep.subr.mxu0 0.0
    %2906 = vmatpush1.msra.mxu0 0.0
    %2907 = vmatprep.subr.mxu0 0.0
    %2908 = vmatpush1.msra.mxu0 0.0
    %2909 = vmatprep.subr.mxu0 0.0
    %2910 = vmatpush1.msra.mxu0 0.0
    %2911 = vmatprep.subr.mxu0 0.0
    %2912 = vmatpush1.msra.mxu0 0.0
    %2913 = vmatprep.subr.mxu0 0.0
    %2914 = vmatpush1.msra.mxu0 0.0
    %2915 = vmatprep.subr.mxu0 0.0
    %2916 = vmatpush1.msra.mxu0 0.0
    %2917 = vmatprep.subr.mxu0 0.0
    %2918 = vmatpush1.msra.mxu0 0.0
    %2919 = vmatprep.subr.mxu0 0.0
    %2920 = vmatpush1.msra.mxu0 0.0
    %2921 = vmatprep.subr.mxu0 0.0
    %2922 = vmatpush1.msra.mxu0 0.0
    %2923 = vmatprep.subr.mxu0 0.0
    %2924 = vmatpush1.msra.mxu0 0.0
    %2925 = vmatprep.subr.mxu0 0.0
    %2926 = vmatpush1.msra.mxu0 0.0
    %2927 = vmatprep.subr.mxu0 0.0
    %2928 = vmatpush1.msra.mxu0 0.0
    %2929 = vmatprep.subr.mxu0 0.0
    %2930 = vmatpush1.msra.mxu0 0.0
    %2931 = vmatprep.subr.mxu0 0.0
    %2932 = vmatpush1.msra.mxu0 0.0
    %2933 = vmatprep.subr.mxu0 0.0
    %2934 = vmatpush1.msra.mxu0 0.0
    %2935 = vmatprep.mubr.f32.mxu0 0.0
    %2936 = vmatmul.mubr.f32.gmra.mrb[0].mxu0 %v2798
    %v2937 = vpop.f32.mrb[0].mxu0
    %v2938 = vadd.f32 0.0, %v2937
    %v2939 = vpop.f32.mrb[0].mxu0
    %v2940 = vadd.f32 0.0, %v2939
    %2941 = vdwg.mxu0
    %v2942 = vadd.f32 %v2777, %v2867
    %v2943 = vadd.f32 %v2778, %v2869
    %v2944 = vadd.f32 %v2779, %v2938
    %v2945 = vadd.f32 %v2780, %v2940
    %v2946 = vxor.u32 %v2942, 2147483648
    %v2947 = vxor.u32 %v2943, 2147483648
    %v2948 = vmul.f32 %v2946, 1.442695
    %v2949 = vpow.pop %v2948
    %v2950 = vmul.f32 %v2947, 1.442695
    %v2951 = vpow.pop %v2950
    %v2952 = vadd.f32 %v2949, 1.0
    %v2953 = vadd.f32 %v2951, 1.0
    %v2954 = vrcp.pop %v2952
    %v2955 = vmul.f32 1.0, %v2954
    %v2956 = vrcp.pop %v2953
    %v2957 = vmul.f32 1.0, %v2956
    %v2958 = vtanh.pop %v2944
    %v2959 = vxor.u32 %v2945, 2147483648
    %v2960 = vmul.f32 %v2959, 1.442695
    %v2961 = vpow.pop %v2960
    %v2962 = vadd.f32 %v2961, 1.0
    %v2963 = vrcp.pop %v2962
    %v2964 = vmul.f32 1.0, %v2963
    %v2965 = vmul.f32 %v2957, %v2282
    %v2966 = vmul.f32 %v2955, %v2958
    %v2967 = vadd.f32 %v2965, %v2966
    %v2968 = vtanh.pop %v2967
    %v2969 = vmul.f32 %v2964, %v2968
    %2971 = vrot.lane.b32.xlu0 %v2506, 32
    %v2972 = vpop.permute.xlu0 %2971
    %v2974 = vsel %vm119, %v2284, %v2972
    %v2975 = vld [vmem:[#allocation4 + $0x100] sm:$0xff]
    %v2976 = vld [vmem:[#allocation4 + $0x108] sm:$0xff]
    %v2977 = vld [vmem:[#allocation4 + $0x110] sm:$0xff]
    %v2978 = vld [vmem:[#allocation4 + $0x118] sm:$0xff]
    %v2979 = vld [vmem:[#allocation4 + $0x120] sm:$0xff]
    %v2980 = vld [vmem:[#allocation4 + $0x128] sm:$0xff]
    %v2981 = vld [vmem:[#allocation4 + $0x130] sm:$0xff]
    %v2982 = vld [vmem:[#allocation4 + $0x138] sm:$0xff]
    %v2983 = vld [vmem:[#allocation4 + $0x140] sm:$0xff]
    %v2984 = vld [vmem:[#allocation4 + $0x148] sm:$0xff]
    %v2985 = vld [vmem:[#allocation4 + $0x150] sm:$0xff]
    %v2986 = vld [vmem:[#allocation4 + $0x158] sm:$0xff]
    %v2987 = vld [vmem:[#allocation4 + $0x160] sm:$0xff]
    %v2988 = vld [vmem:[#allocation4 + $0x168] sm:$0xff]
    %v2989 = vld [vmem:[#allocation4 + $0x170] sm:$0xff]
    %v2990 = vld [vmem:[#allocation4 + $0x178] sm:$0xff]
    %v2991 = vld [vmem:[#allocation4 + $0x180] sm:$0xff]
    %v2992 = vld [vmem:[#allocation4 + $0x188] sm:$0xff]
    %v2993 = vld [vmem:[#allocation4 + $0x190] sm:$0xff]
    %v2994 = vld [vmem:[#allocation4 + $0x198] sm:$0xff]
    %v2995 = vld [vmem:[#allocation4 + $0x1a0] sm:$0xff]
    %v2996 = vld [vmem:[#allocation4 + $0x1a8] sm:$0xff]
    %v2997 = vld [vmem:[#allocation4 + $0x1b0] sm:$0xff]
    %v2998 = vld [vmem:[#allocation4 + $0x1b8] sm:$0xff]
    %v2999 = vld [vmem:[#allocation4 + $0x1c0] sm:$0xff]
    %v3000 = vld [vmem:[#allocation4 + $0x1c8] sm:$0xff]
    %v3001 = vld [vmem:[#allocation4 + $0x1d0] sm:$0xff]
    %v3002 = vld [vmem:[#allocation4 + $0x1d8] sm:$0xff]
    %v3003 = vld [vmem:[#allocation4 + $0x1e0] sm:$0xff]
    %v3004 = vld [vmem:[#allocation4 + $0x1e8] sm:$0xff]
    %v3005 = vld [vmem:[#allocation4 + $0x1f0] sm:$0xff]
    %v3006 = vld [vmem:[#allocation4 + $0x1f8] sm:$0xff]
    %v3007 = vld [vmem:[#allocation4 + $0x200] sm:$0xff]
    %v3008 = vld [vmem:[#allocation4 + $0x208] sm:$0xff]
    %v3009 = vld [vmem:[#allocation4 + $0x210] sm:$0xff]
    %v3010 = vld [vmem:[#allocation4 + $0x218] sm:$0xff]
    %v3011 = vld [vmem:[#allocation4 + $0x220] sm:$0xff]
    %v3012 = vld [vmem:[#allocation4 + $0x228] sm:$0xff]
    %v3013 = vld [vmem:[#allocation4 + $0x230] sm:$0xff]
    %v3014 = vld [vmem:[#allocation4 + $0x238] sm:$0xff]
    %v3015 = vld [vmem:[#allocation4 + $0x240] sm:$0xff]
    %v3016 = vld [vmem:[#allocation4 + $0x248] sm:$0xff]
    %v3017 = vld [vmem:[#allocation4 + $0x250] sm:$0xff]
    %v3018 = vld [vmem:[#allocation4 + $0x258] sm:$0xff]
    %v3019 = vld [vmem:[#allocation4 + $0x260] sm:$0xff]
    %v3020 = vld [vmem:[#allocation4 + $0x268] sm:$0xff]
    %v3021 = vld [vmem:[#allocation4 + $0x270] sm:$0xff]
    %v3022 = vld [vmem:[#allocation4 + $0x278] sm:$0xff]
    %v3024 = vsel %vm1035, %v2974, 0
    %3026 = vmatprep.subr.mxu0 %v2976
    %3027 = vmatpush1.msra.mxu0 %v2975
    %3028 = vmatprep.subr.mxu0 %v2980
    %3029 = vmatpush1.msra.mxu0 %v2979
    %3030 = vmatprep.subr.mxu0 %v2984
    %3031 = vmatpush1.msra.mxu0 %v2983
    %3032 = vmatprep.subr.mxu0 %v2988
    %3033 = vmatpush1.msra.mxu0 %v2987
    %3034 = vmatprep.subr.mxu0 %v2992
    %3035 = vmatpush1.msra.mxu0 %v2991
    %3036 = vmatprep.subr.mxu0 %v2996
    %3037 = vmatpush1.msra.mxu0 %v2995
    %3038 = vmatprep.subr.mxu0 %v3000
    %3039 = vmatpush1.msra.mxu0 %v2999
    %3040 = vmatprep.subr.mxu0 %v3004
    %3041 = vmatpush1.msra.mxu0 %v3003
    %3042 = vmatprep.subr.mxu0 %v3008
    %3043 = vmatpush1.msra.mxu0 %v3007
    %3044 = vmatprep.subr.mxu0 %v3012
    %3045 = vmatpush1.msra.mxu0 %v3011
    %3046 = vmatprep.subr.mxu0 %v3016
    %3047 = vmatpush1.msra.mxu0 %v3015
    %3048 = vmatprep.subr.mxu0 %v3020
    %3049 = vmatpush1.msra.mxu0 %v3019
    %3050 = vmatprep.subr.mxu0 0.0
    %3051 = vmatpush1.msra.mxu0 0.0
    %3052 = vmatprep.subr.mxu0 0.0
    %3053 = vmatpush1.msra.mxu0 0.0
    %3054 = vmatprep.subr.mxu0 0.0
    %3055 = vmatpush1.msra.mxu0 0.0
    %3056 = vmatprep.subr.mxu0 0.0
    %3057 = vmatpush1.msra.mxu0 0.0
    %3058 = vmatprep.subr.mxu0 0.0
    %3059 = vmatpush1.msra.mxu0 0.0
    %3060 = vmatprep.subr.mxu0 0.0
    %3061 = vmatpush1.msra.mxu0 0.0
    %3062 = vmatprep.subr.mxu0 0.0
    %3063 = vmatpush1.msra.mxu0 0.0
    %3064 = vmatprep.subr.mxu0 0.0
    %3065 = vmatpush1.msra.mxu0 0.0
    %3066 = vmatprep.subr.mxu0 0.0
    %3067 = vmatpush1.msra.mxu0 0.0
    %3068 = vmatprep.subr.mxu0 0.0
    %3069 = vmatpush1.msra.mxu0 0.0
    %3070 = vmatprep.subr.mxu0 0.0
    %3071 = vmatpush1.msra.mxu0 0.0
    %3072 = vmatprep.subr.mxu0 0.0
    %3073 = vmatpush1.msra.mxu0 0.0
    %3074 = vmatprep.subr.mxu0 0.0
    %3075 = vmatpush1.msra.mxu0 0.0
    %3076 = vmatprep.subr.mxu0 0.0
    %3077 = vmatpush1.msra.mxu0 0.0
    %3078 = vmatprep.subr.mxu0 0.0
    %3079 = vmatpush1.msra.mxu0 0.0
    %3080 = vmatprep.subr.mxu0 0.0
    %3081 = vmatpush1.msra.mxu0 0.0
    %3082 = vmatprep.subr.mxu0 0.0
    %3083 = vmatpush1.msra.mxu0 0.0
    %3084 = vmatprep.subr.mxu0 0.0
    %3085 = vmatpush1.msra.mxu0 0.0
    %3086 = vmatprep.subr.mxu0 0.0
    %3087 = vmatpush1.msra.mxu0 0.0
    %3088 = vmatprep.subr.mxu0 0.0
    %3089 = vmatpush1.msra.mxu0 0.0
    %3090 = vmatprep.mubr.f32.mxu0 0.0
    %3091 = vmatmul.mubr.f32.gmra.mrb[0].mxu0 %v3024
    %v3092 = vpop.f32.mrb[0].mxu0
    %v3093 = vadd.f32 %v32, %v3092
    %v3094 = vpop.f32.mrb[0].mxu0
    %v3095 = vadd.f32 %v36, %v3094
    %3096 = vdwg.mxu0
    %3097 = vmatprep.subr.mxu0 %v2978
    %3098 = vmatpush1.msra.mxu0 %v2977
    %3099 = vmatprep.subr.mxu0 %v2982
    %3100 = vmatpush1.msra.mxu0 %v2981
    %3101 = vmatprep.subr.mxu0 %v2986
    %3102 = vmatpush1.msra.mxu0 %v2985
    %3103 = vmatprep.subr.mxu0 %v2990
    %3104 = vmatpush1.msra.mxu0 %v2989
    %3105 = vmatprep.subr.mxu0 %v2994
    %3106 = vmatpush1.msra.mxu0 %v2993
    %3107 = vmatprep.subr.mxu0 %v2998
    %3108 = vmatpush1.msra.mxu0 %v2997
    %3109 = vmatprep.subr.mxu0 %v3002
    %3110 = vmatpush1.msra.mxu0 %v3001
    %3111 = vmatprep.subr.mxu0 %v3006
    %3112 = vmatpush1.msra.mxu0 %v3005
    %3113 = vmatprep.subr.mxu0 %v3010
    %3114 = vmatpush1.msra.mxu0 %v3009
    %3115 = vmatprep.subr.mxu0 %v3014
    %3116 = vmatpush1.msra.mxu0 %v3013
    %3117 = vmatprep.subr.mxu0 %v3018
    %3118 = vmatpush1.msra.mxu0 %v3017
    %3119 = vmatprep.subr.mxu0 %v3022
    %3120 = vmatpush1.msra.mxu0 %v3021
    %3121 = vmatprep.subr.mxu0 0.0
    %3122 = vmatpush1.msra.mxu0 0.0
    %3123 = vmatprep.subr.mxu0 0.0
    %3124 = vmatpush1.msra.mxu0 0.0
    %3125 = vmatprep.subr.mxu0 0.0
    %3126 = vmatpush1.msra.mxu0 0.0
    %3127 = vmatprep.subr.mxu0 0.0
    %3128 = vmatpush1.msra.mxu0 0.0
    %3129 = vmatprep.subr.mxu0 0.0
    %3130 = vmatpush1.msra.mxu0 0.0
    %3131 = vmatprep.subr.mxu0 0.0
    %3132 = vmatpush1.msra.mxu0 0.0
    %3133 = vmatprep.subr.mxu0 0.0
    %3134 = vmatpush1.msra.mxu0 0.0
    %3135 = vmatprep.subr.mxu0 0.0
    %3136 = vmatpush1.msra.mxu0 0.0
    %3137 = vmatprep.subr.mxu0 0.0
    %3138 = vmatpush1.msra.mxu0 0.0
    %3139 = vmatprep.subr.mxu0 0.0
    %3140 = vmatpush1.msra.mxu0 0.0
    %3141 = vmatprep.subr.mxu0 0.0
    %3142 = vmatpush1.msra.mxu0 0.0
    %3143 = vmatprep.subr.mxu0 0.0
    %3144 = vmatpush1.msra.mxu0 0.0
    %3145 = vmatprep.subr.mxu0 0.0
    %3146 = vmatpush1.msra.mxu0 0.0
    %3147 = vmatprep.subr.mxu0 0.0
    %3148 = vmatpush1.msra.mxu0 0.0
    %3149 = vmatprep.subr.mxu0 0.0
    %3150 = vmatpush1.msra.mxu0 0.0
    %3151 = vmatprep.subr.mxu0 0.0
    %3152 = vmatpush1.msra.mxu0 0.0
    %3153 = vmatprep.subr.mxu0 0.0
    %3154 = vmatpush1.msra.mxu0 0.0
    %3155 = vmatprep.subr.mxu0 0.0
    %3156 = vmatpush1.msra.mxu0 0.0
    %3157 = vmatprep.subr.mxu0 0.0
    %3158 = vmatpush1.msra.mxu0 0.0
    %3159 = vmatprep.subr.mxu0 0.0
    %3160 = vmatpush1.msra.mxu0 0.0
    %3161 = vmatprep.mubr.f32.mxu0 0.0
    %3162 = vmatmul.mubr.f32.gmra.mrb[0].mxu0 %v3024
    %v3163 = vpop.f32.mrb[0].mxu0
    %v3164 = vadd.f32 %v40, %v3163
    %v3165 = vpop.f32.mrb[0].mxu0
    %v3166 = vadd.f32 %v44, %v3165
    %3167 = vdwg.mxu0
    %v3168 = vxor.u32 %v3093, 2147483648
    %v3169 = vxor.u32 %v3095, 2147483648
    %v3170 = vmul.f32 %v3168, 1.442695
    %v3171 = vpow.pop %v3170
    %v3172 = vmul.f32 %v3169, 1.442695
    %v3173 = vpow.pop %v3172
    %v3174 = vadd.f32 %v3171, 1.0
    %v3175 = vadd.f32 %v3173, 1.0
    %v3176 = vrcp.pop %v3174
    %v3177 = vmul.f32 1.0, %v3176
    %v3178 = vrcp.pop %v3175
    %v3179 = vmul.f32 1.0, %v3178
    %v3180 = vtanh.pop %v3164
    %v3181 = vxor.u32 %v3166, 2147483648
    %v3182 = vmul.f32 %v3181, 1.442695
    %v3183 = vpow.pop %v3182
    %v3184 = vadd.f32 %v3183, 1.0
    %v3185 = vrcp.pop %v3184
    %v3186 = vmul.f32 1.0, %v3185
    %v3187 = vmul.f32 %v3179, %v2504
    %v3188 = vmul.f32 %v3177, %v3180
    %v3189 = vadd.f32 %v3187, %v3188
    %v3190 = vtanh.pop %v3189
    %v3191 = vmul.f32 %v3186, %v3190
    %3193 = vrot.lane.b32.xlu0 %v2775, 64
    %v3194 = vpop.permute.xlu0 %3193
    %v3196 = vsel %vm1237, %v2506, %v3194
    %v3197 = vld [vmem:[#allocation4 + $0x280] sm:$0xff]
    %v3198 = vld [vmem:[#allocation4 + $0x288] sm:$0xff]
    %v3199 = vld [vmem:[#allocation4 + $0x290] sm:$0xff]
    %v3200 = vld [vmem:[#allocation4 + $0x298] sm:$0xff]
    %v3201 = vld [vmem:[#allocation4 + $0x2a0] sm:$0xff]
    %v3202 = vld [vmem:[#allocation4 + $0x2a8] sm:$0xff]
    %v3203 = vld [vmem:[#allocation4 + $0x2b0] sm:$0xff]
    %v3204 = vld [vmem:[#allocation4 + $0x2b8] sm:$0xff]
    %v3205 = vld [vmem:[#allocation4 + $0x2c0] sm:$0xff]
    %v3206 = vld [vmem:[#allocation4 + $0x2c8] sm:$0xff]
    %v3207 = vld [vmem:[#allocation4 + $0x2d0] sm:$0xff]
    %v3208 = vld [vmem:[#allocation4 + $0x2d8] sm:$0xff]
    %v3209 = vld [vmem:[#allocation4 + $0x2e0] sm:$0xff]
    %v3210 = vld [vmem:[#allocation4 + $0x2e8] sm:$0xff]
    %v3211 = vld [vmem:[#allocation4 + $0x2f0] sm:$0xff]
    %v3212 = vld [vmem:[#allocation4 + $0x2f8] sm:$0xff]
    %v3213 = vld [vmem:[#allocation4 + $0x300] sm:$0xff]
    %v3214 = vld [vmem:[#allocation4 + $0x308] sm:$0xff]
    %v3215 = vld [vmem:[#allocation4 + $0x310] sm:$0xff]
    %v3216 = vld [vmem:[#allocation4 + $0x318] sm:$0xff]
    %v3217 = vld [vmem:[#allocation4 + $0x320] sm:$0xff]
    %v3218 = vld [vmem:[#allocation4 + $0x328] sm:$0xff]
    %v3219 = vld [vmem:[#allocation4 + $0x330] sm:$0xff]
    %v3220 = vld [vmem:[#allocation4 + $0x338] sm:$0xff]
    %v3221 = vld [vmem:[#allocation4 + $0x340] sm:$0xff]
    %v3222 = vld [vmem:[#allocation4 + $0x348] sm:$0xff]
    %v3223 = vld [vmem:[#allocation4 + $0x350] sm:$0xff]
    %v3224 = vld [vmem:[#allocation4 + $0x358] sm:$0xff]
    %v3225 = vld [vmem:[#allocation4 + $0x360] sm:$0xff]
    %v3226 = vld [vmem:[#allocation4 + $0x368] sm:$0xff]
    %v3227 = vld [vmem:[#allocation4 + $0x370] sm:$0xff]
    %v3228 = vld [vmem:[#allocation4 + $0x378] sm:$0xff]
    %v3229 = vld [vmem:[#allocation4 + $0x380] sm:$0xff]
    %v3230 = vld [vmem:[#allocation4 + $0x388] sm:$0xff]
    %v3231 = vld [vmem:[#allocation4 + $0x390] sm:$0xff]
    %v3232 = vld [vmem:[#allocation4 + $0x398] sm:$0xff]
    %v3233 = vld [vmem:[#allocation4 + $0x3a0] sm:$0xff]
    %v3234 = vld [vmem:[#allocation4 + $0x3a8] sm:$0xff]
    %v3235 = vld [vmem:[#allocation4 + $0x3b0] sm:$0xff]
    %v3236 = vld [vmem:[#allocation4 + $0x3b8] sm:$0xff]
    %v3237 = vld [vmem:[#allocation4 + $0x3c0] sm:$0xff]
    %v3238 = vld [vmem:[#allocation4 + $0x3c8] sm:$0xff]
    %v3239 = vld [vmem:[#allocation4 + $0x3d0] sm:$0xff]
    %v3240 = vld [vmem:[#allocation4 + $0x3d8] sm:$0xff]
    %v3241 = vld [vmem:[#allocation4 + $0x3e0] sm:$0xff]
    %v3242 = vld [vmem:[#allocation4 + $0x3e8] sm:$0xff]
    %v3243 = vld [vmem:[#allocation4 + $0x3f0] sm:$0xff]
    %v3244 = vld [vmem:[#allocation4 + $0x3f8] sm:$0xff]
    %v3245 = vld [vmem:[#allocation4 + $0x400] sm:$0xff]
    %v3246 = vld [vmem:[#allocation4 + $0x408] sm:$0xff]
    %v3247 = vld [vmem:[#allocation4 + $0x410] sm:$0xff]
    %v3248 = vld [vmem:[#allocation4 + $0x418] sm:$0xff]
    %v3249 = vld [vmem:[#allocation4 + $0x420] sm:$0xff]
    %v3250 = vld [vmem:[#allocation4 + $0x428] sm:$0xff]
    %v3251 = vld [vmem:[#allocation4 + $0x430] sm:$0xff]
    %v3252 = vld [vmem:[#allocation4 + $0x438] sm:$0xff]
    %v3253 = vld [vmem:[#allocation4 + $0x440] sm:$0xff]
    %v3254 = vld [vmem:[#allocation4 + $0x448] sm:$0xff]
    %v3255 = vld [vmem:[#allocation4 + $0x450] sm:$0xff]
    %v3256 = vld [vmem:[#allocation4 + $0x458] sm:$0xff]
    %v3257 = vld [vmem:[#allocation4 + $0x460] sm:$0xff]
    %v3258 = vld [vmem:[#allocation4 + $0x468] sm:$0xff]
    %v3259 = vld [vmem:[#allocation4 + $0x470] sm:$0xff]
    %v3260 = vld [vmem:[#allocation4 + $0x478] sm:$0xff]
    %v3261 = vld [vmem:[#allocation4 + $0x480] sm:$0xff]
    %v3262 = vld [vmem:[#allocation4 + $0x488] sm:$0xff]
    %v3263 = vld [vmem:[#allocation4 + $0x490] sm:$0xff]
    %v3264 = vld [vmem:[#allocation4 + $0x498] sm:$0xff]
    %v3265 = vld [vmem:[#allocation4 + $0x4a0] sm:$0xff]
    %v3266 = vld [vmem:[#allocation4 + $0x4a8] sm:$0xff]
    %v3267 = vld [vmem:[#allocation4 + $0x4b0] sm:$0xff]
    %v3268 = vld [vmem:[#allocation4 + $0x4b8] sm:$0xff]
    %v3269 = vld [vmem:[#allocation4 + $0x4c0] sm:$0xff]
    %v3270 = vld [vmem:[#allocation4 + $0x4c8] sm:$0xff]
    %v3271 = vld [vmem:[#allocation4 + $0x4d0] sm:$0xff]
    %v3272 = vld [vmem:[#allocation4 + $0x4d8] sm:$0xff]
    %v3273 = vld [vmem:[#allocation4 + $0x4e0] sm:$0xff]
    %v3274 = vld [vmem:[#allocation4 + $0x4e8] sm:$0xff]
    %v3275 = vld [vmem:[#allocation4 + $0x4f0] sm:$0xff]
    %v3276 = vld [vmem:[#allocation4 + $0x4f8] sm:$0xff]
    %v3277 = vld [vmem:[#allocation4 + $0x500] sm:$0xff]
    %v3278 = vld [vmem:[#allocation4 + $0x508] sm:$0xff]
    %v3279 = vld [vmem:[#allocation4 + $0x510] sm:$0xff]
    %v3280 = vld [vmem:[#allocation4 + $0x518] sm:$0xff]
    %v3281 = vld [vmem:[#allocation4 + $0x520] sm:$0xff]
    %v3282 = vld [vmem:[#allocation4 + $0x528] sm:$0xff]
    %v3283 = vld [vmem:[#allocation4 + $0x530] sm:$0xff]
    %v3284 = vld [vmem:[#allocation4 + $0x538] sm:$0xff]
    %v3285 = vld [vmem:[#allocation4 + $0x540] sm:$0xff]
    %v3286 = vld [vmem:[#allocation4 + $0x548] sm:$0xff]
    %v3287 = vld [vmem:[#allocation4 + $0x550] sm:$0xff]
    %v3288 = vld [vmem:[#allocation4 + $0x558] sm:$0xff]
    %v3289 = vld [vmem:[#allocation4 + $0x560] sm:$0xff]
    %v3290 = vld [vmem:[#allocation4 + $0x568] sm:$0xff]
    %v3291 = vld [vmem:[#allocation4 + $0x570] sm:$0xff]
    %v3292 = vld [vmem:[#allocation4 + $0x578] sm:$0xff]
    %v3293 = vsel %vm1237, %v3194, 0
    %3295 = vmatprep.subr.mxu0 %v3198
    %3296 = vmatpush1.msra.mxu0 %v3197
    %3297 = vmatprep.subr.mxu0 %v3202
    %3298 = vmatpush1.msra.mxu0 %v3201
    %3299 = vmatprep.subr.mxu0 %v3206
    %3300 = vmatpush1.msra.mxu0 %v3205
    %3301 = vmatprep.subr.mxu0 %v3210
    %3302 = vmatpush1.msra.mxu0 %v3209
    %3303 = vmatprep.subr.mxu0 %v3214
    %3304 = vmatpush1.msra.mxu0 %v3213
    %3305 = vmatprep.subr.mxu0 %v3218
    %3306 = vmatpush1.msra.mxu0 %v3217
    %3307 = vmatprep.subr.mxu0 %v3222
    %3308 = vmatpush1.msra.mxu0 %v3221
    %3309 = vmatprep.subr.mxu0 %v3226
    %3310 = vmatpush1.msra.mxu0 %v3225
    %3311 = vmatprep.subr.mxu0 %v3230
    %3312 = vmatpush1.msra.mxu0 %v3229
    %3313 = vmatprep.subr.mxu0 %v3234
    %3314 = vmatpush1.msra.mxu0 %v3233
    %3315 = vmatprep.subr.mxu0 %v3238
    %3316 = vmatpush1.msra.mxu0 %v3237
    %3317 = vmatprep.subr.mxu0 %v3242
    %3318 = vmatpush1.msra.mxu0 %v3241
    %3319 = vmatprep.subr.mxu0 %v3246
    %3320 = vmatpush1.msra.mxu0 %v3245
    %3321 = vmatprep.subr.mxu0 %v3250
    %3322 = vmatpush1.msra.mxu0 %v3249
    %3323 = vmatprep.subr.mxu0 %v3254
    %3324 = vmatpush1.msra.mxu0 %v3253
    %3325 = vmatprep.subr.mxu0 %v3258
    %3326 = vmatpush1.msra.mxu0 %v3257
    %3327 = vmatprep.subr.mxu0 %v3262
    %3328 = vmatpush1.msra.mxu0 %v3261
    %3329 = vmatprep.subr.mxu0 %v3266
    %3330 = vmatpush1.msra.mxu0 %v3265
    %3331 = vmatprep.subr.mxu0 %v3270
    %3332 = vmatpush1.msra.mxu0 %v3269
    %3333 = vmatprep.subr.mxu0 %v3274
    %3334 = vmatpush1.msra.mxu0 %v3273
    %3335 = vmatprep.subr.mxu0 %v3278
    %3336 = vmatpush1.msra.mxu0 %v3277
    %3337 = vmatprep.subr.mxu0 %v3282
    %3338 = vmatpush1.msra.mxu0 %v3281
    %3339 = vmatprep.subr.mxu0 %v3286
    %3340 = vmatpush1.msra.mxu0 %v3285
    %3341 = vmatprep.subr.mxu0 %v3290
    %3342 = vmatpush1.msra.mxu0 %v3289
    %3343 = vmatprep.subr.mxu0 0.0
    %3344 = vmatpush1.msra.mxu0 0.0
    %3345 = vmatprep.subr.mxu0 0.0
    %3346 = vmatpush1.msra.mxu0 0.0
    %3347 = vmatprep.subr.mxu0 0.0
    %3348 = vmatpush1.msra.mxu0 0.0
    %3349 = vmatprep.subr.mxu0 0.0
    %3350 = vmatpush1.msra.mxu0 0.0
    %3351 = vmatprep.subr.mxu0 0.0
    %3352 = vmatpush1.msra.mxu0 0.0
    %3353 = vmatprep.subr.mxu0 0.0
    %3354 = vmatpush1.msra.mxu0 0.0
    %3355 = vmatprep.subr.mxu0 0.0
    %3356 = vmatpush1.msra.mxu0 0.0
    %3357 = vmatprep.subr.mxu0 0.0
    %3358 = vmatpush1.msra.mxu0 0.0
    %3359 = vmatprep.mubr.f32.mxu0 %v3293
    %3360 = vmatmul.mubr.f32.gmra.mrb[0].mxu0 %v3196
    %v3361 = vpop.f32.mrb[0].mxu0
    %v3362 = vadd.f32 %v55, %v3361
    %v3363 = vpop.f32.mrb[0].mxu0
    %v3364 = vadd.f32 %v59, %v3363
    %3365 = vdwg.mxu0
    %3366 = vmatprep.subr.mxu0 %v3200
    %3367 = vmatpush1.msra.mxu0 %v3199
    %3368 = vmatprep.subr.mxu0 %v3204
    %3369 = vmatpush1.msra.mxu0 %v3203
    %3370 = vmatprep.subr.mxu0 %v3208
    %3371 = vmatpush1.msra.mxu0 %v3207
    %3372 = vmatprep.subr.mxu0 %v3212
    %3373 = vmatpush1.msra.mxu0 %v3211
    %3374 = vmatprep.subr.mxu0 %v3216
    %3375 = vmatpush1.msra.mxu0 %v3215
    %3376 = vmatprep.subr.mxu0 %v3220
    %3377 = vmatpush1.msra.mxu0 %v3219
    %3378 = vmatprep.subr.mxu0 %v3224
    %3379 = vmatpush1.msra.mxu0 %v3223
    %3380 = vmatprep.subr.mxu0 %v3228
    %3381 = vmatpush1.msra.mxu0 %v3227
    %3382 = vmatprep.subr.mxu0 %v3232
    %3383 = vmatpush1.msra.mxu0 %v3231
    %3384 = vmatprep.subr.mxu0 %v3236
    %3385 = vmatpush1.msra.mxu0 %v3235
    %3386 = vmatprep.subr.mxu0 %v3240
    %3387 = vmatpush1.msra.mxu0 %v3239
    %3388 = vmatprep.subr.mxu0 %v3244
    %3389 = vmatpush1.msra.mxu0 %v3243
    %3390 = vmatprep.subr.mxu0 %v3248
    %3391 = vmatpush1.msra.mxu0 %v3247
    %3392 = vmatprep.subr.mxu0 %v3252
    %3393 = vmatpush1.msra.mxu0 %v3251
    %3394 = vmatprep.subr.mxu0 %v3256
    %3395 = vmatpush1.msra.mxu0 %v3255
    %3396 = vmatprep.subr.mxu0 %v3260
    %3397 = vmatpush1.msra.mxu0 %v3259
    %3398 = vmatprep.subr.mxu0 %v3264
    %3399 = vmatpush1.msra.mxu0 %v3263
    %3400 = vmatprep.subr.mxu0 %v3268
    %3401 = vmatpush1.msra.mxu0 %v3267
    %3402 = vmatprep.subr.mxu0 %v3272
    %3403 = vmatpush1.msra.mxu0 %v3271
    %3404 = vmatprep.subr.mxu0 %v3276
    %3405 = vmatpush1.msra.mxu0 %v3275
    %3406 = vmatprep.subr.mxu0 %v3280
    %3407 = vmatpush1.msra.mxu0 %v3279
    %3408 = vmatprep.subr.mxu0 %v3284
    %3409 = vmatpush1.msra.mxu0 %v3283
    %3410 = vmatprep.subr.mxu0 %v3288
    %3411 = vmatpush1.msra.mxu0 %v3287
    %3412 = vmatprep.subr.mxu0 %v3292
    %3413 = vmatpush1.msra.mxu0 %v3291
    %3414 = vmatprep.subr.mxu0 0.0
    %3415 = vmatpush1.msra.mxu0 0.0
    %3416 = vmatprep.subr.mxu0 0.0
    %3417 = vmatpush1.msra.mxu0 0.0
    %3418 = vmatprep.subr.mxu0 0.0
    %3419 = vmatpush1.msra.mxu0 0.0
    %3420 = vmatprep.subr.mxu0 0.0
    %3421 = vmatpush1.msra.mxu0 0.0
    %3422 = vmatprep.subr.mxu0 0.0
    %3423 = vmatpush1.msra.mxu0 0.0
    %3424 = vmatprep.subr.mxu0 0.0
    %3425 = vmatpush1.msra.mxu0 0.0
    %3426 = vmatprep.subr.mxu0 0.0
    %3427 = vmatpush1.msra.mxu0 0.0
    %3428 = vmatprep.subr.mxu0 0.0
    %3429 = vmatpush1.msra.mxu0 0.0
    %3430 = vmatprep.mubr.f32.mxu0 %v3293
    %3431 = vmatmul.mubr.f32.gmra.mrb[0].mxu0 %v3196
    %v3432 = vpop.f32.mrb[0].mxu0
    %v3433 = vadd.f32 %v63, %v3432
    %v3434 = vpop.f32.mrb[0].mxu0
    %v3435 = vadd.f32 %v67, %v3434
    %3436 = vdwg.mxu0
    %v3437 = vxor.u32 %v3362, 2147483648
    %v3438 = vxor.u32 %v3364, 2147483648
    %v3439 = vmul.f32 %v3437, 1.442695
    %v3440 = vpow.pop %v3439
    %v3441 = vmul.f32 %v3438, 1.442695
    %v3442 = vpow.pop %v3441
    %v3443 = vadd.f32 %v3440, 1.0
    %v3444 = vadd.f32 %v3442, 1.0
    %v3445 = vrcp.pop %v3443
    %v3446 = vmul.f32 1.0, %v3445
    %v3447 = vrcp.pop %v3444
    %v3448 = vmul.f32 1.0, %v3447
    %v3449 = vtanh.pop %v3433
    %v3450 = vxor.u32 %v3435, 2147483648
    %v3451 = vmul.f32 %v3450, 1.442695
    %v3452 = vpow.pop %v3451
    %v3453 = vadd.f32 %v3452, 1.0
    %v3454 = vrcp.pop %v3453
    %v3455 = vmul.f32 1.0, %v3454
    %v3456 = vmul.f32 %v3448, %v2773
    %v3457 = vmul.f32 %v3446, %v3449
    %v3458 = vadd.f32 %v3456, %v3457
    %v3459 = vtanh.pop %v3458
    %v3460 = vmul.f32 %v3455, %v3459
    %3461 = vst [vmem:[#allocation3 + $0x18] sm:$0xff] %v3460
    %v3462 = vld [vmem:[#allocation2 + $0xc0] sm:$0xff]
    %v3463 = vld [vmem:[#allocation2 + $0xc8] sm:$0xff]
    %v3464 = vld [vmem:[#allocation2 + $0xd0] sm:$0xff]
    %v3465 = vld [vmem:[#allocation2 + $0xd8] sm:$0xff]
    %v3466 = vld [vmem:[#allocation4 + $0x80] sm:$0xff]
    %v3467 = vld [vmem:[#allocation4 + $0x88] sm:$0xff]
    %v3468 = vld [vmem:[#allocation4 + $0x90] sm:$0xff]
    %v3469 = vld [vmem:[#allocation4 + $0x98] sm:$0xff]
    %v3470 = vld [vmem:[#allocation4 + $0xa0] sm:$0xff]
    %v3471 = vld [vmem:[#allocation4 + $0xa8] sm:$0xff]
    %v3472 = vld [vmem:[#allocation4 + $0xb0] sm:$0xff]
    %v3473 = vld [vmem:[#allocation4 + $0xb8] sm:$0xff]
    %v3474 = vld [vmem:[#allocation4 + $0xc0] sm:$0xff]
    %v3475 = vld [vmem:[#allocation4 + $0xc8] sm:$0xff]
    %v3476 = vld [vmem:[#allocation4 + $0xd0] sm:$0xff]
    %v3477 = vld [vmem:[#allocation4 + $0xd8] sm:$0xff]
    %v3478 = vld [vmem:[#allocation4 + $0xe0] sm:$0xff]
    %v3479 = vld [vmem:[#allocation4 + $0xe8] sm:$0xff]
    %v3480 = vld [vmem:[#allocation4 + $0xf0] sm:$0xff]
    %v3481 = vld [vmem:[#allocation4 + $0xf8] sm:$0xff]
    %v3483 = vsel %vm119, %v2969, 0
    %3485 = vmatprep.subr.mxu0 %v3467
    %3486 = vmatpush1.msra.mxu0 %v3466
    %3487 = vmatprep.subr.mxu0 %v3471
    %3488 = vmatpush1.msra.mxu0 %v3470
    %3489 = vmatprep.subr.mxu0 %v3475
    %3490 = vmatpush1.msra.mxu0 %v3474
    %3491 = vmatprep.subr.mxu0 %v3479
    %3492 = vmatpush1.msra.mxu0 %v3478
    %3493 = vmatprep.subr.mxu0 0.0
    %3494 = vmatpush1.msra.mxu0 0.0
    %3495 = vmatprep.subr.mxu0 0.0
    %3496 = vmatpush1.msra.mxu0 0.0
    %3497 = vmatprep.subr.mxu0 0.0
    %3498 = vmatpush1.msra.mxu0 0.0
    %3499 = vmatprep.subr.mxu0 0.0
    %3500 = vmatpush1.msra.mxu0 0.0
    %3501 = vmatprep.subr.mxu0 0.0
    %3502 = vmatpush1.msra.mxu0 0.0
    %3503 = vmatprep.subr.mxu0 0.0
    %3504 = vmatpush1.msra.mxu0 0.0
    %3505 = vmatprep.subr.mxu0 0.0
    %3506 = vmatpush1.msra.mxu0 0.0
    %3507 = vmatprep.subr.mxu0 0.0
    %3508 = vmatpush1.msra.mxu0 0.0
    %3509 = vmatprep.subr.mxu0 0.0
    %3510 = vmatpush1.msra.mxu0 0.0
    %3511 = vmatprep.subr.mxu0 0.0
    %3512 = vmatpush1.msra.mxu0 0.0
    %3513 = vmatprep.subr.mxu0 0.0
    %3514 = vmatpush1.msra.mxu0 0.0
    %3515 = vmatprep.subr.mxu0 0.0
    %3516 = vmatpush1.msra.mxu0 0.0
    %3517 = vmatprep.subr.mxu0 0.0
    %3518 = vmatpush1.msra.mxu0 0.0
    %3519 = vmatprep.subr.mxu0 0.0
    %3520 = vmatpush1.msra.mxu0 0.0
    %3521 = vmatprep.subr.mxu0 0.0
    %3522 = vmatpush1.msra.mxu0 0.0
    %3523 = vmatprep.subr.mxu0 0.0
    %3524 = vmatpush1.msra.mxu0 0.0
    %3525 = vmatprep.subr.mxu0 0.0
    %3526 = vmatpush1.msra.mxu0 0.0
    %3527 = vmatprep.subr.mxu0 0.0
    %3528 = vmatpush1.msra.mxu0 0.0
    %3529 = vmatprep.subr.mxu0 0.0
    %3530 = vmatpush1.msra.mxu0 0.0
    %3531 = vmatprep.subr.mxu0 0.0
    %3532 = vmatpush1.msra.mxu0 0.0
    %3533 = vmatprep.subr.mxu0 0.0
    %3534 = vmatpush1.msra.mxu0 0.0
    %3535 = vmatprep.subr.mxu0 0.0
    %3536 = vmatpush1.msra.mxu0 0.0
    %3537 = vmatprep.subr.mxu0 0.0
    %3538 = vmatpush1.msra.mxu0 0.0
    %3539 = vmatprep.subr.mxu0 0.0
    %3540 = vmatpush1.msra.mxu0 0.0
    %3541 = vmatprep.subr.mxu0 0.0
    %3542 = vmatpush1.msra.mxu0 0.0
    %3543 = vmatprep.subr.mxu0 0.0
    %3544 = vmatpush1.msra.mxu0 0.0
    %3545 = vmatprep.subr.mxu0 0.0
    %3546 = vmatpush1.msra.mxu0 0.0
    %3547 = vmatprep.subr.mxu0 0.0
    %3548 = vmatpush1.msra.mxu0 0.0
    %3549 = vmatprep.mubr.f32.mxu0 0.0
    %3550 = vmatmul.mubr.f32.gmra.mrb[0].mxu0 %v3483
    %v3551 = vpop.f32.mrb[0].mxu0
    %v3552 = vadd.f32 0.0, %v3551
    %v3553 = vpop.f32.mrb[0].mxu0
    %v3554 = vadd.f32 0.0, %v3553
    %3555 = vdwg.mxu0
    %3556 = vmatprep.subr.mxu0 %v3469
    %3557 = vmatpush1.msra.mxu0 %v3468
    %3558 = vmatprep.subr.mxu0 %v3473
    %3559 = vmatpush1.msra.mxu0 %v3472
    %3560 = vmatprep.subr.mxu0 %v3477
    %3561 = vmatpush1.msra.mxu0 %v3476
    %3562 = vmatprep.subr.mxu0 %v3481
    %3563 = vmatpush1.msra.mxu0 %v3480
    %3564 = vmatprep.subr.mxu0 0.0
    %3565 = vmatpush1.msra.mxu0 0.0
    %3566 = vmatprep.subr.mxu0 0.0
    %3567 = vmatpush1.msra.mxu0 0.0
    %3568 = vmatprep.subr.mxu0 0.0
    %3569 = vmatpush1.msra.mxu0 0.0
    %3570 = vmatprep.subr.mxu0 0.0
    %3571 = vmatpush1.msra.mxu0 0.0
    %3572 = vmatprep.subr.mxu0 0.0
    %3573 = vmatpush1.msra.mxu0 0.0
    %3574 = vmatprep.subr.mxu0 0.0
    %3575 = vmatpush1.msra.mxu0 0.0
    %3576 = vmatprep.subr.mxu0 0.0
    %3577 = vmatpush1.msra.mxu0 0.0
    %3578 = vmatprep.subr.mxu0 0.0
    %3579 = vmatpush1.msra.mxu0 0.0
    %3580 = vmatprep.subr.mxu0 0.0
    %3581 = vmatpush1.msra.mxu0 0.0
    %3582 = vmatprep.subr.mxu0 0.0
    %3583 = vmatpush1.msra.mxu0 0.0
    %3584 = vmatprep.subr.mxu0 0.0
    %3585 = vmatpush1.msra.mxu0 0.0
    %3586 = vmatprep.subr.mxu0 0.0
    %3587 = vmatpush1.msra.mxu0 0.0
    %3588 = vmatprep.subr.mxu0 0.0
    %3589 = vmatpush1.msra.mxu0 0.0
    %3590 = vmatprep.subr.mxu0 0.0
    %3591 = vmatpush1.msra.mxu0 0.0
    %3592 = vmatprep.subr.mxu0 0.0
    %3593 = vmatpush1.msra.mxu0 0.0
    %3594 = vmatprep.subr.mxu0 0.0
    %3595 = vmatpush1.msra.mxu0 0.0
    %3596 = vmatprep.subr.mxu0 0.0
    %3597 = vmatpush1.msra.mxu0 0.0
    %3598 = vmatprep.subr.mxu0 0.0
    %3599 = vmatpush1.msra.mxu0 0.0
    %3600 = vmatprep.subr.mxu0 0.0
    %3601 = vmatpush1.msra.mxu0 0.0
    %3602 = vmatprep.subr.mxu0 0.0
    %3603 = vmatpush1.msra.mxu0 0.0
    %3604 = vmatprep.subr.mxu0 0.0
    %3605 = vmatpush1.msra.mxu0 0.0
    %3606 = vmatprep.subr.mxu0 0.0
    %3607 = vmatpush1.msra.mxu0 0.0
    %3608 = vmatprep.subr.mxu0 0.0
    %3609 = vmatpush1.msra.mxu0 0.0
    %3610 = vmatprep.subr.mxu0 0.0
    %3611 = vmatpush1.msra.mxu0 0.0
    %3612 = vmatprep.subr.mxu0 0.0
    %3613 = vmatpush1.msra.mxu0 0.0
    %3614 = vmatprep.subr.mxu0 0.0
    %3615 = vmatpush1.msra.mxu0 0.0
    %3616 = vmatprep.subr.mxu0 0.0
    %3617 = vmatpush1.msra.mxu0 0.0
    %3618 = vmatprep.subr.mxu0 0.0
    %3619 = vmatpush1.msra.mxu0 0.0
    %3620 = vmatprep.mubr.f32.mxu0 0.0
    %3621 = vmatmul.mubr.f32.gmra.mrb[0].mxu0 %v3483
    %v3622 = vpop.f32.mrb[0].mxu0
    %v3623 = vadd.f32 0.0, %v3622
    %v3624 = vpop.f32.mrb[0].mxu0
    %v3625 = vadd.f32 0.0, %v3624
    %3626 = vdwg.mxu0
    %v3627 = vadd.f32 %v3462, %v3552
    %v3628 = vadd.f32 %v3463, %v3554
    %v3629 = vadd.f32 %v3464, %v3623
    %v3630 = vadd.f32 %v3465, %v3625
    %v3631 = vxor.u32 %v3627, 2147483648
    %v3632 = vxor.u32 %v3628, 2147483648
    %v3633 = vmul.f32 %v3631, 1.442695
    %v3634 = vpow.pop %v3633
    %v3635 = vmul.f32 %v3632, 1.442695
    %v3636 = vpow.pop %v3635
    %v3637 = vadd.f32 %v3634, 1.0
    %v3638 = vadd.f32 %v3636, 1.0
    %v3639 = vrcp.pop %v3637
    %v3640 = vmul.f32 1.0, %v3639
    %v3641 = vrcp.pop %v3638
    %v3642 = vmul.f32 1.0, %v3641
    %v3643 = vtanh.pop %v3629
    %v3644 = vxor.u32 %v3630, 2147483648
    %v3645 = vmul.f32 %v3644, 1.442695
    %v3646 = vpow.pop %v3645
    %v3647 = vadd.f32 %v3646, 1.0
    %v3648 = vrcp.pop %v3647
    %v3649 = vmul.f32 1.0, %v3648
    %v3650 = vmul.f32 %v3642, %v2967
    %v3651 = vmul.f32 %v3640, %v3643
    %v3652 = vadd.f32 %v3650, %v3651
    %v3653 = vtanh.pop %v3652
    %v3654 = vmul.f32 %v3649, %v3653
    %3656 = vrot.lane.b32.xlu0 %v3191, 32
    %v3657 = vpop.permute.xlu0 %3656
    %v3659 = vsel %vm119, %v2969, %v3657
    %v3660 = vld [vmem:[#allocation4 + $0x100] sm:$0xff]
    %v3661 = vld [vmem:[#allocation4 + $0x108] sm:$0xff]
    %v3662 = vld [vmem:[#allocation4 + $0x110] sm:$0xff]
    %v3663 = vld [vmem:[#allocation4 + $0x118] sm:$0xff]
    %v3664 = vld [vmem:[#allocation4 + $0x120] sm:$0xff]
    %v3665 = vld [vmem:[#allocation4 + $0x128] sm:$0xff]
    %v3666 = vld [vmem:[#allocation4 + $0x130] sm:$0xff]
    %v3667 = vld [vmem:[#allocation4 + $0x138] sm:$0xff]
    %v3668 = vld [vmem:[#allocation4 + $0x140] sm:$0xff]
    %v3669 = vld [vmem:[#allocation4 + $0x148] sm:$0xff]
    %v3670 = vld [vmem:[#allocation4 + $0x150] sm:$0xff]
    %v3671 = vld [vmem:[#allocation4 + $0x158] sm:$0xff]
    %v3672 = vld [vmem:[#allocation4 + $0x160] sm:$0xff]
    %v3673 = vld [vmem:[#allocation4 + $0x168] sm:$0xff]
    %v3674 = vld [vmem:[#allocation4 + $0x170] sm:$0xff]
    %v3675 = vld [vmem:[#allocation4 + $0x178] sm:$0xff]
    %v3676 = vld [vmem:[#allocation4 + $0x180] sm:$0xff]
    %v3677 = vld [vmem:[#allocation4 + $0x188] sm:$0xff]
    %v3678 = vld [vmem:[#allocation4 + $0x190] sm:$0xff]
    %v3679 = vld [vmem:[#allocation4 + $0x198] sm:$0xff]
    %v3680 = vld [vmem:[#allocation4 + $0x1a0] sm:$0xff]
    %v3681 = vld [vmem:[#allocation4 + $0x1a8] sm:$0xff]
    %v3682 = vld [vmem:[#allocation4 + $0x1b0] sm:$0xff]
    %v3683 = vld [vmem:[#allocation4 + $0x1b8] sm:$0xff]
    %v3684 = vld [vmem:[#allocation4 + $0x1c0] sm:$0xff]
    %v3685 = vld [vmem:[#allocation4 + $0x1c8] sm:$0xff]
    %v3686 = vld [vmem:[#allocation4 + $0x1d0] sm:$0xff]
    %v3687 = vld [vmem:[#allocation4 + $0x1d8] sm:$0xff]
    %v3688 = vld [vmem:[#allocation4 + $0x1e0] sm:$0xff]
    %v3689 = vld [vmem:[#allocation4 + $0x1e8] sm:$0xff]
    %v3690 = vld [vmem:[#allocation4 + $0x1f0] sm:$0xff]
    %v3691 = vld [vmem:[#allocation4 + $0x1f8] sm:$0xff]
    %v3692 = vld [vmem:[#allocation4 + $0x200] sm:$0xff]
    %v3693 = vld [vmem:[#allocation4 + $0x208] sm:$0xff]
    %v3694 = vld [vmem:[#allocation4 + $0x210] sm:$0xff]
    %v3695 = vld [vmem:[#allocation4 + $0x218] sm:$0xff]
    %v3696 = vld [vmem:[#allocation4 + $0x220] sm:$0xff]
    %v3697 = vld [vmem:[#allocation4 + $0x228] sm:$0xff]
    %v3698 = vld [vmem:[#allocation4 + $0x230] sm:$0xff]
    %v3699 = vld [vmem:[#allocation4 + $0x238] sm:$0xff]
    %v3700 = vld [vmem:[#allocation4 + $0x240] sm:$0xff]
    %v3701 = vld [vmem:[#allocation4 + $0x248] sm:$0xff]
    %v3702 = vld [vmem:[#allocation4 + $0x250] sm:$0xff]
    %v3703 = vld [vmem:[#allocation4 + $0x258] sm:$0xff]
    %v3704 = vld [vmem:[#allocation4 + $0x260] sm:$0xff]
    %v3705 = vld [vmem:[#allocation4 + $0x268] sm:$0xff]
    %v3706 = vld [vmem:[#allocation4 + $0x270] sm:$0xff]
    %v3707 = vld [vmem:[#allocation4 + $0x278] sm:$0xff]
    %v3709 = vsel %vm1035, %v3659, 0
    %3711 = vmatprep.subr.mxu0 %v3661
    %3712 = vmatpush1.msra.mxu0 %v3660
    %3713 = vmatprep.subr.mxu0 %v3665
    %3714 = vmatpush1.msra.mxu0 %v3664
    %3715 = vmatprep.subr.mxu0 %v3669
    %3716 = vmatpush1.msra.mxu0 %v3668
    %3717 = vmatprep.subr.mxu0 %v3673
    %3718 = vmatpush1.msra.mxu0 %v3672
    %3719 = vmatprep.subr.mxu0 %v3677
    %3720 = vmatpush1.msra.mxu0 %v3676
    %3721 = vmatprep.subr.mxu0 %v3681
    %3722 = vmatpush1.msra.mxu0 %v3680
    %3723 = vmatprep.subr.mxu0 %v3685
    %3724 = vmatpush1.msra.mxu0 %v3684
    %3725 = vmatprep.subr.mxu0 %v3689
    %3726 = vmatpush1.msra.mxu0 %v3688
    %3727 = vmatprep.subr.mxu0 %v3693
    %3728 = vmatpush1.msra.mxu0 %v3692
    %3729 = vmatprep.subr.mxu0 %v3697
    %3730 = vmatpush1.msra.mxu0 %v3696
    %3731 = vmatprep.subr.mxu0 %v3701
    %3732 = vmatpush1.msra.mxu0 %v3700
    %3733 = vmatprep.subr.mxu0 %v3705
    %3734 = vmatpush1.msra.mxu0 %v3704
    %3735 = vmatprep.subr.mxu0 0.0
    %3736 = vmatpush1.msra.mxu0 0.0
    %3737 = vmatprep.subr.mxu0 0.0
    %3738 = vmatpush1.msra.mxu0 0.0
    %3739 = vmatprep.subr.mxu0 0.0
    %3740 = vmatpush1.msra.mxu0 0.0
    %3741 = vmatprep.subr.mxu0 0.0
    %3742 = vmatpush1.msra.mxu0 0.0
    %3743 = vmatprep.subr.mxu0 0.0
    %3744 = vmatpush1.msra.mxu0 0.0
    %3745 = vmatprep.subr.mxu0 0.0
    %3746 = vmatpush1.msra.mxu0 0.0
    %3747 = vmatprep.subr.mxu0 0.0
    %3748 = vmatpush1.msra.mxu0 0.0
    %3749 = vmatprep.subr.mxu0 0.0
    %3750 = vmatpush1.msra.mxu0 0.0
    %3751 = vmatprep.subr.mxu0 0.0
    %3752 = vmatpush1.msra.mxu0 0.0
    %3753 = vmatprep.subr.mxu0 0.0
    %3754 = vmatpush1.msra.mxu0 0.0
    %3755 = vmatprep.subr.mxu0 0.0
    %3756 = vmatpush1.msra.mxu0 0.0
    %3757 = vmatprep.subr.mxu0 0.0
    %3758 = vmatpush1.msra.mxu0 0.0
    %3759 = vmatprep.subr.mxu0 0.0
    %3760 = vmatpush1.msra.mxu0 0.0
    %3761 = vmatprep.subr.mxu0 0.0
    %3762 = vmatpush1.msra.mxu0 0.0
    %3763 = vmatprep.subr.mxu0 0.0
    %3764 = vmatpush1.msra.mxu0 0.0
    %3765 = vmatprep.subr.mxu0 0.0
    %3766 = vmatpush1.msra.mxu0 0.0
    %3767 = vmatprep.subr.mxu0 0.0
    %3768 = vmatpush1.msra.mxu0 0.0
    %3769 = vmatprep.subr.mxu0 0.0
    %3770 = vmatpush1.msra.mxu0 0.0
    %3771 = vmatprep.subr.mxu0 0.0
    %3772 = vmatpush1.msra.mxu0 0.0
    %3773 = vmatprep.subr.mxu0 0.0
    %3774 = vmatpush1.msra.mxu0 0.0
    %3775 = vmatprep.mubr.f32.mxu0 0.0
    %3776 = vmatmul.mubr.f32.gmra.mrb[0].mxu0 %v3709
    %v3777 = vpop.f32.mrb[0].mxu0
    %v3778 = vadd.f32 %v32, %v3777
    %v3779 = vpop.f32.mrb[0].mxu0
    %v3780 = vadd.f32 %v36, %v3779
    %3781 = vdwg.mxu0
    %3782 = vmatprep.subr.mxu0 %v3663
    %3783 = vmatpush1.msra.mxu0 %v3662
    %3784 = vmatprep.subr.mxu0 %v3667
    %3785 = vmatpush1.msra.mxu0 %v3666
    %3786 = vmatprep.subr.mxu0 %v3671
    %3787 = vmatpush1.msra.mxu0 %v3670
    %3788 = vmatprep.subr.mxu0 %v3675
    %3789 = vmatpush1.msra.mxu0 %v3674
    %3790 = vmatprep.subr.mxu0 %v3679
    %3791 = vmatpush1.msra.mxu0 %v3678
    %3792 = vmatprep.subr.mxu0 %v3683
    %3793 = vmatpush1.msra.mxu0 %v3682
    %3794 = vmatprep.subr.mxu0 %v3687
    %3795 = vmatpush1.msra.mxu0 %v3686
    %3796 = vmatprep.subr.mxu0 %v3691
    %3797 = vmatpush1.msra.mxu0 %v3690
    %3798 = vmatprep.subr.mxu0 %v3695
    %3799 = vmatpush1.msra.mxu0 %v3694
    %3800 = vmatprep.subr.mxu0 %v3699
    %3801 = vmatpush1.msra.mxu0 %v3698
    %3802 = vmatprep.subr.mxu0 %v3703
    %3803 = vmatpush1.msra.mxu0 %v3702
    %3804 = vmatprep.subr.mxu0 %v3707
    %3805 = vmatpush1.msra.mxu0 %v3706
    %3806 = vmatprep.subr.mxu0 0.0
    %3807 = vmatpush1.msra.mxu0 0.0
    %3808 = vmatprep.subr.mxu0 0.0
    %3809 = vmatpush1.msra.mxu0 0.0
    %3810 = vmatprep.subr.mxu0 0.0
    %3811 = vmatpush1.msra.mxu0 0.0
    %3812 = vmatprep.subr.mxu0 0.0
    %3813 = vmatpush1.msra.mxu0 0.0
    %3814 = vmatprep.subr.mxu0 0.0
    %3815 = vmatpush1.msra.mxu0 0.0
    %3816 = vmatprep.subr.mxu0 0.0
    %3817 = vmatpush1.msra.mxu0 0.0
    %3818 = vmatprep.subr.mxu0 0.0
    %3819 = vmatpush1.msra.mxu0 0.0
    %3820 = vmatprep.subr.mxu0 0.0
    %3821 = vmatpush1.msra.mxu0 0.0
    %3822 = vmatprep.subr.mxu0 0.0
    %3823 = vmatpush1.msra.mxu0 0.0
    %3824 = vmatprep.subr.mxu0 0.0
    %3825 = vmatpush1.msra.mxu0 0.0
    %3826 = vmatprep.subr.mxu0 0.0
    %3827 = vmatpush1.msra.mxu0 0.0
    %3828 = vmatprep.subr.mxu0 0.0
    %3829 = vmatpush1.msra.mxu0 0.0
    %3830 = vmatprep.subr.mxu0 0.0
    %3831 = vmatpush1.msra.mxu0 0.0
    %3832 = vmatprep.subr.mxu0 0.0
    %3833 = vmatpush1.msra.mxu0 0.0
    %3834 = vmatprep.subr.mxu0 0.0
    %3835 = vmatpush1.msra.mxu0 0.0
    %3836 = vmatprep.subr.mxu0 0.0
    %3837 = vmatpush1.msra.mxu0 0.0
    %3838 = vmatprep.subr.mxu0 0.0
    %3839 = vmatpush1.msra.mxu0 0.0
    %3840 = vmatprep.subr.mxu0 0.0
    %3841 = vmatpush1.msra.mxu0 0.0
    %3842 = vmatprep.subr.mxu0 0.0
    %3843 = vmatpush1.msra.mxu0 0.0
    %3844 = vmatprep.subr.mxu0 0.0
    %3845 = vmatpush1.msra.mxu0 0.0
    %3846 = vmatprep.mubr.f32.mxu0 0.0
    %3847 = vmatmul.mubr.f32.gmra.mrb[0].mxu0 %v3709
    %v3848 = vpop.f32.mrb[0].mxu0
    %v3849 = vadd.f32 %v40, %v3848
    %v3850 = vpop.f32.mrb[0].mxu0
    %v3851 = vadd.f32 %v44, %v3850
    %3852 = vdwg.mxu0
    %v3853 = vxor.u32 %v3778, 2147483648
    %v3854 = vxor.u32 %v3780, 2147483648
    %v3855 = vmul.f32 %v3853, 1.442695
    %v3856 = vpow.pop %v3855
    %v3857 = vmul.f32 %v3854, 1.442695
    %v3858 = vpow.pop %v3857
    %v3859 = vadd.f32 %v3856, 1.0
    %v3860 = vadd.f32 %v3858, 1.0
    %v3861 = vrcp.pop %v3859
    %v3862 = vmul.f32 1.0, %v3861
    %v3863 = vrcp.pop %v3860
    %v3864 = vmul.f32 1.0, %v3863
    %v3865 = vtanh.pop %v3849
    %v3866 = vxor.u32 %v3851, 2147483648
    %v3867 = vmul.f32 %v3866, 1.442695
    %v3868 = vpow.pop %v3867
    %v3869 = vadd.f32 %v3868, 1.0
    %v3870 = vrcp.pop %v3869
    %v3871 = vmul.f32 1.0, %v3870
    %v3872 = vmul.f32 %v3864, %v3189
    %v3873 = vmul.f32 %v3862, %v3865
    %v3874 = vadd.f32 %v3872, %v3873
    %v3875 = vtanh.pop %v3874
    %v3876 = vmul.f32 %v3871, %v3875
    %3878 = vrot.lane.b32.xlu0 %v3460, 64
    %v3879 = vpop.permute.xlu0 %3878
    %v3881 = vsel %vm1237, %v3191, %v3879
    %v3882 = vld [vmem:[#allocation4 + $0x280] sm:$0xff]
    %v3883 = vld [vmem:[#allocation4 + $0x288] sm:$0xff]
    %v3884 = vld [vmem:[#allocation4 + $0x290] sm:$0xff]
    %v3885 = vld [vmem:[#allocation4 + $0x298] sm:$0xff]
    %v3886 = vld [vmem:[#allocation4 + $0x2a0] sm:$0xff]
    %v3887 = vld [vmem:[#allocation4 + $0x2a8] sm:$0xff]
    %v3888 = vld [vmem:[#allocation4 + $0x2b0] sm:$0xff]
    %v3889 = vld [vmem:[#allocation4 + $0x2b8] sm:$0xff]
    %v3890 = vld [vmem:[#allocation4 + $0x2c0] sm:$0xff]
    %v3891 = vld [vmem:[#allocation4 + $0x2c8] sm:$0xff]
    %v3892 = vld [vmem:[#allocation4 + $0x2d0] sm:$0xff]
    %v3893 = vld [vmem:[#allocation4 + $0x2d8] sm:$0xff]
    %v3894 = vld [vmem:[#allocation4 + $0x2e0] sm:$0xff]
    %v3895 = vld [vmem:[#allocation4 + $0x2e8] sm:$0xff]
    %v3896 = vld [vmem:[#allocation4 + $0x2f0] sm:$0xff]
    %v3897 = vld [vmem:[#allocation4 + $0x2f8] sm:$0xff]
    %v3898 = vld [vmem:[#allocation4 + $0x300] sm:$0xff]
    %v3899 = vld [vmem:[#allocation4 + $0x308] sm:$0xff]
    %v3900 = vld [vmem:[#allocation4 + $0x310] sm:$0xff]
    %v3901 = vld [vmem:[#allocation4 + $0x318] sm:$0xff]
    %v3902 = vld [vmem:[#allocation4 + $0x320] sm:$0xff]
    %v3903 = vld [vmem:[#allocation4 + $0x328] sm:$0xff]
    %v3904 = vld [vmem:[#allocation4 + $0x330] sm:$0xff]
    %v3905 = vld [vmem:[#allocation4 + $0x338] sm:$0xff]
    %v3906 = vld [vmem:[#allocation4 + $0x340] sm:$0xff]
    %v3907 = vld [vmem:[#allocation4 + $0x348] sm:$0xff]
    %v3908 = vld [vmem:[#allocation4 + $0x350] sm:$0xff]
    %v3909 = vld [vmem:[#allocation4 + $0x358] sm:$0xff]
    %v3910 = vld [vmem:[#allocation4 + $0x360] sm:$0xff]
    %v3911 = vld [vmem:[#allocation4 + $0x368] sm:$0xff]
    %v3912 = vld [vmem:[#allocation4 + $0x370] sm:$0xff]
    %v3913 = vld [vmem:[#allocation4 + $0x378] sm:$0xff]
    %v3914 = vld [vmem:[#allocation4 + $0x380] sm:$0xff]
    %v3915 = vld [vmem:[#allocation4 + $0x388] sm:$0xff]
    %v3916 = vld [vmem:[#allocation4 + $0x390] sm:$0xff]
    %v3917 = vld [vmem:[#allocation4 + $0x398] sm:$0xff]
    %v3918 = vld [vmem:[#allocation4 + $0x3a0] sm:$0xff]
    %v3919 = vld [vmem:[#allocation4 + $0x3a8] sm:$0xff]
    %v3920 = vld [vmem:[#allocation4 + $0x3b0] sm:$0xff]
    %v3921 = vld [vmem:[#allocation4 + $0x3b8] sm:$0xff]
    %v3922 = vld [vmem:[#allocation4 + $0x3c0] sm:$0xff]
    %v3923 = vld [vmem:[#allocation4 + $0x3c8] sm:$0xff]
    %v3924 = vld [vmem:[#allocation4 + $0x3d0] sm:$0xff]
    %v3925 = vld [vmem:[#allocation4 + $0x3d8] sm:$0xff]
    %v3926 = vld [vmem:[#allocation4 + $0x3e0] sm:$0xff]
    %v3927 = vld [vmem:[#allocation4 + $0x3e8] sm:$0xff]
    %v3928 = vld [vmem:[#allocation4 + $0x3f0] sm:$0xff]
    %v3929 = vld [vmem:[#allocation4 + $0x3f8] sm:$0xff]
    %v3930 = vld [vmem:[#allocation4 + $0x400] sm:$0xff]
    %v3931 = vld [vmem:[#allocation4 + $0x408] sm:$0xff]
    %v3932 = vld [vmem:[#allocation4 + $0x410] sm:$0xff]
    %v3933 = vld [vmem:[#allocation4 + $0x418] sm:$0xff]
    %v3934 = vld [vmem:[#allocation4 + $0x420] sm:$0xff]
    %v3935 = vld [vmem:[#allocation4 + $0x428] sm:$0xff]
    %v3936 = vld [vmem:[#allocation4 + $0x430] sm:$0xff]
    %v3937 = vld [vmem:[#allocation4 + $0x438] sm:$0xff]
    %v3938 = vld [vmem:[#allocation4 + $0x440] sm:$0xff]
    %v3939 = vld [vmem:[#allocation4 + $0x448] sm:$0xff]
    %v3940 = vld [vmem:[#allocation4 + $0x450] sm:$0xff]
    %v3941 = vld [vmem:[#allocation4 + $0x458] sm:$0xff]
    %v3942 = vld [vmem:[#allocation4 + $0x460] sm:$0xff]
    %v3943 = vld [vmem:[#allocation4 + $0x468] sm:$0xff]
    %v3944 = vld [vmem:[#allocation4 + $0x470] sm:$0xff]
    %v3945 = vld [vmem:[#allocation4 + $0x478] sm:$0xff]
    %v3946 = vld [vmem:[#allocation4 + $0x480] sm:$0xff]
    %v3947 = vld [vmem:[#allocation4 + $0x488] sm:$0xff]
    %v3948 = vld [vmem:[#allocation4 + $0x490] sm:$0xff]
    %v3949 = vld [vmem:[#allocation4 + $0x498] sm:$0xff]
    %v3950 = vld [vmem:[#allocation4 + $0x4a0] sm:$0xff]
    %v3951 = vld [vmem:[#allocation4 + $0x4a8] sm:$0xff]
    %v3952 = vld [vmem:[#allocation4 + $0x4b0] sm:$0xff]
    %v3953 = vld [vmem:[#allocation4 + $0x4b8] sm:$0xff]
    %v3954 = vld [vmem:[#allocation4 + $0x4c0] sm:$0xff]
    %v3955 = vld [vmem:[#allocation4 + $0x4c8] sm:$0xff]
    %v3956 = vld [vmem:[#allocation4 + $0x4d0] sm:$0xff]
    %v3957 = vld [vmem:[#allocation4 + $0x4d8] sm:$0xff]
    %v3958 = vld [vmem:[#allocation4 + $0x4e0] sm:$0xff]
    %v3959 = vld [vmem:[#allocation4 + $0x4e8] sm:$0xff]
    %v3960 = vld [vmem:[#allocation4 + $0x4f0] sm:$0xff]
    %v3961 = vld [vmem:[#allocation4 + $0x4f8] sm:$0xff]
    %v3962 = vld [vmem:[#allocation4 + $0x500] sm:$0xff]
    %v3963 = vld [vmem:[#allocation4 + $0x508] sm:$0xff]
    %v3964 = vld [vmem:[#allocation4 + $0x510] sm:$0xff]
    %v3965 = vld [vmem:[#allocation4 + $0x518] sm:$0xff]
    %v3966 = vld [vmem:[#allocation4 + $0x520] sm:$0xff]
    %v3967 = vld [vmem:[#allocation4 + $0x528] sm:$0xff]
    %v3968 = vld [vmem:[#allocation4 + $0x530] sm:$0xff]
    %v3969 = vld [vmem:[#allocation4 + $0x538] sm:$0xff]
    %v3970 = vld [vmem:[#allocation4 + $0x540] sm:$0xff]
    %v3971 = vld [vmem:[#allocation4 + $0x548] sm:$0xff]
    %v3972 = vld [vmem:[#allocation4 + $0x550] sm:$0xff]
    %v3973 = vld [vmem:[#allocation4 + $0x558] sm:$0xff]
    %v3974 = vld [vmem:[#allocation4 + $0x560] sm:$0xff]
    %v3975 = vld [vmem:[#allocation4 + $0x568] sm:$0xff]
    %v3976 = vld [vmem:[#allocation4 + $0x570] sm:$0xff]
    %v3977 = vld [vmem:[#allocation4 + $0x578] sm:$0xff]
    %v3978 = vsel %vm1237, %v3879, 0
    %3980 = vmatprep.subr.mxu0 %v3883
    %3981 = vmatpush1.msra.mxu0 %v3882
    %3982 = vmatprep.subr.mxu0 %v3887
    %3983 = vmatpush1.msra.mxu0 %v3886
    %3984 = vmatprep.subr.mxu0 %v3891
    %3985 = vmatpush1.msra.mxu0 %v3890
    %3986 = vmatprep.subr.mxu0 %v3895
    %3987 = vmatpush1.msra.mxu0 %v3894
    %3988 = vmatprep.subr.mxu0 %v3899
    %3989 = vmatpush1.msra.mxu0 %v3898
    %3990 = vmatprep.subr.mxu0 %v3903
    %3991 = vmatpush1.msra.mxu0 %v3902
    %3992 = vmatprep.subr.mxu0 %v3907
    %3993 = vmatpush1.msra.mxu0 %v3906
    %3994 = vmatprep.subr.mxu0 %v3911
    %3995 = vmatpush1.msra.mxu0 %v3910
    %3996 = vmatprep.subr.mxu0 %v3915
    %3997 = vmatpush1.msra.mxu0 %v3914
    %3998 = vmatprep.subr.mxu0 %v3919
    %3999 = vmatpush1.msra.mxu0 %v3918
    %4000 = vmatprep.subr.mxu0 %v3923
    %4001 = vmatpush1.msra.mxu0 %v3922
    %4002 = vmatprep.subr.mxu0 %v3927
    %4003 = vmatpush1.msra.mxu0 %v3926
    %4004 = vmatprep.subr.mxu0 %v3931
    %4005 = vmatpush1.msra.mxu0 %v3930
    %4006 = vmatprep.subr.mxu0 %v3935
    %4007 = vmatpush1.msra.mxu0 %v3934
    %4008 = vmatprep.subr.mxu0 %v3939
    %4009 = vmatpush1.msra.mxu0 %v3938
    %4010 = vmatprep.subr.mxu0 %v3943
    %4011 = vmatpush1.msra.mxu0 %v3942
    %4012 = vmatprep.subr.mxu0 %v3947
    %4013 = vmatpush1.msra.mxu0 %v3946
    %4014 = vmatprep.subr.mxu0 %v3951
    %4015 = vmatpush1.msra.mxu0 %v3950
    %4016 = vmatprep.subr.mxu0 %v3955
    %4017 = vmatpush1.msra.mxu0 %v3954
    %4018 = vmatprep.subr.mxu0 %v3959
    %4019 = vmatpush1.msra.mxu0 %v3958
    %4020 = vmatprep.subr.mxu0 %v3963
    %4021 = vmatpush1.msra.mxu0 %v3962
    %4022 = vmatprep.subr.mxu0 %v3967
    %4023 = vmatpush1.msra.mxu0 %v3966
    %4024 = vmatprep.subr.mxu0 %v3971
    %4025 = vmatpush1.msra.mxu0 %v3970
    %4026 = vmatprep.subr.mxu0 %v3975
    %4027 = vmatpush1.msra.mxu0 %v3974
    %4028 = vmatprep.subr.mxu0 0.0
    %4029 = vmatpush1.msra.mxu0 0.0
    %4030 = vmatprep.subr.mxu0 0.0
    %4031 = vmatpush1.msra.mxu0 0.0
    %4032 = vmatprep.subr.mxu0 0.0
    %4033 = vmatpush1.msra.mxu0 0.0
    %4034 = vmatprep.subr.mxu0 0.0
    %4035 = vmatpush1.msra.mxu0 0.0
    %4036 = vmatprep.subr.mxu0 0.0
    %4037 = vmatpush1.msra.mxu0 0.0
    %4038 = vmatprep.subr.mxu0 0.0
    %4039 = vmatpush1.msra.mxu0 0.0
    %4040 = vmatprep.subr.mxu0 0.0
    %4041 = vmatpush1.msra.mxu0 0.0
    %4042 = vmatprep.subr.mxu0 0.0
    %4043 = vmatpush1.msra.mxu0 0.0
    %4044 = vmatprep.mubr.f32.mxu0 %v3978
    %4045 = vmatmul.mubr.f32.gmra.mrb[0].mxu0 %v3881
    %v4046 = vpop.f32.mrb[0].mxu0
    %v4047 = vadd.f32 %v55, %v4046
    %v4048 = vpop.f32.mrb[0].mxu0
    %v4049 = vadd.f32 %v59, %v4048
    %4050 = vdwg.mxu0
    %4051 = vmatprep.subr.mxu0 %v3885
    %4052 = vmatpush1.msra.mxu0 %v3884
    %4053 = vmatprep.subr.mxu0 %v3889
    %4054 = vmatpush1.msra.mxu0 %v3888
    %4055 = vmatprep.subr.mxu0 %v3893
    %4056 = vmatpush1.msra.mxu0 %v3892
    %4057 = vmatprep.subr.mxu0 %v3897
    %4058 = vmatpush1.msra.mxu0 %v3896
    %4059 = vmatprep.subr.mxu0 %v3901
    %4060 = vmatpush1.msra.mxu0 %v3900
    %4061 = vmatprep.subr.mxu0 %v3905
    %4062 = vmatpush1.msra.mxu0 %v3904
    %4063 = vmatprep.subr.mxu0 %v3909
    %4064 = vmatpush1.msra.mxu0 %v3908
    %4065 = vmatprep.subr.mxu0 %v3913
    %4066 = vmatpush1.msra.mxu0 %v3912
    %4067 = vmatprep.subr.mxu0 %v3917
    %4068 = vmatpush1.msra.mxu0 %v3916
    %4069 = vmatprep.subr.mxu0 %v3921
    %4070 = vmatpush1.msra.mxu0 %v3920
    %4071 = vmatprep.subr.mxu0 %v3925
    %4072 = vmatpush1.msra.mxu0 %v3924
    %4073 = vmatprep.subr.mxu0 %v3929
    %4074 = vmatpush1.msra.mxu0 %v3928
    %4075 = vmatprep.subr.mxu0 %v3933
    %4076 = vmatpush1.msra.mxu0 %v3932
    %4077 = vmatprep.subr.mxu0 %v3937
    %4078 = vmatpush1.msra.mxu0 %v3936
    %4079 = vmatprep.subr.mxu0 %v3941
    %4080 = vmatpush1.msra.mxu0 %v3940
    %4081 = vmatprep.subr.mxu0 %v3945
    %4082 = vmatpush1.msra.mxu0 %v3944
    %4083 = vmatprep.subr.mxu0 %v3949
    %4084 = vmatpush1.msra.mxu0 %v3948
    %4085 = vmatprep.subr.mxu0 %v3953
    %4086 = vmatpush1.msra.mxu0 %v3952
    %4087 = vmatprep.subr.mxu0 %v3957
    %4088 = vmatpush1.msra.mxu0 %v3956
    %4089 = vmatprep.subr.mxu0 %v3961
    %4090 = vmatpush1.msra.mxu0 %v3960
    %4091 = vmatprep.subr.mxu0 %v3965
    %4092 = vmatpush1.msra.mxu0 %v3964
    %4093 = vmatprep.subr.mxu0 %v3969
    %4094 = vmatpush1.msra.mxu0 %v3968
    %4095 = vmatprep.subr.mxu0 %v3973
    %4096 = vmatpush1.msra.mxu0 %v3972
    %4097 = vmatprep.subr.mxu0 %v3977
    %4098 = vmatpush1.msra.mxu0 %v3976
    %4099 = vmatprep.subr.mxu0 0.0
    %4100 = vmatpush1.msra.mxu0 0.0
    %4101 = vmatprep.subr.mxu0 0.0
    %4102 = vmatpush1.msra.mxu0 0.0
    %4103 = vmatprep.subr.mxu0 0.0
    %4104 = vmatpush1.msra.mxu0 0.0
    %4105 = vmatprep.subr.mxu0 0.0
    %4106 = vmatpush1.msra.mxu0 0.0
    %4107 = vmatprep.subr.mxu0 0.0
    %4108 = vmatpush1.msra.mxu0 0.0
    %4109 = vmatprep.subr.mxu0 0.0
    %4110 = vmatpush1.msra.mxu0 0.0
    %4111 = vmatprep.subr.mxu0 0.0
    %4112 = vmatpush1.msra.mxu0 0.0
    %4113 = vmatprep.subr.mxu0 0.0
    %4114 = vmatpush1.msra.mxu0 0.0
    %4115 = vmatprep.mubr.f32.mxu0 %v3978
    %4116 = vmatmul.mubr.f32.gmra.mrb[0].mxu0 %v3881
    %v4117 = vpop.f32.mrb[0].mxu0
    %v4118 = vadd.f32 %v63, %v4117
    %v4119 = vpop.f32.mrb[0].mxu0
    %v4120 = vadd.f32 %v67, %v4119
    %4121 = vdwg.mxu0
    %v4122 = vxor.u32 %v4047, 2147483648
    %v4123 = vxor.u32 %v4049, 2147483648
    %v4124 = vmul.f32 %v4122, 1.442695
    %v4125 = vpow.pop %v4124
    %v4126 = vmul.f32 %v4123, 1.442695
    %v4127 = vpow.pop %v4126
    %v4128 = vadd.f32 %v4125, 1.0
    %v4129 = vadd.f32 %v4127, 1.0
    %v4130 = vrcp.pop %v4128
    %v4131 = vmul.f32 1.0, %v4130
    %v4132 = vrcp.pop %v4129
    %v4133 = vmul.f32 1.0, %v4132
    %v4134 = vtanh.pop %v4118
    %v4135 = vxor.u32 %v4120, 2147483648
    %v4136 = vmul.f32 %v4135, 1.442695
    %v4137 = vpow.pop %v4136
    %v4138 = vadd.f32 %v4137, 1.0
    %v4139 = vrcp.pop %v4138
    %v4140 = vmul.f32 1.0, %v4139
    %v4141 = vmul.f32 %v4133, %v3458
    %v4142 = vmul.f32 %v4131, %v4134
    %v4143 = vadd.f32 %v4141, %v4142
    %v4144 = vtanh.pop %v4143
    %v4145 = vmul.f32 %v4140, %v4144
    %4146 = vst [vmem:[#allocation3 + $0x20] sm:$0xff] %v4145
    %v4147 = vld [vmem:[#allocation2 + $0xe0] sm:$0xff]
    %v4148 = vld [vmem:[#allocation2 + $0xe8] sm:$0xff]
    %v4149 = vld [vmem:[#allocation2 + $0xf0] sm:$0xff]
    %v4150 = vld [vmem:[#allocation2 + $0xf8] sm:$0xff]
    %v4151 = vld [vmem:[#allocation4 + $0x80] sm:$0xff]
    %v4152 = vld [vmem:[#allocation4 + $0x88] sm:$0xff]
    %v4153 = vld [vmem:[#allocation4 + $0x90] sm:$0xff]
    %v4154 = vld [vmem:[#allocation4 + $0x98] sm:$0xff]
    %v4155 = vld [vmem:[#allocation4 + $0xa0] sm:$0xff]
    %v4156 = vld [vmem:[#allocation4 + $0xa8] sm:$0xff]
    %v4157 = vld [vmem:[#allocation4 + $0xb0] sm:$0xff]
    %v4158 = vld [vmem:[#allocation4 + $0xb8] sm:$0xff]
    %v4159 = vld [vmem:[#allocation4 + $0xc0] sm:$0xff]
    %v4160 = vld [vmem:[#allocation4 + $0xc8] sm:$0xff]
    %v4161 = vld [vmem:[#allocation4 + $0xd0] sm:$0xff]
    %v4162 = vld [vmem:[#allocation4 + $0xd8] sm:$0xff]
    %v4163 = vld [vmem:[#allocation4 + $0xe0] sm:$0xff]
    %v4164 = vld [vmem:[#allocation4 + $0xe8] sm:$0xff]
    %v4165 = vld [vmem:[#allocation4 + $0xf0] sm:$0xff]
    %v4166 = vld [vmem:[#allocation4 + $0xf8] sm:$0xff]
    %v4168 = vsel %vm119, %v3654, 0
    %4170 = vmatprep.subr.mxu0 %v4152
    %4171 = vmatpush1.msra.mxu0 %v4151
    %4172 = vmatprep.subr.mxu0 %v4156
    %4173 = vmatpush1.msra.mxu0 %v4155
    %4174 = vmatprep.subr.mxu0 %v4160
    %4175 = vmatpush1.msra.mxu0 %v4159
    %4176 = vmatprep.subr.mxu0 %v4164
    %4177 = vmatpush1.msra.mxu0 %v4163
    %4178 = vmatprep.subr.mxu0 0.0
    %4179 = vmatpush1.msra.mxu0 0.0
    %4180 = vmatprep.subr.mxu0 0.0
    %4181 = vmatpush1.msra.mxu0 0.0
    %4182 = vmatprep.subr.mxu0 0.0
    %4183 = vmatpush1.msra.mxu0 0.0
    %4184 = vmatprep.subr.mxu0 0.0
    %4185 = vmatpush1.msra.mxu0 0.0
    %4186 = vmatprep.subr.mxu0 0.0
    %4187 = vmatpush1.msra.mxu0 0.0
    %4188 = vmatprep.subr.mxu0 0.0
    %4189 = vmatpush1.msra.mxu0 0.0
    %4190 = vmatprep.subr.mxu0 0.0
    %4191 = vmatpush1.msra.mxu0 0.0
    %4192 = vmatprep.subr.mxu0 0.0
    %4193 = vmatpush1.msra.mxu0 0.0
    %4194 = vmatprep.subr.mxu0 0.0
    %4195 = vmatpush1.msra.mxu0 0.0
    %4196 = vmatprep.subr.mxu0 0.0
    %4197 = vmatpush1.msra.mxu0 0.0
    %4198 = vmatprep.subr.mxu0 0.0
    %4199 = vmatpush1.msra.mxu0 0.0
    %4200 = vmatprep.subr.mxu0 0.0
    %4201 = vmatpush1.msra.mxu0 0.0
    %4202 = vmatprep.subr.mxu0 0.0
    %4203 = vmatpush1.msra.mxu0 0.0
    %4204 = vmatprep.subr.mxu0 0.0
    %4205 = vmatpush1.msra.mxu0 0.0
    %4206 = vmatprep.subr.mxu0 0.0
    %4207 = vmatpush1.msra.mxu0 0.0
    %4208 = vmatprep.subr.mxu0 0.0
    %4209 = vmatpush1.msra.mxu0 0.0
    %4210 = vmatprep.subr.mxu0 0.0
    %4211 = vmatpush1.msra.mxu0 0.0
    %4212 = vmatprep.subr.mxu0 0.0
    %4213 = vmatpush1.msra.mxu0 0.0
    %4214 = vmatprep.subr.mxu0 0.0
    %4215 = vmatpush1.msra.mxu0 0.0
    %4216 = vmatprep.subr.mxu0 0.0
    %4217 = vmatpush1.msra.mxu0 0.0
    %4218 = vmatprep.subr.mxu0 0.0
    %4219 = vmatpush1.msra.mxu0 0.0
    %4220 = vmatprep.subr.mxu0 0.0
    %4221 = vmatpush1.msra.mxu0 0.0
    %4222 = vmatprep.subr.mxu0 0.0
    %4223 = vmatpush1.msra.mxu0 0.0
    %4224 = vmatprep.subr.mxu0 0.0
    %4225 = vmatpush1.msra.mxu0 0.0
    %4226 = vmatprep.subr.mxu0 0.0
    %4227 = vmatpush1.msra.mxu0 0.0
    %4228 = vmatprep.subr.mxu0 0.0
    %4229 = vmatpush1.msra.mxu0 0.0
    %4230 = vmatprep.subr.mxu0 0.0
    %4231 = vmatpush1.msra.mxu0 0.0
    %4232 = vmatprep.subr.mxu0 0.0
    %4233 = vmatpush1.msra.mxu0 0.0
    %4234 = vmatprep.mubr.f32.mxu0 0.0
    %4235 = vmatmul.mubr.f32.gmra.mrb[0].mxu0 %v4168
    %v4236 = vpop.f32.mrb[0].mxu0
    %v4237 = vadd.f32 0.0, %v4236
    %v4238 = vpop.f32.mrb[0].mxu0
    %v4239 = vadd.f32 0.0, %v4238
    %4240 = vdwg.mxu0
    %4241 = vmatprep.subr.mxu0 %v4154
    %4242 = vmatpush1.msra.mxu0 %v4153
    %4243 = vmatprep.subr.mxu0 %v4158
    %4244 = vmatpush1.msra.mxu0 %v4157
    %4245 = vmatprep.subr.mxu0 %v4162
    %4246 = vmatpush1.msra.mxu0 %v4161
    %4247 = vmatprep.subr.mxu0 %v4166
    %4248 = vmatpush1.msra.mxu0 %v4165
    %4249 = vmatprep.subr.mxu0 0.0
    %4250 = vmatpush1.msra.mxu0 0.0
    %4251 = vmatprep.subr.mxu0 0.0
    %4252 = vmatpush1.msra.mxu0 0.0
    %4253 = vmatprep.subr.mxu0 0.0
    %4254 = vmatpush1.msra.mxu0 0.0
    %4255 = vmatprep.subr.mxu0 0.0
    %4256 = vmatpush1.msra.mxu0 0.0
    %4257 = vmatprep.subr.mxu0 0.0
    %4258 = vmatpush1.msra.mxu0 0.0
    %4259 = vmatprep.subr.mxu0 0.0
    %4260 = vmatpush1.msra.mxu0 0.0
    %4261 = vmatprep.subr.mxu0 0.0
    %4262 = vmatpush1.msra.mxu0 0.0
    %4263 = vmatprep.subr.mxu0 0.0
    %4264 = vmatpush1.msra.mxu0 0.0
    %4265 = vmatprep.subr.mxu0 0.0
    %4266 = vmatpush1.msra.mxu0 0.0
    %4267 = vmatprep.subr.mxu0 0.0
    %4268 = vmatpush1.msra.mxu0 0.0
    %4269 = vmatprep.subr.mxu0 0.0
    %4270 = vmatpush1.msra.mxu0 0.0
    %4271 = vmatprep.subr.mxu0 0.0
    %4272 = vmatpush1.msra.mxu0 0.0
    %4273 = vmatprep.subr.mxu0 0.0
    %4274 = vmatpush1.msra.mxu0 0.0
    %4275 = vmatprep.subr.mxu0 0.0
    %4276 = vmatpush1.msra.mxu0 0.0
    %4277 = vmatprep.subr.mxu0 0.0
    %4278 = vmatpush1.msra.mxu0 0.0
    %4279 = vmatprep.subr.mxu0 0.0
    %4280 = vmatpush1.msra.mxu0 0.0
    %4281 = vmatprep.subr.mxu0 0.0
    %4282 = vmatpush1.msra.mxu0 0.0
    %4283 = vmatprep.subr.mxu0 0.0
    %4284 = vmatpush1.msra.mxu0 0.0
    %4285 = vmatprep.subr.mxu0 0.0
    %4286 = vmatpush1.msra.mxu0 0.0
    %4287 = vmatprep.subr.mxu0 0.0
    %4288 = vmatpush1.msra.mxu0 0.0
    %4289 = vmatprep.subr.mxu0 0.0
    %4290 = vmatpush1.msra.mxu0 0.0
    %4291 = vmatprep.subr.mxu0 0.0
    %4292 = vmatpush1.msra.mxu0 0.0
    %4293 = vmatprep.subr.mxu0 0.0
    %4294 = vmatpush1.msra.mxu0 0.0
    %4295 = vmatprep.subr.mxu0 0.0
    %4296 = vmatpush1.msra.mxu0 0.0
    %4297 = vmatprep.subr.mxu0 0.0
    %4298 = vmatpush1.msra.mxu0 0.0
    %4299 = vmatprep.subr.mxu0 0.0
    %4300 = vmatpush1.msra.mxu0 0.0
    %4301 = vmatprep.subr.mxu0 0.0
    %4302 = vmatpush1.msra.mxu0 0.0
    %4303 = vmatprep.subr.mxu0 0.0
    %4304 = vmatpush1.msra.mxu0 0.0
    %4305 = vmatprep.mubr.f32.mxu0 0.0
    %4306 = vmatmul.mubr.f32.gmra.mrb[0].mxu0 %v4168
    %v4307 = vpop.f32.mrb[0].mxu0
    %v4308 = vadd.f32 0.0, %v4307
    %v4309 = vpop.f32.mrb[0].mxu0
    %v4310 = vadd.f32 0.0, %v4309
    %4311 = vdwg.mxu0
    %v4312 = vadd.f32 %v4147, %v4237
    %v4313 = vadd.f32 %v4148, %v4239
    %v4314 = vadd.f32 %v4149, %v4308
    %v4315 = vadd.f32 %v4150, %v4310
    %v4316 = vxor.u32 %v4312, 2147483648
    %v4317 = vxor.u32 %v4313, 2147483648
    %v4318 = vmul.f32 %v4316, 1.442695
    %v4319 = vpow.pop %v4318
    %v4320 = vmul.f32 %v4317, 1.442695
    %v4321 = vpow.pop %v4320
    %v4322 = vadd.f32 %v4319, 1.0
    %v4323 = vadd.f32 %v4321, 1.0
    %v4324 = vrcp.pop %v4322
    %v4325 = vmul.f32 1.0, %v4324
    %v4326 = vrcp.pop %v4323
    %v4327 = vmul.f32 1.0, %v4326
    %v4328 = vtanh.pop %v4314
    %v4329 = vxor.u32 %v4315, 2147483648
    %v4330 = vmul.f32 %v4329, 1.442695
    %v4331 = vpow.pop %v4330
    %v4332 = vadd.f32 %v4331, 1.0
    %v4333 = vrcp.pop %v4332
    %v4334 = vmul.f32 1.0, %v4333
    %v4335 = vmul.f32 %v4327, %v3652
    %v4336 = vmul.f32 %v4325, %v4328
    %v4337 = vadd.f32 %v4335, %v4336
    %v4338 = vtanh.pop %v4337
    %v4339 = vmul.f32 %v4334, %v4338
    %4341 = vrot.lane.b32.xlu0 %v3876, 32
    %v4342 = vpop.permute.xlu0 %4341
    %v4344 = vsel %vm119, %v3654, %v4342
    %v4345 = vld [vmem:[#allocation4 + $0x100] sm:$0xff]
    %v4346 = vld [vmem:[#allocation4 + $0x108] sm:$0xff]
    %v4347 = vld [vmem:[#allocation4 + $0x110] sm:$0xff]
    %v4348 = vld [vmem:[#allocation4 + $0x118] sm:$0xff]
    %v4349 = vld [vmem:[#allocation4 + $0x120] sm:$0xff]
    %v4350 = vld [vmem:[#allocation4 + $0x128] sm:$0xff]
    %v4351 = vld [vmem:[#allocation4 + $0x130] sm:$0xff]
    %v4352 = vld [vmem:[#allocation4 + $0x138] sm:$0xff]
    %v4353 = vld [vmem:[#allocation4 + $0x140] sm:$0xff]
    %v4354 = vld [vmem:[#allocation4 + $0x148] sm:$0xff]
    %v4355 = vld [vmem:[#allocation4 + $0x150] sm:$0xff]
    %v4356 = vld [vmem:[#allocation4 + $0x158] sm:$0xff]
    %v4357 = vld [vmem:[#allocation4 + $0x160] sm:$0xff]
    %v4358 = vld [vmem:[#allocation4 + $0x168] sm:$0xff]
    %v4359 = vld [vmem:[#allocation4 + $0x170] sm:$0xff]
    %v4360 = vld [vmem:[#allocation4 + $0x178] sm:$0xff]
    %v4361 = vld [vmem:[#allocation4 + $0x180] sm:$0xff]
    %v4362 = vld [vmem:[#allocation4 + $0x188] sm:$0xff]
    %v4363 = vld [vmem:[#allocation4 + $0x190] sm:$0xff]
    %v4364 = vld [vmem:[#allocation4 + $0x198] sm:$0xff]
    %v4365 = vld [vmem:[#allocation4 + $0x1a0] sm:$0xff]
    %v4366 = vld [vmem:[#allocation4 + $0x1a8] sm:$0xff]
    %v4367 = vld [vmem:[#allocation4 + $0x1b0] sm:$0xff]
    %v4368 = vld [vmem:[#allocation4 + $0x1b8] sm:$0xff]
    %v4369 = vld [vmem:[#allocation4 + $0x1c0] sm:$0xff]
    %v4370 = vld [vmem:[#allocation4 + $0x1c8] sm:$0xff]
    %v4371 = vld [vmem:[#allocation4 + $0x1d0] sm:$0xff]
    %v4372 = vld [vmem:[#allocation4 + $0x1d8] sm:$0xff]
    %v4373 = vld [vmem:[#allocation4 + $0x1e0] sm:$0xff]
    %v4374 = vld [vmem:[#allocation4 + $0x1e8] sm:$0xff]
    %v4375 = vld [vmem:[#allocation4 + $0x1f0] sm:$0xff]
    %v4376 = vld [vmem:[#allocation4 + $0x1f8] sm:$0xff]
    %v4377 = vld [vmem:[#allocation4 + $0x200] sm:$0xff]
    %v4378 = vld [vmem:[#allocation4 + $0x208] sm:$0xff]
    %v4379 = vld [vmem:[#allocation4 + $0x210] sm:$0xff]
    %v4380 = vld [vmem:[#allocation4 + $0x218] sm:$0xff]
    %v4381 = vld [vmem:[#allocation4 + $0x220] sm:$0xff]
    %v4382 = vld [vmem:[#allocation4 + $0x228] sm:$0xff]
    %v4383 = vld [vmem:[#allocation4 + $0x230] sm:$0xff]
    %v4384 = vld [vmem:[#allocation4 + $0x238] sm:$0xff]
    %v4385 = vld [vmem:[#allocation4 + $0x240] sm:$0xff]
    %v4386 = vld [vmem:[#allocation4 + $0x248] sm:$0xff]
    %v4387 = vld [vmem:[#allocation4 + $0x250] sm:$0xff]
    %v4388 = vld [vmem:[#allocation4 + $0x258] sm:$0xff]
    %v4389 = vld [vmem:[#allocation4 + $0x260] sm:$0xff]
    %v4390 = vld [vmem:[#allocation4 + $0x268] sm:$0xff]
    %v4391 = vld [vmem:[#allocation4 + $0x270] sm:$0xff]
    %v4392 = vld [vmem:[#allocation4 + $0x278] sm:$0xff]
    %v4394 = vsel %vm1035, %v4344, 0
    %4396 = vmatprep.subr.mxu0 %v4346
    %4397 = vmatpush1.msra.mxu0 %v4345
    %4398 = vmatprep.subr.mxu0 %v4350
    %4399 = vmatpush1.msra.mxu0 %v4349
    %4400 = vmatprep.subr.mxu0 %v4354
    %4401 = vmatpush1.msra.mxu0 %v4353
    %4402 = vmatprep.subr.mxu0 %v4358
    %4403 = vmatpush1.msra.mxu0 %v4357
    %4404 = vmatprep.subr.mxu0 %v4362
    %4405 = vmatpush1.msra.mxu0 %v4361
    %4406 = vmatprep.subr.mxu0 %v4366
    %4407 = vmatpush1.msra.mxu0 %v4365
    %4408 = vmatprep.subr.mxu0 %v4370
    %4409 = vmatpush1.msra.mxu0 %v4369
    %4410 = vmatprep.subr.mxu0 %v4374
    %4411 = vmatpush1.msra.mxu0 %v4373
    %4412 = vmatprep.subr.mxu0 %v4378
    %4413 = vmatpush1.msra.mxu0 %v4377
    %4414 = vmatprep.subr.mxu0 %v4382
    %4415 = vmatpush1.msra.mxu0 %v4381
    %4416 = vmatprep.subr.mxu0 %v4386
    %4417 = vmatpush1.msra.mxu0 %v4385
    %4418 = vmatprep.subr.mxu0 %v4390
    %4419 = vmatpush1.msra.mxu0 %v4389
    %4420 = vmatprep.subr.mxu0 0.0
    %4421 = vmatpush1.msra.mxu0 0.0
    %4422 = vmatprep.subr.mxu0 0.0
    %4423 = vmatpush1.msra.mxu0 0.0
    %4424 = vmatprep.subr.mxu0 0.0
    %4425 = vmatpush1.msra.mxu0 0.0
    %4426 = vmatprep.subr.mxu0 0.0
    %4427 = vmatpush1.msra.mxu0 0.0
    %4428 = vmatprep.subr.mxu0 0.0
    %4429 = vmatpush1.msra.mxu0 0.0
    %4430 = vmatprep.subr.mxu0 0.0
    %4431 = vmatpush1.msra.mxu0 0.0
    %4432 = vmatprep.subr.mxu0 0.0
    %4433 = vmatpush1.msra.mxu0 0.0
    %4434 = vmatprep.subr.mxu0 0.0
    %4435 = vmatpush1.msra.mxu0 0.0
    %4436 = vmatprep.subr.mxu0 0.0
    %4437 = vmatpush1.msra.mxu0 0.0
    %4438 = vmatprep.subr.mxu0 0.0
    %4439 = vmatpush1.msra.mxu0 0.0
    %4440 = vmatprep.subr.mxu0 0.0
    %4441 = vmatpush1.msra.mxu0 0.0
    %4442 = vmatprep.subr.mxu0 0.0
    %4443 = vmatpush1.msra.mxu0 0.0
    %4444 = vmatprep.subr.mxu0 0.0
    %4445 = vmatpush1.msra.mxu0 0.0
    %4446 = vmatprep.subr.mxu0 0.0
    %4447 = vmatpush1.msra.mxu0 0.0
    %4448 = vmatprep.subr.mxu0 0.0
    %4449 = vmatpush1.msra.mxu0 0.0
    %4450 = vmatprep.subr.mxu0 0.0
    %4451 = vmatpush1.msra.mxu0 0.0
    %4452 = vmatprep.subr.mxu0 0.0
    %4453 = vmatpush1.msra.mxu0 0.0
    %4454 = vmatprep.subr.mxu0 0.0
    %4455 = vmatpush1.msra.mxu0 0.0
    %4456 = vmatprep.subr.mxu0 0.0
    %4457 = vmatpush1.msra.mxu0 0.0
    %4458 = vmatprep.subr.mxu0 0.0
    %4459 = vmatpush1.msra.mxu0 0.0
    %4460 = vmatprep.mubr.f32.mxu0 0.0
    %4461 = vmatmul.mubr.f32.gmra.mrb[0].mxu0 %v4394
    %v4462 = vpop.f32.mrb[0].mxu0
    %v4463 = vadd.f32 %v32, %v4462
    %v4464 = vpop.f32.mrb[0].mxu0
    %v4465 = vadd.f32 %v36, %v4464
    %4466 = vdwg.mxu0
    %4467 = vmatprep.subr.mxu0 %v4348
    %4468 = vmatpush1.msra.mxu0 %v4347
    %4469 = vmatprep.subr.mxu0 %v4352
    %4470 = vmatpush1.msra.mxu0 %v4351
    %4471 = vmatprep.subr.mxu0 %v4356
    %4472 = vmatpush1.msra.mxu0 %v4355
    %4473 = vmatprep.subr.mxu0 %v4360
    %4474 = vmatpush1.msra.mxu0 %v4359
    %4475 = vmatprep.subr.mxu0 %v4364
    %4476 = vmatpush1.msra.mxu0 %v4363
    %4477 = vmatprep.subr.mxu0 %v4368
    %4478 = vmatpush1.msra.mxu0 %v4367
    %4479 = vmatprep.subr.mxu0 %v4372
    %4480 = vmatpush1.msra.mxu0 %v4371
    %4481 = vmatprep.subr.mxu0 %v4376
    %4482 = vmatpush1.msra.mxu0 %v4375
    %4483 = vmatprep.subr.mxu0 %v4380
    %4484 = vmatpush1.msra.mxu0 %v4379
    %4485 = vmatprep.subr.mxu0 %v4384
    %4486 = vmatpush1.msra.mxu0 %v4383
    %4487 = vmatprep.subr.mxu0 %v4388
    %4488 = vmatpush1.msra.mxu0 %v4387
    %4489 = vmatprep.subr.mxu0 %v4392
    %4490 = vmatpush1.msra.mxu0 %v4391
    %4491 = vmatprep.subr.mxu0 0.0
    %4492 = vmatpush1.msra.mxu0 0.0
    %4493 = vmatprep.subr.mxu0 0.0
    %4494 = vmatpush1.msra.mxu0 0.0
    %4495 = vmatprep.subr.mxu0 0.0
    %4496 = vmatpush1.msra.mxu0 0.0
    %4497 = vmatprep.subr.mxu0 0.0
    %4498 = vmatpush1.msra.mxu0 0.0
    %4499 = vmatprep.subr.mxu0 0.0
    %4500 = vmatpush1.msra.mxu0 0.0
    %4501 = vmatprep.subr.mxu0 0.0
    %4502 = vmatpush1.msra.mxu0 0.0
    %4503 = vmatprep.subr.mxu0 0.0
    %4504 = vmatpush1.msra.mxu0 0.0
    %4505 = vmatprep.subr.mxu0 0.0
    %4506 = vmatpush1.msra.mxu0 0.0
    %4507 = vmatprep.subr.mxu0 0.0
    %4508 = vmatpush1.msra.mxu0 0.0
    %4509 = vmatprep.subr.mxu0 0.0
    %4510 = vmatpush1.msra.mxu0 0.0
    %4511 = vmatprep.subr.mxu0 0.0
    %4512 = vmatpush1.msra.mxu0 0.0
    %4513 = vmatprep.subr.mxu0 0.0
    %4514 = vmatpush1.msra.mxu0 0.0
    %4515 = vmatprep.subr.mxu0 0.0
    %4516 = vmatpush1.msra.mxu0 0.0
    %4517 = vmatprep.subr.mxu0 0.0
    %4518 = vmatpush1.msra.mxu0 0.0
    %4519 = vmatprep.subr.mxu0 0.0
    %4520 = vmatpush1.msra.mxu0 0.0
    %4521 = vmatprep.subr.mxu0 0.0
    %4522 = vmatpush1.msra.mxu0 0.0
    %4523 = vmatprep.subr.mxu0 0.0
    %4524 = vmatpush1.msra.mxu0 0.0
    %4525 = vmatprep.subr.mxu0 0.0
    %4526 = vmatpush1.msra.mxu0 0.0
    %4527 = vmatprep.subr.mxu0 0.0
    %4528 = vmatpush1.msra.mxu0 0.0
    %4529 = vmatprep.subr.mxu0 0.0
    %4530 = vmatpush1.msra.mxu0 0.0
    %4531 = vmatprep.mubr.f32.mxu0 0.0
    %4532 = vmatmul.mubr.f32.gmra.mrb[0].mxu0 %v4394
    %v4533 = vpop.f32.mrb[0].mxu0
    %v4534 = vadd.f32 %v40, %v4533
    %v4535 = vpop.f32.mrb[0].mxu0
    %v4536 = vadd.f32 %v44, %v4535
    %4537 = vdwg.mxu0
    %v4538 = vxor.u32 %v4463, 2147483648
    %v4539 = vxor.u32 %v4465, 2147483648
    %v4540 = vmul.f32 %v4538, 1.442695
    %v4541 = vpow.pop %v4540
    %v4542 = vmul.f32 %v4539, 1.442695
    %v4543 = vpow.pop %v4542
    %v4544 = vadd.f32 %v4541, 1.0
    %v4545 = vadd.f32 %v4543, 1.0
    %v4546 = vrcp.pop %v4544
    %v4547 = vmul.f32 1.0, %v4546
    %v4548 = vrcp.pop %v4545
    %v4549 = vmul.f32 1.0, %v4548
    %v4550 = vtanh.pop %v4534
    %v4551 = vxor.u32 %v4536, 2147483648
    %v4552 = vmul.f32 %v4551, 1.442695
    %v4553 = vpow.pop %v4552
    %v4554 = vadd.f32 %v4553, 1.0
    %v4555 = vrcp.pop %v4554
    %v4556 = vmul.f32 1.0, %v4555
    %v4557 = vmul.f32 %v4549, %v3874
    %v4558 = vmul.f32 %v4547, %v4550
    %v4559 = vadd.f32 %v4557, %v4558
    %v4560 = vtanh.pop %v4559
    %v4561 = vmul.f32 %v4556, %v4560
    %4563 = vrot.lane.b32.xlu0 %v4145, 64
    %v4564 = vpop.permute.xlu0 %4563
    %v4566 = vsel %vm1237, %v3876, %v4564
    %v4567 = vld [vmem:[#allocation4 + $0x280] sm:$0xff]
    %v4568 = vld [vmem:[#allocation4 + $0x288] sm:$0xff]
    %v4569 = vld [vmem:[#allocation4 + $0x290] sm:$0xff]
    %v4570 = vld [vmem:[#allocation4 + $0x298] sm:$0xff]
    %v4571 = vld [vmem:[#allocation4 + $0x2a0] sm:$0xff]
    %v4572 = vld [vmem:[#allocation4 + $0x2a8] sm:$0xff]
    %v4573 = vld [vmem:[#allocation4 + $0x2b0] sm:$0xff]
    %v4574 = vld [vmem:[#allocation4 + $0x2b8] sm:$0xff]
    %v4575 = vld [vmem:[#allocation4 + $0x2c0] sm:$0xff]
    %v4576 = vld [vmem:[#allocation4 + $0x2c8] sm:$0xff]
    %v4577 = vld [vmem:[#allocation4 + $0x2d0] sm:$0xff]
    %v4578 = vld [vmem:[#allocation4 + $0x2d8] sm:$0xff]
    %v4579 = vld [vmem:[#allocation4 + $0x2e0] sm:$0xff]
    %v4580 = vld [vmem:[#allocation4 + $0x2e8] sm:$0xff]
    %v4581 = vld [vmem:[#allocation4 + $0x2f0] sm:$0xff]
    %v4582 = vld [vmem:[#allocation4 + $0x2f8] sm:$0xff]
    %v4583 = vld [vmem:[#allocation4 + $0x300] sm:$0xff]
    %v4584 = vld [vmem:[#allocation4 + $0x308] sm:$0xff]
    %v4585 = vld [vmem:[#allocation4 + $0x310] sm:$0xff]
    %v4586 = vld [vmem:[#allocation4 + $0x318] sm:$0xff]
    %v4587 = vld [vmem:[#allocation4 + $0x320] sm:$0xff]
    %v4588 = vld [vmem:[#allocation4 + $0x328] sm:$0xff]
    %v4589 = vld [vmem:[#allocation4 + $0x330] sm:$0xff]
    %v4590 = vld [vmem:[#allocation4 + $0x338] sm:$0xff]
    %v4591 = vld [vmem:[#allocation4 + $0x340] sm:$0xff]
    %v4592 = vld [vmem:[#allocation4 + $0x348] sm:$0xff]
    %v4593 = vld [vmem:[#allocation4 + $0x350] sm:$0xff]
    %v4594 = vld [vmem:[#allocation4 + $0x358] sm:$0xff]
    %v4595 = vld [vmem:[#allocation4 + $0x360] sm:$0xff]
    %v4596 = vld [vmem:[#allocation4 + $0x368] sm:$0xff]
    %v4597 = vld [vmem:[#allocation4 + $0x370] sm:$0xff]
    %v4598 = vld [vmem:[#allocation4 + $0x378] sm:$0xff]
    %v4599 = vld [vmem:[#allocation4 + $0x380] sm:$0xff]
    %v4600 = vld [vmem:[#allocation4 + $0x388] sm:$0xff]
    %v4601 = vld [vmem:[#allocation4 + $0x390] sm:$0xff]
    %v4602 = vld [vmem:[#allocation4 + $0x398] sm:$0xff]
    %v4603 = vld [vmem:[#allocation4 + $0x3a0] sm:$0xff]
    %v4604 = vld [vmem:[#allocation4 + $0x3a8] sm:$0xff]
    %v4605 = vld [vmem:[#allocation4 + $0x3b0] sm:$0xff]
    %v4606 = vld [vmem:[#allocation4 + $0x3b8] sm:$0xff]
    %v4607 = vld [vmem:[#allocation4 + $0x3c0] sm:$0xff]
    %v4608 = vld [vmem:[#allocation4 + $0x3c8] sm:$0xff]
    %v4609 = vld [vmem:[#allocation4 + $0x3d0] sm:$0xff]
    %v4610 = vld [vmem:[#allocation4 + $0x3d8] sm:$0xff]
    %v4611 = vld [vmem:[#allocation4 + $0x3e0] sm:$0xff]
    %v4612 = vld [vmem:[#allocation4 + $0x3e8] sm:$0xff]
    %v4613 = vld [vmem:[#allocation4 + $0x3f0] sm:$0xff]
    %v4614 = vld [vmem:[#allocation4 + $0x3f8] sm:$0xff]
    %v4615 = vld [vmem:[#allocation4 + $0x400] sm:$0xff]
    %v4616 = vld [vmem:[#allocation4 + $0x408] sm:$0xff]
    %v4617 = vld [vmem:[#allocation4 + $0x410] sm:$0xff]
    %v4618 = vld [vmem:[#allocation4 + $0x418] sm:$0xff]
    %v4619 = vld [vmem:[#allocation4 + $0x420] sm:$0xff]
    %v4620 = vld [vmem:[#allocation4 + $0x428] sm:$0xff]
    %v4621 = vld [vmem:[#allocation4 + $0x430] sm:$0xff]
    %v4622 = vld [vmem:[#allocation4 + $0x438] sm:$0xff]
    %v4623 = vld [vmem:[#allocation4 + $0x440] sm:$0xff]
    %v4624 = vld [vmem:[#allocation4 + $0x448] sm:$0xff]
    %v4625 = vld [vmem:[#allocation4 + $0x450] sm:$0xff]
    %v4626 = vld [vmem:[#allocation4 + $0x458] sm:$0xff]
    %v4627 = vld [vmem:[#allocation4 + $0x460] sm:$0xff]
    %v4628 = vld [vmem:[#allocation4 + $0x468] sm:$0xff]
    %v4629 = vld [vmem:[#allocation4 + $0x470] sm:$0xff]
    %v4630 = vld [vmem:[#allocation4 + $0x478] sm:$0xff]
    %v4631 = vld [vmem:[#allocation4 + $0x480] sm:$0xff]
    %v4632 = vld [vmem:[#allocation4 + $0x488] sm:$0xff]
    %v4633 = vld [vmem:[#allocation4 + $0x490] sm:$0xff]
    %v4634 = vld [vmem:[#allocation4 + $0x498] sm:$0xff]
    %v4635 = vld [vmem:[#allocation4 + $0x4a0] sm:$0xff]
    %v4636 = vld [vmem:[#allocation4 + $0x4a8] sm:$0xff]
    %v4637 = vld [vmem:[#allocation4 + $0x4b0] sm:$0xff]
    %v4638 = vld [vmem:[#allocation4 + $0x4b8] sm:$0xff]
    %v4639 = vld [vmem:[#allocation4 + $0x4c0] sm:$0xff]
    %v4640 = vld [vmem:[#allocation4 + $0x4c8] sm:$0xff]
    %v4641 = vld [vmem:[#allocation4 + $0x4d0] sm:$0xff]
    %v4642 = vld [vmem:[#allocation4 + $0x4d8] sm:$0xff]
    %v4643 = vld [vmem:[#allocation4 + $0x4e0] sm:$0xff]
    %v4644 = vld [vmem:[#allocation4 + $0x4e8] sm:$0xff]
    %v4645 = vld [vmem:[#allocation4 + $0x4f0] sm:$0xff]
    %v4646 = vld [vmem:[#allocation4 + $0x4f8] sm:$0xff]
    %v4647 = vld [vmem:[#allocation4 + $0x500] sm:$0xff]
    %v4648 = vld [vmem:[#allocation4 + $0x508] sm:$0xff]
    %v4649 = vld [vmem:[#allocation4 + $0x510] sm:$0xff]
    %v4650 = vld [vmem:[#allocation4 + $0x518] sm:$0xff]
    %v4651 = vld [vmem:[#allocation4 + $0x520] sm:$0xff]
    %v4652 = vld [vmem:[#allocation4 + $0x528] sm:$0xff]
    %v4653 = vld [vmem:[#allocation4 + $0x530] sm:$0xff]
    %v4654 = vld [vmem:[#allocation4 + $0x538] sm:$0xff]
    %v4655 = vld [vmem:[#allocation4 + $0x540] sm:$0xff]
    %v4656 = vld [vmem:[#allocation4 + $0x548] sm:$0xff]
    %v4657 = vld [vmem:[#allocation4 + $0x550] sm:$0xff]
    %v4658 = vld [vmem:[#allocation4 + $0x558] sm:$0xff]
    %v4659 = vld [vmem:[#allocation4 + $0x560] sm:$0xff]
    %v4660 = vld [vmem:[#allocation4 + $0x568] sm:$0xff]
    %v4661 = vld [vmem:[#allocation4 + $0x570] sm:$0xff]
    %v4662 = vld [vmem:[#allocation4 + $0x578] sm:$0xff]
    %v4663 = vsel %vm1237, %v4564, 0
    %4665 = vmatprep.subr.mxu0 %v4568
    %4666 = vmatpush1.msra.mxu0 %v4567
    %4667 = vmatprep.subr.mxu0 %v4572
    %4668 = vmatpush1.msra.mxu0 %v4571
    %4669 = vmatprep.subr.mxu0 %v4576
    %4670 = vmatpush1.msra.mxu0 %v4575
    %4671 = vmatprep.subr.mxu0 %v4580
    %4672 = vmatpush1.msra.mxu0 %v4579
    %4673 = vmatprep.subr.mxu0 %v4584
    %4674 = vmatpush1.msra.mxu0 %v4583
    %4675 = vmatprep.subr.mxu0 %v4588
    %4676 = vmatpush1.msra.mxu0 %v4587
    %4677 = vmatprep.subr.mxu0 %v4592
    %4678 = vmatpush1.msra.mxu0 %v4591
    %4679 = vmatprep.subr.mxu0 %v4596
    %4680 = vmatpush1.msra.mxu0 %v4595
    %4681 = vmatprep.subr.mxu0 %v4600
    %4682 = vmatpush1.msra.mxu0 %v4599
    %4683 = vmatprep.subr.mxu0 %v4604
    %4684 = vmatpush1.msra.mxu0 %v4603
    %4685 = vmatprep.subr.mxu0 %v4608
    %4686 = vmatpush1.msra.mxu0 %v4607
    %4687 = vmatprep.subr.mxu0 %v4612
    %4688 = vmatpush1.msra.mxu0 %v4611
    %4689 = vmatprep.subr.mxu0 %v4616
    %4690 = vmatpush1.msra.mxu0 %v4615
    %4691 = vmatprep.subr.mxu0 %v4620
    %4692 = vmatpush1.msra.mxu0 %v4619
    %4693 = vmatprep.subr.mxu0 %v4624
    %4694 = vmatpush1.msra.mxu0 %v4623
    %4695 = vmatprep.subr.mxu0 %v4628
    %4696 = vmatpush1.msra.mxu0 %v4627
    %4697 = vmatprep.subr.mxu0 %v4632
    %4698 = vmatpush1.msra.mxu0 %v4631
    %4699 = vmatprep.subr.mxu0 %v4636
    %4700 = vmatpush1.msra.mxu0 %v4635
    %4701 = vmatprep.subr.mxu0 %v4640
    %4702 = vmatpush1.msra.mxu0 %v4639
    %4703 = vmatprep.subr.mxu0 %v4644
    %4704 = vmatpush1.msra.mxu0 %v4643
    %4705 = vmatprep.subr.mxu0 %v4648
    %4706 = vmatpush1.msra.mxu0 %v4647
    %4707 = vmatprep.subr.mxu0 %v4652
    %4708 = vmatpush1.msra.mxu0 %v4651
    %4709 = vmatprep.subr.mxu0 %v4656
    %4710 = vmatpush1.msra.mxu0 %v4655
    %4711 = vmatprep.subr.mxu0 %v4660
    %4712 = vmatpush1.msra.mxu0 %v4659
    %4713 = vmatprep.subr.mxu0 0.0
    %4714 = vmatpush1.msra.mxu0 0.0
    %4715 = vmatprep.subr.mxu0 0.0
    %4716 = vmatpush1.msra.mxu0 0.0
    %4717 = vmatprep.subr.mxu0 0.0
    %4718 = vmatpush1.msra.mxu0 0.0
    %4719 = vmatprep.subr.mxu0 0.0
    %4720 = vmatpush1.msra.mxu0 0.0
    %4721 = vmatprep.subr.mxu0 0.0
    %4722 = vmatpush1.msra.mxu0 0.0
    %4723 = vmatprep.subr.mxu0 0.0
    %4724 = vmatpush1.msra.mxu0 0.0
    %4725 = vmatprep.subr.mxu0 0.0
    %4726 = vmatpush1.msra.mxu0 0.0
    %4727 = vmatprep.subr.mxu0 0.0
    %4728 = vmatpush1.msra.mxu0 0.0
    %4729 = vmatprep.mubr.f32.mxu0 %v4663
    %4730 = vmatmul.mubr.f32.gmra.mrb[0].mxu0 %v4566
    %v4731 = vpop.f32.mrb[0].mxu0
    %v4732 = vadd.f32 %v55, %v4731
    %v4733 = vpop.f32.mrb[0].mxu0
    %v4734 = vadd.f32 %v59, %v4733
    %4735 = vdwg.mxu0
    %4736 = vmatprep.subr.mxu0 %v4570
    %4737 = vmatpush1.msra.mxu0 %v4569
    %4738 = vmatprep.subr.mxu0 %v4574
    %4739 = vmatpush1.msra.mxu0 %v4573
    %4740 = vmatprep.subr.mxu0 %v4578
    %4741 = vmatpush1.msra.mxu0 %v4577
    %4742 = vmatprep.subr.mxu0 %v4582
    %4743 = vmatpush1.msra.mxu0 %v4581
    %4744 = vmatprep.subr.mxu0 %v4586
    %4745 = vmatpush1.msra.mxu0 %v4585
    %4746 = vmatprep.subr.mxu0 %v4590
    %4747 = vmatpush1.msra.mxu0 %v4589
    %4748 = vmatprep.subr.mxu0 %v4594
    %4749 = vmatpush1.msra.mxu0 %v4593
    %4750 = vmatprep.subr.mxu0 %v4598
    %4751 = vmatpush1.msra.mxu0 %v4597
    %4752 = vmatprep.subr.mxu0 %v4602
    %4753 = vmatpush1.msra.mxu0 %v4601
    %4754 = vmatprep.subr.mxu0 %v4606
    %4755 = vmatpush1.msra.mxu0 %v4605
    %4756 = vmatprep.subr.mxu0 %v4610
    %4757 = vmatpush1.msra.mxu0 %v4609
    %4758 = vmatprep.subr.mxu0 %v4614
    %4759 = vmatpush1.msra.mxu0 %v4613
    %4760 = vmatprep.subr.mxu0 %v4618
    %4761 = vmatpush1.msra.mxu0 %v4617
    %4762 = vmatprep.subr.mxu0 %v4622
    %4763 = vmatpush1.msra.mxu0 %v4621
    %4764 = vmatprep.subr.mxu0 %v4626
    %4765 = vmatpush1.msra.mxu0 %v4625
    %4766 = vmatprep.subr.mxu0 %v4630
    %4767 = vmatpush1.msra.mxu0 %v4629
    %4768 = vmatprep.subr.mxu0 %v4634
    %4769 = vmatpush1.msra.mxu0 %v4633
    %4770 = vmatprep.subr.mxu0 %v4638
    %4771 = vmatpush1.msra.mxu0 %v4637
    %4772 = vmatprep.subr.mxu0 %v4642
    %4773 = vmatpush1.msra.mxu0 %v4641
    %4774 = vmatprep.subr.mxu0 %v4646
    %4775 = vmatpush1.msra.mxu0 %v4645
    %4776 = vmatprep.subr.mxu0 %v4650
    %4777 = vmatpush1.msra.mxu0 %v4649
    %4778 = vmatprep.subr.mxu0 %v4654
    %4779 = vmatpush1.msra.mxu0 %v4653
    %4780 = vmatprep.subr.mxu0 %v4658
    %4781 = vmatpush1.msra.mxu0 %v4657
    %4782 = vmatprep.subr.mxu0 %v4662
    %4783 = vmatpush1.msra.mxu0 %v4661
    %4784 = vmatprep.subr.mxu0 0.0
    %4785 = vmatpush1.msra.mxu0 0.0
    %4786 = vmatprep.subr.mxu0 0.0
    %4787 = vmatpush1.msra.mxu0 0.0
    %4788 = vmatprep.subr.mxu0 0.0
    %4789 = vmatpush1.msra.mxu0 0.0
    %4790 = vmatprep.subr.mxu0 0.0
    %4791 = vmatpush1.msra.mxu0 0.0
    %4792 = vmatprep.subr.mxu0 0.0
    %4793 = vmatpush1.msra.mxu0 0.0
    %4794 = vmatprep.subr.mxu0 0.0
    %4795 = vmatpush1.msra.mxu0 0.0
    %4796 = vmatprep.subr.mxu0 0.0
    %4797 = vmatpush1.msra.mxu0 0.0
    %4798 = vmatprep.subr.mxu0 0.0
    %4799 = vmatpush1.msra.mxu0 0.0
    %4800 = vmatprep.mubr.f32.mxu0 %v4663
    %4801 = vmatmul.mubr.f32.gmra.mrb[0].mxu0 %v4566
    %v4802 = vpop.f32.mrb[0].mxu0
    %v4803 = vadd.f32 %v63, %v4802
    %v4804 = vpop.f32.mrb[0].mxu0
    %v4805 = vadd.f32 %v67, %v4804
    %4806 = vdwg.mxu0
    %v4807 = vxor.u32 %v4732, 2147483648
    %v4808 = vxor.u32 %v4734, 2147483648
    %v4809 = vmul.f32 %v4807, 1.442695
    %v4810 = vpow.pop %v4809
    %v4811 = vmul.f32 %v4808, 1.442695
    %v4812 = vpow.pop %v4811
    %v4813 = vadd.f32 %v4810, 1.0
    %v4814 = vadd.f32 %v4812, 1.0
    %v4815 = vrcp.pop %v4813
    %v4816 = vmul.f32 1.0, %v4815
    %v4817 = vrcp.pop %v4814
    %v4818 = vmul.f32 1.0, %v4817
    %v4819 = vtanh.pop %v4803
    %v4820 = vxor.u32 %v4805, 2147483648
    %v4821 = vmul.f32 %v4820, 1.442695
    %v4822 = vpow.pop %v4821
    %v4823 = vadd.f32 %v4822, 1.0
    %v4824 = vrcp.pop %v4823
    %v4825 = vmul.f32 1.0, %v4824
    %v4826 = vmul.f32 %v4818, %v4143
    %v4827 = vmul.f32 %v4816, %v4819
    %v4828 = vadd.f32 %v4826, %v4827
    %v4829 = vtanh.pop %v4828
    %v4830 = vmul.f32 %v4825, %v4829
    %4831 = vst [vmem:[#allocation3 + $0x28] sm:$0xff] %v4830
    %4833 = vrot.lane.b32.xlu0 %v4561, 32
    %v4834 = vpop.permute.xlu0 %4833
    %v4836 = vsel %vm119, %v4339, %v4834
    %v4837 = vld [vmem:[#allocation4 + $0x100] sm:$0xff]
    %v4838 = vld [vmem:[#allocation4 + $0x108] sm:$0xff]
    %v4839 = vld [vmem:[#allocation4 + $0x110] sm:$0xff]
    %v4840 = vld [vmem:[#allocation4 + $0x118] sm:$0xff]
    %v4841 = vld [vmem:[#allocation4 + $0x120] sm:$0xff]
    %v4842 = vld [vmem:[#allocation4 + $0x128] sm:$0xff]
    %v4843 = vld [vmem:[#allocation4 + $0x130] sm:$0xff]
    %v4844 = vld [vmem:[#allocation4 + $0x138] sm:$0xff]
    %v4845 = vld [vmem:[#allocation4 + $0x140] sm:$0xff]
    %v4846 = vld [vmem:[#allocation4 + $0x148] sm:$0xff]
    %v4847 = vld [vmem:[#allocation4 + $0x150] sm:$0xff]
    %v4848 = vld [vmem:[#allocation4 + $0x158] sm:$0xff]
    %v4849 = vld [vmem:[#allocation4 + $0x160] sm:$0xff]
    %v4850 = vld [vmem:[#allocation4 + $0x168] sm:$0xff]
    %v4851 = vld [vmem:[#allocation4 + $0x170] sm:$0xff]
    %v4852 = vld [vmem:[#allocation4 + $0x178] sm:$0xff]
    %v4853 = vld [vmem:[#allocation4 + $0x180] sm:$0xff]
    %v4854 = vld [vmem:[#allocation4 + $0x188] sm:$0xff]
    %v4855 = vld [vmem:[#allocation4 + $0x190] sm:$0xff]
    %v4856 = vld [vmem:[#allocation4 + $0x198] sm:$0xff]
    %v4857 = vld [vmem:[#allocation4 + $0x1a0] sm:$0xff]
    %v4858 = vld [vmem:[#allocation4 + $0x1a8] sm:$0xff]
    %v4859 = vld [vmem:[#allocation4 + $0x1b0] sm:$0xff]
    %v4860 = vld [vmem:[#allocation4 + $0x1b8] sm:$0xff]
    %v4861 = vld [vmem:[#allocation4 + $0x1c0] sm:$0xff]
    %v4862 = vld [vmem:[#allocation4 + $0x1c8] sm:$0xff]
    %v4863 = vld [vmem:[#allocation4 + $0x1d0] sm:$0xff]
    %v4864 = vld [vmem:[#allocation4 + $0x1d8] sm:$0xff]
    %v4865 = vld [vmem:[#allocation4 + $0x1e0] sm:$0xff]
    %v4866 = vld [vmem:[#allocation4 + $0x1e8] sm:$0xff]
    %v4867 = vld [vmem:[#allocation4 + $0x1f0] sm:$0xff]
    %v4868 = vld [vmem:[#allocation4 + $0x1f8] sm:$0xff]
    %v4869 = vld [vmem:[#allocation4 + $0x200] sm:$0xff]
    %v4870 = vld [vmem:[#allocation4 + $0x208] sm:$0xff]
    %v4871 = vld [vmem:[#allocation4 + $0x210] sm:$0xff]
    %v4872 = vld [vmem:[#allocation4 + $0x218] sm:$0xff]
    %v4873 = vld [vmem:[#allocation4 + $0x220] sm:$0xff]
    %v4874 = vld [vmem:[#allocation4 + $0x228] sm:$0xff]
    %v4875 = vld [vmem:[#allocation4 + $0x230] sm:$0xff]
    %v4876 = vld [vmem:[#allocation4 + $0x238] sm:$0xff]
    %v4877 = vld [vmem:[#allocation4 + $0x240] sm:$0xff]
    %v4878 = vld [vmem:[#allocation4 + $0x248] sm:$0xff]
    %v4879 = vld [vmem:[#allocation4 + $0x250] sm:$0xff]
    %v4880 = vld [vmem:[#allocation4 + $0x258] sm:$0xff]
    %v4881 = vld [vmem:[#allocation4 + $0x260] sm:$0xff]
    %v4882 = vld [vmem:[#allocation4 + $0x268] sm:$0xff]
    %v4883 = vld [vmem:[#allocation4 + $0x270] sm:$0xff]
    %v4884 = vld [vmem:[#allocation4 + $0x278] sm:$0xff]
    %v4886 = vsel %vm1035, %v4836, 0
    %4888 = vmatprep.subr.mxu0 %v4838
    %4889 = vmatpush1.msra.mxu0 %v4837
    %4890 = vmatprep.subr.mxu0 %v4842
    %4891 = vmatpush1.msra.mxu0 %v4841
    %4892 = vmatprep.subr.mxu0 %v4846
    %4893 = vmatpush1.msra.mxu0 %v4845
    %4894 = vmatprep.subr.mxu0 %v4850
    %4895 = vmatpush1.msra.mxu0 %v4849
    %4896 = vmatprep.subr.mxu0 %v4854
    %4897 = vmatpush1.msra.mxu0 %v4853
    %4898 = vmatprep.subr.mxu0 %v4858
    %4899 = vmatpush1.msra.mxu0 %v4857
    %4900 = vmatprep.subr.mxu0 %v4862
    %4901 = vmatpush1.msra.mxu0 %v4861
    %4902 = vmatprep.subr.mxu0 %v4866
    %4903 = vmatpush1.msra.mxu0 %v4865
    %4904 = vmatprep.subr.mxu0 %v4870
    %4905 = vmatpush1.msra.mxu0 %v4869
    %4906 = vmatprep.subr.mxu0 %v4874
    %4907 = vmatpush1.msra.mxu0 %v4873
    %4908 = vmatprep.subr.mxu0 %v4878
    %4909 = vmatpush1.msra.mxu0 %v4877
    %4910 = vmatprep.subr.mxu0 %v4882
    %4911 = vmatpush1.msra.mxu0 %v4881
    %4912 = vmatprep.subr.mxu0 0.0
    %4913 = vmatpush1.msra.mxu0 0.0
    %4914 = vmatprep.subr.mxu0 0.0
    %4915 = vmatpush1.msra.mxu0 0.0
    %4916 = vmatprep.subr.mxu0 0.0
    %4917 = vmatpush1.msra.mxu0 0.0
    %4918 = vmatprep.subr.mxu0 0.0
    %4919 = vmatpush1.msra.mxu0 0.0
    %4920 = vmatprep.subr.mxu0 0.0
    %4921 = vmatpush1.msra.mxu0 0.0
    %4922 = vmatprep.subr.mxu0 0.0
    %4923 = vmatpush1.msra.mxu0 0.0
    %4924 = vmatprep.subr.mxu0 0.0
    %4925 = vmatpush1.msra.mxu0 0.0
    %4926 = vmatprep.subr.mxu0 0.0
    %4927 = vmatpush1.msra.mxu0 0.0
    %4928 = vmatprep.subr.mxu0 0.0
    %4929 = vmatpush1.msra.mxu0 0.0
    %4930 = vmatprep.subr.mxu0 0.0
    %4931 = vmatpush1.msra.mxu0 0.0
    %4932 = vmatprep.subr.mxu0 0.0
    %4933 = vmatpush1.msra.mxu0 0.0
    %4934 = vmatprep.subr.mxu0 0.0
    %4935 = vmatpush1.msra.mxu0 0.0
    %4936 = vmatprep.subr.mxu0 0.0
    %4937 = vmatpush1.msra.mxu0 0.0
    %4938 = vmatprep.subr.mxu0 0.0
    %4939 = vmatpush1.msra.mxu0 0.0
    %4940 = vmatprep.subr.mxu0 0.0
    %4941 = vmatpush1.msra.mxu0 0.0
    %4942 = vmatprep.subr.mxu0 0.0
    %4943 = vmatpush1.msra.mxu0 0.0
    %4944 = vmatprep.subr.mxu0 0.0
    %4945 = vmatpush1.msra.mxu0 0.0
    %4946 = vmatprep.subr.mxu0 0.0
    %4947 = vmatpush1.msra.mxu0 0.0
    %4948 = vmatprep.subr.mxu0 0.0
    %4949 = vmatpush1.msra.mxu0 0.0
    %4950 = vmatprep.subr.mxu0 0.0
    %4951 = vmatpush1.msra.mxu0 0.0
    %4952 = vmatprep.mubr.f32.mxu0 0.0
    %4953 = vmatmul.mubr.f32.gmra.mrb[0].mxu0 %v4886
    %v4954 = vpop.f32.mrb[0].mxu0
    %v4955 = vadd.f32 %v32, %v4954
    %v4956 = vpop.f32.mrb[0].mxu0
    %v4957 = vadd.f32 %v36, %v4956
    %4958 = vdwg.mxu0
    %4959 = vmatprep.subr.mxu0 %v4840
    %4960 = vmatpush1.msra.mxu0 %v4839
    %4961 = vmatprep.subr.mxu0 %v4844
    %4962 = vmatpush1.msra.mxu0 %v4843
    %4963 = vmatprep.subr.mxu0 %v4848
    %4964 = vmatpush1.msra.mxu0 %v4847
    %4965 = vmatprep.subr.mxu0 %v4852
    %4966 = vmatpush1.msra.mxu0 %v4851
    %4967 = vmatprep.subr.mxu0 %v4856
    %4968 = vmatpush1.msra.mxu0 %v4855
    %4969 = vmatprep.subr.mxu0 %v4860
    %4970 = vmatpush1.msra.mxu0 %v4859
    %4971 = vmatprep.subr.mxu0 %v4864
    %4972 = vmatpush1.msra.mxu0 %v4863
    %4973 = vmatprep.subr.mxu0 %v4868
    %4974 = vmatpush1.msra.mxu0 %v4867
    %4975 = vmatprep.subr.mxu0 %v4872
    %4976 = vmatpush1.msra.mxu0 %v4871
    %4977 = vmatprep.subr.mxu0 %v4876
    %4978 = vmatpush1.msra.mxu0 %v4875
    %4979 = vmatprep.subr.mxu0 %v4880
    %4980 = vmatpush1.msra.mxu0 %v4879
    %4981 = vmatprep.subr.mxu0 %v4884
    %4982 = vmatpush1.msra.mxu0 %v4883
    %4983 = vmatprep.subr.mxu0 0.0
    %4984 = vmatpush1.msra.mxu0 0.0
    %4985 = vmatprep.subr.mxu0 0.0
    %4986 = vmatpush1.msra.mxu0 0.0
    %4987 = vmatprep.subr.mxu0 0.0
    %4988 = vmatpush1.msra.mxu0 0.0
    %4989 = vmatprep.subr.mxu0 0.0
    %4990 = vmatpush1.msra.mxu0 0.0
    %4991 = vmatprep.subr.mxu0 0.0
    %4992 = vmatpush1.msra.mxu0 0.0
    %4993 = vmatprep.subr.mxu0 0.0
    %4994 = vmatpush1.msra.mxu0 0.0
    %4995 = vmatprep.subr.mxu0 0.0
    %4996 = vmatpush1.msra.mxu0 0.0
    %4997 = vmatprep.subr.mxu0 0.0
    %4998 = vmatpush1.msra.mxu0 0.0
    %4999 = vmatprep.subr.mxu0 0.0
    %5000 = vmatpush1.msra.mxu0 0.0
    %5001 = vmatprep.subr.mxu0 0.0
    %5002 = vmatpush1.msra.mxu0 0.0
    %5003 = vmatprep.subr.mxu0 0.0
    %5004 = vmatpush1.msra.mxu0 0.0
    %5005 = vmatprep.subr.mxu0 0.0
    %5006 = vmatpush1.msra.mxu0 0.0
    %5007 = vmatprep.subr.mxu0 0.0
    %5008 = vmatpush1.msra.mxu0 0.0
    %5009 = vmatprep.subr.mxu0 0.0
    %5010 = vmatpush1.msra.mxu0 0.0
    %5011 = vmatprep.subr.mxu0 0.0
    %5012 = vmatpush1.msra.mxu0 0.0
    %5013 = vmatprep.subr.mxu0 0.0
    %5014 = vmatpush1.msra.mxu0 0.0
    %5015 = vmatprep.subr.mxu0 0.0
    %5016 = vmatpush1.msra.mxu0 0.0
    %5017 = vmatprep.subr.mxu0 0.0
    %5018 = vmatpush1.msra.mxu0 0.0
    %5019 = vmatprep.subr.mxu0 0.0
    %5020 = vmatpush1.msra.mxu0 0.0
    %5021 = vmatprep.subr.mxu0 0.0
    %5022 = vmatpush1.msra.mxu0 0.0
    %5023 = vmatprep.mubr.f32.mxu0 0.0
    %5024 = vmatmul.mubr.f32.gmra.mrb[0].mxu0 %v4886
    %v5025 = vpop.f32.mrb[0].mxu0
    %v5026 = vadd.f32 %v40, %v5025
    %v5027 = vpop.f32.mrb[0].mxu0
    %v5028 = vadd.f32 %v44, %v5027
    %5029 = vdwg.mxu0
    %v5030 = vxor.u32 %v4955, 2147483648
    %v5031 = vxor.u32 %v4957, 2147483648
    %v5032 = vmul.f32 %v5030, 1.442695
    %v5033 = vpow.pop %v5032
    %v5034 = vmul.f32 %v5031, 1.442695
    %v5035 = vpow.pop %v5034
    %v5036 = vadd.f32 %v5033, 1.0
    %v5037 = vadd.f32 %v5035, 1.0
    %v5038 = vrcp.pop %v5036
    %v5039 = vmul.f32 1.0, %v5038
    %v5040 = vrcp.pop %v5037
    %v5041 = vmul.f32 1.0, %v5040
    %v5042 = vtanh.pop %v5026
    %v5043 = vxor.u32 %v5028, 2147483648
    %v5044 = vmul.f32 %v5043, 1.442695
    %v5045 = vpow.pop %v5044
    %v5046 = vadd.f32 %v5045, 1.0
    %v5047 = vrcp.pop %v5046
    %v5048 = vmul.f32 1.0, %v5047
    %v5049 = vmul.f32 %v5041, %v4559
    %v5050 = vmul.f32 %v5039, %v5042
    %v5051 = vadd.f32 %v5049, %v5050
    %v5052 = vtanh.pop %v5051
    %v5053 = vmul.f32 %v5048, %v5052
    %5055 = vrot.lane.b32.xlu0 %v4830, 64
    %v5056 = vpop.permute.xlu0 %5055
    %v5058 = vsel %vm1237, %v4561, %v5056
    %v5059 = vld [vmem:[#allocation4 + $0x280] sm:$0xff]
    %v5060 = vld [vmem:[#allocation4 + $0x288] sm:$0xff]
    %v5061 = vld [vmem:[#allocation4 + $0x290] sm:$0xff]
    %v5062 = vld [vmem:[#allocation4 + $0x298] sm:$0xff]
    %v5063 = vld [vmem:[#allocation4 + $0x2a0] sm:$0xff]
    %v5064 = vld [vmem:[#allocation4 + $0x2a8] sm:$0xff]
    %v5065 = vld [vmem:[#allocation4 + $0x2b0] sm:$0xff]
    %v5066 = vld [vmem:[#allocation4 + $0x2b8] sm:$0xff]
    %v5067 = vld [vmem:[#allocation4 + $0x2c0] sm:$0xff]
    %v5068 = vld [vmem:[#allocation4 + $0x2c8] sm:$0xff]
    %v5069 = vld [vmem:[#allocation4 + $0x2d0] sm:$0xff]
    %v5070 = vld [vmem:[#allocation4 + $0x2d8] sm:$0xff]
    %v5071 = vld [vmem:[#allocation4 + $0x2e0] sm:$0xff]
    %v5072 = vld [vmem:[#allocation4 + $0x2e8] sm:$0xff]
    %v5073 = vld [vmem:[#allocation4 + $0x2f0] sm:$0xff]
    %v5074 = vld [vmem:[#allocation4 + $0x2f8] sm:$0xff]
    %v5075 = vld [vmem:[#allocation4 + $0x300] sm:$0xff]
    %v5076 = vld [vmem:[#allocation4 + $0x308] sm:$0xff]
    %v5077 = vld [vmem:[#allocation4 + $0x310] sm:$0xff]
    %v5078 = vld [vmem:[#allocation4 + $0x318] sm:$0xff]
    %v5079 = vld [vmem:[#allocation4 + $0x320] sm:$0xff]
    %v5080 = vld [vmem:[#allocation4 + $0x328] sm:$0xff]
    %v5081 = vld [vmem:[#allocation4 + $0x330] sm:$0xff]
    %v5082 = vld [vmem:[#allocation4 + $0x338] sm:$0xff]
    %v5083 = vld [vmem:[#allocation4 + $0x340] sm:$0xff]
    %v5084 = vld [vmem:[#allocation4 + $0x348] sm:$0xff]
    %v5085 = vld [vmem:[#allocation4 + $0x350] sm:$0xff]
    %v5086 = vld [vmem:[#allocation4 + $0x358] sm:$0xff]
    %v5087 = vld [vmem:[#allocation4 + $0x360] sm:$0xff]
    %v5088 = vld [vmem:[#allocation4 + $0x368] sm:$0xff]
    %v5089 = vld [vmem:[#allocation4 + $0x370] sm:$0xff]
    %v5090 = vld [vmem:[#allocation4 + $0x378] sm:$0xff]
    %v5091 = vld [vmem:[#allocation4 + $0x380] sm:$0xff]
    %v5092 = vld [vmem:[#allocation4 + $0x388] sm:$0xff]
    %v5093 = vld [vmem:[#allocation4 + $0x390] sm:$0xff]
    %v5094 = vld [vmem:[#allocation4 + $0x398] sm:$0xff]
    %v5095 = vld [vmem:[#allocation4 + $0x3a0] sm:$0xff]
    %v5096 = vld [vmem:[#allocation4 + $0x3a8] sm:$0xff]
    %v5097 = vld [vmem:[#allocation4 + $0x3b0] sm:$0xff]
    %v5098 = vld [vmem:[#allocation4 + $0x3b8] sm:$0xff]
    %v5099 = vld [vmem:[#allocation4 + $0x3c0] sm:$0xff]
    %v5100 = vld [vmem:[#allocation4 + $0x3c8] sm:$0xff]
    %v5101 = vld [vmem:[#allocation4 + $0x3d0] sm:$0xff]
    %v5102 = vld [vmem:[#allocation4 + $0x3d8] sm:$0xff]
    %v5103 = vld [vmem:[#allocation4 + $0x3e0] sm:$0xff]
    %v5104 = vld [vmem:[#allocation4 + $0x3e8] sm:$0xff]
    %v5105 = vld [vmem:[#allocation4 + $0x3f0] sm:$0xff]
    %v5106 = vld [vmem:[#allocation4 + $0x3f8] sm:$0xff]
    %v5107 = vld [vmem:[#allocation4 + $0x400] sm:$0xff]
    %v5108 = vld [vmem:[#allocation4 + $0x408] sm:$0xff]
    %v5109 = vld [vmem:[#allocation4 + $0x410] sm:$0xff]
    %v5110 = vld [vmem:[#allocation4 + $0x418] sm:$0xff]
    %v5111 = vld [vmem:[#allocation4 + $0x420] sm:$0xff]
    %v5112 = vld [vmem:[#allocation4 + $0x428] sm:$0xff]
    %v5113 = vld [vmem:[#allocation4 + $0x430] sm:$0xff]
    %v5114 = vld [vmem:[#allocation4 + $0x438] sm:$0xff]
    %v5115 = vld [vmem:[#allocation4 + $0x440] sm:$0xff]
    %v5116 = vld [vmem:[#allocation4 + $0x448] sm:$0xff]
    %v5117 = vld [vmem:[#allocation4 + $0x450] sm:$0xff]
    %v5118 = vld [vmem:[#allocation4 + $0x458] sm:$0xff]
    %v5119 = vld [vmem:[#allocation4 + $0x460] sm:$0xff]
    %v5120 = vld [vmem:[#allocation4 + $0x468] sm:$0xff]
    %v5121 = vld [vmem:[#allocation4 + $0x470] sm:$0xff]
    %v5122 = vld [vmem:[#allocation4 + $0x478] sm:$0xff]
    %v5123 = vld [vmem:[#allocation4 + $0x480] sm:$0xff]
    %v5124 = vld [vmem:[#allocation4 + $0x488] sm:$0xff]
    %v5125 = vld [vmem:[#allocation4 + $0x490] sm:$0xff]
    %v5126 = vld [vmem:[#allocation4 + $0x498] sm:$0xff]
    %v5127 = vld [vmem:[#allocation4 + $0x4a0] sm:$0xff]
    %v5128 = vld [vmem:[#allocation4 + $0x4a8] sm:$0xff]
    %v5129 = vld [vmem:[#allocation4 + $0x4b0] sm:$0xff]
    %v5130 = vld [vmem:[#allocation4 + $0x4b8] sm:$0xff]
    %v5131 = vld [vmem:[#allocation4 + $0x4c0] sm:$0xff]
    %v5132 = vld [vmem:[#allocation4 + $0x4c8] sm:$0xff]
    %v5133 = vld [vmem:[#allocation4 + $0x4d0] sm:$0xff]
    %v5134 = vld [vmem:[#allocation4 + $0x4d8] sm:$0xff]
    %v5135 = vld [vmem:[#allocation4 + $0x4e0] sm:$0xff]
    %v5136 = vld [vmem:[#allocation4 + $0x4e8] sm:$0xff]
    %v5137 = vld [vmem:[#allocation4 + $0x4f0] sm:$0xff]
    %v5138 = vld [vmem:[#allocation4 + $0x4f8] sm:$0xff]
    %v5139 = vld [vmem:[#allocation4 + $0x500] sm:$0xff]
    %v5140 = vld [vmem:[#allocation4 + $0x508] sm:$0xff]
    %v5141 = vld [vmem:[#allocation4 + $0x510] sm:$0xff]
    %v5142 = vld [vmem:[#allocation4 + $0x518] sm:$0xff]
    %v5143 = vld [vmem:[#allocation4 + $0x520] sm:$0xff]
    %v5144 = vld [vmem:[#allocation4 + $0x528] sm:$0xff]
    %v5145 = vld [vmem:[#allocation4 + $0x530] sm:$0xff]
    %v5146 = vld [vmem:[#allocation4 + $0x538] sm:$0xff]
    %v5147 = vld [vmem:[#allocation4 + $0x540] sm:$0xff]
    %v5148 = vld [vmem:[#allocation4 + $0x548] sm:$0xff]
    %v5149 = vld [vmem:[#allocation4 + $0x550] sm:$0xff]
    %v5150 = vld [vmem:[#allocation4 + $0x558] sm:$0xff]
    %v5151 = vld [vmem:[#allocation4 + $0x560] sm:$0xff]
    %v5152 = vld [vmem:[#allocation4 + $0x568] sm:$0xff]
    %v5153 = vld [vmem:[#allocation4 + $0x570] sm:$0xff]
    %v5154 = vld [vmem:[#allocation4 + $0x578] sm:$0xff]
    %v5155 = vsel %vm1237, %v5056, 0
    %5157 = vmatprep.subr.mxu0 %v5060
    %5158 = vmatpush1.msra.mxu0 %v5059
    %5159 = vmatprep.subr.mxu0 %v5064
    %5160 = vmatpush1.msra.mxu0 %v5063
    %5161 = vmatprep.subr.mxu0 %v5068
    %5162 = vmatpush1.msra.mxu0 %v5067
    %5163 = vmatprep.subr.mxu0 %v5072
    %5164 = vmatpush1.msra.mxu0 %v5071
    %5165 = vmatprep.subr.mxu0 %v5076
    %5166 = vmatpush1.msra.mxu0 %v5075
    %5167 = vmatprep.subr.mxu0 %v5080
    %5168 = vmatpush1.msra.mxu0 %v5079
    %5169 = vmatprep.subr.mxu0 %v5084
    %5170 = vmatpush1.msra.mxu0 %v5083
    %5171 = vmatprep.subr.mxu0 %v5088
    %5172 = vmatpush1.msra.mxu0 %v5087
    %5173 = vmatprep.subr.mxu0 %v5092
    %5174 = vmatpush1.msra.mxu0 %v5091
    %5175 = vmatprep.subr.mxu0 %v5096
    %5176 = vmatpush1.msra.mxu0 %v5095
    %5177 = vmatprep.subr.mxu0 %v5100
    %5178 = vmatpush1.msra.mxu0 %v5099
    %5179 = vmatprep.subr.mxu0 %v5104
    %5180 = vmatpush1.msra.mxu0 %v5103
    %5181 = vmatprep.subr.mxu0 %v5108
    %5182 = vmatpush1.msra.mxu0 %v5107
    %5183 = vmatprep.subr.mxu0 %v5112
    %5184 = vmatpush1.msra.mxu0 %v5111
    %5185 = vmatprep.subr.mxu0 %v5116
    %5186 = vmatpush1.msra.mxu0 %v5115
    %5187 = vmatprep.subr.mxu0 %v5120
    %5188 = vmatpush1.msra.mxu0 %v5119
    %5189 = vmatprep.subr.mxu0 %v5124
    %5190 = vmatpush1.msra.mxu0 %v5123
    %5191 = vmatprep.subr.mxu0 %v5128
    %5192 = vmatpush1.msra.mxu0 %v5127
    %5193 = vmatprep.subr.mxu0 %v5132
    %5194 = vmatpush1.msra.mxu0 %v5131
    %5195 = vmatprep.subr.mxu0 %v5136
    %5196 = vmatpush1.msra.mxu0 %v5135
    %5197 = vmatprep.subr.mxu0 %v5140
    %5198 = vmatpush1.msra.mxu0 %v5139
    %5199 = vmatprep.subr.mxu0 %v5144
    %5200 = vmatpush1.msra.mxu0 %v5143
    %5201 = vmatprep.subr.mxu0 %v5148
    %5202 = vmatpush1.msra.mxu0 %v5147
    %5203 = vmatprep.subr.mxu0 %v5152
    %5204 = vmatpush1.msra.mxu0 %v5151
    %5205 = vmatprep.subr.mxu0 0.0
    %5206 = vmatpush1.msra.mxu0 0.0
    %5207 = vmatprep.subr.mxu0 0.0
    %5208 = vmatpush1.msra.mxu0 0.0
    %5209 = vmatprep.subr.mxu0 0.0
    %5210 = vmatpush1.msra.mxu0 0.0
    %5211 = vmatprep.subr.mxu0 0.0
    %5212 = vmatpush1.msra.mxu0 0.0
    %5213 = vmatprep.subr.mxu0 0.0
    %5214 = vmatpush1.msra.mxu0 0.0
    %5215 = vmatprep.subr.mxu0 0.0
    %5216 = vmatpush1.msra.mxu0 0.0
    %5217 = vmatprep.subr.mxu0 0.0
    %5218 = vmatpush1.msra.mxu0 0.0
    %5219 = vmatprep.subr.mxu0 0.0
    %5220 = vmatpush1.msra.mxu0 0.0
    %5221 = vmatprep.mubr.f32.mxu0 %v5155
    %5222 = vmatmul.mubr.f32.gmra.mrb[0].mxu0 %v5058
    %v5223 = vpop.f32.mrb[0].mxu0
    %v5224 = vadd.f32 %v55, %v5223
    %v5225 = vpop.f32.mrb[0].mxu0
    %v5226 = vadd.f32 %v59, %v5225
    %5227 = vdwg.mxu0
    %5228 = vmatprep.subr.mxu0 %v5062
    %5229 = vmatpush1.msra.mxu0 %v5061
    %5230 = vmatprep.subr.mxu0 %v5066
    %5231 = vmatpush1.msra.mxu0 %v5065
    %5232 = vmatprep.subr.mxu0 %v5070
    %5233 = vmatpush1.msra.mxu0 %v5069
    %5234 = vmatprep.subr.mxu0 %v5074
    %5235 = vmatpush1.msra.mxu0 %v5073
    %5236 = vmatprep.subr.mxu0 %v5078
    %5237 = vmatpush1.msra.mxu0 %v5077
    %5238 = vmatprep.subr.mxu0 %v5082
    %5239 = vmatpush1.msra.mxu0 %v5081
    %5240 = vmatprep.subr.mxu0 %v5086
    %5241 = vmatpush1.msra.mxu0 %v5085
    %5242 = vmatprep.subr.mxu0 %v5090
    %5243 = vmatpush1.msra.mxu0 %v5089
    %5244 = vmatprep.subr.mxu0 %v5094
    %5245 = vmatpush1.msra.mxu0 %v5093
    %5246 = vmatprep.subr.mxu0 %v5098
    %5247 = vmatpush1.msra.mxu0 %v5097
    %5248 = vmatprep.subr.mxu0 %v5102
    %5249 = vmatpush1.msra.mxu0 %v5101
    %5250 = vmatprep.subr.mxu0 %v5106
    %5251 = vmatpush1.msra.mxu0 %v5105
    %5252 = vmatprep.subr.mxu0 %v5110
    %5253 = vmatpush1.msra.mxu0 %v5109
    %5254 = vmatprep.subr.mxu0 %v5114
    %5255 = vmatpush1.msra.mxu0 %v5113
    %5256 = vmatprep.subr.mxu0 %v5118
    %5257 = vmatpush1.msra.mxu0 %v5117
    %5258 = vmatprep.subr.mxu0 %v5122
    %5259 = vmatpush1.msra.mxu0 %v5121
    %5260 = vmatprep.subr.mxu0 %v5126
    %5261 = vmatpush1.msra.mxu0 %v5125
    %5262 = vmatprep.subr.mxu0 %v5130
    %5263 = vmatpush1.msra.mxu0 %v5129
    %5264 = vmatprep.subr.mxu0 %v5134
    %5265 = vmatpush1.msra.mxu0 %v5133
    %5266 = vmatprep.subr.mxu0 %v5138
    %5267 = vmatpush1.msra.mxu0 %v5137
    %5268 = vmatprep.subr.mxu0 %v5142
    %5269 = vmatpush1.msra.mxu0 %v5141
    %5270 = vmatprep.subr.mxu0 %v5146
    %5271 = vmatpush1.msra.mxu0 %v5145
    %5272 = vmatprep.subr.mxu0 %v5150
    %5273 = vmatpush1.msra.mxu0 %v5149
    %5274 = vmatprep.subr.mxu0 %v5154
    %5275 = vmatpush1.msra.mxu0 %v5153
    %5276 = vmatprep.subr.mxu0 0.0
    %5277 = vmatpush1.msra.mxu0 0.0
    %5278 = vmatprep.subr.mxu0 0.0
    %5279 = vmatpush1.msra.mxu0 0.0
    %5280 = vmatprep.subr.mxu0 0.0
    %5281 = vmatpush1.msra.mxu0 0.0
    %5282 = vmatprep.subr.mxu0 0.0
    %5283 = vmatpush1.msra.mxu0 0.0
    %5284 = vmatprep.subr.mxu0 0.0
    %5285 = vmatpush1.msra.mxu0 0.0
    %5286 = vmatprep.subr.mxu0 0.0
    %5287 = vmatpush1.msra.mxu0 0.0
    %5288 = vmatprep.subr.mxu0 0.0
    %5289 = vmatpush1.msra.mxu0 0.0
    %5290 = vmatprep.subr.mxu0 0.0
    %5291 = vmatpush1.msra.mxu0 0.0
    %5292 = vmatprep.mubr.f32.mxu0 %v5155
    %5293 = vmatmul.mubr.f32.gmra.mrb[0].mxu0 %v5058
    %v5294 = vpop.f32.mrb[0].mxu0
    %v5295 = vadd.f32 %v63, %v5294
    %v5296 = vpop.f32.mrb[0].mxu0
    %v5297 = vadd.f32 %v67, %v5296
    %5298 = vdwg.mxu0
    %v5299 = vxor.u32 %v5224, 2147483648
    %v5300 = vxor.u32 %v5226, 2147483648
    %v5301 = vmul.f32 %v5299, 1.442695
    %v5302 = vpow.pop %v5301
    %v5303 = vmul.f32 %v5300, 1.442695
    %v5304 = vpow.pop %v5303
    %v5305 = vadd.f32 %v5302, 1.0
    %v5306 = vadd.f32 %v5304, 1.0
    %v5307 = vrcp.pop %v5305
    %v5308 = vmul.f32 1.0, %v5307
    %v5309 = vrcp.pop %v5306
    %v5310 = vmul.f32 1.0, %v5309
    %v5311 = vtanh.pop %v5295
    %v5312 = vxor.u32 %v5297, 2147483648
    %v5313 = vmul.f32 %v5312, 1.442695
    %v5314 = vpow.pop %v5313
    %v5315 = vadd.f32 %v5314, 1.0
    %v5316 = vrcp.pop %v5315
    %v5317 = vmul.f32 1.0, %v5316
    %v5318 = vmul.f32 %v5310, %v4828
    %v5319 = vmul.f32 %v5308, %v5311
    %v5320 = vadd.f32 %v5318, %v5319
    %v5321 = vtanh.pop %v5320
    %v5322 = vmul.f32 %v5317, %v5321
    %5323 = vst [vmem:[#allocation3 + $0x30] sm:$0xff] %v5322
    %5325 = vrot.lane.b32.xlu0 %v5322, 64
    %v5326 = vpop.permute.xlu0 %5325
    %v5328 = vsel %vm1237, %v5053, %v5326
    %v5329 = vld [vmem:[#allocation4 + $0x280] sm:$0xff]
    %v5330 = vld [vmem:[#allocation4 + $0x288] sm:$0xff]
    %v5331 = vld [vmem:[#allocation4 + $0x290] sm:$0xff]
    %v5332 = vld [vmem:[#allocation4 + $0x298] sm:$0xff]
    %v5333 = vld [vmem:[#allocation4 + $0x2a0] sm:$0xff]
    %v5334 = vld [vmem:[#allocation4 + $0x2a8] sm:$0xff]
    %v5335 = vld [vmem:[#allocation4 + $0x2b0] sm:$0xff]
    %v5336 = vld [vmem:[#allocation4 + $0x2b8] sm:$0xff]
    %v5337 = vld [vmem:[#allocation4 + $0x2c0] sm:$0xff]
    %v5338 = vld [vmem:[#allocation4 + $0x2c8] sm:$0xff]
    %v5339 = vld [vmem:[#allocation4 + $0x2d0] sm:$0xff]
    %v5340 = vld [vmem:[#allocation4 + $0x2d8] sm:$0xff]
    %v5341 = vld [vmem:[#allocation4 + $0x2e0] sm:$0xff]
    %v5342 = vld [vmem:[#allocation4 + $0x2e8] sm:$0xff]
    %v5343 = vld [vmem:[#allocation4 + $0x2f0] sm:$0xff]
    %v5344 = vld [vmem:[#allocation4 + $0x2f8] sm:$0xff]
    %v5345 = vld [vmem:[#allocation4 + $0x300] sm:$0xff]
    %v5346 = vld [vmem:[#allocation4 + $0x308] sm:$0xff]
    %v5347 = vld [vmem:[#allocation4 + $0x310] sm:$0xff]
    %v5348 = vld [vmem:[#allocation4 + $0x318] sm:$0xff]
    %v5349 = vld [vmem:[#allocation4 + $0x320] sm:$0xff]
    %v5350 = vld [vmem:[#allocation4 + $0x328] sm:$0xff]
    %v5351 = vld [vmem:[#allocation4 + $0x330] sm:$0xff]
    %v5352 = vld [vmem:[#allocation4 + $0x338] sm:$0xff]
    %v5353 = vld [vmem:[#allocation4 + $0x340] sm:$0xff]
    %v5354 = vld [vmem:[#allocation4 + $0x348] sm:$0xff]
    %v5355 = vld [vmem:[#allocation4 + $0x350] sm:$0xff]
    %v5356 = vld [vmem:[#allocation4 + $0x358] sm:$0xff]
    %v5357 = vld [vmem:[#allocation4 + $0x360] sm:$0xff]
    %v5358 = vld [vmem:[#allocation4 + $0x368] sm:$0xff]
    %v5359 = vld [vmem:[#allocation4 + $0x370] sm:$0xff]
    %v5360 = vld [vmem:[#allocation4 + $0x378] sm:$0xff]
    %v5361 = vld [vmem:[#allocation4 + $0x380] sm:$0xff]
    %v5362 = vld [vmem:[#allocation4 + $0x388] sm:$0xff]
    %v5363 = vld [vmem:[#allocation4 + $0x390] sm:$0xff]
    %v5364 = vld [vmem:[#allocation4 + $0x398] sm:$0xff]
    %v5365 = vld [vmem:[#allocation4 + $0x3a0] sm:$0xff]
    %v5366 = vld [vmem:[#allocation4 + $0x3a8] sm:$0xff]
    %v5367 = vld [vmem:[#allocation4 + $0x3b0] sm:$0xff]
    %v5368 = vld [vmem:[#allocation4 + $0x3b8] sm:$0xff]
    %v5369 = vld [vmem:[#allocation4 + $0x3c0] sm:$0xff]
    %v5370 = vld [vmem:[#allocation4 + $0x3c8] sm:$0xff]
    %v5371 = vld [vmem:[#allocation4 + $0x3d0] sm:$0xff]
    %v5372 = vld [vmem:[#allocation4 + $0x3d8] sm:$0xff]
    %v5373 = vld [vmem:[#allocation4 + $0x3e0] sm:$0xff]
    %v5374 = vld [vmem:[#allocation4 + $0x3e8] sm:$0xff]
    %v5375 = vld [vmem:[#allocation4 + $0x3f0] sm:$0xff]
    %v5376 = vld [vmem:[#allocation4 + $0x3f8] sm:$0xff]
    %v5377 = vld [vmem:[#allocation4 + $0x400] sm:$0xff]
    %v5378 = vld [vmem:[#allocation4 + $0x408] sm:$0xff]
    %v5379 = vld [vmem:[#allocation4 + $0x410] sm:$0xff]
    %v5380 = vld [vmem:[#allocation4 + $0x418] sm:$0xff]
    %v5381 = vld [vmem:[#allocation4 + $0x420] sm:$0xff]
    %v5382 = vld [vmem:[#allocation4 + $0x428] sm:$0xff]
    %v5383 = vld [vmem:[#allocation4 + $0x430] sm:$0xff]
    %v5384 = vld [vmem:[#allocation4 + $0x438] sm:$0xff]
    %v5385 = vld [vmem:[#allocation4 + $0x440] sm:$0xff]
    %v5386 = vld [vmem:[#allocation4 + $0x448] sm:$0xff]
    %v5387 = vld [vmem:[#allocation4 + $0x450] sm:$0xff]
    %v5388 = vld [vmem:[#allocation4 + $0x458] sm:$0xff]
    %v5389 = vld [vmem:[#allocation4 + $0x460] sm:$0xff]
    %v5390 = vld [vmem:[#allocation4 + $0x468] sm:$0xff]
    %v5391 = vld [vmem:[#allocation4 + $0x470] sm:$0xff]
    %v5392 = vld [vmem:[#allocation4 + $0x478] sm:$0xff]
    %v5393 = vld [vmem:[#allocation4 + $0x480] sm:$0xff]
    %v5394 = vld [vmem:[#allocation4 + $0x488] sm:$0xff]
    %v5395 = vld [vmem:[#allocation4 + $0x490] sm:$0xff]
    %v5396 = vld [vmem:[#allocation4 + $0x498] sm:$0xff]
    %v5397 = vld [vmem:[#allocation4 + $0x4a0] sm:$0xff]
    %v5398 = vld [vmem:[#allocation4 + $0x4a8] sm:$0xff]
    %v5399 = vld [vmem:[#allocation4 + $0x4b0] sm:$0xff]
    %v5400 = vld [vmem:[#allocation4 + $0x4b8] sm:$0xff]
    %v5401 = vld [vmem:[#allocation4 + $0x4c0] sm:$0xff]
    %v5402 = vld [vmem:[#allocation4 + $0x4c8] sm:$0xff]
    %v5403 = vld [vmem:[#allocation4 + $0x4d0] sm:$0xff]
    %v5404 = vld [vmem:[#allocation4 + $0x4d8] sm:$0xff]
    %v5405 = vld [vmem:[#allocation4 + $0x4e0] sm:$0xff]
    %v5406 = vld [vmem:[#allocation4 + $0x4e8] sm:$0xff]
    %v5407 = vld [vmem:[#allocation4 + $0x4f0] sm:$0xff]
    %v5408 = vld [vmem:[#allocation4 + $0x4f8] sm:$0xff]
    %v5409 = vld [vmem:[#allocation4 + $0x500] sm:$0xff]
    %v5410 = vld [vmem:[#allocation4 + $0x508] sm:$0xff]
    %v5411 = vld [vmem:[#allocation4 + $0x510] sm:$0xff]
    %v5412 = vld [vmem:[#allocation4 + $0x518] sm:$0xff]
    %v5413 = vld [vmem:[#allocation4 + $0x520] sm:$0xff]
    %v5414 = vld [vmem:[#allocation4 + $0x528] sm:$0xff]
    %v5415 = vld [vmem:[#allocation4 + $0x530] sm:$0xff]
    %v5416 = vld [vmem:[#allocation4 + $0x538] sm:$0xff]
    %v5417 = vld [vmem:[#allocation4 + $0x540] sm:$0xff]
    %v5418 = vld [vmem:[#allocation4 + $0x548] sm:$0xff]
    %v5419 = vld [vmem:[#allocation4 + $0x550] sm:$0xff]
    %v5420 = vld [vmem:[#allocation4 + $0x558] sm:$0xff]
    %v5421 = vld [vmem:[#allocation4 + $0x560] sm:$0xff]
    %v5422 = vld [vmem:[#allocation4 + $0x568] sm:$0xff]
    %v5423 = vld [vmem:[#allocation4 + $0x570] sm:$0xff]
    %v5424 = vld [vmem:[#allocation4 + $0x578] sm:$0xff]
    %v5425 = vsel %vm1237, %v5326, 0
    %5427 = vmatprep.subr.mxu0 %v5330
    %5428 = vmatpush1.msra.mxu0 %v5329
    %5429 = vmatprep.subr.mxu0 %v5334
    %5430 = vmatpush1.msra.mxu0 %v5333
    %5431 = vmatprep.subr.mxu0 %v5338
    %5432 = vmatpush1.msra.mxu0 %v5337
    %5433 = vmatprep.subr.mxu0 %v5342
    %5434 = vmatpush1.msra.mxu0 %v5341
    %5435 = vmatprep.subr.mxu0 %v5346
    %5436 = vmatpush1.msra.mxu0 %v5345
    %5437 = vmatprep.subr.mxu0 %v5350
    %5438 = vmatpush1.msra.mxu0 %v5349
    %5439 = vmatprep.subr.mxu0 %v5354
    %5440 = vmatpush1.msra.mxu0 %v5353
    %5441 = vmatprep.subr.mxu0 %v5358
    %5442 = vmatpush1.msra.mxu0 %v5357
    %5443 = vmatprep.subr.mxu0 %v5362
    %5444 = vmatpush1.msra.mxu0 %v5361
    %5445 = vmatprep.subr.mxu0 %v5366
    %5446 = vmatpush1.msra.mxu0 %v5365
    %5447 = vmatprep.subr.mxu0 %v5370
    %5448 = vmatpush1.msra.mxu0 %v5369
    %5449 = vmatprep.subr.mxu0 %v5374
    %5450 = vmatpush1.msra.mxu0 %v5373
    %5451 = vmatprep.subr.mxu0 %v5378
    %5452 = vmatpush1.msra.mxu0 %v5377
    %5453 = vmatprep.subr.mxu0 %v5382
    %5454 = vmatpush1.msra.mxu0 %v5381
    %5455 = vmatprep.subr.mxu0 %v5386
    %5456 = vmatpush1.msra.mxu0 %v5385
    %5457 = vmatprep.subr.mxu0 %v5390
    %5458 = vmatpush1.msra.mxu0 %v5389
    %5459 = vmatprep.subr.mxu0 %v5394
    %5460 = vmatpush1.msra.mxu0 %v5393
    %5461 = vmatprep.subr.mxu0 %v5398
    %5462 = vmatpush1.msra.mxu0 %v5397
    %5463 = vmatprep.subr.mxu0 %v5402
    %5464 = vmatpush1.msra.mxu0 %v5401
    %5465 = vmatprep.subr.mxu0 %v5406
    %5466 = vmatpush1.msra.mxu0 %v5405
    %5467 = vmatprep.subr.mxu0 %v5410
    %5468 = vmatpush1.msra.mxu0 %v5409
    %5469 = vmatprep.subr.mxu0 %v5414
    %5470 = vmatpush1.msra.mxu0 %v5413
    %5471 = vmatprep.subr.mxu0 %v5418
    %5472 = vmatpush1.msra.mxu0 %v5417
    %5473 = vmatprep.subr.mxu0 %v5422
    %5474 = vmatpush1.msra.mxu0 %v5421
    %5475 = vmatprep.subr.mxu0 0.0
    %5476 = vmatpush1.msra.mxu0 0.0
    %5477 = vmatprep.subr.mxu0 0.0
    %5478 = vmatpush1.msra.mxu0 0.0
    %5479 = vmatprep.subr.mxu0 0.0
    %5480 = vmatpush1.msra.mxu0 0.0
    %5481 = vmatprep.subr.mxu0 0.0
    %5482 = vmatpush1.msra.mxu0 0.0
    %5483 = vmatprep.subr.mxu0 0.0
    %5484 = vmatpush1.msra.mxu0 0.0
    %5485 = vmatprep.subr.mxu0 0.0
    %5486 = vmatpush1.msra.mxu0 0.0
    %5487 = vmatprep.subr.mxu0 0.0
    %5488 = vmatpush1.msra.mxu0 0.0
    %5489 = vmatprep.subr.mxu0 0.0
    %5490 = vmatpush1.msra.mxu0 0.0
    %5491 = vmatprep.mubr.f32.mxu0 %v5425
    %5492 = vmatmul.mubr.f32.gmra.mrb[0].mxu0 %v5328
    %v5493 = vpop.f32.mrb[0].mxu0
    %v5494 = vadd.f32 %v55, %v5493
    %v5495 = vpop.f32.mrb[0].mxu0
    %v5496 = vadd.f32 %v59, %v5495
    %5497 = vdwg.mxu0
    %5498 = vmatprep.subr.mxu0 %v5332
    %5499 = vmatpush1.msra.mxu0 %v5331
    %5500 = vmatprep.subr.mxu0 %v5336
    %5501 = vmatpush1.msra.mxu0 %v5335
    %5502 = vmatprep.subr.mxu0 %v5340
    %5503 = vmatpush1.msra.mxu0 %v5339
    %5504 = vmatprep.subr.mxu0 %v5344
    %5505 = vmatpush1.msra.mxu0 %v5343
    %5506 = vmatprep.subr.mxu0 %v5348
    %5507 = vmatpush1.msra.mxu0 %v5347
    %5508 = vmatprep.subr.mxu0 %v5352
    %5509 = vmatpush1.msra.mxu0 %v5351
    %5510 = vmatprep.subr.mxu0 %v5356
    %5511 = vmatpush1.msra.mxu0 %v5355
    %5512 = vmatprep.subr.mxu0 %v5360
    %5513 = vmatpush1.msra.mxu0 %v5359
    %5514 = vmatprep.subr.mxu0 %v5364
    %5515 = vmatpush1.msra.mxu0 %v5363
    %5516 = vmatprep.subr.mxu0 %v5368
    %5517 = vmatpush1.msra.mxu0 %v5367
    %5518 = vmatprep.subr.mxu0 %v5372
    %5519 = vmatpush1.msra.mxu0 %v5371
    %5520 = vmatprep.subr.mxu0 %v5376
    %5521 = vmatpush1.msra.mxu0 %v5375
    %5522 = vmatprep.subr.mxu0 %v5380
    %5523 = vmatpush1.msra.mxu0 %v5379
    %5524 = vmatprep.subr.mxu0 %v5384
    %5525 = vmatpush1.msra.mxu0 %v5383
    %5526 = vmatprep.subr.mxu0 %v5388
    %5527 = vmatpush1.msra.mxu0 %v5387
    %5528 = vmatprep.subr.mxu0 %v5392
    %5529 = vmatpush1.msra.mxu0 %v5391
    %5530 = vmatprep.subr.mxu0 %v5396
    %5531 = vmatpush1.msra.mxu0 %v5395
    %5532 = vmatprep.subr.mxu0 %v5400
    %5533 = vmatpush1.msra.mxu0 %v5399
    %5534 = vmatprep.subr.mxu0 %v5404
    %5535 = vmatpush1.msra.mxu0 %v5403
    %5536 = vmatprep.subr.mxu0 %v5408
    %5537 = vmatpush1.msra.mxu0 %v5407
    %5538 = vmatprep.subr.mxu0 %v5412
    %5539 = vmatpush1.msra.mxu0 %v5411
    %5540 = vmatprep.subr.mxu0 %v5416
    %5541 = vmatpush1.msra.mxu0 %v5415
    %5542 = vmatprep.subr.mxu0 %v5420
    %5543 = vmatpush1.msra.mxu0 %v5419
    %5544 = vmatprep.subr.mxu0 %v5424
    %5545 = vmatpush1.msra.mxu0 %v5423
    %5546 = vmatprep.subr.mxu0 0.0
    %5547 = vmatpush1.msra.mxu0 0.0
    %5548 = vmatprep.subr.mxu0 0.0
    %5549 = vmatpush1.msra.mxu0 0.0
    %5550 = vmatprep.subr.mxu0 0.0
    %5551 = vmatpush1.msra.mxu0 0.0
    %5552 = vmatprep.subr.mxu0 0.0
    %5553 = vmatpush1.msra.mxu0 0.0
    %5554 = vmatprep.subr.mxu0 0.0
    %5555 = vmatpush1.msra.mxu0 0.0
    %5556 = vmatprep.subr.mxu0 0.0
    %5557 = vmatpush1.msra.mxu0 0.0
    %5558 = vmatprep.subr.mxu0 0.0
    %5559 = vmatpush1.msra.mxu0 0.0
    %5560 = vmatprep.subr.mxu0 0.0
    %5561 = vmatpush1.msra.mxu0 0.0
    %5562 = vmatprep.mubr.f32.mxu0 %v5425
    %5563 = vmatmul.mubr.f32.gmra.mrb[0].mxu0 %v5328
    %v5564 = vpop.f32.mrb[0].mxu0
    %v5565 = vadd.f32 %v63, %v5564
    %v5566 = vpop.f32.mrb[0].mxu0
    %v5567 = vadd.f32 %v67, %v5566
    %5568 = vdwg.mxu0
    %v5569 = vxor.u32 %v5494, 2147483648
    %v5570 = vxor.u32 %v5496, 2147483648
    %v5571 = vmul.f32 %v5569, 1.442695
    %v5572 = vpow.pop %v5571
    %v5573 = vmul.f32 %v5570, 1.442695
    %v5574 = vpow.pop %v5573
    %v5575 = vadd.f32 %v5572, 1.0
    %v5576 = vadd.f32 %v5574, 1.0
    %v5577 = vrcp.pop %v5575
    %v5578 = vmul.f32 1.0, %v5577
    %v5579 = vrcp.pop %v5576
    %v5580 = vmul.f32 1.0, %v5579
    %v5581 = vtanh.pop %v5565
    %v5582 = vxor.u32 %v5567, 2147483648
    %v5583 = vmul.f32 %v5582, 1.442695
    %v5584 = vpow.pop %v5583
    %v5585 = vadd.f32 %v5584, 1.0
    %v5586 = vrcp.pop %v5585
    %v5587 = vmul.f32 1.0, %v5586
    %v5588 = vmul.f32 %v5580, %v5320
    %v5589 = vmul.f32 %v5578, %v5581
    %v5590 = vadd.f32 %v5588, %v5589
    %v5591 = vtanh.pop %v5590
    %v5592 = vmul.f32 %v5587, %v5591
    %5593 = vst [vmem:[#allocation3 + $0x38] sm:$0xff] %v5592
    %v5594 = vld [vmem:[#allocation3] sm:$0xff]
    %v5595 = vld [vmem:[#allocation3 + $0x8] sm:$0xff]
    %v5596 = vld [vmem:[#allocation3 + $0x10] sm:$0xff]
    %v5597 = vld [vmem:[#allocation3 + $0x18] sm:$0xff]
    %v5598 = vld [vmem:[#allocation3 + $0x20] sm:$0xff]
    %v5599 = vld [vmem:[#allocation3 + $0x28] sm:$0xff]
    %v5600 = vld [vmem:[#allocation3 + $0x30] sm:$0xff]
    %v5601 = vld [vmem:[#allocation3 + $0x38] sm:$0xff]
    %v5602 = vld [vmem:[#allocation4 + $0x580] sm:$0xff]
    %v5603 = vld [vmem:[#allocation4 + $0x5a0] sm:$0xff]
    %v5604 = vld [vmem:[#allocation4 + $0x5c0] sm:$0xff]
    %v5605 = vld [vmem:[#allocation4 + $0x5e0] sm:$0xff]
    %v5606 = vld [vmem:[#allocation4 + $0x600] sm:$0xff]
    %v5607 = vld [vmem:[#allocation4 + $0x620] sm:$0xff]
    %v5608 = vld [vmem:[#allocation4 + $0x640] sm:$0xff]
    %v5609 = vld [vmem:[#allocation4 + $0x660] sm:$0xff]
    %v5610 = vld [vmem:[#allocation4 + $0x680] sm:$0xff]
    %v5611 = vld [vmem:[#allocation4 + $0x6a0] sm:$0xff]
    %v5612 = vld [vmem:[#allocation4 + $0x6c0] sm:$0xff]
    %v5613 = vld [vmem:[#allocation4 + $0x6e0] sm:$0xff]
    %v5614 = vld [vmem:[#allocation4 + $0x700] sm:$0xff]
    %v5615 = vld [vmem:[#allocation4 + $0x720] sm:$0xff]
    %v5616 = vld [vmem:[#allocation4 + $0x740] sm:$0xff]
    %v5617 = vld [vmem:[#allocation4 + $0x760] sm:$0xff]
    %v5618 = vld [vmem:[#allocation4 + $0x7e0] ss:$0 sm:$0xff]
    %5619 = vmatprep.subr.mxu0 0.0
    %5620 = vmatpush1.msra.mxu0 %v5602
    %5621 = vmatprep.subr.mxu0 0.0
    %5622 = vmatpush1.msra.mxu0 %v5603
    %5623 = vmatprep.subr.mxu0 0.0
    %5624 = vmatpush1.msra.mxu0 %v5604
    %5625 = vmatprep.subr.mxu0 0.0
    %5626 = vmatpush1.msra.mxu0 %v5605
    %5627 = vmatprep.subr.mxu0 0.0
    %5628 = vmatpush1.msra.mxu0 %v5606
    %5629 = vmatprep.subr.mxu0 0.0
    %5630 = vmatpush1.msra.mxu0 %v5607
    %5631 = vmatprep.subr.mxu0 0.0
    %5632 = vmatpush1.msra.mxu0 %v5608
    %5633 = vmatprep.subr.mxu0 0.0
    %5634 = vmatpush1.msra.mxu0 %v5609
    %5635 = vmatprep.subr.mxu0 0.0
    %5636 = vmatpush1.msra.mxu0 %v5610
    %5637 = vmatprep.subr.mxu0 0.0
    %5638 = vmatpush1.msra.mxu0 %v5611
    %5639 = vmatprep.subr.mxu0 0.0
    %5640 = vmatpush1.msra.mxu0 %v5612
    %5641 = vmatprep.subr.mxu0 0.0
    %5642 = vmatpush1.msra.mxu0 %v5613
    %5643 = vmatprep.subr.mxu0 0.0
    %5644 = vmatpush1.msra.mxu0 %v5614
    %5645 = vmatprep.subr.mxu0 0.0
    %5646 = vmatpush1.msra.mxu0 %v5615
    %5647 = vmatprep.subr.mxu0 0.0
    %5648 = vmatpush1.msra.mxu0 %v5616
    %5649 = vmatprep.subr.mxu0 0.0
    %5650 = vmatpush1.msra.mxu0 %v5617
    %5651 = vmatprep.subr.mxu0 0.0
    %5652 = vmatpush1.msra.mxu0 0.0
    %5653 = vmatprep.subr.mxu0 0.0
    %5654 = vmatpush1.msra.mxu0 0.0
    %5655 = vmatprep.subr.mxu0 0.0
    %5656 = vmatpush1.msra.mxu0 0.0
    %5657 = vmatprep.subr.mxu0 0.0
    %5658 = vmatpush1.msra.mxu0 0.0
    %5659 = vmatprep.subr.mxu0 0.0
    %5660 = vmatpush1.msra.mxu0 0.0
    %5661 = vmatprep.subr.mxu0 0.0
    %5662 = vmatpush1.msra.mxu0 0.0
    %5663 = vmatprep.subr.mxu0 0.0
    %5664 = vmatpush1.msra.mxu0 0.0
    %5665 = vmatprep.subr.mxu0 0.0
    %5666 = vmatpush1.msra.mxu0 0.0
    %5667 = vmatprep.subr.mxu0 0.0
    %5668 = vmatpush1.msra.mxu0 0.0
    %5669 = vmatprep.subr.mxu0 0.0
    %5670 = vmatpush1.msra.mxu0 0.0
    %5671 = vmatprep.subr.mxu0 0.0
    %5672 = vmatpush1.msra.mxu0 0.0
    %5673 = vmatprep.subr.mxu0 0.0
    %5674 = vmatpush1.msra.mxu0 0.0
    %5675 = vmatprep.subr.mxu0 0.0
    %5676 = vmatpush1.msra.mxu0 0.0
    %5677 = vmatprep.subr.mxu0 0.0
    %5678 = vmatpush1.msra.mxu0 0.0
    %5679 = vmatprep.subr.mxu0 0.0
    %5680 = vmatpush1.msra.mxu0 0.0
    %5681 = vmatprep.subr.mxu0 0.0
    %5682 = vmatpush1.msra.mxu0 0.0
    %5683 = vmatprep.mubr.f32.mxu0 0.0
    %5684 = vmatmul.mubr.f32.gmra.mrb[0].mxu0 %v5594
    %v5685 = vpop.f32.mrb[0].mxu0
    %v5686 = vadd.f32 %v5618, %v5685
    %v5687 = vpop.f32.mrb[0].mxu0
    %5688 = vmatprep.mubr.f32.mxu0 0.0
    %5689 = vmatmul.mubr.f32.gmra.mrb[0].mxu0 %v5595
    %v5690 = vpop.f32.mrb[0].mxu0
    %v5691 = vadd.f32 %v5618, %v5690
    %v5692 = vpop.f32.mrb[0].mxu0
    %5693 = vmatprep.mubr.f32.mxu0 0.0
    %5694 = vmatmul.mubr.f32.gmra.mrb[0].mxu0 %v5596
    %v5695 = vpop.f32.mrb[0].mxu0
    %v5696 = vadd.f32 %v5618, %v5695
    %v5697 = vpop.f32.mrb[0].mxu0
    %5698 = vmatprep.mubr.f32.mxu0 0.0
    %5699 = vmatmul.mubr.f32.gmra.mrb[0].mxu0 %v5597
    %v5700 = vpop.f32.mrb[0].mxu0
    %v5701 = vadd.f32 %v5618, %v5700
    %v5702 = vpop.f32.mrb[0].mxu0
    %5703 = vmatprep.mubr.f32.mxu0 0.0
    %5704 = vmatmul.mubr.f32.gmra.mrb[0].mxu0 %v5598
    %v5705 = vpop.f32.mrb[0].mxu0
    %v5706 = vadd.f32 %v5618, %v5705
    %v5707 = vpop.f32.mrb[0].mxu0
    %5708 = vmatprep.mubr.f32.mxu0 0.0
    %5709 = vmatmul.mubr.f32.gmra.mrb[0].mxu0 %v5599
    %v5710 = vpop.f32.mrb[0].mxu0
    %v5711 = vadd.f32 %v5618, %v5710
    %v5712 = vpop.f32.mrb[0].mxu0
    %5713 = vmatprep.mubr.f32.mxu0 0.0
    %5714 = vmatmul.mubr.f32.gmra.mrb[0].mxu0 %v5600
    %v5715 = vpop.f32.mrb[0].mxu0
    %v5716 = vadd.f32 %v5618, %v5715
    %v5717 = vpop.f32.mrb[0].mxu0
    %5718 = vmatprep.mubr.f32.mxu0 0.0
    %5719 = vmatmul.mubr.f32.gmra.mrb[0].mxu0 %v5601
    %v5720 = vpop.f32.mrb[0].mxu0
    %v5721 = vadd.f32 %v5618, %v5720
    %v5722 = vpop.f32.mrb[0].mxu0
    %5723 = vdwg.mxu0
    %5724 = vst [vmem:[#allocation7] sm:$0xff] %v5686
    %5725 = vst [vmem:[#allocation7 + $0x8] sm:$0xff] %v5691
    %5726 = vst [vmem:[#allocation7 + $0x10] sm:$0xff] %v5696
    %5727 = vst [vmem:[#allocation7 + $0x18] sm:$0xff] %v5701
    %5728 = vst [vmem:[#allocation7 + $0x20] sm:$0xff] %v5706
    %5729 = vst [vmem:[#allocation7 + $0x28] sm:$0xff] %v5711
    %5730 = vst [vmem:[#allocation7 + $0x30] sm:$0xff] %v5716
    %5731 = vst [vmem:[#allocation7 + $0x38] sm:$0xff] %v5721
    // Predicated region
    $region14: #{tpu_custom_call.1} parent=1 // pred_check
      _
    $region15: #{tpu_custom_call.1} parent=1 // pred_check_branch
      %5733 = sbr.rel (0) target = $region17
    $region16: #{tpu_custom_call.1} parent=1 // pred_region
      %s5735 = ssub.s32 1024, 1024
      %5736 = vsyncadd [#allocation6], %s5735
      %s5737 = sshll.u32 [#allocation7], 4
      %s5738 = int_to_ptr.vmem [resolvable:$true] %s5737
      %5743 = dma.vmem_to_hbm [thread:$0]  %s5738, 1024, %s2, [#allocation6], 128, 128, 8
    $region17: #{tpu_custom_call.1} parent=1 // pred_fallthru
      _
    // Predicated region
    $region18: #{tpu_custom_call.1} parent=1 // pred_check
      _
    $region19: #{tpu_custom_call.1} parent=1 // pred_check_branch
      %5745 = sbr.rel (0) target = $region21
    $region20: #{tpu_custom_call.1} parent=1 // pred_region
      %5746 = dma.done [#allocation6], 1024
    $region21: #{tpu_custom_call.1} parent=1 // pred_fallthru
      _
    %5747 = vsyncpa [#allocation5], 1
    %5748 = vsyncpa [#allocation6], 1

</llo_original>
